<compile_context>
chip_gen: v7x
topology: tpu7x:2x2x1
jax: 0.10.0
libtpu: 0.0.40
codegen_flags: <defaults>
</compile_context>

<pallas_src>
import functools

import jax
import jax.numpy as jnp
from jax.experimental import pallas as pl
from jax.experimental.pallas import tpu as pltpu


def _round_up(x, m):
    return ((x + m - 1) // m) * m


# ------------------------------ Pallas kernel ------------------------------ #

def _basic_block_kernel(*refs, ho, wo, cmid, wacc, s0, offs1, offs2, sc_off,
                        has_proj):
    """Fused BasicBlock forward for one batch element.

    refs = (x, colmask, w1, s1, b1, w2, s2, b2[, ws, ss, bs], out, mid)
      x       : (1, Rx, Cin)       bf16  flat padded input (phase planes if s=2)
      colmask : (ho*wacc, 1)       bf16  1.0 for valid columns, 0.0 for overshoot
      w1      : (9, Cin, Cmid)     bf16  conv1 taps (plain weights)
      s1, b1  : (1, Cmid)          f32   BN1 scale / bias (f32 epilogue)
      w2      : (9, Cmid, Cmid)    bf16  conv2 taps
      s2, b2  : (1, Cmid)          f32   BN2 scale / bias
      ws      : (Cin, Cmid)        bf16  1x1 projection weight
      ss, bs  : (1, Cmid)          f32   BNs scale / bias
      out     : (1, ho*wacc, Cmid) bf16  flat output (overshoot cols sliced off host-side)
      mid     : (Rm, Cmid)         bf16  conv1 output + zero halo (VMEM scratch)
    """
    if has_proj:
        (x_ref, m_ref, w1_ref, s1_ref, b1_ref, w2_ref, s2_ref, b2_ref,
         ws_ref, ss_ref, bs_ref, o_ref, mid_ref) = refs
    else:
        (x_ref, m_ref, w1_ref, s1_ref, b1_ref, w2_ref, s2_ref, b2_ref,
         o_ref, mid_ref) = refs
        ws_ref = ss_ref = bs_ref = None

    rows = ho * wacc
    mid_rows = mid_ref.shape[0]

    # ---- conv1 (3x3): 9 contiguous-slab MXU matmuls, f32 BN1 epilogue + ReLU
    acc1 = jnp.dot(x_ref[0, offs1[0]:offs1[0] + rows, :], w1_ref[0],
                   preferred_element_type=jnp.float32)
    for t in range(1, 9):
        off = offs1[t]
        acc1 = acc1 + jnp.dot(x_ref[0, off:off + rows, :], w1_ref[t],
                              preferred_element_type=jnp.float32)
    y1 = jnp.maximum(acc1 * s1_ref[...] + b1_ref[...], 0.0)
    # Overshoot columns become conv2's left/right halo inside mid -> force to 0.
    y1 = y1 * m_ref[...]

    # ---- mid scratch: zero only the head/tail halo, aligned interior store ----
    mid_ref[0:s0, :] = jnp.zeros((s0, cmid), mid_ref.dtype)
    mid_ref[s0 + rows:mid_rows, :] = jnp.zeros((mid_rows - s0 - rows, cmid),
                                               mid_ref.dtype)
    mid_ref[s0:s0 + rows, :] = y1.astype(mid_ref.dtype)       # s0 % 8 == 0

    # ---- conv2 (3x3, stride 1): 9 contiguous-slab matmuls + f32 BN2 epilogue
    acc2 = jnp.dot(mid_ref[offs2[0]:offs2[0] + rows, :], w2_ref[0],
                   preferred_element_type=jnp.float32)
    for t in range(1, 9):
        off = offs2[t]
        acc2 = acc2 + jnp.dot(mid_ref[off:off + rows, :], w2_ref[t],
                              preferred_element_type=jnp.float32)
    y2 = acc2 * s2_ref[...] + b2_ref[...]

    # ---- shortcut ----
    sc_in = x_ref[0, sc_off:sc_off + rows, :]
    if has_proj:
        sc = (jnp.dot(sc_in, ws_ref[...], preferred_element_type=jnp.float32)
              * ss_ref[...] + bs_ref[...])
    else:
        # NOTE: identity shortcut adds the bf16-rounded input (x ships as bf16);
        # the f32 reference adds full-precision x (documented deviation).
        sc = sc_in.astype(jnp.float32)

    out = jnp.maximum(y2 + sc, 0.0)
    o_ref[...] = out.reshape(1, rows, cmid).astype(o_ref.dtype)


# ------------------------------- host wrapper ------------------------------- #

def _prep_conv(w_oihw, bn, eps=1e-5):
    """torch (O,I,kh,kw) -> ((kh*kw, I, O) bf16 weight, (1,O) f32 scale, (1,O) f32 bias)."""
    gamma, beta, mean, var = bn
    scale = gamma / jnp.sqrt(var + eps)
    bias = beta - mean * scale
    o, i, kh, kw = w_oihw.shape
    wm = jnp.transpose(w_oihw, (2, 3, 1, 0)).reshape(kh * kw, i, o)
    return (wm.astype(jnp.bfloat16),
            scale.reshape(1, o).astype(jnp.float32),
            bias.reshape(1, o).astype(jnp.float32))


def basic_block_forward(x_nchw, params, stride):
    assert stride in (1, 2), "ResNet BasicBlock only uses stride 1 or 2"
    x = jnp.transpose(x_nchw, (0, 2, 3, 1)).astype(jnp.float32)   # NCHW -> NHWC
    n, h, w, cin = x.shape
    cmid = params["w1"].shape[0]
    has_proj = (stride != 1) or (cin != cmid)

    if stride == 1:
        ho, wo = h, w
    else:
        ho, wo = (h - 1) // 2 + 1, (w - 1) // 2 + 1
    wacc = wo + 2                      # accumulator / mid row stride
    rows = ho * wacc

    # ---- flat padded input (contiguous-slab taps need only row offsets) ----
    if stride == 1:
        # padded (ho+3, wacc); original x at rows 1..h, cols 1..w
        xpad = jnp.pad(x, ((0, 0), (1, ho + 3 - h - 1), (1, wacc - w - 1), (0, 0)))
        xflat = xpad.reshape(n, (ho + 3) * wacc, cin)
        offs1 = tuple(dh * wacc + dw for dh in range(3) for dw in range(3))
        sc_off = wacc + 1
    else:
        hpl = ho + 2                   # per-phase-plane height (incl. overshoot)
        xpad = jnp.pad(x, ((0, 0), (1, 2 * hpl - h - 1), (1, 2 * wacc - w - 1), (0, 0)))
        planes = [xpad[:, ph::2, pw::2, :].reshape(n, hpl * wacc, cin)
                  for ph in range(2) for pw in range(2)]
        xflat = jnp.concatenate(planes, axis=1)
        offs1 = tuple(((dh % 2) * 2 + (dw % 2)) * hpl * wacc
                      + (dh // 2) * wacc + (dw // 2)
                      for dh in range(3) for dw in range(3))
        sc_off = 3 * hpl * wacc        # plane (1,1) holds x[::2, ::2]
    xflat = xflat.astype(jnp.bfloat16)

    # mid layout: conv1 output starts at sublane-aligned S0; conv2 tap offsets
    s0 = _round_up(wacc + 1, 8)
    offs2 = tuple(s0 + (dh - 1) * wacc + (dw - 1)
                  for dh in range(3) for dw in range(3))
    mid_rows = _round_up(s0 + (ho + 2) * wacc, 8)

    # column-validity mask (1.0 valid / 0.0 overshoot), built host-side
    colmask = ((jnp.arange(rows, dtype=jnp.int32) % wacc) < wo)
    colmask = colmask.astype(jnp.bfloat16).reshape(rows, 1)

    w1m, s1, b1 = _prep_conv(params["w1"], params["bn1"])
    w2m, s2, b2 = _prep_conv(params["w2"], params["bn2"])

    inputs = [xflat, colmask, w1m, s1, b1, w2m, s2, b2]
    in_specs = [
        pl.BlockSpec((1, xflat.shape[1], cin), lambda i: (i, 0, 0)),
        pl.BlockSpec((rows, 1), lambda i: (0, 0)),
        pl.BlockSpec(w1m.shape, lambda i: (0, 0, 0)),
        pl.BlockSpec(s1.shape, lambda i: (0, 0)),
        pl.BlockSpec(b1.shape, lambda i: (0, 0)),
        pl.BlockSpec(w2m.shape, lambda i: (0, 0, 0)),
        pl.BlockSpec(s2.shape, lambda i: (0, 0)),
        pl.BlockSpec(b2.shape, lambda i: (0, 0)),
    ]
    if has_proj:
        wsm, ss, bs = _prep_conv(params["ws"], params["bns"])
        wsm = wsm[0]                                           # (Cin, Cmid)
        inputs += [wsm, ss, bs]
        in_specs += [pl.BlockSpec(wsm.shape, lambda i: (0, 0)),
                     pl.BlockSpec(ss.shape, lambda i: (0, 0)),
                     pl.BlockSpec(bs.shape, lambda i: (0, 0))]

    # VMEM cap derived from actual footprint (default double-buffering assumed).
    w_bytes = (w1m.size + w2m.size + (cin * cmid if has_proj else 0)) * 2
    vmem_need = (2 * xflat.shape[1] * cin * 2          # input block x2 buffers
                 + 2 * rows * cmid * 2                 # output block x2 buffers
                 + 2 * rows * 2                        # colmask x2 buffers
                 + 2 * w_bytes                         # weights x2 buffers
                 + mid_rows * cmid * 2                 # mid scratch
                 + 4 * rows * cmid * 4                 # f32 accumulators / temps
                 + 2 * rows * max(cin, cmid) * 2)      # live tap slabs
    vmem_limit = int(min(max(2 * vmem_need + (4 << 20), 16 << 20), 48 << 20))

    kernel = functools.partial(
        _basic_block_kernel, ho=ho, wo=wo, cmid=cmid, wacc=wacc, s0=s0,
        offs1=offs1, offs2=offs2, sc_off=sc_off, has_proj=has_proj)

    out = pl.pallas_call(
        kernel,
        out_shape=jax.ShapeDtypeStruct((n, rows, cmid), jnp.bfloat16),
        grid=(n,),
        in_specs=in_specs,
        out_specs=pl.BlockSpec((1, rows, cmid), lambda i: (i, 0, 0)),
        scratch_shapes=[pltpu.VMEM((mid_rows, cmid), jnp.bfloat16)],
        compiler_params=pltpu.CompilerParams(
            dimension_semantics=("parallel",),
            vmem_limit_bytes=vmem_limit),
    )(*inputs)

    # drop overshoot columns, back to NCHW f32
    out = out.reshape(n, ho, wacc, cmid)[:, :, :wo, :].astype(jnp.float32)
    return jnp.transpose(out, (0, 3, 1, 2))


# ----------------------- deterministic parameter init ----------------------- #

def init_params(key, in_planes, planes, stride):
    ks = jax.random.split(key, 16)

    def bn(k0, k1, k2, k3):
        return (jax.random.uniform(ks[k0], (planes,), jnp.float32, 0.5, 1.5),   # gamma
                jax.random.normal(ks[k1], (planes,), jnp.float32) * 0.1,        # beta
                jax.random.normal(ks[k2], (planes,), jnp.float32) * 0.1,        # running_mean
                jax.random.uniform(ks[k3], (planes,), jnp.float32, 0.5, 1.5))   # running_var

    params = {
        "w1": jax.random.normal(ks[0], (planes, in_planes, 3, 3), jnp.float32) * 0.1,
        "bn1": bn(1, 2, 3, 4),
        "w2": jax.random.normal(ks[5], (planes, planes, 3, 3), jnp.float32) * 0.1,
        "bn2": bn(6, 7, 8, 9),
    }
    if stride != 1 or in_planes != planes:
        params["ws"] = jax.random.normal(ks[10], (planes, in_planes, 1, 1), jnp.float32) * 0.1
        params["bns"] = bn(11, 12, 13, 14)
    return params


# --------------------------- pure-JAX reference ----------------------------- #

def _ref_bn(x, gamma, beta, mean, var, eps=1e-5):
    inv = gamma / jnp.sqrt(var + eps)
    return (x - mean[None, :, None, None]) * inv[None, :, None, None] + beta[None, :, None, None]


def ref_forward(x, params, stride):
    dn = ("NCHW", "OIHW", "NCHW")
    out = jax.nn.relu(_ref_bn(
        jax.lax.conv_general_dilated(x, params["w1"], (stride, stride),
                                     ((1, 1), (1, 1)), dimension_numbers=dn),
        *params["bn1"]))
    out = _ref_bn(
        jax.lax.conv_general_dilated(out, params["w2"], (1, 1),
                                     ((1, 1), (1, 1)), dimension_numbers=dn),
        *params["bn2"])
    if stride != 1 or x.shape[1] != params["w1"].shape[0]:
        sc = jax.lax.conv_general_dilated(x, params["ws"], (stride, stride),
                                          ((0, 0), (0, 0)), dimension_numbers=dn)
        sc = _ref_bn(sc, *params["bns"])
    else:
        sc = x
    return jax.nn.relu(out + sc)


# ----------------------------------- main ------------------------------------ #

if __name__ == "__main__":
    configs = [
        ("projection / stride 1", 4, 8, 1),
        ("identity   / stride 1", 8, 8, 1),
        ("projection / stride 2", 4, 8, 2),
    ]
    key = jax.random.PRNGKey(0)
    failures = []
    for name, in_planes, planes, stride in configs:
        key, kx, kp = jax.random.split(key, 3)
        x = jax.random.normal(kx, (2, in_planes, 16, 16), jnp.float32)
        params = init_params(kp, in_planes, planes, stride)

        fwd = jax.jit(functools.partial(basic_block_forward, stride=stride))
        out = jax.block_until_ready(fwd(x, params))

        ref = ref_forward(x, params, stride)
        assert out.shape == ref.shape
        err = float(jnp.max(jnp.abs(out - ref)))
        tol = 5e-2 * max(1.0, float(jnp.max(jnp.abs(ref))))   # bf16 MXU/IO tolerance
        if err > tol:
            failures.append(f"[{name}] max abs err {err:.4e} > tol {tol:.4e}")

    if failures:
        raise SystemExit("mismatch vs reference:\n" + "\n".join(failures))
    print("KERNEL_OK")
</pallas_src>

<mosaic_0001>
module attributes {stable_mosaic.version = 11 : i64} {
  func.func @_basic_block_kernel(%arg0: i32, %arg1: memref<1x342x4xbf16, #tpu.memory_space<vmem>>, %arg2: memref<288x1xbf16, #tpu.memory_space<vmem>>, %arg3: memref<9x4x8xbf16, #tpu.memory_space<vmem>>, %arg4: memref<1x8xf32, #tpu.memory_space<vmem>>, %arg5: memref<1x8xf32, #tpu.memory_space<vmem>>, %arg6: memref<9x8x8xbf16, #tpu.memory_space<vmem>>, %arg7: memref<1x8xf32, #tpu.memory_space<vmem>>, %arg8: memref<1x8xf32, #tpu.memory_space<vmem>>, %arg9: memref<4x8xbf16, #tpu.memory_space<vmem>>, %arg10: memref<1x8xf32, #tpu.memory_space<vmem>>, %arg11: memref<1x8xf32, #tpu.memory_space<vmem>>, %arg12: memref<1x288x8xbf16, #tpu.memory_space<vmem>>, %arg13: memref<352x8xbf16, #tpu.memory_space<vmem>>) attributes {dimension_semantics = [#tpu.dimension_semantics<parallel>], iteration_bounds = array<i64: 2>, scalar_prefetch = 0 : i64, scratch_operands = 1 : i64, tpu.core_type = #tpu.core_type<tc>, window_params = [{transform_indices = @transform_0, window_bounds = array<i64: 1, 342, 4>}, {pipeline_mode = #tpu.pipeline_mode<synchronous>, transform_indices = @transform_1, window_bounds = array<i64: 288, 1>}, {pipeline_mode = #tpu.pipeline_mode<synchronous>, transform_indices = @transform_2, window_bounds = array<i64: 9, 4, 8>}, {pipeline_mode = #tpu.pipeline_mode<synchronous>, transform_indices = @transform_3, window_bounds = array<i64: 1, 8>}, {pipeline_mode = #tpu.pipeline_mode<synchronous>, transform_indices = @transform_4, window_bounds = array<i64: 1, 8>}, {pipeline_mode = #tpu.pipeline_mode<synchronous>, transform_indices = @transform_5, window_bounds = array<i64: 9, 8, 8>}, {pipeline_mode = #tpu.pipeline_mode<synchronous>, transform_indices = @transform_6, window_bounds = array<i64: 1, 8>}, {pipeline_mode = #tpu.pipeline_mode<synchronous>, transform_indices = @transform_7, window_bounds = array<i64: 1, 8>}, {pipeline_mode = #tpu.pipeline_mode<synchronous>, transform_indices = @transform_8, window_bounds = array<i64: 4, 8>}, {pipeline_mode = #tpu.pipeline_mode<synchronous>, transform_indices = @transform_9, window_bounds = array<i64: 1, 8>}, {pipeline_mode = #tpu.pipeline_mode<synchronous>, transform_indices = @transform_10, window_bounds = array<i64: 1, 8>}, {transform_indices = @transform_11, window_bounds = array<i64: 1, 288, 8>}]} {
    %c0 = arith.constant 0 : index
    %c0_0 = arith.constant 0 : index
    %c0_1 = arith.constant 0 : index
    %0 = vector.load %arg1[%c0, %c0_0, %c0_1] : memref<1x342x4xbf16, #tpu.memory_space<vmem>>, vector<1x288x4xbf16>
    %1 = vector.shape_cast %0 : vector<1x288x4xbf16> to vector<288x4xbf16>
    %c0_2 = arith.constant 0 : index
    %c0_3 = arith.constant 0 : index
    %c0_4 = arith.constant 0 : index
    %2 = vector.load %arg3[%c0_2, %c0_3, %c0_4] : memref<9x4x8xbf16, #tpu.memory_space<vmem>>, vector<1x4x8xbf16>
    %3 = vector.shape_cast %2 : vector<1x4x8xbf16> to vector<4x8xbf16>
    %cst = arith.constant dense<0.000000e+00> : vector<288x8xf32>
    %4 = tpu.matmul %1, %3, %cst {dimension_numbers = #tpu.dot_dimension_numbers<[1], [0], [0], [1], [0, 0, 1, 1], [], []>} : vector<288x4xbf16>, vector<4x8xbf16>, vector<288x8xf32> -> vector<288x8xf32>
    %c0_5 = arith.constant 0 : index
    %c1 = arith.constant 1 : index
    %c0_6 = arith.constant 0 : index
    %5 = vector.load %arg1[%c0_5, %c1, %c0_6] : memref<1x342x4xbf16, #tpu.memory_space<vmem>>, vector<1x288x4xbf16>
    %6 = vector.shape_cast %5 : vector<1x288x4xbf16> to vector<288x4xbf16>
    %c1_7 = arith.constant 1 : index
    %c0_8 = arith.constant 0 : index
    %c0_9 = arith.constant 0 : index
    %7 = vector.load %arg3[%c1_7, %c0_8, %c0_9] : memref<9x4x8xbf16, #tpu.memory_space<vmem>>, vector<1x4x8xbf16>
    %8 = vector.shape_cast %7 : vector<1x4x8xbf16> to vector<4x8xbf16>
    %cst_10 = arith.constant dense<0.000000e+00> : vector<288x8xf32>
    %9 = tpu.matmul %6, %8, %cst_10 {dimension_numbers = #tpu.dot_dimension_numbers<[1], [0], [0], [1], [0, 0, 1, 1], [], []>} : vector<288x4xbf16>, vector<4x8xbf16>, vector<288x8xf32> -> vector<288x8xf32>
    %10 = arith.addf %4, %9 : vector<288x8xf32>
    %c0_11 = arith.constant 0 : index
    %c2 = arith.constant 2 : index
    %c0_12 = arith.constant 0 : index
    %11 = vector.load %arg1[%c0_11, %c2, %c0_12] : memref<1x342x4xbf16, #tpu.memory_space<vmem>>, vector<1x288x4xbf16>
    %12 = vector.shape_cast %11 : vector<1x288x4xbf16> to vector<288x4xbf16>
    %c2_13 = arith.constant 2 : index
    %c0_14 = arith.constant 0 : index
    %c0_15 = arith.constant 0 : index
    %13 = vector.load %arg3[%c2_13, %c0_14, %c0_15] : memref<9x4x8xbf16, #tpu.memory_space<vmem>>, vector<1x4x8xbf16>
    %14 = vector.shape_cast %13 : vector<1x4x8xbf16> to vector<4x8xbf16>
    %cst_16 = arith.constant dense<0.000000e+00> : vector<288x8xf32>
    %15 = tpu.matmul %12, %14, %cst_16 {dimension_numbers = #tpu.dot_dimension_numbers<[1], [0], [0], [1], [0, 0, 1, 1], [], []>} : vector<288x4xbf16>, vector<4x8xbf16>, vector<288x8xf32> -> vector<288x8xf32>
    %16 = arith.addf %10, %15 : vector<288x8xf32>
    %c0_17 = arith.constant 0 : index
    %c18 = arith.constant 18 : index
    %c0_18 = arith.constant 0 : index
    %17 = vector.load %arg1[%c0_17, %c18, %c0_18] : memref<1x342x4xbf16, #tpu.memory_space<vmem>>, vector<1x288x4xbf16>
    %18 = vector.shape_cast %17 : vector<1x288x4xbf16> to vector<288x4xbf16>
    %c3 = arith.constant 3 : index
    %c0_19 = arith.constant 0 : index
    %c0_20 = arith.constant 0 : index
    %19 = vector.load %arg3[%c3, %c0_19, %c0_20] : memref<9x4x8xbf16, #tpu.memory_space<vmem>>, vector<1x4x8xbf16>
    %20 = vector.shape_cast %19 : vector<1x4x8xbf16> to vector<4x8xbf16>
    %cst_21 = arith.constant dense<0.000000e+00> : vector<288x8xf32>
    %21 = tpu.matmul %18, %20, %cst_21 {dimension_numbers = #tpu.dot_dimension_numbers<[1], [0], [0], [1], [0, 0, 1, 1], [], []>} : vector<288x4xbf16>, vector<4x8xbf16>, vector<288x8xf32> -> vector<288x8xf32>
    %22 = arith.addf %16, %21 : vector<288x8xf32>
    %c0_22 = arith.constant 0 : index
    %c19 = arith.constant 19 : index
    %c0_23 = arith.constant 0 : index
    %23 = vector.load %arg1[%c0_22, %c19, %c0_23] : memref<1x342x4xbf16, #tpu.memory_space<vmem>>, vector<1x288x4xbf16>
    %24 = vector.shape_cast %23 : vector<1x288x4xbf16> to vector<288x4xbf16>
    %c4 = arith.constant 4 : index
    %c0_24 = arith.constant 0 : index
    %c0_25 = arith.constant 0 : index
    %25 = vector.load %arg3[%c4, %c0_24, %c0_25] : memref<9x4x8xbf16, #tpu.memory_space<vmem>>, vector<1x4x8xbf16>
    %26 = vector.shape_cast %25 : vector<1x4x8xbf16> to vector<4x8xbf16>
    %cst_26 = arith.constant dense<0.000000e+00> : vector<288x8xf32>
    %27 = tpu.matmul %24, %26, %cst_26 {dimension_numbers = #tpu.dot_dimension_numbers<[1], [0], [0], [1], [0, 0, 1, 1], [], []>} : vector<288x4xbf16>, vector<4x8xbf16>, vector<288x8xf32> -> vector<288x8xf32>
    %28 = arith.addf %22, %27 : vector<288x8xf32>
    %c0_27 = arith.constant 0 : index
    %c20 = arith.constant 20 : index
    %c0_28 = arith.constant 0 : index
    %29 = vector.load %arg1[%c0_27, %c20, %c0_28] : memref<1x342x4xbf16, #tpu.memory_space<vmem>>, vector<1x288x4xbf16>
    %30 = vector.shape_cast %29 : vector<1x288x4xbf16> to vector<288x4xbf16>
    %c5 = arith.constant 5 : index
    %c0_29 = arith.constant 0 : index
    %c0_30 = arith.constant 0 : index
    %31 = vector.load %arg3[%c5, %c0_29, %c0_30] : memref<9x4x8xbf16, #tpu.memory_space<vmem>>, vector<1x4x8xbf16>
    %32 = vector.shape_cast %31 : vector<1x4x8xbf16> to vector<4x8xbf16>
    %cst_31 = arith.constant dense<0.000000e+00> : vector<288x8xf32>
    %33 = tpu.matmul %30, %32, %cst_31 {dimension_numbers = #tpu.dot_dimension_numbers<[1], [0], [0], [1], [0, 0, 1, 1], [], []>} : vector<288x4xbf16>, vector<4x8xbf16>, vector<288x8xf32> -> vector<288x8xf32>
    %34 = arith.addf %28, %33 : vector<288x8xf32>
    %c0_32 = arith.constant 0 : index
    %c36 = arith.constant 36 : index
    %c0_33 = arith.constant 0 : index
    %35 = vector.load %arg1[%c0_32, %c36, %c0_33] : memref<1x342x4xbf16, #tpu.memory_space<vmem>>, vector<1x288x4xbf16>
    %36 = vector.shape_cast %35 : vector<1x288x4xbf16> to vector<288x4xbf16>
    %c6 = arith.constant 6 : index
    %c0_34 = arith.constant 0 : index
    %c0_35 = arith.constant 0 : index
    %37 = vector.load %arg3[%c6, %c0_34, %c0_35] : memref<9x4x8xbf16, #tpu.memory_space<vmem>>, vector<1x4x8xbf16>
    %38 = vector.shape_cast %37 : vector<1x4x8xbf16> to vector<4x8xbf16>
    %cst_36 = arith.constant dense<0.000000e+00> : vector<288x8xf32>
    %39 = tpu.matmul %36, %38, %cst_36 {dimension_numbers = #tpu.dot_dimension_numbers<[1], [0], [0], [1], [0, 0, 1, 1], [], []>} : vector<288x4xbf16>, vector<4x8xbf16>, vector<288x8xf32> -> vector<288x8xf32>
    %40 = arith.addf %34, %39 : vector<288x8xf32>
    %c0_37 = arith.constant 0 : index
    %c37 = arith.constant 37 : index
    %c0_38 = arith.constant 0 : index
    %41 = vector.load %arg1[%c0_37, %c37, %c0_38] : memref<1x342x4xbf16, #tpu.memory_space<vmem>>, vector<1x288x4xbf16>
    %42 = vector.shape_cast %41 : vector<1x288x4xbf16> to vector<288x4xbf16>
    %c7 = arith.constant 7 : index
    %c0_39 = arith.constant 0 : index
    %c0_40 = arith.constant 0 : index
    %43 = vector.load %arg3[%c7, %c0_39, %c0_40] : memref<9x4x8xbf16, #tpu.memory_space<vmem>>, vector<1x4x8xbf16>
    %44 = vector.shape_cast %43 : vector<1x4x8xbf16> to vector<4x8xbf16>
    %cst_41 = arith.constant dense<0.000000e+00> : vector<288x8xf32>
    %45 = tpu.matmul %42, %44, %cst_41 {dimension_numbers = #tpu.dot_dimension_numbers<[1], [0], [0], [1], [0, 0, 1, 1], [], []>} : vector<288x4xbf16>, vector<4x8xbf16>, vector<288x8xf32> -> vector<288x8xf32>
    %46 = arith.addf %40, %45 : vector<288x8xf32>
    %c0_42 = arith.constant 0 : index
    %c38 = arith.constant 38 : index
    %c0_43 = arith.constant 0 : index
    %47 = vector.load %arg1[%c0_42, %c38, %c0_43] : memref<1x342x4xbf16, #tpu.memory_space<vmem>>, vector<1x288x4xbf16>
    %48 = vector.shape_cast %47 : vector<1x288x4xbf16> to vector<288x4xbf16>
    %c8 = arith.constant 8 : index
    %c0_44 = arith.constant 0 : index
    %c0_45 = arith.constant 0 : index
    %49 = vector.load %arg3[%c8, %c0_44, %c0_45] : memref<9x4x8xbf16, #tpu.memory_space<vmem>>, vector<1x4x8xbf16>
    %50 = vector.shape_cast %49 : vector<1x4x8xbf16> to vector<4x8xbf16>
    %cst_46 = arith.constant dense<0.000000e+00> : vector<288x8xf32>
    %51 = tpu.matmul %48, %50, %cst_46 {dimension_numbers = #tpu.dot_dimension_numbers<[1], [0], [0], [1], [0, 0, 1, 1], [], []>} : vector<288x4xbf16>, vector<4x8xbf16>, vector<288x8xf32> -> vector<288x8xf32>
    %52 = arith.addf %46, %51 : vector<288x8xf32>
    %c0_47 = arith.constant 0 : index
    %c0_48 = arith.constant 0 : index
    %53 = vector.load %arg4[%c0_47, %c0_48] : memref<1x8xf32, #tpu.memory_space<vmem>>, vector<1x8xf32>
    %54 = vector.broadcast %53 : vector<1x8xf32> to vector<288x8xf32>
    %55 = arith.mulf %52, %54 : vector<288x8xf32>
    %c0_49 = arith.constant 0 : index
    %c0_50 = arith.constant 0 : index
    %56 = vector.load %arg5[%c0_49, %c0_50] : memref<1x8xf32, #tpu.memory_space<vmem>>, vector<1x8xf32>
    %57 = vector.broadcast %56 : vector<1x8xf32> to vector<288x8xf32>
    %58 = arith.addf %55, %57 : vector<288x8xf32>
    %cst_51 = arith.constant 0.000000e+00 : f32
    %59 = vector.broadcast %cst_51 : f32 to vector<288x8xf32>
    %60 = arith.maximumf %58, %59 : vector<288x8xf32>
    %c0_52 = arith.constant 0 : index
    %c0_53 = arith.constant 0 : index
    %61 = vector.load %arg2[%c0_52, %c0_53] : memref<288x1xbf16, #tpu.memory_space<vmem>>, vector<288x1xbf16>
    %62 = arith.extf %61 : vector<288x1xbf16> to vector<288x1xf32>
    %63 = vector.broadcast %62 : vector<288x1xf32> to vector<288x8xf32>
    %64 = arith.mulf %60, %63 : vector<288x8xf32>
    %cst_54 = arith.constant 0.000000e+00 : bf16
    %65 = vector.broadcast %cst_54 : bf16 to vector<24x8xbf16>
    %c0_55 = arith.constant 0 : index
    %c0_56 = arith.constant 0 : index
    %66 = vector.load %arg13[%c0_55, %c0_56] : memref<352x8xbf16, #tpu.memory_space<vmem>>, vector<24x8xbf16>
    tpu.vector_store %arg13[%c0_55, %c0_56], %65 {strides = array<i32>} : memref<352x8xbf16, #tpu.memory_space<vmem>>, vector<24x8xbf16>,
    %cst_57 = arith.constant 0.000000e+00 : bf16
    %67 = vector.broadcast %cst_57 : bf16 to vector<40x8xbf16>
    %c312 = arith.constant 312 : index
    %c0_58 = arith.constant 0 : index
    %68 = vector.load %arg13[%c312, %c0_58] : memref<352x8xbf16, #tpu.memory_space<vmem>>, vector<40x8xbf16>
    tpu.vector_store %arg13[%c312, %c0_58], %67 {strides = array<i32>} : memref<352x8xbf16, #tpu.memory_space<vmem>>, vector<40x8xbf16>,
    %69 = arith.truncf %64 : vector<288x8xf32> to vector<288x8xbf16>
    %c24 = arith.constant 24 : index
    %c0_59 = arith.constant 0 : index
    %70 = vector.load %arg13[%c24, %c0_59] : memref<352x8xbf16, #tpu.memory_space<vmem>>, vector<288x8xbf16>
    tpu.vector_store %arg13[%c24, %c0_59], %69 {strides = array<i32>} : memref<352x8xbf16, #tpu.memory_space<vmem>>, vector<288x8xbf16>,
    %c5_60 = arith.constant 5 : index
    %c0_61 = arith.constant 0 : index
    %71 = vector.load %arg13[%c5_60, %c0_61] : memref<352x8xbf16, #tpu.memory_space<vmem>>, vector<288x8xbf16>
    %c0_62 = arith.constant 0 : index
    %c0_63 = arith.constant 0 : index
    %c0_64 = arith.constant 0 : index
    %72 = vector.load %arg6[%c0_62, %c0_63, %c0_64] : memref<9x8x8xbf16, #tpu.memory_space<vmem>>, vector<1x8x8xbf16>
    %73 = vector.shape_cast %72 : vector<1x8x8xbf16> to vector<8x8xbf16>
    %cst_65 = arith.constant dense<0.000000e+00> : vector<288x8xf32>
    %74 = tpu.matmul %71, %73, %cst_65 {dimension_numbers = #tpu.dot_dimension_numbers<[1], [0], [0], [1], [0, 0, 1, 1], [], []>} : vector<288x8xbf16>, vector<8x8xbf16>, vector<288x8xf32> -> vector<288x8xf32>
    %c6_66 = arith.constant 6 : index
    %c0_67 = arith.constant 0 : index
    %75 = vector.load %arg13[%c6_66, %c0_67] : memref<352x8xbf16, #tpu.memory_space<vmem>>, vector<288x8xbf16>
    %c1_68 = arith.constant 1 : index
    %c0_69 = arith.constant 0 : index
    %c0_70 = arith.constant 0 : index
    %76 = vector.load %arg6[%c1_68, %c0_69, %c0_70] : memref<9x8x8xbf16, #tpu.memory_space<vmem>>, vector<1x8x8xbf16>
    %77 = vector.shape_cast %76 : vector<1x8x8xbf16> to vector<8x8xbf16>
    %cst_71 = arith.constant dense<0.000000e+00> : vector<288x8xf32>
    %78 = tpu.matmul %75, %77, %cst_71 {dimension_numbers = #tpu.dot_dimension_numbers<[1], [0], [0], [1], [0, 0, 1, 1], [], []>} : vector<288x8xbf16>, vector<8x8xbf16>, vector<288x8xf32> -> vector<288x8xf32>
    %79 = arith.addf %74, %78 : vector<288x8xf32>
    %c7_72 = arith.constant 7 : index
    %c0_73 = arith.constant 0 : index
    %80 = vector.load %arg13[%c7_72, %c0_73] : memref<352x8xbf16, #tpu.memory_space<vmem>>, vector<288x8xbf16>
    %c2_74 = arith.constant 2 : index
    %c0_75 = arith.constant 0 : index
    %c0_76 = arith.constant 0 : index
    %81 = vector.load %arg6[%c2_74, %c0_75, %c0_76] : memref<9x8x8xbf16, #tpu.memory_space<vmem>>, vector<1x8x8xbf16>
    %82 = vector.shape_cast %81 : vector<1x8x8xbf16> to vector<8x8xbf16>
    %cst_77 = arith.constant dense<0.000000e+00> : vector<288x8xf32>
    %83 = tpu.matmul %80, %82, %cst_77 {dimension_numbers = #tpu.dot_dimension_numbers<[1], [0], [0], [1], [0, 0, 1, 1], [], []>} : vector<288x8xbf16>, vector<8x8xbf16>, vector<288x8xf32> -> vector<288x8xf32>
    %84 = arith.addf %79, %83 : vector<288x8xf32>
    %c23 = arith.constant 23 : index
    %c0_78 = arith.constant 0 : index
    %85 = vector.load %arg13[%c23, %c0_78] : memref<352x8xbf16, #tpu.memory_space<vmem>>, vector<288x8xbf16>
    %c3_79 = arith.constant 3 : index
    %c0_80 = arith.constant 0 : index
    %c0_81 = arith.constant 0 : index
    %86 = vector.load %arg6[%c3_79, %c0_80, %c0_81] : memref<9x8x8xbf16, #tpu.memory_space<vmem>>, vector<1x8x8xbf16>
    %87 = vector.shape_cast %86 : vector<1x8x8xbf16> to vector<8x8xbf16>
    %cst_82 = arith.constant dense<0.000000e+00> : vector<288x8xf32>
    %88 = tpu.matmul %85, %87, %cst_82 {dimension_numbers = #tpu.dot_dimension_numbers<[1], [0], [0], [1], [0, 0, 1, 1], [], []>} : vector<288x8xbf16>, vector<8x8xbf16>, vector<288x8xf32> -> vector<288x8xf32>
    %89 = arith.addf %84, %88 : vector<288x8xf32>
    %c24_83 = arith.constant 24 : index
    %c0_84 = arith.constant 0 : index
    %90 = vector.load %arg13[%c24_83, %c0_84] : memref<352x8xbf16, #tpu.memory_space<vmem>>, vector<288x8xbf16>
    %c4_85 = arith.constant 4 : index
    %c0_86 = arith.constant 0 : index
    %c0_87 = arith.constant 0 : index
    %91 = vector.load %arg6[%c4_85, %c0_86, %c0_87] : memref<9x8x8xbf16, #tpu.memory_space<vmem>>, vector<1x8x8xbf16>
    %92 = vector.shape_cast %91 : vector<1x8x8xbf16> to vector<8x8xbf16>
    %cst_88 = arith.constant dense<0.000000e+00> : vector<288x8xf32>
    %93 = tpu.matmul %90, %92, %cst_88 {dimension_numbers = #tpu.dot_dimension_numbers<[1], [0], [0], [1], [0, 0, 1, 1], [], []>} : vector<288x8xbf16>, vector<8x8xbf16>, vector<288x8xf32> -> vector<288x8xf32>
    %94 = arith.addf %89, %93 : vector<288x8xf32>
    %c25 = arith.constant 25 : index
    %c0_89 = arith.constant 0 : index
    %95 = vector.load %arg13[%c25, %c0_89] : memref<352x8xbf16, #tpu.memory_space<vmem>>, vector<288x8xbf16>
    %c5_90 = arith.constant 5 : index
    %c0_91 = arith.constant 0 : index
    %c0_92 = arith.constant 0 : index
    %96 = vector.load %arg6[%c5_90, %c0_91, %c0_92] : memref<9x8x8xbf16, #tpu.memory_space<vmem>>, vector<1x8x8xbf16>
    %97 = vector.shape_cast %96 : vector<1x8x8xbf16> to vector<8x8xbf16>
    %cst_93 = arith.constant dense<0.000000e+00> : vector<288x8xf32>
    %98 = tpu.matmul %95, %97, %cst_93 {dimension_numbers = #tpu.dot_dimension_numbers<[1], [0], [0], [1], [0, 0, 1, 1], [], []>} : vector<288x8xbf16>, vector<8x8xbf16>, vector<288x8xf32> -> vector<288x8xf32>
    %99 = arith.addf %94, %98 : vector<288x8xf32>
    %c41 = arith.constant 41 : index
    %c0_94 = arith.constant 0 : index
    %100 = vector.load %arg13[%c41, %c0_94] : memref<352x8xbf16, #tpu.memory_space<vmem>>, vector<288x8xbf16>
    %c6_95 = arith.constant 6 : index
    %c0_96 = arith.constant 0 : index
    %c0_97 = arith.constant 0 : index
    %101 = vector.load %arg6[%c6_95, %c0_96, %c0_97] : memref<9x8x8xbf16, #tpu.memory_space<vmem>>, vector<1x8x8xbf16>
    %102 = vector.shape_cast %101 : vector<1x8x8xbf16> to vector<8x8xbf16>
    %cst_98 = arith.constant dense<0.000000e+00> : vector<288x8xf32>
    %103 = tpu.matmul %100, %102, %cst_98 {dimension_numbers = #tpu.dot_dimension_numbers<[1], [0], [0], [1], [0, 0, 1, 1], [], []>} : vector<288x8xbf16>, vector<8x8xbf16>, vector<288x8xf32> -> vector<288x8xf32>
    %104 = arith.addf %99, %103 : vector<288x8xf32>
    %c42 = arith.constant 42 : index
    %c0_99 = arith.constant 0 : index
    %105 = vector.load %arg13[%c42, %c0_99] : memref<352x8xbf16, #tpu.memory_space<vmem>>, vector<288x8xbf16>
    %c7_100 = arith.constant 7 : index
    %c0_101 = arith.constant 0 : index
    %c0_102 = arith.constant 0 : index
    %106 = vector.load %arg6[%c7_100, %c0_101, %c0_102] : memref<9x8x8xbf16, #tpu.memory_space<vmem>>, vector<1x8x8xbf16>
    %107 = vector.shape_cast %106 : vector<1x8x8xbf16> to vector<8x8xbf16>
    %cst_103 = arith.constant dense<0.000000e+00> : vector<288x8xf32>
    %108 = tpu.matmul %105, %107, %cst_103 {dimension_numbers = #tpu.dot_dimension_numbers<[1], [0], [0], [1], [0, 0, 1, 1], [], []>} : vector<288x8xbf16>, vector<8x8xbf16>, vector<288x8xf32> -> vector<288x8xf32>
    %109 = arith.addf %104, %108 : vector<288x8xf32>
    %c43 = arith.constant 43 : index
    %c0_104 = arith.constant 0 : index
    %110 = vector.load %arg13[%c43, %c0_104] : memref<352x8xbf16, #tpu.memory_space<vmem>>, vector<288x8xbf16>
    %c8_105 = arith.constant 8 : index
    %c0_106 = arith.constant 0 : index
    %c0_107 = arith.constant 0 : index
    %111 = vector.load %arg6[%c8_105, %c0_106, %c0_107] : memref<9x8x8xbf16, #tpu.memory_space<vmem>>, vector<1x8x8xbf16>
    %112 = vector.shape_cast %111 : vector<1x8x8xbf16> to vector<8x8xbf16>
    %cst_108 = arith.constant dense<0.000000e+00> : vector<288x8xf32>
    %113 = tpu.matmul %110, %112, %cst_108 {dimension_numbers = #tpu.dot_dimension_numbers<[1], [0], [0], [1], [0, 0, 1, 1], [], []>} : vector<288x8xbf16>, vector<8x8xbf16>, vector<288x8xf32> -> vector<288x8xf32>
    %114 = arith.addf %109, %113 : vector<288x8xf32>
    %c0_109 = arith.constant 0 : index
    %c0_110 = arith.constant 0 : index
    %115 = vector.load %arg7[%c0_109, %c0_110] : memref<1x8xf32, #tpu.memory_space<vmem>>, vector<1x8xf32>
    %116 = vector.broadcast %115 : vector<1x8xf32> to vector<288x8xf32>
    %117 = arith.mulf %114, %116 : vector<288x8xf32>
    %c0_111 = arith.constant 0 : index
    %c0_112 = arith.constant 0 : index
    %118 = vector.load %arg8[%c0_111, %c0_112] : memref<1x8xf32, #tpu.memory_space<vmem>>, vector<1x8xf32>
    %119 = vector.broadcast %118 : vector<1x8xf32> to vector<288x8xf32>
    %120 = arith.addf %117, %119 : vector<288x8xf32>
    %c0_113 = arith.constant 0 : index
    %c19_114 = arith.constant 19 : index
    %c0_115 = arith.constant 0 : index
    %121 = vector.load %arg1[%c0_113, %c19_114, %c0_115] : memref<1x342x4xbf16, #tpu.memory_space<vmem>>, vector<1x288x4xbf16>
    %122 = vector.shape_cast %121 : vector<1x288x4xbf16> to vector<288x4xbf16>
    %c0_116 = arith.constant 0 : index
    %c0_117 = arith.constant 0 : index
    %123 = vector.load %arg9[%c0_116, %c0_117] : memref<4x8xbf16, #tpu.memory_space<vmem>>, vector<4x8xbf16>
    %cst_118 = arith.constant dense<0.000000e+00> : vector<288x8xf32>
    %124 = tpu.matmul %122, %123, %cst_118 {dimension_numbers = #tpu.dot_dimension_numbers<[1], [0], [0], [1], [0, 0, 1, 1], [], []>} : vector<288x4xbf16>, vector<4x8xbf16>, vector<288x8xf32> -> vector<288x8xf32>
    %c0_119 = arith.constant 0 : index
    %c0_120 = arith.constant 0 : index
    %125 = vector.load %arg10[%c0_119, %c0_120] : memref<1x8xf32, #tpu.memory_space<vmem>>, vector<1x8xf32>
    %126 = vector.broadcast %125 : vector<1x8xf32> to vector<288x8xf32>
    %127 = arith.mulf %124, %126 : vector<288x8xf32>
    %c0_121 = arith.constant 0 : index
    %c0_122 = arith.constant 0 : index
    %128 = vector.load %arg11[%c0_121, %c0_122] : memref<1x8xf32, #tpu.memory_space<vmem>>, vector<1x8xf32>
    %129 = vector.broadcast %128 : vector<1x8xf32> to vector<288x8xf32>
    %130 = arith.addf %127, %129 : vector<288x8xf32>
    %131 = arith.addf %120, %130 : vector<288x8xf32>
    %cst_123 = arith.constant 0.000000e+00 : f32
    %132 = vector.broadcast %cst_123 : f32 to vector<288x8xf32>
    %133 = arith.maximumf %131, %132 : vector<288x8xf32>
    %134 = vector.shape_cast %133 : vector<288x8xf32> to vector<1x288x8xf32>
    %135 = arith.truncf %134 : vector<1x288x8xf32> to vector<1x288x8xbf16>
    %c0_124 = arith.constant 0 : index
    %c0_125 = arith.constant 0 : index
    %c0_126 = arith.constant 0 : index
    %136 = vector.load %arg12[%c0_124, %c0_125, %c0_126] : memref<1x288x8xbf16, #tpu.memory_space<vmem>>, vector<1x288x8xbf16>
    tpu.vector_store %arg12[%c0_124, %c0_125, %c0_126], %135 {strides = array<i32>} : memref<1x288x8xbf16, #tpu.memory_space<vmem>>, vector<1x288x8xbf16>,
    return
  }
  func.func @transform_0(%arg0: i32) -> (i32, i32, i32) {
    %c0_i32 = arith.constant 0 : i32
    %c0_i32_0 = arith.constant 0 : i32
    %c0_i32_1 = arith.constant 0 : i32
    return %arg0, %c0_i32, %c0_i32_0 : i32, i32, i32
  }
  func.func @transform_1(%arg0: i32) -> (i32, i32) {
    %c0_i32 = arith.constant 0 : i32
    %c0_i32_0 = arith.constant 0 : i32
    %c0_i32_1 = arith.constant 0 : i32
    return %c0_i32, %c0_i32_0 : i32, i32
  }
  func.func @transform_2(%arg0: i32) -> (i32, i32, i32) {
    %c0_i32 = arith.constant 0 : i32
    %c0_i32_0 = arith.constant 0 : i32
    %c0_i32_1 = arith.constant 0 : i32
    %c0_i32_2 = arith.constant 0 : i32
    return %c0_i32, %c0_i32_0, %c0_i32_1 : i32, i32, i32
  }
  func.func @transform_3(%arg0: i32) -> (i32, i32) {
    %c0_i32 = arith.constant 0 : i32
    %c0_i32_0 = arith.constant 0 : i32
    %c0_i32_1 = arith.constant 0 : i32
    return %c0_i32, %c0_i32_0 : i32, i32
  }
  func.func @transform_4(%arg0: i32) -> (i32, i32) {
    %c0_i32 = arith.constant 0 : i32
    %c0_i32_0 = arith.constant 0 : i32
    %c0_i32_1 = arith.constant 0 : i32
    return %c0_i32, %c0_i32_0 : i32, i32
  }
  func.func @transform_5(%arg0: i32) -> (i32, i32, i32) {
    %c0_i32 = arith.constant 0 : i32
    %c0_i32_0 = arith.constant 0 : i32
    %c0_i32_1 = arith.constant 0 : i32
    %c0_i32_2 = arith.constant 0 : i32
    return %c0_i32, %c0_i32_0, %c0_i32_1 : i32, i32, i32
  }
  func.func @transform_6(%arg0: i32) -> (i32, i32) {
    %c0_i32 = arith.constant 0 : i32
    %c0_i32_0 = arith.constant 0 : i32
    %c0_i32_1 = arith.constant 0 : i32
    return %c0_i32, %c0_i32_0 : i32, i32
  }
  func.func @transform_7(%arg0: i32) -> (i32, i32) {
    %c0_i32 = arith.constant 0 : i32
    %c0_i32_0 = arith.constant 0 : i32
    %c0_i32_1 = arith.constant 0 : i32
    return %c0_i32, %c0_i32_0 : i32, i32
  }
  func.func @transform_8(%arg0: i32) -> (i32, i32) {
    %c0_i32 = arith.constant 0 : i32
    %c0_i32_0 = arith.constant 0 : i32
    %c0_i32_1 = arith.constant 0 : i32
    return %c0_i32, %c0_i32_0 : i32, i32
  }
  func.func @transform_9(%arg0: i32) -> (i32, i32) {
    %c0_i32 = arith.constant 0 : i32
    %c0_i32_0 = arith.constant 0 : i32
    %c0_i32_1 = arith.constant 0 : i32
    return %c0_i32, %c0_i32_0 : i32, i32
  }
  func.func @transform_10(%arg0: i32) -> (i32, i32) {
    %c0_i32 = arith.constant 0 : i32
    %c0_i32_0 = arith.constant 0 : i32
    %c0_i32_1 = arith.constant 0 : i32
    return %c0_i32, %c0_i32_0 : i32, i32
  }
  func.func @transform_11(%arg0: i32) -> (i32, i32, i32) {
    %c0_i32 = arith.constant 0 : i32
    %c0_i32_0 = arith.constant 0 : i32
    %c0_i32_1 = arith.constant 0 : i32
    return %arg0, %c0_i32, %c0_i32_0 : i32, i32, i32
  }
}

</mosaic_0001>

<llo_original>
// kernel: basic_block_forward.1
$region0: #{basic_block_forward.1}
  #allocation0 [shape = 'u32[]', space=smem, size = 0x4, offset = 0x4, fixed_abs, tag = 'smem constant byte address 0x4 - core index']
  #allocation1 [shape = 'u32[144,128]{1,0:T(1,128)}', space=vmem, size = 0x12000, scoped, tag = 'internal scratch']
  #allocation2 [shape = 'bf16[352,8]{1,0:T(16,128)(2,1)}', space=vmem, size = 0x16000, scoped, tag = 'scratch operand']
  %s0 = inlined_call_operand.vmem [shape: bf16[2,342,4], index: 0, kind: input, shape index: {}]
  %s1 = inlined_call_operand.vmem [shape: bf16[288,1], index: 1, kind: input, shape index: {}]
  %s2 = inlined_call_operand.vmem [shape: bf16[9,4,8], index: 2, kind: input, shape index: {}]
  %s3 = inlined_call_operand.vmem [shape: f32[1,8], index: 3, kind: input, shape index: {}]
  %s4 = inlined_call_operand.vmem [shape: f32[1,8], index: 4, kind: input, shape index: {}]
  %s5 = inlined_call_operand.vmem [shape: bf16[9,8,8], index: 5, kind: input, shape index: {}]
  %s6 = inlined_call_operand.vmem [shape: f32[1,8], index: 6, kind: input, shape index: {}]
  %s7 = inlined_call_operand.vmem [shape: f32[1,8], index: 7, kind: input, shape index: {}]
  %s8 = inlined_call_operand.vmem [shape: bf16[4,8], index: 8, kind: input, shape index: {}]
  %s9 = inlined_call_operand.vmem [shape: f32[1,8], index: 9, kind: input, shape index: {}]
  %s10 = inlined_call_operand.vmem [shape: f32[1,8], index: 10, kind: input, shape index: {}]
  %s11 = inlined_call_operand.vmem [shape: bf16[2,288,8], index: 11, kind: output, shape index: {}]
  %s12 = sld [smem:[#allocation0]]
  $region77: #{basic_block_forward.1} parent=0
    _
  %s14 = ssub.s32 1, %s12
  %s15 = scalar_select 0, %s14, %s12
  loop: start=0, step=1, limit=4
  $region2: #{basic_block_forward.1} parent=0 // loop_pre_header
    _
  $region3: #{basic_block_forward.1} parent=0 // loop_header
    %s17 = sphi 0, %s21
    %p18 = scmp.ge.s32.totalorder %s17, 4
    %s27 = sphi 0, %s29
    %s30 = sphi 0, %s27
    %s31 = sphi 0, %s30
    %s47 = sphi 0, %s31
    %s51 = sphi 0, %s51
    %s53 = sphi 0, %s51
    %s54 = sphi 0, %s53
    %s68 = sphi 0, %s54
    %s72 = sphi 0, %s72
    %s74 = sphi 0, %s72
    %s75 = sphi 0, %s74
    %s89 = sphi 0, %s75
    %s93 = sphi 0, %s93
    %s95 = sphi 0, %s93
    %s96 = sphi 0, %s95
    %s110 = sphi 0, %s96
    %s114 = sphi 0, %s114
    %s116 = sphi 0, %s114
    %s117 = sphi 0, %s116
    %s131 = sphi 0, %s117
    %s135 = sphi 0, %s135
    %s137 = sphi 0, %s135
    %s138 = sphi 0, %s137
    %s152 = sphi 0, %s138
    %s156 = sphi 0, %s156
    %s158 = sphi 0, %s156
    %s159 = sphi 0, %s158
    %s173 = sphi 0, %s159
    %s177 = sphi 0, %s177
    %s179 = sphi 0, %s177
    %s180 = sphi 0, %s179
    %s194 = sphi 0, %s180
    %s198 = sphi 0, %s198
    %s200 = sphi 0, %s198
    %s201 = sphi 0, %s200
    %s215 = sphi 0, %s201
    %s219 = sphi 0, %s219
    %s221 = sphi 0, %s219
    %s222 = sphi 0, %s221
    %s236 = sphi 0, %s222
    %s240 = sphi 0, %s240
    %s242 = sphi 0, %s240
    %s243 = sphi 0, %s242
    %s257 = sphi 0, %s243
    %s263 = sphi 0, %s265
    %s266 = sphi 0, %s263
    %s267 = sphi 0, %s266
    %s283 = sphi 0, %s267
  $region4: #{basic_block_forward.1} parent=0 // loop_header_branch
    %20 = sbr.rel (%p18) target = $region8
  $region5: #{basic_block_forward.1} parent=0 // loop_body
    %s22 = ssub.s32 %s17, 1
    %s23 = ssub.s32 %s17, 2
    %s24 = sadd.s32 %s17, 1
    %s25 = ssub.s32 %s17, %s24
    %p26 = scmp.eq.s32.totalorder %s25, 0
    %s28 = sadd.s32 %s27, 1
    %s29 = scalar_select %p26, %s27, %s28
    %p32 = pneg %p26
    %p33 = scmp.eq.s32.totalorder %s17, 1
    %p34 = por %p32, %p33
    %p35 = scmp.ne.s32.totalorder %s27, %s30
    %p36 = scmp.eq.s32.totalorder %s17, 0
    %p37 = por %p35, %p36
    %p38 = scmp.ne.s32.totalorder %s27, %s30
    %p39 = scmp.eq.s32.totalorder %s22, 1
    %p40 = por %p38, %p39
    %p41 = scmp.ne.s32.totalorder %s30, %s31
    %p42 = scmp.eq.s32.totalorder %s22, 0
    %p43 = por %p41, %p42
    %p44 = scmp.ne.s32.totalorder %s30, %s31
    %p45 = scmp.eq.s32.totalorder %s23, 1
    %p46 = por %p44, %p45
    %p48 = scmp.ne.s32.totalorder %s31, %s47
    %p49 = scmp.eq.s32.totalorder %s23, 0
    %p50 = por %p48, %p49
    %s52 = sadd.s32 %s51, 1
    %p55 = scmp.eq.s32.totalorder %s17, 1
    %p56 = scmp.ne.s32.totalorder %s51, %s53
    %p57 = scmp.eq.s32.totalorder %s17, 0
    %p58 = por %p56, %p57
    %p59 = scmp.ne.s32.totalorder %s51, %s53
    %p60 = scmp.eq.s32.totalorder %s22, 1
    %p61 = por %p59, %p60
    %p62 = scmp.ne.s32.totalorder %s53, %s54
    %p63 = scmp.eq.s32.totalorder %s22, 0
    %p64 = por %p62, %p63
    %p65 = scmp.ne.s32.totalorder %s53, %s54
    %p66 = scmp.eq.s32.totalorder %s23, 1
    %p67 = por %p65, %p66
    %p69 = scmp.ne.s32.totalorder %s54, %s68
    %p70 = scmp.eq.s32.totalorder %s23, 0
    %p71 = por %p69, %p70
    %s73 = sadd.s32 %s72, 1
    %p76 = scmp.eq.s32.totalorder %s17, 1
    %p77 = scmp.ne.s32.totalorder %s72, %s74
    %p78 = scmp.eq.s32.totalorder %s17, 0
    %p79 = por %p77, %p78
    %p80 = scmp.ne.s32.totalorder %s72, %s74
    %p81 = scmp.eq.s32.totalorder %s22, 1
    %p82 = por %p80, %p81
    %p83 = scmp.ne.s32.totalorder %s74, %s75
    %p84 = scmp.eq.s32.totalorder %s22, 0
    %p85 = por %p83, %p84
    %p86 = scmp.ne.s32.totalorder %s74, %s75
    %p87 = scmp.eq.s32.totalorder %s23, 1
    %p88 = por %p86, %p87
    %p90 = scmp.ne.s32.totalorder %s75, %s89
    %p91 = scmp.eq.s32.totalorder %s23, 0
    %p92 = por %p90, %p91
    %s94 = sadd.s32 %s93, 1
    %p97 = scmp.eq.s32.totalorder %s17, 1
    %p98 = scmp.ne.s32.totalorder %s93, %s95
    %p99 = scmp.eq.s32.totalorder %s17, 0
    %p100 = por %p98, %p99
    %p101 = scmp.ne.s32.totalorder %s93, %s95
    %p102 = scmp.eq.s32.totalorder %s22, 1
    %p103 = por %p101, %p102
    %p104 = scmp.ne.s32.totalorder %s95, %s96
    %p105 = scmp.eq.s32.totalorder %s22, 0
    %p106 = por %p104, %p105
    %p107 = scmp.ne.s32.totalorder %s95, %s96
    %p108 = scmp.eq.s32.totalorder %s23, 1
    %p109 = por %p107, %p108
    %p111 = scmp.ne.s32.totalorder %s96, %s110
    %p112 = scmp.eq.s32.totalorder %s23, 0
    %p113 = por %p111, %p112
    %s115 = sadd.s32 %s114, 1
    %p118 = scmp.eq.s32.totalorder %s17, 1
    %p119 = scmp.ne.s32.totalorder %s114, %s116
    %p120 = scmp.eq.s32.totalorder %s17, 0
    %p121 = por %p119, %p120
    %p122 = scmp.ne.s32.totalorder %s114, %s116
    %p123 = scmp.eq.s32.totalorder %s22, 1
    %p124 = por %p122, %p123
    %p125 = scmp.ne.s32.totalorder %s116, %s117
    %p126 = scmp.eq.s32.totalorder %s22, 0
    %p127 = por %p125, %p126
    %p128 = scmp.ne.s32.totalorder %s116, %s117
    %p129 = scmp.eq.s32.totalorder %s23, 1
    %p130 = por %p128, %p129
    %p132 = scmp.ne.s32.totalorder %s117, %s131
    %p133 = scmp.eq.s32.totalorder %s23, 0
    %p134 = por %p132, %p133
    %s136 = sadd.s32 %s135, 1
    %p139 = scmp.eq.s32.totalorder %s17, 1
    %p140 = scmp.ne.s32.totalorder %s135, %s137
    %p141 = scmp.eq.s32.totalorder %s17, 0
    %p142 = por %p140, %p141
    %p143 = scmp.ne.s32.totalorder %s135, %s137
    %p144 = scmp.eq.s32.totalorder %s22, 1
    %p145 = por %p143, %p144
    %p146 = scmp.ne.s32.totalorder %s137, %s138
    %p147 = scmp.eq.s32.totalorder %s22, 0
    %p148 = por %p146, %p147
    %p149 = scmp.ne.s32.totalorder %s137, %s138
    %p150 = scmp.eq.s32.totalorder %s23, 1
    %p151 = por %p149, %p150
    %p153 = scmp.ne.s32.totalorder %s138, %s152
    %p154 = scmp.eq.s32.totalorder %s23, 0
    %p155 = por %p153, %p154
    %s157 = sadd.s32 %s156, 1
    %p160 = scmp.eq.s32.totalorder %s17, 1
    %p161 = scmp.ne.s32.totalorder %s156, %s158
    %p162 = scmp.eq.s32.totalorder %s17, 0
    %p163 = por %p161, %p162
    %p164 = scmp.ne.s32.totalorder %s156, %s158
    %p165 = scmp.eq.s32.totalorder %s22, 1
    %p166 = por %p164, %p165
    %p167 = scmp.ne.s32.totalorder %s158, %s159
    %p168 = scmp.eq.s32.totalorder %s22, 0
    %p169 = por %p167, %p168
    %p170 = scmp.ne.s32.totalorder %s158, %s159
    %p171 = scmp.eq.s32.totalorder %s23, 1
    %p172 = por %p170, %p171
    %p174 = scmp.ne.s32.totalorder %s159, %s173
    %p175 = scmp.eq.s32.totalorder %s23, 0
    %p176 = por %p174, %p175
    %s178 = sadd.s32 %s177, 1
    %p181 = scmp.eq.s32.totalorder %s17, 1
    %p182 = scmp.ne.s32.totalorder %s177, %s179
    %p183 = scmp.eq.s32.totalorder %s17, 0
    %p184 = por %p182, %p183
    %p185 = scmp.ne.s32.totalorder %s177, %s179
    %p186 = scmp.eq.s32.totalorder %s22, 1
    %p187 = por %p185, %p186
    %p188 = scmp.ne.s32.totalorder %s179, %s180
    %p189 = scmp.eq.s32.totalorder %s22, 0
    %p190 = por %p188, %p189
    %p191 = scmp.ne.s32.totalorder %s179, %s180
    %p192 = scmp.eq.s32.totalorder %s23, 1
    %p193 = por %p191, %p192
    %p195 = scmp.ne.s32.totalorder %s180, %s194
    %p196 = scmp.eq.s32.totalorder %s23, 0
    %p197 = por %p195, %p196
    %s199 = sadd.s32 %s198, 1
    %p202 = scmp.eq.s32.totalorder %s17, 1
    %p203 = scmp.ne.s32.totalorder %s198, %s200
    %p204 = scmp.eq.s32.totalorder %s17, 0
    %p205 = por %p203, %p204
    %p206 = scmp.ne.s32.totalorder %s198, %s200
    %p207 = scmp.eq.s32.totalorder %s22, 1
    %p208 = por %p206, %p207
    %p209 = scmp.ne.s32.totalorder %s200, %s201
    %p210 = scmp.eq.s32.totalorder %s22, 0
    %p211 = por %p209, %p210
    %p212 = scmp.ne.s32.totalorder %s200, %s201
    %p213 = scmp.eq.s32.totalorder %s23, 1
    %p214 = por %p212, %p213
    %p216 = scmp.ne.s32.totalorder %s201, %s215
    %p217 = scmp.eq.s32.totalorder %s23, 0
    %p218 = por %p216, %p217
    %s220 = sadd.s32 %s219, 1
    %p223 = scmp.eq.s32.totalorder %s17, 1
    %p224 = scmp.ne.s32.totalorder %s219, %s221
    %p225 = scmp.eq.s32.totalorder %s17, 0
    %p226 = por %p224, %p225
    %p227 = scmp.ne.s32.totalorder %s219, %s221
    %p228 = scmp.eq.s32.totalorder %s22, 1
    %p229 = por %p227, %p228
    %p230 = scmp.ne.s32.totalorder %s221, %s222
    %p231 = scmp.eq.s32.totalorder %s22, 0
    %p232 = por %p230, %p231
    %p233 = scmp.ne.s32.totalorder %s221, %s222
    %p234 = scmp.eq.s32.totalorder %s23, 1
    %p235 = por %p233, %p234
    %p237 = scmp.ne.s32.totalorder %s222, %s236
    %p238 = scmp.eq.s32.totalorder %s23, 0
    %p239 = por %p237, %p238
    %s241 = sadd.s32 %s240, 1
    %p244 = scmp.eq.s32.totalorder %s17, 1
    %p245 = scmp.ne.s32.totalorder %s240, %s242
    %p246 = scmp.eq.s32.totalorder %s17, 0
    %p247 = por %p245, %p246
    %p248 = scmp.ne.s32.totalorder %s240, %s242
    %p249 = scmp.eq.s32.totalorder %s22, 1
    %p250 = por %p248, %p249
    %p251 = scmp.ne.s32.totalorder %s242, %s243
    %p252 = scmp.eq.s32.totalorder %s22, 0
    %p253 = por %p251, %p252
    %p254 = scmp.ne.s32.totalorder %s242, %s243
    %p255 = scmp.eq.s32.totalorder %s23, 1
    %p256 = por %p254, %p255
    %p258 = scmp.ne.s32.totalorder %s243, %s257
    %p259 = scmp.eq.s32.totalorder %s23, 0
    %p260 = por %p258, %p259
    %s261 = ssub.s32 %s17, %s24
    %p262 = scmp.eq.s32.totalorder %s261, 0
    %s264 = sadd.s32 %s263, 1
    %s265 = scalar_select %p262, %s263, %s264
    %p268 = pneg %p262
    %p269 = scmp.eq.s32.totalorder %s17, 1
    %p270 = por %p268, %p269
    %p271 = scmp.ne.s32.totalorder %s263, %s266
    %p272 = scmp.eq.s32.totalorder %s17, 0
    %p273 = por %p271, %p272
    %p274 = scmp.ne.s32.totalorder %s263, %s266
    %p275 = scmp.eq.s32.totalorder %s22, 1
    %p276 = por %p274, %p275
    %p277 = scmp.ne.s32.totalorder %s266, %s267
    %p278 = scmp.eq.s32.totalorder %s22, 0
    %p279 = por %p277, %p278
    %p280 = scmp.ne.s32.totalorder %s266, %s267
    %p281 = scmp.eq.s32.totalorder %s23, 1
    %p282 = por %p280, %p281
    %p284 = scmp.ne.s32.totalorder %s267, %s283
    %p285 = scmp.eq.s32.totalorder %s23, 0
    %p286 = por %p284, %p285
    %p287 = scmp.le.s32.totalorder 1, %s17
    %p288 = scmp.lt.s32.totalorder %s17, 3
    %p289 = pnand %p287, %p288
    %p290 = pneg %p289
    // Predicated region
    $region9: #{basic_block_forward.1} parent=5 // pred_check
      _
    $region10: #{basic_block_forward.1} parent=5 // pred_check_branch
      %292 = sbr.rel (%p289) target = $region12
    $region11: #{basic_block_forward.1} parent=5 // pred_region
      %s293 = ssub.s32 %s17, 1
      // Predicated region
      $region13: #{basic_block_forward.1} parent=11 // pred_check
        %p294 = pneg %p64
      $region14: #{basic_block_forward.1} parent=11 // pred_check_branch
        %296 = sbr.rel (%p294) target = $region16
      $region15: #{basic_block_forward.1} parent=11 // pred_region
        _
      $region16: #{basic_block_forward.1} parent=11 // pred_fallthru
        _
      // Predicated region
      $region17: #{basic_block_forward.1} parent=11 // pred_check
        %p297 = pneg %p85
      $region18: #{basic_block_forward.1} parent=11 // pred_check_branch
        %299 = sbr.rel (%p297) target = $region20
      $region19: #{basic_block_forward.1} parent=11 // pred_region
        _
      $region20: #{basic_block_forward.1} parent=11 // pred_fallthru
        _
      // Predicated region
      $region21: #{basic_block_forward.1} parent=11 // pred_check
        %p300 = pneg %p106
      $region22: #{basic_block_forward.1} parent=11 // pred_check_branch
        %302 = sbr.rel (%p300) target = $region24
      $region23: #{basic_block_forward.1} parent=11 // pred_region
        _
      $region24: #{basic_block_forward.1} parent=11 // pred_fallthru
        _
      // Predicated region
      $region25: #{basic_block_forward.1} parent=11 // pred_check
        %p303 = pneg %p127
      $region26: #{basic_block_forward.1} parent=11 // pred_check_branch
        %305 = sbr.rel (%p303) target = $region28
      $region27: #{basic_block_forward.1} parent=11 // pred_region
        _
      $region28: #{basic_block_forward.1} parent=11 // pred_fallthru
        _
      // Predicated region
      $region29: #{basic_block_forward.1} parent=11 // pred_check
        %p306 = pneg %p148
      $region30: #{basic_block_forward.1} parent=11 // pred_check_branch
        %308 = sbr.rel (%p306) target = $region32
      $region31: #{basic_block_forward.1} parent=11 // pred_region
        _
      $region32: #{basic_block_forward.1} parent=11 // pred_fallthru
        _
      // Predicated region
      $region33: #{basic_block_forward.1} parent=11 // pred_check
        %p309 = pneg %p169
      $region34: #{basic_block_forward.1} parent=11 // pred_check_branch
        %311 = sbr.rel (%p309) target = $region36
      $region35: #{basic_block_forward.1} parent=11 // pred_region
        _
      $region36: #{basic_block_forward.1} parent=11 // pred_fallthru
        _
      // Predicated region
      $region37: #{basic_block_forward.1} parent=11 // pred_check
        %p312 = pneg %p190
      $region38: #{basic_block_forward.1} parent=11 // pred_check_branch
        %314 = sbr.rel (%p312) target = $region40
      $region39: #{basic_block_forward.1} parent=11 // pred_region
        _
      $region40: #{basic_block_forward.1} parent=11 // pred_fallthru
        _
      // Predicated region
      $region41: #{basic_block_forward.1} parent=11 // pred_check
        %p315 = pneg %p211
      $region42: #{basic_block_forward.1} parent=11 // pred_check_branch
        %317 = sbr.rel (%p315) target = $region44
      $region43: #{basic_block_forward.1} parent=11 // pred_region
        _
      $region44: #{basic_block_forward.1} parent=11 // pred_fallthru
        _
      // Predicated region
      $region45: #{basic_block_forward.1} parent=11 // pred_check
        %p318 = pneg %p232
      $region46: #{basic_block_forward.1} parent=11 // pred_check_branch
        %320 = sbr.rel (%p318) target = $region48
      $region47: #{basic_block_forward.1} parent=11 // pred_region
        _
      $region48: #{basic_block_forward.1} parent=11 // pred_fallthru
        _
      // Predicated region
      $region49: #{basic_block_forward.1} parent=11 // pred_check
        %p321 = pneg %p253
      $region50: #{basic_block_forward.1} parent=11 // pred_check_branch
        %323 = sbr.rel (%p321) target = $region52
      $region51: #{basic_block_forward.1} parent=11 // pred_region
        _
      $region52: #{basic_block_forward.1} parent=11 // pred_fallthru
        _
    $region12: #{basic_block_forward.1} parent=5 // pred_fallthru
      _
    %p324 = scmp.lt.s32.totalorder %s17, 2
    // Predicated region
    $region53: #{basic_block_forward.1} parent=5 // pred_check
      %p325 = pneg %p324
    $region54: #{basic_block_forward.1} parent=5 // pred_check_branch
      %327 = sbr.rel (%p325) target = $region56
    $region55: #{basic_block_forward.1} parent=5 // pred_region
      // Predicated region
      $region57: #{basic_block_forward.1} parent=55 // pred_check
        %p328 = pneg %p37
      $region58: #{basic_block_forward.1} parent=55 // pred_check_branch
        %330 = sbr.rel (%p328) target = $region60
      $region59: #{basic_block_forward.1} parent=55 // pred_region
        %p331 = scmp.lt.s32.totalorder %s17, 1
        %s332 = scalar_select %p331, %s17, 1
        %s333 = smul.addr %s332, 43
        %s334 = smul.addr %s333, 4
        %s335 = scalar_lea.vmem %s0, %s334
      $region60: #{basic_block_forward.1} parent=55 // pred_fallthru
        _
    $region56: #{basic_block_forward.1} parent=5 // pred_fallthru
      _
    %p336 = scmp.le.s32.totalorder 1, %s17
    %p337 = scmp.lt.s32.totalorder %s17, 3
    %p338 = pnand %p336, %p337
    %p339 = pneg %p338
    // Predicated region
    $region61: #{basic_block_forward.1} parent=5 // pred_check
      _
    $region62: #{basic_block_forward.1} parent=5 // pred_check_branch
      %341 = sbr.rel (%p338) target = $region64
    $region63: #{basic_block_forward.1} parent=5 // pred_region
      %s342 = ssub.s32 %s17, 1
      %p343 = scmp.lt.s32.totalorder %s22, 1
      %s344 = scalar_select %p343, %s22, 1
      %s345 = smul.addr %s344, 43
      %s346 = smul.addr %s345, 4
      %s347 = scalar_lea.vmem %s0, %s346
      %p348 = pneg %p43
      %p349 = pneg %p40
      %p350 = pneg %p64
      %p351 = pneg %p61
      %p352 = pneg %p85
      %p353 = pneg %p82
      %p354 = pneg %p106
      %p355 = pneg %p103
      %p356 = pneg %p127
      %p357 = pneg %p124
      %p358 = pneg %p148
      %p359 = pneg %p145
      %p360 = pneg %p169
      %p361 = pneg %p166
      %p362 = pneg %p190
      %p363 = pneg %p187
      %p364 = pneg %p211
      %p365 = pneg %p208
      %p366 = pneg %p232
      %p367 = pneg %p229
      %p368 = pneg %p253
      %p369 = pneg %p250
      %p370 = pneg %p279
      %p371 = pneg %p276
      %p372 = scmp.lt.s32.totalorder %s22, 1
      %s373 = scalar_select %p372, %s22, 1
      %s374 = smul.addr %s373, 36
      %s375 = smul.addr %s374, 4
      %s376 = scalar_lea.vmem %s11, %s375
      %p377 = scmp.lt.s32.totalorder %s22, 1
      %s378 = scalar_select %p377, %s22, 1
      %s379 = smul.addr %s378, 43
      %s380 = smul.addr %s379, 4
      %s381 = scalar_lea.vmem %s0, %s380
      %p382 = scmp.lt.s32.totalorder %s22, 1
      %s383 = scalar_select %p382, %s22, 1
      %s384 = smul.addr %s383, 36
      %s385 = smul.addr %s384, 4
      %s386 = scalar_lea.vmem %s11, %s385
      %v388 = vld [vmem:[%s381] sm:$0xf]
      %v389 = vld [vmem:[%s381 + $0x4] sm:$0xf]
      %v390 = vld [vmem:[%s381 + $0x8] sm:$0xf]
      %v391 = vld [vmem:[%s381 + $0xc] sm:$0xf]
      %v392 = vld [vmem:[%s381 + $0x10] sm:$0xf]
      %v393 = vld [vmem:[%s381 + $0x14] sm:$0xf]
      %v394 = vld [vmem:[%s381 + $0x18] sm:$0xf]
      %v395 = vld [vmem:[%s381 + $0x1c] sm:$0xf]
      %v396 = vld [vmem:[%s381 + $0x20] sm:$0xf]
      %v397 = vld [vmem:[%s381 + $0x24] sm:$0xf]
      %v398 = vld [vmem:[%s381 + $0x28] sm:$0xf]
      %v399 = vld [vmem:[%s381 + $0x2c] sm:$0xf]
      %v400 = vld [vmem:[%s381 + $0x30] sm:$0xf]
      %v401 = vld [vmem:[%s381 + $0x34] sm:$0xf]
      %v402 = vld [vmem:[%s381 + $0x38] sm:$0xf]
      %v403 = vld [vmem:[%s381 + $0x3c] sm:$0xf]
      %v404 = vld [vmem:[%s381 + $0x40] sm:$0xf]
      %v405 = vld [vmem:[%s381 + $0x44] sm:$0xf]
      %v406 = vld [vmem:[%s381 + $0x48] sm:$0xf]
      %v407 = vld [vmem:[%s381 + $0x4c] sm:$0xf]
      %v408 = vld [vmem:[%s381 + $0x50] sm:$0xf]
      %v409 = vld [vmem:[%s381 + $0x54] sm:$0xf]
      %v410 = vld [vmem:[%s381 + $0x58] sm:$0xf]
      %v411 = vld [vmem:[%s381 + $0x5c] sm:$0xf]
      %v412 = vld [vmem:[%s381 + $0x60] sm:$0xf]
      %v413 = vld [vmem:[%s381 + $0x64] sm:$0xf]
      %v414 = vld [vmem:[%s381 + $0x68] sm:$0xf]
      %v415 = vld [vmem:[%s381 + $0x6c] sm:$0xf]
      %v416 = vld [vmem:[%s381 + $0x70] sm:$0xf]
      %v417 = vld [vmem:[%s381 + $0x74] sm:$0xf]
      %v418 = vld [vmem:[%s381 + $0x78] sm:$0xf]
      %v419 = vld [vmem:[%s381 + $0x7c] sm:$0xf]
      %v420 = vld [vmem:[%s381 + $0x80] sm:$0xf]
      %v421 = vld [vmem:[%s381 + $0x84] sm:$0xf]
      %v422 = vld [vmem:[%s381 + $0x88] sm:$0xf]
      %v423 = vld [vmem:[%s381 + $0x8c] sm:$0xf]
      %v424 = vld [vmem:[%s2] sm:$0x3]
      %v425 = vld [vmem:[%s381 + $0x90] sm:$0x1]
      %s426 = scalar_lea.vmem %s2, 2
      %v427 = vld [vmem:[%s426] sm:$0x3]
      %v465 = vunpack.c.l.b16 %v388
      %v466 = vunpack.c.l.b16 %v389
      %v467 = vunpack.c.l.b16 %v390
      %v468 = vunpack.c.l.b16 %v391
      %v469 = vunpack.c.l.b16 %v392
      %v470 = vunpack.c.l.b16 %v393
      %v471 = vunpack.c.l.b16 %v394
      %v472 = vunpack.c.l.b16 %v395
      %v473 = vunpack.c.l.b16 %v396
      %v474 = vunpack.c.l.b16 %v397
      %v475 = vunpack.c.l.b16 %v398
      %v476 = vunpack.c.l.b16 %v399
      %v477 = vunpack.c.l.b16 %v400
      %v478 = vunpack.c.l.b16 %v401
      %v479 = vunpack.c.l.b16 %v402
      %v480 = vunpack.c.l.b16 %v403
      %v481 = vunpack.c.l.b16 %v404
      %v482 = vunpack.c.l.b16 %v405
      %v483 = vunpack.c.l.b16 %v406
      %v484 = vunpack.c.l.b16 %v407
      %v485 = vunpack.c.l.b16 %v408
      %v486 = vunpack.c.l.b16 %v409
      %v487 = vunpack.c.l.b16 %v410
      %v488 = vunpack.c.l.b16 %v411
      %v489 = vunpack.c.l.b16 %v412
      %v490 = vunpack.c.l.b16 %v413
      %v491 = vunpack.c.l.b16 %v414
      %v492 = vunpack.c.l.b16 %v415
      %v493 = vunpack.c.l.b16 %v416
      %v494 = vunpack.c.l.b16 %v417
      %v495 = vunpack.c.l.b16 %v418
      %v496 = vunpack.c.l.b16 %v419
      %v497 = vunpack.c.l.b16 %v420
      %v498 = vunpack.c.l.b16 %v421
      %v499 = vunpack.c.l.b16 %v422
      %v500 = vunpack.c.l.b16 %v423
      %v501 = vunpack.c.l.b16 %v425
      %v502 = vpack.c.b16 %v466, %v465
      %v503 = vpack.c.b16 %v468, %v467
      %v504 = vpack.c.b16 %v470, %v469
      %v505 = vpack.c.b16 %v472, %v471
      %v506 = vpack.c.b16 %v474, %v473
      %v507 = vpack.c.b16 %v476, %v475
      %v508 = vpack.c.b16 %v478, %v477
      %v509 = vpack.c.b16 %v480, %v479
      %v510 = vpack.c.b16 %v482, %v481
      %v511 = vpack.c.b16 %v484, %v483
      %v512 = vpack.c.b16 %v486, %v485
      %v513 = vpack.c.b16 %v488, %v487
      %v514 = vpack.c.b16 %v490, %v489
      %v515 = vpack.c.b16 %v492, %v491
      %v516 = vpack.c.b16 %v494, %v493
      %v517 = vpack.c.b16 %v496, %v495
      %v518 = vpack.c.b16 %v498, %v497
      %v519 = vpack.c.b16 %v500, %v499
      %v520 = vpack.c.b16 %v501, %v501
      %vm521 = vsmask.f32 7424
      %v523 = vshrl.u32 %v502, 16
      %v525 = vshll.u32 %v502, 16
      %v527 = vrot.slane %v525, 1
      %v528 = vor.u32 %v523, %v527
      %v530 = vshll.u32 %v503, 16
      %v532 = vrot.slane %v530, 1
      %v533 = vsel %vm521, %v528, %v532
      %v534 = vshrl.u32 %v503, 16
      %v536 = vor.u32 %v534, %v532
      %v538 = vshll.u32 %v504, 16
      %v540 = vrot.slane %v538, 1
      %v541 = vsel %vm521, %v536, %v540
      %v542 = vshrl.u32 %v504, 16
      %v544 = vor.u32 %v542, %v540
      %v546 = vshll.u32 %v505, 16
      %v548 = vrot.slane %v546, 1
      %v549 = vsel %vm521, %v544, %v548
      %v550 = vshrl.u32 %v505, 16
      %v552 = vor.u32 %v550, %v548
      %v554 = vshll.u32 %v506, 16
      %v556 = vrot.slane %v554, 1
      %v557 = vsel %vm521, %v552, %v556
      %v558 = vshrl.u32 %v506, 16
      %v560 = vor.u32 %v558, %v556
      %v562 = vshll.u32 %v507, 16
      %v564 = vrot.slane %v562, 1
      %v565 = vsel %vm521, %v560, %v564
      %v566 = vshrl.u32 %v507, 16
      %v568 = vor.u32 %v566, %v564
      %v570 = vshll.u32 %v508, 16
      %v572 = vrot.slane %v570, 1
      %v573 = vsel %vm521, %v568, %v572
      %v574 = vshrl.u32 %v508, 16
      %v576 = vor.u32 %v574, %v572
      %v578 = vshll.u32 %v509, 16
      %v580 = vrot.slane %v578, 1
      %v581 = vsel %vm521, %v576, %v580
      %v582 = vshrl.u32 %v509, 16
      %v584 = vor.u32 %v582, %v580
      %v586 = vshll.u32 %v510, 16
      %v588 = vrot.slane %v586, 1
      %v589 = vsel %vm521, %v584, %v588
      %v590 = vshrl.u32 %v510, 16
      %v592 = vor.u32 %v590, %v588
      %v594 = vshll.u32 %v511, 16
      %v596 = vrot.slane %v594, 1
      %v597 = vsel %vm521, %v592, %v596
      %v598 = vshrl.u32 %v511, 16
      %v600 = vor.u32 %v598, %v596
      %v602 = vshll.u32 %v512, 16
      %v604 = vrot.slane %v602, 1
      %v605 = vsel %vm521, %v600, %v604
      %v606 = vshrl.u32 %v512, 16
      %v608 = vor.u32 %v606, %v604
      %v610 = vshll.u32 %v513, 16
      %v612 = vrot.slane %v610, 1
      %v613 = vsel %vm521, %v608, %v612
      %v614 = vshrl.u32 %v513, 16
      %v616 = vor.u32 %v614, %v612
      %v618 = vshll.u32 %v514, 16
      %v620 = vrot.slane %v618, 1
      %v621 = vsel %vm521, %v616, %v620
      %v622 = vshrl.u32 %v514, 16
      %v624 = vor.u32 %v622, %v620
      %v626 = vshll.u32 %v515, 16
      %v628 = vrot.slane %v626, 1
      %v629 = vsel %vm521, %v624, %v628
      %v630 = vshrl.u32 %v515, 16
      %v632 = vor.u32 %v630, %v628
      %v634 = vshll.u32 %v516, 16
      %v636 = vrot.slane %v634, 1
      %v637 = vsel %vm521, %v632, %v636
      %v638 = vshrl.u32 %v516, 16
      %v640 = vor.u32 %v638, %v636
      %v642 = vshll.u32 %v517, 16
      %v644 = vrot.slane %v642, 1
      %v645 = vsel %vm521, %v640, %v644
      %v646 = vshrl.u32 %v517, 16
      %v648 = vor.u32 %v646, %v644
      %v650 = vshll.u32 %v518, 16
      %v652 = vrot.slane %v650, 1
      %v653 = vsel %vm521, %v648, %v652
      %v654 = vshrl.u32 %v518, 16
      %v656 = vor.u32 %v654, %v652
      %v658 = vshll.u32 %v519, 16
      %v660 = vrot.slane %v658, 1
      %v661 = vsel %vm521, %v656, %v660
      %v662 = vshrl.u32 %v519, 16
      %v664 = vor.u32 %v662, %v660
      %v666 = vshll.u32 %v520, 16
      %v668 = vrot.slane %v666, 1
      %v669 = vsel %vm521, %v664, %v668
      %vm670 = vcmask 31744
      %v672 = vsel %vm670, %v533, 0
      %v675 = vsel %vm670, %v541, 0
      %v678 = vsel %vm670, %v549, 0
      %v681 = vsel %vm670, %v557, 0
      %v684 = vsel %vm670, %v565, 0
      %v687 = vsel %vm670, %v573, 0
      %v690 = vsel %vm670, %v581, 0
      %v693 = vsel %vm670, %v589, 0
      %v696 = vsel %vm670, %v597, 0
      %v699 = vsel %vm670, %v605, 0
      %v702 = vsel %vm670, %v613, 0
      %v705 = vsel %vm670, %v621, 0
      %v708 = vsel %vm670, %v629, 0
      %v711 = vsel %vm670, %v637, 0
      %v714 = vsel %vm670, %v645, 0
      %v717 = vsel %vm670, %v653, 0
      %v720 = vsel %vm670, %v661, 0
      %v723 = vsel %vm670, %v669, 0
      %vm725 = vcmask 1041408
      %v727 = vsel %vm725, %v427, 0
      %729 = vmatprep.subr.bf16.mxu0 0
      %730 = vmatpush1.bf16.msra.mxu0 %v727
      %731 = vmatprep.subr.bf16.mxu0 0
      %732 = vmatpush1.bf16.msra.mxu0 0
      %733 = vmatprep.subr.bf16.mxu0 0
      %734 = vmatpush1.bf16.msra.mxu0 0
      %735 = vmatprep.subr.bf16.mxu0 0
      %736 = vmatpush1.bf16.msra.mxu0 0
      %737 = vmatprep.subr.bf16.mxu0 0
      %738 = vmatpush1.bf16.msra.mxu0 0
      %739 = vmatprep.subr.bf16.mxu0 0
      %740 = vmatpush1.bf16.msra.mxu0 0
      %741 = vmatprep.subr.bf16.mxu0 0
      %742 = vmatpush1.bf16.msra.mxu0 0
      %743 = vmatprep.subr.bf16.mxu0 0
      %744 = vmatpush1.bf16.msra.mxu0 0
      %745 = vmatprep.subr.bf16.mxu0 0
      %746 = vmatpush1.bf16.msra.mxu0 0
      %747 = vmatprep.subr.bf16.mxu0 0
      %748 = vmatpush1.bf16.msra.mxu0 0
      %749 = vmatprep.subr.bf16.mxu0 0
      %750 = vmatpush1.bf16.msra.mxu0 0
      %751 = vmatprep.subr.bf16.mxu0 0
      %752 = vmatpush1.bf16.msra.mxu0 0
      %753 = vmatprep.subr.bf16.mxu0 0
      %754 = vmatpush1.bf16.msra.mxu0 0
      %755 = vmatprep.subr.bf16.mxu0 0
      %756 = vmatpush1.bf16.msra.mxu0 0
      %757 = vmatprep.subr.bf16.mxu0 0
      %758 = vmatpush1.bf16.msra.mxu0 0
      %759 = vmatprep.subr.bf16.mxu0 0
      %760 = vmatpush1.bf16.msra.mxu0 0
      %761 = vmatprep.mubr.bf16.mxu0 0
      %762 = vmatmul.mubr.bf16.gmra.mrb[0].mxu0 %v672
      %v763 = vpop.f32.mrb[0].mxu0
      %v764 = vadd.f32 0.0, %v763
      %v765 = vpop.f32.mrb[0].mxu0
      %v766 = vpop.f32.mrb[0].mxu0
      %v767 = vadd.f32 0.0, %v766
      %v768 = vpop.f32.mrb[0].mxu0
      %769 = vmatprep.mubr.bf16.mxu0 0
      %770 = vmatmul.mubr.bf16.gmra.mrb[0].mxu0 %v675
      %v771 = vpop.f32.mrb[0].mxu0
      %v772 = vadd.f32 0.0, %v771
      %v773 = vpop.f32.mrb[0].mxu0
      %v774 = vpop.f32.mrb[0].mxu0
      %v775 = vadd.f32 0.0, %v774
      %v776 = vpop.f32.mrb[0].mxu0
      %777 = vmatprep.mubr.bf16.mxu0 0
      %778 = vmatmul.mubr.bf16.gmra.mrb[0].mxu0 %v678
      %v779 = vpop.f32.mrb[0].mxu0
      %v780 = vadd.f32 0.0, %v779
      %v781 = vpop.f32.mrb[0].mxu0
      %v782 = vpop.f32.mrb[0].mxu0
      %v783 = vadd.f32 0.0, %v782
      %v784 = vpop.f32.mrb[0].mxu0
      %785 = vmatprep.mubr.bf16.mxu0 0
      %786 = vmatmul.mubr.bf16.gmra.mrb[0].mxu0 %v681
      %v787 = vpop.f32.mrb[0].mxu0
      %v788 = vadd.f32 0.0, %v787
      %v789 = vpop.f32.mrb[0].mxu0
      %v790 = vpop.f32.mrb[0].mxu0
      %v791 = vadd.f32 0.0, %v790
      %v792 = vpop.f32.mrb[0].mxu0
      %793 = vmatprep.mubr.bf16.mxu0 0
      %794 = vmatmul.mubr.bf16.gmra.mrb[0].mxu0 %v684
      %v795 = vpop.f32.mrb[0].mxu0
      %v796 = vadd.f32 0.0, %v795
      %v797 = vpop.f32.mrb[0].mxu0
      %v798 = vpop.f32.mrb[0].mxu0
      %v799 = vadd.f32 0.0, %v798
      %v800 = vpop.f32.mrb[0].mxu0
      %801 = vmatprep.mubr.bf16.mxu0 0
      %802 = vmatmul.mubr.bf16.gmra.mrb[0].mxu0 %v687
      %v803 = vpop.f32.mrb[0].mxu0
      %v804 = vadd.f32 0.0, %v803
      %v805 = vpop.f32.mrb[0].mxu0
      %v806 = vpop.f32.mrb[0].mxu0
      %v807 = vadd.f32 0.0, %v806
      %v808 = vpop.f32.mrb[0].mxu0
      %809 = vmatprep.mubr.bf16.mxu0 0
      %810 = vmatmul.mubr.bf16.gmra.mrb[0].mxu0 %v690
      %v811 = vpop.f32.mrb[0].mxu0
      %v812 = vadd.f32 0.0, %v811
      %v813 = vpop.f32.mrb[0].mxu0
      %v814 = vpop.f32.mrb[0].mxu0
      %v815 = vadd.f32 0.0, %v814
      %v816 = vpop.f32.mrb[0].mxu0
      %817 = vmatprep.mubr.bf16.mxu0 0
      %818 = vmatmul.mubr.bf16.gmra.mrb[0].mxu0 %v693
      %v819 = vpop.f32.mrb[0].mxu0
      %v820 = vadd.f32 0.0, %v819
      %v821 = vpop.f32.mrb[0].mxu0
      %v822 = vpop.f32.mrb[0].mxu0
      %v823 = vadd.f32 0.0, %v822
      %v824 = vpop.f32.mrb[0].mxu0
      %825 = vmatprep.mubr.bf16.mxu0 0
      %826 = vmatmul.mubr.bf16.gmra.mrb[0].mxu0 %v696
      %v827 = vpop.f32.mrb[0].mxu0
      %v828 = vadd.f32 0.0, %v827
      %v829 = vpop.f32.mrb[0].mxu0
      %v830 = vpop.f32.mrb[0].mxu0
      %v831 = vadd.f32 0.0, %v830
      %v832 = vpop.f32.mrb[0].mxu0
      %833 = vmatprep.mubr.bf16.mxu0 0
      %834 = vmatmul.mubr.bf16.gmra.mrb[0].mxu0 %v699
      %v835 = vpop.f32.mrb[0].mxu0
      %v836 = vadd.f32 0.0, %v835
      %v837 = vpop.f32.mrb[0].mxu0
      %v838 = vpop.f32.mrb[0].mxu0
      %v839 = vadd.f32 0.0, %v838
      %v840 = vpop.f32.mrb[0].mxu0
      %841 = vmatprep.mubr.bf16.mxu0 0
      %842 = vmatmul.mubr.bf16.gmra.mrb[0].mxu0 %v702
      %v843 = vpop.f32.mrb[0].mxu0
      %v844 = vadd.f32 0.0, %v843
      %v845 = vpop.f32.mrb[0].mxu0
      %v846 = vpop.f32.mrb[0].mxu0
      %v847 = vadd.f32 0.0, %v846
      %v848 = vpop.f32.mrb[0].mxu0
      %849 = vmatprep.mubr.bf16.mxu0 0
      %850 = vmatmul.mubr.bf16.gmra.mrb[0].mxu0 %v705
      %v851 = vpop.f32.mrb[0].mxu0
      %v852 = vadd.f32 0.0, %v851
      %v853 = vpop.f32.mrb[0].mxu0
      %v854 = vpop.f32.mrb[0].mxu0
      %v855 = vadd.f32 0.0, %v854
      %v856 = vpop.f32.mrb[0].mxu0
      %857 = vmatprep.mubr.bf16.mxu0 0
      %858 = vmatmul.mubr.bf16.gmra.mrb[0].mxu0 %v708
      %v859 = vpop.f32.mrb[0].mxu0
      %v860 = vadd.f32 0.0, %v859
      %v861 = vpop.f32.mrb[0].mxu0
      %v862 = vpop.f32.mrb[0].mxu0
      %v863 = vadd.f32 0.0, %v862
      %v864 = vpop.f32.mrb[0].mxu0
      %865 = vmatprep.mubr.bf16.mxu0 0
      %866 = vmatmul.mubr.bf16.gmra.mrb[0].mxu0 %v711
      %v867 = vpop.f32.mrb[0].mxu0
      %v868 = vadd.f32 0.0, %v867
      %v869 = vpop.f32.mrb[0].mxu0
      %v870 = vpop.f32.mrb[0].mxu0
      %v871 = vadd.f32 0.0, %v870
      %v872 = vpop.f32.mrb[0].mxu0
      %873 = vmatprep.mubr.bf16.mxu0 0
      %874 = vmatmul.mubr.bf16.gmra.mrb[0].mxu0 %v714
      %v875 = vpop.f32.mrb[0].mxu0
      %v876 = vadd.f32 0.0, %v875
      %v877 = vpop.f32.mrb[0].mxu0
      %v878 = vpop.f32.mrb[0].mxu0
      %v879 = vadd.f32 0.0, %v878
      %v880 = vpop.f32.mrb[0].mxu0
      %881 = vmatprep.mubr.bf16.mxu0 0
      %882 = vmatmul.mubr.bf16.gmra.mrb[0].mxu0 %v717
      %v883 = vpop.f32.mrb[0].mxu0
      %v884 = vadd.f32 0.0, %v883
      %v885 = vpop.f32.mrb[0].mxu0
      %v886 = vpop.f32.mrb[0].mxu0
      %v887 = vadd.f32 0.0, %v886
      %v888 = vpop.f32.mrb[0].mxu0
      %889 = vmatprep.mubr.bf16.mxu0 0
      %890 = vmatmul.mubr.bf16.gmra.mrb[0].mxu0 %v720
      %v891 = vpop.f32.mrb[0].mxu0
      %v892 = vadd.f32 0.0, %v891
      %v893 = vpop.f32.mrb[0].mxu0
      %v894 = vpop.f32.mrb[0].mxu0
      %v895 = vadd.f32 0.0, %v894
      %v896 = vpop.f32.mrb[0].mxu0
      %897 = vmatprep.mubr.bf16.mxu0 0
      %898 = vmatmul.mubr.bf16.gmra.mrb[0].mxu0 %v723
      %v899 = vpop.f32.mrb[0].mxu0
      %v900 = vadd.f32 0.0, %v899
      %v901 = vpop.f32.mrb[0].mxu0
      %v902 = vpop.f32.mrb[0].mxu0
      %v903 = vadd.f32 0.0, %v902
      %v904 = vpop.f32.mrb[0].mxu0
      %905 = vdwg.mxu0
      %v906 = vsel %vm670, %v502, 0
      %v908 = vsel %vm670, %v503, 0
      %v910 = vsel %vm670, %v504, 0
      %v912 = vsel %vm670, %v505, 0
      %v914 = vsel %vm670, %v506, 0
      %v916 = vsel %vm670, %v507, 0
      %v918 = vsel %vm670, %v508, 0
      %v920 = vsel %vm670, %v509, 0
      %v922 = vsel %vm670, %v510, 0
      %v924 = vsel %vm670, %v511, 0
      %v926 = vsel %vm670, %v512, 0
      %v928 = vsel %vm670, %v513, 0
      %v930 = vsel %vm670, %v514, 0
      %v932 = vsel %vm670, %v515, 0
      %v934 = vsel %vm670, %v516, 0
      %v936 = vsel %vm670, %v517, 0
      %v938 = vsel %vm670, %v518, 0
      %v940 = vsel %vm670, %v519, 0
      %v943 = vsel %vm725, %v424, 0
      %945 = vmatprep.subr.bf16.mxu0 0
      %946 = vmatpush1.bf16.msra.mxu0 %v943
      %947 = vmatprep.subr.bf16.mxu0 0
      %948 = vmatpush1.bf16.msra.mxu0 0
      %949 = vmatprep.subr.bf16.mxu0 0
      %950 = vmatpush1.bf16.msra.mxu0 0
      %951 = vmatprep.subr.bf16.mxu0 0
      %952 = vmatpush1.bf16.msra.mxu0 0
      %953 = vmatprep.subr.bf16.mxu0 0
      %954 = vmatpush1.bf16.msra.mxu0 0
      %955 = vmatprep.subr.bf16.mxu0 0
      %956 = vmatpush1.bf16.msra.mxu0 0
      %957 = vmatprep.subr.bf16.mxu0 0
      %958 = vmatpush1.bf16.msra.mxu0 0
      %959 = vmatprep.subr.bf16.mxu0 0
      %960 = vmatpush1.bf16.msra.mxu0 0
      %961 = vmatprep.subr.bf16.mxu0 0
      %962 = vmatpush1.bf16.msra.mxu0 0
      %963 = vmatprep.subr.bf16.mxu0 0
      %964 = vmatpush1.bf16.msra.mxu0 0
      %965 = vmatprep.subr.bf16.mxu0 0
      %966 = vmatpush1.bf16.msra.mxu0 0
      %967 = vmatprep.subr.bf16.mxu0 0
      %968 = vmatpush1.bf16.msra.mxu0 0
      %969 = vmatprep.subr.bf16.mxu0 0
      %970 = vmatpush1.bf16.msra.mxu0 0
      %971 = vmatprep.subr.bf16.mxu0 0
      %972 = vmatpush1.bf16.msra.mxu0 0
      %973 = vmatprep.subr.bf16.mxu0 0
      %974 = vmatpush1.bf16.msra.mxu0 0
      %975 = vmatprep.subr.bf16.mxu0 0
      %976 = vmatpush1.bf16.msra.mxu0 0
      %977 = vmatprep.mubr.bf16.mxu0 0
      %978 = vmatmul.mubr.bf16.gmra.mrb[0].mxu0 %v906
      %v979 = vpop.f32.mrb[0].mxu0
      %v980 = vadd.f32 %v764, %v979
      %v981 = vpop.f32.mrb[0].mxu0
      %v982 = vpop.f32.mrb[0].mxu0
      %v983 = vadd.f32 %v767, %v982
      %v984 = vpop.f32.mrb[0].mxu0
      %985 = vmatprep.mubr.bf16.mxu0 0
      %986 = vmatmul.mubr.bf16.gmra.mrb[0].mxu0 %v908
      %v987 = vpop.f32.mrb[0].mxu0
      %v988 = vadd.f32 %v772, %v987
      %v989 = vpop.f32.mrb[0].mxu0
      %v990 = vpop.f32.mrb[0].mxu0
      %v991 = vadd.f32 %v775, %v990
      %v992 = vpop.f32.mrb[0].mxu0
      %993 = vmatprep.mubr.bf16.mxu0 0
      %994 = vmatmul.mubr.bf16.gmra.mrb[0].mxu0 %v910
      %v995 = vpop.f32.mrb[0].mxu0
      %v996 = vadd.f32 %v780, %v995
      %v997 = vpop.f32.mrb[0].mxu0
      %v998 = vpop.f32.mrb[0].mxu0
      %v999 = vadd.f32 %v783, %v998
      %v1000 = vpop.f32.mrb[0].mxu0
      %1001 = vmatprep.mubr.bf16.mxu0 0
      %1002 = vmatmul.mubr.bf16.gmra.mrb[0].mxu0 %v912
      %v1003 = vpop.f32.mrb[0].mxu0
      %v1004 = vadd.f32 %v788, %v1003
      %v1005 = vpop.f32.mrb[0].mxu0
      %v1006 = vpop.f32.mrb[0].mxu0
      %v1007 = vadd.f32 %v791, %v1006
      %v1008 = vpop.f32.mrb[0].mxu0
      %1009 = vmatprep.mubr.bf16.mxu0 0
      %1010 = vmatmul.mubr.bf16.gmra.mrb[0].mxu0 %v914
      %v1011 = vpop.f32.mrb[0].mxu0
      %v1012 = vadd.f32 %v796, %v1011
      %v1013 = vpop.f32.mrb[0].mxu0
      %v1014 = vpop.f32.mrb[0].mxu0
      %v1015 = vadd.f32 %v799, %v1014
      %v1016 = vpop.f32.mrb[0].mxu0
      %1017 = vmatprep.mubr.bf16.mxu0 0
      %1018 = vmatmul.mubr.bf16.gmra.mrb[0].mxu0 %v916
      %v1019 = vpop.f32.mrb[0].mxu0
      %v1020 = vadd.f32 %v804, %v1019
      %v1021 = vpop.f32.mrb[0].mxu0
      %v1022 = vpop.f32.mrb[0].mxu0
      %v1023 = vadd.f32 %v807, %v1022
      %v1024 = vpop.f32.mrb[0].mxu0
      %1025 = vmatprep.mubr.bf16.mxu0 0
      %1026 = vmatmul.mubr.bf16.gmra.mrb[0].mxu0 %v918
      %v1027 = vpop.f32.mrb[0].mxu0
      %v1028 = vadd.f32 %v812, %v1027
      %v1029 = vpop.f32.mrb[0].mxu0
      %v1030 = vpop.f32.mrb[0].mxu0
      %v1031 = vadd.f32 %v815, %v1030
      %v1032 = vpop.f32.mrb[0].mxu0
      %1033 = vmatprep.mubr.bf16.mxu0 0
      %1034 = vmatmul.mubr.bf16.gmra.mrb[0].mxu0 %v920
      %v1035 = vpop.f32.mrb[0].mxu0
      %v1036 = vadd.f32 %v820, %v1035
      %v1037 = vpop.f32.mrb[0].mxu0
      %v1038 = vpop.f32.mrb[0].mxu0
      %v1039 = vadd.f32 %v823, %v1038
      %v1040 = vpop.f32.mrb[0].mxu0
      %1041 = vmatprep.mubr.bf16.mxu0 0
      %1042 = vmatmul.mubr.bf16.gmra.mrb[0].mxu0 %v922
      %v1043 = vpop.f32.mrb[0].mxu0
      %v1044 = vadd.f32 %v828, %v1043
      %v1045 = vpop.f32.mrb[0].mxu0
      %v1046 = vpop.f32.mrb[0].mxu0
      %v1047 = vadd.f32 %v831, %v1046
      %v1048 = vpop.f32.mrb[0].mxu0
      %1049 = vmatprep.mubr.bf16.mxu0 0
      %1050 = vmatmul.mubr.bf16.gmra.mrb[0].mxu0 %v924
      %v1051 = vpop.f32.mrb[0].mxu0
      %v1052 = vadd.f32 %v836, %v1051
      %v1053 = vpop.f32.mrb[0].mxu0
      %v1054 = vpop.f32.mrb[0].mxu0
      %v1055 = vadd.f32 %v839, %v1054
      %v1056 = vpop.f32.mrb[0].mxu0
      %1057 = vmatprep.mubr.bf16.mxu0 0
      %1058 = vmatmul.mubr.bf16.gmra.mrb[0].mxu0 %v926
      %v1059 = vpop.f32.mrb[0].mxu0
      %v1060 = vadd.f32 %v844, %v1059
      %v1061 = vpop.f32.mrb[0].mxu0
      %v1062 = vpop.f32.mrb[0].mxu0
      %v1063 = vadd.f32 %v847, %v1062
      %v1064 = vpop.f32.mrb[0].mxu0
      %1065 = vmatprep.mubr.bf16.mxu0 0
      %1066 = vmatmul.mubr.bf16.gmra.mrb[0].mxu0 %v928
      %v1067 = vpop.f32.mrb[0].mxu0
      %v1068 = vadd.f32 %v852, %v1067
      %v1069 = vpop.f32.mrb[0].mxu0
      %v1070 = vpop.f32.mrb[0].mxu0
      %v1071 = vadd.f32 %v855, %v1070
      %v1072 = vpop.f32.mrb[0].mxu0
      %1073 = vmatprep.mubr.bf16.mxu0 0
      %1074 = vmatmul.mubr.bf16.gmra.mrb[0].mxu0 %v930
      %v1075 = vpop.f32.mrb[0].mxu0
      %v1076 = vadd.f32 %v860, %v1075
      %v1077 = vpop.f32.mrb[0].mxu0
      %v1078 = vpop.f32.mrb[0].mxu0
      %v1079 = vadd.f32 %v863, %v1078
      %v1080 = vpop.f32.mrb[0].mxu0
      %1081 = vmatprep.mubr.bf16.mxu0 0
      %1082 = vmatmul.mubr.bf16.gmra.mrb[0].mxu0 %v932
      %v1083 = vpop.f32.mrb[0].mxu0
      %v1084 = vadd.f32 %v868, %v1083
      %v1085 = vpop.f32.mrb[0].mxu0
      %v1086 = vpop.f32.mrb[0].mxu0
      %v1087 = vadd.f32 %v871, %v1086
      %v1088 = vpop.f32.mrb[0].mxu0
      %1089 = vmatprep.mubr.bf16.mxu0 0
      %1090 = vmatmul.mubr.bf16.gmra.mrb[0].mxu0 %v934
      %v1091 = vpop.f32.mrb[0].mxu0
      %v1092 = vadd.f32 %v876, %v1091
      %v1093 = vpop.f32.mrb[0].mxu0
      %v1094 = vpop.f32.mrb[0].mxu0
      %v1095 = vadd.f32 %v879, %v1094
      %v1096 = vpop.f32.mrb[0].mxu0
      %1097 = vmatprep.mubr.bf16.mxu0 0
      %1098 = vmatmul.mubr.bf16.gmra.mrb[0].mxu0 %v936
      %v1099 = vpop.f32.mrb[0].mxu0
      %v1100 = vadd.f32 %v884, %v1099
      %v1101 = vpop.f32.mrb[0].mxu0
      %v1102 = vpop.f32.mrb[0].mxu0
      %v1103 = vadd.f32 %v887, %v1102
      %v1104 = vpop.f32.mrb[0].mxu0
      %1105 = vmatprep.mubr.bf16.mxu0 0
      %1106 = vmatmul.mubr.bf16.gmra.mrb[0].mxu0 %v938
      %v1107 = vpop.f32.mrb[0].mxu0
      %v1108 = vadd.f32 %v892, %v1107
      %v1109 = vpop.f32.mrb[0].mxu0
      %v1110 = vpop.f32.mrb[0].mxu0
      %v1111 = vadd.f32 %v895, %v1110
      %v1112 = vpop.f32.mrb[0].mxu0
      %1113 = vmatprep.mubr.bf16.mxu0 0
      %1114 = vmatmul.mubr.bf16.gmra.mrb[0].mxu0 %v940
      %v1115 = vpop.f32.mrb[0].mxu0
      %v1116 = vadd.f32 %v900, %v1115
      %v1117 = vpop.f32.mrb[0].mxu0
      %v1118 = vpop.f32.mrb[0].mxu0
      %v1119 = vadd.f32 %v903, %v1118
      %v1120 = vpop.f32.mrb[0].mxu0
      %1121 = vdwg.mxu0
      %v1122 = vld [vmem:[%s381] sm:$0xe]
      %s1123 = scalar_lea.vmem %s2, 4
      %v1124 = vld [vmem:[%s1123] sm:$0x3]
      %v1126 = vunpack.c.l.b16 %v1122
      %v1127 = vpack.c.b16 %v466, %v1126
      %vm1128 = vcmask 1046528
      %v1129 = vrot.slane %v1127, 1
      %v1130 = vrot.slane %v503, 1
      %v1131 = vsel %vm1128, %v1129, %v1130
      %v1132 = vrot.slane %v504, 1
      %v1133 = vsel %vm1128, %v1130, %v1132
      %v1134 = vrot.slane %v505, 1
      %v1135 = vsel %vm1128, %v1132, %v1134
      %v1136 = vrot.slane %v506, 1
      %v1137 = vsel %vm1128, %v1134, %v1136
      %v1138 = vrot.slane %v507, 1
      %v1139 = vsel %vm1128, %v1136, %v1138
      %v1140 = vrot.slane %v508, 1
      %v1141 = vsel %vm1128, %v1138, %v1140
      %v1142 = vrot.slane %v509, 1
      %v1143 = vsel %vm1128, %v1140, %v1142
      %v1144 = vrot.slane %v510, 1
      %v1145 = vsel %vm1128, %v1142, %v1144
      %v1146 = vrot.slane %v511, 1
      %v1147 = vsel %vm1128, %v1144, %v1146
      %v1148 = vrot.slane %v512, 1
      %v1149 = vsel %vm1128, %v1146, %v1148
      %v1150 = vrot.slane %v513, 1
      %v1151 = vsel %vm1128, %v1148, %v1150
      %v1152 = vrot.slane %v514, 1
      %v1153 = vsel %vm1128, %v1150, %v1152
      %v1154 = vrot.slane %v515, 1
      %v1155 = vsel %vm1128, %v1152, %v1154
      %v1156 = vrot.slane %v516, 1
      %v1157 = vsel %vm1128, %v1154, %v1156
      %v1158 = vrot.slane %v517, 1
      %v1159 = vsel %vm1128, %v1156, %v1158
      %v1160 = vrot.slane %v518, 1
      %v1161 = vsel %vm1128, %v1158, %v1160
      %v1162 = vrot.slane %v519, 1
      %v1163 = vsel %vm1128, %v1160, %v1162
      %v1164 = vrot.slane %v520, 1
      %v1165 = vsel %vm1128, %v1162, %v1164
      %v1167 = vsel %vm670, %v1131, 0
      %v1170 = vsel %vm670, %v1133, 0
      %v1173 = vsel %vm670, %v1135, 0
      %v1176 = vsel %vm670, %v1137, 0
      %v1179 = vsel %vm670, %v1139, 0
      %v1182 = vsel %vm670, %v1141, 0
      %v1185 = vsel %vm670, %v1143, 0
      %v1188 = vsel %vm670, %v1145, 0
      %v1191 = vsel %vm670, %v1147, 0
      %v1194 = vsel %vm670, %v1149, 0
      %v1197 = vsel %vm670, %v1151, 0
      %v1200 = vsel %vm670, %v1153, 0
      %v1203 = vsel %vm670, %v1155, 0
      %v1206 = vsel %vm670, %v1157, 0
      %v1209 = vsel %vm670, %v1159, 0
      %v1212 = vsel %vm670, %v1161, 0
      %v1215 = vsel %vm670, %v1163, 0
      %v1218 = vsel %vm670, %v1165, 0
      %v1221 = vsel %vm725, %v1124, 0
      %1223 = vmatprep.subr.bf16.mxu0 0
      %1224 = vmatpush1.bf16.msra.mxu0 %v1221
      %1225 = vmatprep.subr.bf16.mxu0 0
      %1226 = vmatpush1.bf16.msra.mxu0 0
      %1227 = vmatprep.subr.bf16.mxu0 0
      %1228 = vmatpush1.bf16.msra.mxu0 0
      %1229 = vmatprep.subr.bf16.mxu0 0
      %1230 = vmatpush1.bf16.msra.mxu0 0
      %1231 = vmatprep.subr.bf16.mxu0 0
      %1232 = vmatpush1.bf16.msra.mxu0 0
      %1233 = vmatprep.subr.bf16.mxu0 0
      %1234 = vmatpush1.bf16.msra.mxu0 0
      %1235 = vmatprep.subr.bf16.mxu0 0
      %1236 = vmatpush1.bf16.msra.mxu0 0
      %1237 = vmatprep.subr.bf16.mxu0 0
      %1238 = vmatpush1.bf16.msra.mxu0 0
      %1239 = vmatprep.subr.bf16.mxu0 0
      %1240 = vmatpush1.bf16.msra.mxu0 0
      %1241 = vmatprep.subr.bf16.mxu0 0
      %1242 = vmatpush1.bf16.msra.mxu0 0
      %1243 = vmatprep.subr.bf16.mxu0 0
      %1244 = vmatpush1.bf16.msra.mxu0 0
      %1245 = vmatprep.subr.bf16.mxu0 0
      %1246 = vmatpush1.bf16.msra.mxu0 0
      %1247 = vmatprep.subr.bf16.mxu0 0
      %1248 = vmatpush1.bf16.msra.mxu0 0
      %1249 = vmatprep.subr.bf16.mxu0 0
      %1250 = vmatpush1.bf16.msra.mxu0 0
      %1251 = vmatprep.subr.bf16.mxu0 0
      %1252 = vmatpush1.bf16.msra.mxu0 0
      %1253 = vmatprep.subr.bf16.mxu0 0
      %1254 = vmatpush1.bf16.msra.mxu0 0
      %1255 = vmatprep.mubr.bf16.mxu0 0
      %1256 = vmatmul.mubr.bf16.gmra.mrb[0].mxu0 %v1167
      %v1257 = vpop.f32.mrb[0].mxu0
      %v1258 = vadd.f32 0.0, %v1257
      %v1259 = vpop.f32.mrb[0].mxu0
      %v1260 = vpop.f32.mrb[0].mxu0
      %v1261 = vadd.f32 0.0, %v1260
      %v1262 = vpop.f32.mrb[0].mxu0
      %1263 = vmatprep.mubr.bf16.mxu0 0
      %1264 = vmatmul.mubr.bf16.gmra.mrb[0].mxu0 %v1170
      %v1265 = vpop.f32.mrb[0].mxu0
      %v1266 = vadd.f32 0.0, %v1265
      %v1267 = vpop.f32.mrb[0].mxu0
      %v1268 = vpop.f32.mrb[0].mxu0
      %v1269 = vadd.f32 0.0, %v1268
      %v1270 = vpop.f32.mrb[0].mxu0
      %1271 = vmatprep.mubr.bf16.mxu0 0
      %1272 = vmatmul.mubr.bf16.gmra.mrb[0].mxu0 %v1173
      %v1273 = vpop.f32.mrb[0].mxu0
      %v1274 = vadd.f32 0.0, %v1273
      %v1275 = vpop.f32.mrb[0].mxu0
      %v1276 = vpop.f32.mrb[0].mxu0
      %v1277 = vadd.f32 0.0, %v1276
      %v1278 = vpop.f32.mrb[0].mxu0
      %1279 = vmatprep.mubr.bf16.mxu0 0
      %1280 = vmatmul.mubr.bf16.gmra.mrb[0].mxu0 %v1176
      %v1281 = vpop.f32.mrb[0].mxu0
      %v1282 = vadd.f32 0.0, %v1281
      %v1283 = vpop.f32.mrb[0].mxu0
      %v1284 = vpop.f32.mrb[0].mxu0
      %v1285 = vadd.f32 0.0, %v1284
      %v1286 = vpop.f32.mrb[0].mxu0
      %1287 = vmatprep.mubr.bf16.mxu0 0
      %1288 = vmatmul.mubr.bf16.gmra.mrb[0].mxu0 %v1179
      %v1289 = vpop.f32.mrb[0].mxu0
      %v1290 = vadd.f32 0.0, %v1289
      %v1291 = vpop.f32.mrb[0].mxu0
      %v1292 = vpop.f32.mrb[0].mxu0
      %v1293 = vadd.f32 0.0, %v1292
      %v1294 = vpop.f32.mrb[0].mxu0
      %1295 = vmatprep.mubr.bf16.mxu0 0
      %1296 = vmatmul.mubr.bf16.gmra.mrb[0].mxu0 %v1182
      %v1297 = vpop.f32.mrb[0].mxu0
      %v1298 = vadd.f32 0.0, %v1297
      %v1299 = vpop.f32.mrb[0].mxu0
      %v1300 = vpop.f32.mrb[0].mxu0
      %v1301 = vadd.f32 0.0, %v1300
      %v1302 = vpop.f32.mrb[0].mxu0
      %1303 = vmatprep.mubr.bf16.mxu0 0
      %1304 = vmatmul.mubr.bf16.gmra.mrb[0].mxu0 %v1185
      %v1305 = vpop.f32.mrb[0].mxu0
      %v1306 = vadd.f32 0.0, %v1305
      %v1307 = vpop.f32.mrb[0].mxu0
      %v1308 = vpop.f32.mrb[0].mxu0
      %v1309 = vadd.f32 0.0, %v1308
      %v1310 = vpop.f32.mrb[0].mxu0
      %1311 = vmatprep.mubr.bf16.mxu0 0
      %1312 = vmatmul.mubr.bf16.gmra.mrb[0].mxu0 %v1188
      %v1313 = vpop.f32.mrb[0].mxu0
      %v1314 = vadd.f32 0.0, %v1313
      %v1315 = vpop.f32.mrb[0].mxu0
      %v1316 = vpop.f32.mrb[0].mxu0
      %v1317 = vadd.f32 0.0, %v1316
      %v1318 = vpop.f32.mrb[0].mxu0
      %1319 = vmatprep.mubr.bf16.mxu0 0
      %1320 = vmatmul.mubr.bf16.gmra.mrb[0].mxu0 %v1191
      %v1321 = vpop.f32.mrb[0].mxu0
      %v1322 = vadd.f32 0.0, %v1321
      %v1323 = vpop.f32.mrb[0].mxu0
      %v1324 = vpop.f32.mrb[0].mxu0
      %v1325 = vadd.f32 0.0, %v1324
      %v1326 = vpop.f32.mrb[0].mxu0
      %1327 = vmatprep.mubr.bf16.mxu0 0
      %1328 = vmatmul.mubr.bf16.gmra.mrb[0].mxu0 %v1194
      %v1329 = vpop.f32.mrb[0].mxu0
      %v1330 = vadd.f32 0.0, %v1329
      %v1331 = vpop.f32.mrb[0].mxu0
      %v1332 = vpop.f32.mrb[0].mxu0
      %v1333 = vadd.f32 0.0, %v1332
      %v1334 = vpop.f32.mrb[0].mxu0
      %1335 = vmatprep.mubr.bf16.mxu0 0
      %1336 = vmatmul.mubr.bf16.gmra.mrb[0].mxu0 %v1197
      %v1337 = vpop.f32.mrb[0].mxu0
      %v1338 = vadd.f32 0.0, %v1337
      %v1339 = vpop.f32.mrb[0].mxu0
      %v1340 = vpop.f32.mrb[0].mxu0
      %v1341 = vadd.f32 0.0, %v1340
      %v1342 = vpop.f32.mrb[0].mxu0
      %1343 = vmatprep.mubr.bf16.mxu0 0
      %1344 = vmatmul.mubr.bf16.gmra.mrb[0].mxu0 %v1200
      %v1345 = vpop.f32.mrb[0].mxu0
      %v1346 = vadd.f32 0.0, %v1345
      %v1347 = vpop.f32.mrb[0].mxu0
      %v1348 = vpop.f32.mrb[0].mxu0
      %v1349 = vadd.f32 0.0, %v1348
      %v1350 = vpop.f32.mrb[0].mxu0
      %1351 = vmatprep.mubr.bf16.mxu0 0
      %1352 = vmatmul.mubr.bf16.gmra.mrb[0].mxu0 %v1203
      %v1353 = vpop.f32.mrb[0].mxu0
      %v1354 = vadd.f32 0.0, %v1353
      %v1355 = vpop.f32.mrb[0].mxu0
      %v1356 = vpop.f32.mrb[0].mxu0
      %v1357 = vadd.f32 0.0, %v1356
      %v1358 = vpop.f32.mrb[0].mxu0
      %1359 = vmatprep.mubr.bf16.mxu0 0
      %1360 = vmatmul.mubr.bf16.gmra.mrb[0].mxu0 %v1206
      %v1361 = vpop.f32.mrb[0].mxu0
      %v1362 = vadd.f32 0.0, %v1361
      %v1363 = vpop.f32.mrb[0].mxu0
      %v1364 = vpop.f32.mrb[0].mxu0
      %v1365 = vadd.f32 0.0, %v1364
      %v1366 = vpop.f32.mrb[0].mxu0
      %1367 = vmatprep.mubr.bf16.mxu0 0
      %1368 = vmatmul.mubr.bf16.gmra.mrb[0].mxu0 %v1209
      %v1369 = vpop.f32.mrb[0].mxu0
      %v1370 = vadd.f32 0.0, %v1369
      %v1371 = vpop.f32.mrb[0].mxu0
      %v1372 = vpop.f32.mrb[0].mxu0
      %v1373 = vadd.f32 0.0, %v1372
      %v1374 = vpop.f32.mrb[0].mxu0
      %1375 = vmatprep.mubr.bf16.mxu0 0
      %1376 = vmatmul.mubr.bf16.gmra.mrb[0].mxu0 %v1212
      %v1377 = vpop.f32.mrb[0].mxu0
      %v1378 = vadd.f32 0.0, %v1377
      %v1379 = vpop.f32.mrb[0].mxu0
      %v1380 = vpop.f32.mrb[0].mxu0
      %v1381 = vadd.f32 0.0, %v1380
      %v1382 = vpop.f32.mrb[0].mxu0
      %1383 = vmatprep.mubr.bf16.mxu0 0
      %1384 = vmatmul.mubr.bf16.gmra.mrb[0].mxu0 %v1215
      %v1385 = vpop.f32.mrb[0].mxu0
      %v1386 = vadd.f32 0.0, %v1385
      %v1387 = vpop.f32.mrb[0].mxu0
      %v1388 = vpop.f32.mrb[0].mxu0
      %v1389 = vadd.f32 0.0, %v1388
      %v1390 = vpop.f32.mrb[0].mxu0
      %1391 = vmatprep.mubr.bf16.mxu0 0
      %1392 = vmatmul.mubr.bf16.gmra.mrb[0].mxu0 %v1218
      %v1393 = vpop.f32.mrb[0].mxu0
      %v1394 = vadd.f32 0.0, %v1393
      %v1395 = vpop.f32.mrb[0].mxu0
      %v1396 = vpop.f32.mrb[0].mxu0
      %v1397 = vadd.f32 0.0, %v1396
      %v1398 = vpop.f32.mrb[0].mxu0
      %1399 = vdwg.mxu0
      %v1400 = vadd.f32 %v980, %v1258
      %v1401 = vadd.f32 %v983, %v1261
      %v1402 = vadd.f32 %v988, %v1266
      %v1403 = vadd.f32 %v991, %v1269
      %v1404 = vadd.f32 %v996, %v1274
      %v1405 = vadd.f32 %v999, %v1277
      %v1406 = vadd.f32 %v1004, %v1282
      %v1407 = vadd.f32 %v1007, %v1285
      %v1408 = vadd.f32 %v1012, %v1290
      %v1409 = vadd.f32 %v1015, %v1293
      %v1410 = vadd.f32 %v1020, %v1298
      %v1411 = vadd.f32 %v1023, %v1301
      %v1412 = vadd.f32 %v1028, %v1306
      %v1413 = vadd.f32 %v1031, %v1309
      %v1414 = vadd.f32 %v1036, %v1314
      %v1415 = vadd.f32 %v1039, %v1317
      %v1416 = vadd.f32 %v1044, %v1322
      %v1417 = vadd.f32 %v1047, %v1325
      %v1418 = vadd.f32 %v1052, %v1330
      %v1419 = vadd.f32 %v1055, %v1333
      %v1420 = vadd.f32 %v1060, %v1338
      %v1421 = vadd.f32 %v1063, %v1341
      %v1422 = vadd.f32 %v1068, %v1346
      %v1423 = vadd.f32 %v1071, %v1349
      %v1424 = vadd.f32 %v1076, %v1354
      %v1425 = vadd.f32 %v1079, %v1357
      %v1426 = vadd.f32 %v1084, %v1362
      %v1427 = vadd.f32 %v1087, %v1365
      %v1428 = vadd.f32 %v1092, %v1370
      %v1429 = vadd.f32 %v1095, %v1373
      %v1430 = vadd.f32 %v1100, %v1378
      %v1431 = vadd.f32 %v1103, %v1381
      %v1432 = vadd.f32 %v1108, %v1386
      %v1433 = vadd.f32 %v1111, %v1389
      %v1434 = vadd.f32 %v1116, %v1394
      %v1435 = vadd.f32 %v1119, %v1397
      %v1436 = vld [vmem:[%s381 + $0x8] sm:$0xe]
      %v1437 = vld [vmem:[%s381 + $0xc] sm:$0xf]
      %v1438 = vld [vmem:[%s381 + $0x10] sm:$0xf]
      %v1439 = vld [vmem:[%s381 + $0x14] sm:$0xf]
      %v1440 = vld [vmem:[%s381 + $0x18] sm:$0xf]
      %v1441 = vld [vmem:[%s381 + $0x1c] sm:$0xf]
      %v1442 = vld [vmem:[%s381 + $0x20] sm:$0xf]
      %v1443 = vld [vmem:[%s381 + $0x24] sm:$0xf]
      %v1444 = vld [vmem:[%s381 + $0x28] sm:$0xf]
      %v1445 = vld [vmem:[%s381 + $0x2c] sm:$0xf]
      %v1446 = vld [vmem:[%s381 + $0x30] sm:$0xf]
      %v1447 = vld [vmem:[%s381 + $0x34] sm:$0xf]
      %v1448 = vld [vmem:[%s381 + $0x38] sm:$0xf]
      %v1449 = vld [vmem:[%s381 + $0x3c] sm:$0xf]
      %v1450 = vld [vmem:[%s381 + $0x40] sm:$0xf]
      %v1451 = vld [vmem:[%s381 + $0x44] sm:$0xf]
      %v1452 = vld [vmem:[%s381 + $0x48] sm:$0xf]
      %v1453 = vld [vmem:[%s381 + $0x4c] sm:$0xf]
      %v1454 = vld [vmem:[%s381 + $0x50] sm:$0xf]
      %v1455 = vld [vmem:[%s381 + $0x54] sm:$0xf]
      %v1456 = vld [vmem:[%s381 + $0x58] sm:$0xf]
      %v1457 = vld [vmem:[%s381 + $0x5c] sm:$0xf]
      %v1458 = vld [vmem:[%s381 + $0x60] sm:$0xf]
      %v1459 = vld [vmem:[%s381 + $0x64] sm:$0xf]
      %v1460 = vld [vmem:[%s381 + $0x68] sm:$0xf]
      %v1461 = vld [vmem:[%s381 + $0x6c] sm:$0xf]
      %v1462 = vld [vmem:[%s381 + $0x70] sm:$0xf]
      %v1463 = vld [vmem:[%s381 + $0x74] sm:$0xf]
      %v1464 = vld [vmem:[%s381 + $0x78] sm:$0xf]
      %v1465 = vld [vmem:[%s381 + $0x7c] sm:$0xf]
      %v1466 = vld [vmem:[%s381 + $0x80] sm:$0xf]
      %v1467 = vld [vmem:[%s381 + $0x84] sm:$0xf]
      %v1468 = vld [vmem:[%s381 + $0x88] sm:$0xf]
      %v1469 = vld [vmem:[%s381 + $0x8c] sm:$0xf]
      %v1470 = vld [vmem:[%s381 + $0x90] sm:$0xf]
      %v1471 = vld [vmem:[%s381 + $0x94] sm:$0xf]
      %v1472 = vld [vmem:[%s381 + $0x98] sm:$0x1]
      %s1473 = scalar_lea.vmem %s2, 6
      %v1474 = vld [vmem:[%s1473] sm:$0x3]
      %v1512 = vunpack.c.l.b16 %v1436
      %v1513 = vunpack.c.l.b16 %v1437
      %v1514 = vunpack.c.l.b16 %v1438
      %v1515 = vunpack.c.l.b16 %v1439
      %v1516 = vunpack.c.l.b16 %v1440
      %v1517 = vunpack.c.l.b16 %v1441
      %v1518 = vunpack.c.l.b16 %v1442
      %v1519 = vunpack.c.l.b16 %v1443
      %v1520 = vunpack.c.l.b16 %v1444
      %v1521 = vunpack.c.l.b16 %v1445
      %v1522 = vunpack.c.l.b16 %v1446
      %v1523 = vunpack.c.l.b16 %v1447
      %v1524 = vunpack.c.l.b16 %v1448
      %v1525 = vunpack.c.l.b16 %v1449
      %v1526 = vunpack.c.l.b16 %v1450
      %v1527 = vunpack.c.l.b16 %v1451
      %v1528 = vunpack.c.l.b16 %v1452
      %v1529 = vunpack.c.l.b16 %v1453
      %v1530 = vunpack.c.l.b16 %v1454
      %v1531 = vunpack.c.l.b16 %v1455
      %v1532 = vunpack.c.l.b16 %v1456
      %v1533 = vunpack.c.l.b16 %v1457
      %v1534 = vunpack.c.l.b16 %v1458
      %v1535 = vunpack.c.l.b16 %v1459
      %v1536 = vunpack.c.l.b16 %v1460
      %v1537 = vunpack.c.l.b16 %v1461
      %v1538 = vunpack.c.l.b16 %v1462
      %v1539 = vunpack.c.l.b16 %v1463
      %v1540 = vunpack.c.l.b16 %v1464
      %v1541 = vunpack.c.l.b16 %v1465
      %v1542 = vunpack.c.l.b16 %v1466
      %v1543 = vunpack.c.l.b16 %v1467
      %v1544 = vunpack.c.l.b16 %v1468
      %v1545 = vunpack.c.l.b16 %v1469
      %v1546 = vunpack.c.l.b16 %v1470
      %v1547 = vunpack.c.l.b16 %v1471
      %v1548 = vunpack.c.l.b16 %v1472
      %v1549 = vpack.c.b16 %v1513, %v1512
      %v1550 = vpack.c.b16 %v1515, %v1514
      %v1551 = vpack.c.b16 %v1517, %v1516
      %v1552 = vpack.c.b16 %v1519, %v1518
      %v1553 = vpack.c.b16 %v1521, %v1520
      %v1554 = vpack.c.b16 %v1523, %v1522
      %v1555 = vpack.c.b16 %v1525, %v1524
      %v1556 = vpack.c.b16 %v1527, %v1526
      %v1557 = vpack.c.b16 %v1529, %v1528
      %v1558 = vpack.c.b16 %v1531, %v1530
      %v1559 = vpack.c.b16 %v1533, %v1532
      %v1560 = vpack.c.b16 %v1535, %v1534
      %v1561 = vpack.c.b16 %v1537, %v1536
      %v1562 = vpack.c.b16 %v1539, %v1538
      %v1563 = vpack.c.b16 %v1541, %v1540
      %v1564 = vpack.c.b16 %v1543, %v1542
      %v1565 = vpack.c.b16 %v1545, %v1544
      %v1566 = vpack.c.b16 %v1547, %v1546
      %v1567 = vpack.c.b16 %v1548, %v1548
      %v1568 = vrot.slane %v1549, 1
      %v1569 = vrot.slane %v1550, 1
      %v1570 = vsel %vm1128, %v1568, %v1569
      %v1571 = vrot.slane %v1551, 1
      %v1572 = vsel %vm1128, %v1569, %v1571
      %v1573 = vrot.slane %v1552, 1
      %v1574 = vsel %vm1128, %v1571, %v1573
      %v1575 = vrot.slane %v1553, 1
      %v1576 = vsel %vm1128, %v1573, %v1575
      %v1577 = vrot.slane %v1554, 1
      %v1578 = vsel %vm1128, %v1575, %v1577
      %v1579 = vrot.slane %v1555, 1
      %v1580 = vsel %vm1128, %v1577, %v1579
      %v1581 = vrot.slane %v1556, 1
      %v1582 = vsel %vm1128, %v1579, %v1581
      %v1583 = vrot.slane %v1557, 1
      %v1584 = vsel %vm1128, %v1581, %v1583
      %v1585 = vrot.slane %v1558, 1
      %v1586 = vsel %vm1128, %v1583, %v1585
      %v1587 = vrot.slane %v1559, 1
      %v1588 = vsel %vm1128, %v1585, %v1587
      %v1589 = vrot.slane %v1560, 1
      %v1590 = vsel %vm1128, %v1587, %v1589
      %v1591 = vrot.slane %v1561, 1
      %v1592 = vsel %vm1128, %v1589, %v1591
      %v1593 = vrot.slane %v1562, 1
      %v1594 = vsel %vm1128, %v1591, %v1593
      %v1595 = vrot.slane %v1563, 1
      %v1596 = vsel %vm1128, %v1593, %v1595
      %v1597 = vrot.slane %v1564, 1
      %v1598 = vsel %vm1128, %v1595, %v1597
      %v1599 = vrot.slane %v1565, 1
      %v1600 = vsel %vm1128, %v1597, %v1599
      %v1601 = vrot.slane %v1566, 1
      %v1602 = vsel %vm1128, %v1599, %v1601
      %v1603 = vrot.slane %v1567, 1
      %v1604 = vsel %vm1128, %v1601, %v1603
      %v1606 = vsel %vm670, %v1570, 0
      %v1609 = vsel %vm670, %v1572, 0
      %v1612 = vsel %vm670, %v1574, 0
      %v1615 = vsel %vm670, %v1576, 0
      %v1618 = vsel %vm670, %v1578, 0
      %v1621 = vsel %vm670, %v1580, 0
      %v1624 = vsel %vm670, %v1582, 0
      %v1627 = vsel %vm670, %v1584, 0
      %v1630 = vsel %vm670, %v1586, 0
      %v1633 = vsel %vm670, %v1588, 0
      %v1636 = vsel %vm670, %v1590, 0
      %v1639 = vsel %vm670, %v1592, 0
      %v1642 = vsel %vm670, %v1594, 0
      %v1645 = vsel %vm670, %v1596, 0
      %v1648 = vsel %vm670, %v1598, 0
      %v1651 = vsel %vm670, %v1600, 0
      %v1654 = vsel %vm670, %v1602, 0
      %v1657 = vsel %vm670, %v1604, 0
      %v1660 = vsel %vm725, %v1474, 0
      %1662 = vmatprep.subr.bf16.mxu0 0
      %1663 = vmatpush1.bf16.msra.mxu0 %v1660
      %1664 = vmatprep.subr.bf16.mxu0 0
      %1665 = vmatpush1.bf16.msra.mxu0 0
      %1666 = vmatprep.subr.bf16.mxu0 0
      %1667 = vmatpush1.bf16.msra.mxu0 0
      %1668 = vmatprep.subr.bf16.mxu0 0
      %1669 = vmatpush1.bf16.msra.mxu0 0
      %1670 = vmatprep.subr.bf16.mxu0 0
      %1671 = vmatpush1.bf16.msra.mxu0 0
      %1672 = vmatprep.subr.bf16.mxu0 0
      %1673 = vmatpush1.bf16.msra.mxu0 0
      %1674 = vmatprep.subr.bf16.mxu0 0
      %1675 = vmatpush1.bf16.msra.mxu0 0
      %1676 = vmatprep.subr.bf16.mxu0 0
      %1677 = vmatpush1.bf16.msra.mxu0 0
      %1678 = vmatprep.subr.bf16.mxu0 0
      %1679 = vmatpush1.bf16.msra.mxu0 0
      %1680 = vmatprep.subr.bf16.mxu0 0
      %1681 = vmatpush1.bf16.msra.mxu0 0
      %1682 = vmatprep.subr.bf16.mxu0 0
      %1683 = vmatpush1.bf16.msra.mxu0 0
      %1684 = vmatprep.subr.bf16.mxu0 0
      %1685 = vmatpush1.bf16.msra.mxu0 0
      %1686 = vmatprep.subr.bf16.mxu0 0
      %1687 = vmatpush1.bf16.msra.mxu0 0
      %1688 = vmatprep.subr.bf16.mxu0 0
      %1689 = vmatpush1.bf16.msra.mxu0 0
      %1690 = vmatprep.subr.bf16.mxu0 0
      %1691 = vmatpush1.bf16.msra.mxu0 0
      %1692 = vmatprep.subr.bf16.mxu0 0
      %1693 = vmatpush1.bf16.msra.mxu0 0
      %1694 = vmatprep.mubr.bf16.mxu0 0
      %1695 = vmatmul.mubr.bf16.gmra.mrb[0].mxu0 %v1606
      %v1696 = vpop.f32.mrb[0].mxu0
      %v1697 = vadd.f32 0.0, %v1696
      %v1698 = vpop.f32.mrb[0].mxu0
      %v1699 = vpop.f32.mrb[0].mxu0
      %v1700 = vadd.f32 0.0, %v1699
      %v1701 = vpop.f32.mrb[0].mxu0
      %1702 = vmatprep.mubr.bf16.mxu0 0
      %1703 = vmatmul.mubr.bf16.gmra.mrb[0].mxu0 %v1609
      %v1704 = vpop.f32.mrb[0].mxu0
      %v1705 = vadd.f32 0.0, %v1704
      %v1706 = vpop.f32.mrb[0].mxu0
      %v1707 = vpop.f32.mrb[0].mxu0
      %v1708 = vadd.f32 0.0, %v1707
      %v1709 = vpop.f32.mrb[0].mxu0
      %1710 = vmatprep.mubr.bf16.mxu0 0
      %1711 = vmatmul.mubr.bf16.gmra.mrb[0].mxu0 %v1612
      %v1712 = vpop.f32.mrb[0].mxu0
      %v1713 = vadd.f32 0.0, %v1712
      %v1714 = vpop.f32.mrb[0].mxu0
      %v1715 = vpop.f32.mrb[0].mxu0
      %v1716 = vadd.f32 0.0, %v1715
      %v1717 = vpop.f32.mrb[0].mxu0
      %1718 = vmatprep.mubr.bf16.mxu0 0
      %1719 = vmatmul.mubr.bf16.gmra.mrb[0].mxu0 %v1615
      %v1720 = vpop.f32.mrb[0].mxu0
      %v1721 = vadd.f32 0.0, %v1720
      %v1722 = vpop.f32.mrb[0].mxu0
      %v1723 = vpop.f32.mrb[0].mxu0
      %v1724 = vadd.f32 0.0, %v1723
      %v1725 = vpop.f32.mrb[0].mxu0
      %1726 = vmatprep.mubr.bf16.mxu0 0
      %1727 = vmatmul.mubr.bf16.gmra.mrb[0].mxu0 %v1618
      %v1728 = vpop.f32.mrb[0].mxu0
      %v1729 = vadd.f32 0.0, %v1728
      %v1730 = vpop.f32.mrb[0].mxu0
      %v1731 = vpop.f32.mrb[0].mxu0
      %v1732 = vadd.f32 0.0, %v1731
      %v1733 = vpop.f32.mrb[0].mxu0
      %1734 = vmatprep.mubr.bf16.mxu0 0
      %1735 = vmatmul.mubr.bf16.gmra.mrb[0].mxu0 %v1621
      %v1736 = vpop.f32.mrb[0].mxu0
      %v1737 = vadd.f32 0.0, %v1736
      %v1738 = vpop.f32.mrb[0].mxu0
      %v1739 = vpop.f32.mrb[0].mxu0
      %v1740 = vadd.f32 0.0, %v1739
      %v1741 = vpop.f32.mrb[0].mxu0
      %1742 = vmatprep.mubr.bf16.mxu0 0
      %1743 = vmatmul.mubr.bf16.gmra.mrb[0].mxu0 %v1624
      %v1744 = vpop.f32.mrb[0].mxu0
      %v1745 = vadd.f32 0.0, %v1744
      %v1746 = vpop.f32.mrb[0].mxu0
      %v1747 = vpop.f32.mrb[0].mxu0
      %v1748 = vadd.f32 0.0, %v1747
      %v1749 = vpop.f32.mrb[0].mxu0
      %1750 = vmatprep.mubr.bf16.mxu0 0
      %1751 = vmatmul.mubr.bf16.gmra.mrb[0].mxu0 %v1627
      %v1752 = vpop.f32.mrb[0].mxu0
      %v1753 = vadd.f32 0.0, %v1752
      %v1754 = vpop.f32.mrb[0].mxu0
      %v1755 = vpop.f32.mrb[0].mxu0
      %v1756 = vadd.f32 0.0, %v1755
      %v1757 = vpop.f32.mrb[0].mxu0
      %1758 = vmatprep.mubr.bf16.mxu0 0
      %1759 = vmatmul.mubr.bf16.gmra.mrb[0].mxu0 %v1630
      %v1760 = vpop.f32.mrb[0].mxu0
      %v1761 = vadd.f32 0.0, %v1760
      %v1762 = vpop.f32.mrb[0].mxu0
      %v1763 = vpop.f32.mrb[0].mxu0
      %v1764 = vadd.f32 0.0, %v1763
      %v1765 = vpop.f32.mrb[0].mxu0
      %1766 = vmatprep.mubr.bf16.mxu0 0
      %1767 = vmatmul.mubr.bf16.gmra.mrb[0].mxu0 %v1633
      %v1768 = vpop.f32.mrb[0].mxu0
      %v1769 = vadd.f32 0.0, %v1768
      %v1770 = vpop.f32.mrb[0].mxu0
      %v1771 = vpop.f32.mrb[0].mxu0
      %v1772 = vadd.f32 0.0, %v1771
      %v1773 = vpop.f32.mrb[0].mxu0
      %1774 = vmatprep.mubr.bf16.mxu0 0
      %1775 = vmatmul.mubr.bf16.gmra.mrb[0].mxu0 %v1636
      %v1776 = vpop.f32.mrb[0].mxu0
      %v1777 = vadd.f32 0.0, %v1776
      %v1778 = vpop.f32.mrb[0].mxu0
      %v1779 = vpop.f32.mrb[0].mxu0
      %v1780 = vadd.f32 0.0, %v1779
      %v1781 = vpop.f32.mrb[0].mxu0
      %1782 = vmatprep.mubr.bf16.mxu0 0
      %1783 = vmatmul.mubr.bf16.gmra.mrb[0].mxu0 %v1639
      %v1784 = vpop.f32.mrb[0].mxu0
      %v1785 = vadd.f32 0.0, %v1784
      %v1786 = vpop.f32.mrb[0].mxu0
      %v1787 = vpop.f32.mrb[0].mxu0
      %v1788 = vadd.f32 0.0, %v1787
      %v1789 = vpop.f32.mrb[0].mxu0
      %1790 = vmatprep.mubr.bf16.mxu0 0
      %1791 = vmatmul.mubr.bf16.gmra.mrb[0].mxu0 %v1642
      %v1792 = vpop.f32.mrb[0].mxu0
      %v1793 = vadd.f32 0.0, %v1792
      %v1794 = vpop.f32.mrb[0].mxu0
      %v1795 = vpop.f32.mrb[0].mxu0
      %v1796 = vadd.f32 0.0, %v1795
      %v1797 = vpop.f32.mrb[0].mxu0
      %1798 = vmatprep.mubr.bf16.mxu0 0
      %1799 = vmatmul.mubr.bf16.gmra.mrb[0].mxu0 %v1645
      %v1800 = vpop.f32.mrb[0].mxu0
      %v1801 = vadd.f32 0.0, %v1800
      %v1802 = vpop.f32.mrb[0].mxu0
      %v1803 = vpop.f32.mrb[0].mxu0
      %v1804 = vadd.f32 0.0, %v1803
      %v1805 = vpop.f32.mrb[0].mxu0
      %1806 = vmatprep.mubr.bf16.mxu0 0
      %1807 = vmatmul.mubr.bf16.gmra.mrb[0].mxu0 %v1648
      %v1808 = vpop.f32.mrb[0].mxu0
      %v1809 = vadd.f32 0.0, %v1808
      %v1810 = vpop.f32.mrb[0].mxu0
      %v1811 = vpop.f32.mrb[0].mxu0
      %v1812 = vadd.f32 0.0, %v1811
      %v1813 = vpop.f32.mrb[0].mxu0
      %1814 = vmatprep.mubr.bf16.mxu0 0
      %1815 = vmatmul.mubr.bf16.gmra.mrb[0].mxu0 %v1651
      %v1816 = vpop.f32.mrb[0].mxu0
      %v1817 = vadd.f32 0.0, %v1816
      %v1818 = vpop.f32.mrb[0].mxu0
      %v1819 = vpop.f32.mrb[0].mxu0
      %v1820 = vadd.f32 0.0, %v1819
      %v1821 = vpop.f32.mrb[0].mxu0
      %1822 = vmatprep.mubr.bf16.mxu0 0
      %1823 = vmatmul.mubr.bf16.gmra.mrb[0].mxu0 %v1654
      %v1824 = vpop.f32.mrb[0].mxu0
      %v1825 = vadd.f32 0.0, %v1824
      %v1826 = vpop.f32.mrb[0].mxu0
      %v1827 = vpop.f32.mrb[0].mxu0
      %v1828 = vadd.f32 0.0, %v1827
      %v1829 = vpop.f32.mrb[0].mxu0
      %1830 = vmatprep.mubr.bf16.mxu0 0
      %1831 = vmatmul.mubr.bf16.gmra.mrb[0].mxu0 %v1657
      %v1832 = vpop.f32.mrb[0].mxu0
      %v1833 = vadd.f32 0.0, %v1832
      %v1834 = vpop.f32.mrb[0].mxu0
      %v1835 = vpop.f32.mrb[0].mxu0
      %v1836 = vadd.f32 0.0, %v1835
      %v1837 = vpop.f32.mrb[0].mxu0
      %1838 = vdwg.mxu0
      %v1839 = vadd.f32 %v1400, %v1697
      %v1840 = vadd.f32 %v1401, %v1700
      %v1841 = vadd.f32 %v1402, %v1705
      %v1842 = vadd.f32 %v1403, %v1708
      %v1843 = vadd.f32 %v1404, %v1713
      %v1844 = vadd.f32 %v1405, %v1716
      %v1845 = vadd.f32 %v1406, %v1721
      %v1846 = vadd.f32 %v1407, %v1724
      %v1847 = vadd.f32 %v1408, %v1729
      %v1848 = vadd.f32 %v1409, %v1732
      %v1849 = vadd.f32 %v1410, %v1737
      %v1850 = vadd.f32 %v1411, %v1740
      %v1851 = vadd.f32 %v1412, %v1745
      %v1852 = vadd.f32 %v1413, %v1748
      %v1853 = vadd.f32 %v1414, %v1753
      %v1854 = vadd.f32 %v1415, %v1756
      %v1855 = vadd.f32 %v1416, %v1761
      %v1856 = vadd.f32 %v1417, %v1764
      %v1857 = vadd.f32 %v1418, %v1769
      %v1858 = vadd.f32 %v1419, %v1772
      %v1859 = vadd.f32 %v1420, %v1777
      %v1860 = vadd.f32 %v1421, %v1780
      %v1861 = vadd.f32 %v1422, %v1785
      %v1862 = vadd.f32 %v1423, %v1788
      %v1863 = vadd.f32 %v1424, %v1793
      %v1864 = vadd.f32 %v1425, %v1796
      %v1865 = vadd.f32 %v1426, %v1801
      %v1866 = vadd.f32 %v1427, %v1804
      %v1867 = vadd.f32 %v1428, %v1809
      %v1868 = vadd.f32 %v1429, %v1812
      %v1869 = vadd.f32 %v1430, %v1817
      %v1870 = vadd.f32 %v1431, %v1820
      %v1871 = vadd.f32 %v1432, %v1825
      %v1872 = vadd.f32 %v1433, %v1828
      %v1873 = vadd.f32 %v1434, %v1833
      %v1874 = vadd.f32 %v1435, %v1836
      %v1875 = vld [vmem:[%s381 + $0x98] sm:$0x3]
      %s1876 = scalar_lea.vmem %s2, 8
      %v1877 = vld [vmem:[%s1876] sm:$0x3]
      %v1879 = vunpack.c.l.b16 %v1875
      %v1880 = vpack.c.b16 %v1879, %v1879
      %vm1881 = vsmask.f32 6400
      %v1883 = vshrl.u32 %v1549, 16
      %v1885 = vrot.slane %v1883, 1
      %v1886 = vshll.u32 %v1549, 16
      %v1888 = vrot.slane %v1886, 2
      %v1889 = vor.u32 %v1885, %v1888
      %v1891 = vshrl.u32 %v1550, 16
      %v1893 = vrot.slane %v1891, 1
      %v1894 = vshll.u32 %v1550, 16
      %v1896 = vrot.slane %v1894, 2
      %v1897 = vor.u32 %v1893, %v1896
      %v1898 = vsel %vm1881, %v1889, %v1897
      %v1900 = vshrl.u32 %v1551, 16
      %v1902 = vrot.slane %v1900, 1
      %v1903 = vshll.u32 %v1551, 16
      %v1905 = vrot.slane %v1903, 2
      %v1906 = vor.u32 %v1902, %v1905
      %v1907 = vsel %vm1881, %v1897, %v1906
      %v1909 = vshrl.u32 %v1552, 16
      %v1911 = vrot.slane %v1909, 1
      %v1912 = vshll.u32 %v1552, 16
      %v1914 = vrot.slane %v1912, 2
      %v1915 = vor.u32 %v1911, %v1914
      %v1916 = vsel %vm1881, %v1906, %v1915
      %v1918 = vshrl.u32 %v1553, 16
      %v1920 = vrot.slane %v1918, 1
      %v1921 = vshll.u32 %v1553, 16
      %v1923 = vrot.slane %v1921, 2
      %v1924 = vor.u32 %v1920, %v1923
      %v1925 = vsel %vm1881, %v1915, %v1924
      %v1927 = vshrl.u32 %v1554, 16
      %v1929 = vrot.slane %v1927, 1
      %v1930 = vshll.u32 %v1554, 16
      %v1932 = vrot.slane %v1930, 2
      %v1933 = vor.u32 %v1929, %v1932
      %v1934 = vsel %vm1881, %v1924, %v1933
      %v1936 = vshrl.u32 %v1555, 16
      %v1938 = vrot.slane %v1936, 1
      %v1939 = vshll.u32 %v1555, 16
      %v1941 = vrot.slane %v1939, 2
      %v1942 = vor.u32 %v1938, %v1941
      %v1943 = vsel %vm1881, %v1933, %v1942
      %v1945 = vshrl.u32 %v1556, 16
      %v1947 = vrot.slane %v1945, 1
      %v1948 = vshll.u32 %v1556, 16
      %v1950 = vrot.slane %v1948, 2
      %v1951 = vor.u32 %v1947, %v1950
      %v1952 = vsel %vm1881, %v1942, %v1951
      %v1954 = vshrl.u32 %v1557, 16
      %v1956 = vrot.slane %v1954, 1
      %v1957 = vshll.u32 %v1557, 16
      %v1959 = vrot.slane %v1957, 2
      %v1960 = vor.u32 %v1956, %v1959
      %v1961 = vsel %vm1881, %v1951, %v1960
      %v1963 = vshrl.u32 %v1558, 16
      %v1965 = vrot.slane %v1963, 1
      %v1966 = vshll.u32 %v1558, 16
      %v1968 = vrot.slane %v1966, 2
      %v1969 = vor.u32 %v1965, %v1968
      %v1970 = vsel %vm1881, %v1960, %v1969
      %v1972 = vshrl.u32 %v1559, 16
      %v1974 = vrot.slane %v1972, 1
      %v1975 = vshll.u32 %v1559, 16
      %v1977 = vrot.slane %v1975, 2
      %v1978 = vor.u32 %v1974, %v1977
      %v1979 = vsel %vm1881, %v1969, %v1978
      %v1981 = vshrl.u32 %v1560, 16
      %v1983 = vrot.slane %v1981, 1
      %v1984 = vshll.u32 %v1560, 16
      %v1986 = vrot.slane %v1984, 2
      %v1987 = vor.u32 %v1983, %v1986
      %v1988 = vsel %vm1881, %v1978, %v1987
      %v1990 = vshrl.u32 %v1561, 16
      %v1992 = vrot.slane %v1990, 1
      %v1993 = vshll.u32 %v1561, 16
      %v1995 = vrot.slane %v1993, 2
      %v1996 = vor.u32 %v1992, %v1995
      %v1997 = vsel %vm1881, %v1987, %v1996
      %v1999 = vshrl.u32 %v1562, 16
      %v2001 = vrot.slane %v1999, 1
      %v2002 = vshll.u32 %v1562, 16
      %v2004 = vrot.slane %v2002, 2
      %v2005 = vor.u32 %v2001, %v2004
      %v2006 = vsel %vm1881, %v1996, %v2005
      %v2008 = vshrl.u32 %v1563, 16
      %v2010 = vrot.slane %v2008, 1
      %v2011 = vshll.u32 %v1563, 16
      %v2013 = vrot.slane %v2011, 2
      %v2014 = vor.u32 %v2010, %v2013
      %v2015 = vsel %vm1881, %v2005, %v2014
      %v2017 = vshrl.u32 %v1564, 16
      %v2019 = vrot.slane %v2017, 1
      %v2020 = vshll.u32 %v1564, 16
      %v2022 = vrot.slane %v2020, 2
      %v2023 = vor.u32 %v2019, %v2022
      %v2024 = vsel %vm1881, %v2014, %v2023
      %v2026 = vshrl.u32 %v1565, 16
      %v2028 = vrot.slane %v2026, 1
      %v2029 = vshll.u32 %v1565, 16
      %v2031 = vrot.slane %v2029, 2
      %v2032 = vor.u32 %v2028, %v2031
      %v2033 = vsel %vm1881, %v2023, %v2032
      %v2035 = vshrl.u32 %v1566, 16
      %v2037 = vrot.slane %v2035, 1
      %v2038 = vshll.u32 %v1566, 16
      %v2040 = vrot.slane %v2038, 2
      %v2041 = vor.u32 %v2037, %v2040
      %v2042 = vsel %vm1881, %v2032, %v2041
      %v2044 = vshrl.u32 %v1880, 16
      %v2046 = vrot.slane %v2044, 1
      %v2047 = vshll.u32 %v1880, 16
      %v2049 = vrot.slane %v2047, 2
      %v2050 = vor.u32 %v2046, %v2049
      %v2051 = vsel %vm1881, %v2041, %v2050
      %v2053 = vsel %vm670, %v1898, 0
      %v2056 = vsel %vm670, %v1907, 0
      %v2059 = vsel %vm670, %v1916, 0
      %v2062 = vsel %vm670, %v1925, 0
      %v2065 = vsel %vm670, %v1934, 0
      %v2068 = vsel %vm670, %v1943, 0
      %v2071 = vsel %vm670, %v1952, 0
      %v2074 = vsel %vm670, %v1961, 0
      %v2077 = vsel %vm670, %v1970, 0
      %v2080 = vsel %vm670, %v1979, 0
      %v2083 = vsel %vm670, %v1988, 0
      %v2086 = vsel %vm670, %v1997, 0
      %v2089 = vsel %vm670, %v2006, 0
      %v2092 = vsel %vm670, %v2015, 0
      %v2095 = vsel %vm670, %v2024, 0
      %v2098 = vsel %vm670, %v2033, 0
      %v2101 = vsel %vm670, %v2042, 0
      %v2104 = vsel %vm670, %v2051, 0
      %v2107 = vsel %vm725, %v1877, 0
      %2109 = vmatprep.subr.bf16.mxu0 0
      %2110 = vmatpush1.bf16.msra.mxu0 %v2107
      %2111 = vmatprep.subr.bf16.mxu0 0
      %2112 = vmatpush1.bf16.msra.mxu0 0
      %2113 = vmatprep.subr.bf16.mxu0 0
      %2114 = vmatpush1.bf16.msra.mxu0 0
      %2115 = vmatprep.subr.bf16.mxu0 0
      %2116 = vmatpush1.bf16.msra.mxu0 0
      %2117 = vmatprep.subr.bf16.mxu0 0
      %2118 = vmatpush1.bf16.msra.mxu0 0
      %2119 = vmatprep.subr.bf16.mxu0 0
      %2120 = vmatpush1.bf16.msra.mxu0 0
      %2121 = vmatprep.subr.bf16.mxu0 0
      %2122 = vmatpush1.bf16.msra.mxu0 0
      %2123 = vmatprep.subr.bf16.mxu0 0
      %2124 = vmatpush1.bf16.msra.mxu0 0
      %2125 = vmatprep.subr.bf16.mxu0 0
      %2126 = vmatpush1.bf16.msra.mxu0 0
      %2127 = vmatprep.subr.bf16.mxu0 0
      %2128 = vmatpush1.bf16.msra.mxu0 0
      %2129 = vmatprep.subr.bf16.mxu0 0
      %2130 = vmatpush1.bf16.msra.mxu0 0
      %2131 = vmatprep.subr.bf16.mxu0 0
      %2132 = vmatpush1.bf16.msra.mxu0 0
      %2133 = vmatprep.subr.bf16.mxu0 0
      %2134 = vmatpush1.bf16.msra.mxu0 0
      %2135 = vmatprep.subr.bf16.mxu0 0
      %2136 = vmatpush1.bf16.msra.mxu0 0
      %2137 = vmatprep.subr.bf16.mxu0 0
      %2138 = vmatpush1.bf16.msra.mxu0 0
      %2139 = vmatprep.subr.bf16.mxu0 0
      %2140 = vmatpush1.bf16.msra.mxu0 0
      %2141 = vmatprep.mubr.bf16.mxu0 0
      %2142 = vmatmul.mubr.bf16.gmra.mrb[0].mxu0 %v2053
      %v2143 = vpop.f32.mrb[0].mxu0
      %v2144 = vadd.f32 0.0, %v2143
      %v2145 = vpop.f32.mrb[0].mxu0
      %v2146 = vpop.f32.mrb[0].mxu0
      %v2147 = vadd.f32 0.0, %v2146
      %v2148 = vpop.f32.mrb[0].mxu0
      %2149 = vmatprep.mubr.bf16.mxu0 0
      %2150 = vmatmul.mubr.bf16.gmra.mrb[0].mxu0 %v2056
      %v2151 = vpop.f32.mrb[0].mxu0
      %v2152 = vadd.f32 0.0, %v2151
      %v2153 = vpop.f32.mrb[0].mxu0
      %v2154 = vpop.f32.mrb[0].mxu0
      %v2155 = vadd.f32 0.0, %v2154
      %v2156 = vpop.f32.mrb[0].mxu0
      %2157 = vmatprep.mubr.bf16.mxu0 0
      %2158 = vmatmul.mubr.bf16.gmra.mrb[0].mxu0 %v2059
      %v2159 = vpop.f32.mrb[0].mxu0
      %v2160 = vadd.f32 0.0, %v2159
      %v2161 = vpop.f32.mrb[0].mxu0
      %v2162 = vpop.f32.mrb[0].mxu0
      %v2163 = vadd.f32 0.0, %v2162
      %v2164 = vpop.f32.mrb[0].mxu0
      %2165 = vmatprep.mubr.bf16.mxu0 0
      %2166 = vmatmul.mubr.bf16.gmra.mrb[0].mxu0 %v2062
      %v2167 = vpop.f32.mrb[0].mxu0
      %v2168 = vadd.f32 0.0, %v2167
      %v2169 = vpop.f32.mrb[0].mxu0
      %v2170 = vpop.f32.mrb[0].mxu0
      %v2171 = vadd.f32 0.0, %v2170
      %v2172 = vpop.f32.mrb[0].mxu0
      %2173 = vmatprep.mubr.bf16.mxu0 0
      %2174 = vmatmul.mubr.bf16.gmra.mrb[0].mxu0 %v2065
      %v2175 = vpop.f32.mrb[0].mxu0
      %v2176 = vadd.f32 0.0, %v2175
      %v2177 = vpop.f32.mrb[0].mxu0
      %v2178 = vpop.f32.mrb[0].mxu0
      %v2179 = vadd.f32 0.0, %v2178
      %v2180 = vpop.f32.mrb[0].mxu0
      %2181 = vmatprep.mubr.bf16.mxu0 0
      %2182 = vmatmul.mubr.bf16.gmra.mrb[0].mxu0 %v2068
      %v2183 = vpop.f32.mrb[0].mxu0
      %v2184 = vadd.f32 0.0, %v2183
      %v2185 = vpop.f32.mrb[0].mxu0
      %v2186 = vpop.f32.mrb[0].mxu0
      %v2187 = vadd.f32 0.0, %v2186
      %v2188 = vpop.f32.mrb[0].mxu0
      %2189 = vmatprep.mubr.bf16.mxu0 0
      %2190 = vmatmul.mubr.bf16.gmra.mrb[0].mxu0 %v2071
      %v2191 = vpop.f32.mrb[0].mxu0
      %v2192 = vadd.f32 0.0, %v2191
      %v2193 = vpop.f32.mrb[0].mxu0
      %v2194 = vpop.f32.mrb[0].mxu0
      %v2195 = vadd.f32 0.0, %v2194
      %v2196 = vpop.f32.mrb[0].mxu0
      %2197 = vmatprep.mubr.bf16.mxu0 0
      %2198 = vmatmul.mubr.bf16.gmra.mrb[0].mxu0 %v2074
      %v2199 = vpop.f32.mrb[0].mxu0
      %v2200 = vadd.f32 0.0, %v2199
      %v2201 = vpop.f32.mrb[0].mxu0
      %v2202 = vpop.f32.mrb[0].mxu0
      %v2203 = vadd.f32 0.0, %v2202
      %v2204 = vpop.f32.mrb[0].mxu0
      %2205 = vmatprep.mubr.bf16.mxu0 0
      %2206 = vmatmul.mubr.bf16.gmra.mrb[0].mxu0 %v2077
      %v2207 = vpop.f32.mrb[0].mxu0
      %v2208 = vadd.f32 0.0, %v2207
      %v2209 = vpop.f32.mrb[0].mxu0
      %v2210 = vpop.f32.mrb[0].mxu0
      %v2211 = vadd.f32 0.0, %v2210
      %v2212 = vpop.f32.mrb[0].mxu0
      %2213 = vmatprep.mubr.bf16.mxu0 0
      %2214 = vmatmul.mubr.bf16.gmra.mrb[0].mxu0 %v2080
      %v2215 = vpop.f32.mrb[0].mxu0
      %v2216 = vadd.f32 0.0, %v2215
      %v2217 = vpop.f32.mrb[0].mxu0
      %v2218 = vpop.f32.mrb[0].mxu0
      %v2219 = vadd.f32 0.0, %v2218
      %v2220 = vpop.f32.mrb[0].mxu0
      %2221 = vmatprep.mubr.bf16.mxu0 0
      %2222 = vmatmul.mubr.bf16.gmra.mrb[0].mxu0 %v2083
      %v2223 = vpop.f32.mrb[0].mxu0
      %v2224 = vadd.f32 0.0, %v2223
      %v2225 = vpop.f32.mrb[0].mxu0
      %v2226 = vpop.f32.mrb[0].mxu0
      %v2227 = vadd.f32 0.0, %v2226
      %v2228 = vpop.f32.mrb[0].mxu0
      %2229 = vmatprep.mubr.bf16.mxu0 0
      %2230 = vmatmul.mubr.bf16.gmra.mrb[0].mxu0 %v2086
      %v2231 = vpop.f32.mrb[0].mxu0
      %v2232 = vadd.f32 0.0, %v2231
      %v2233 = vpop.f32.mrb[0].mxu0
      %v2234 = vpop.f32.mrb[0].mxu0
      %v2235 = vadd.f32 0.0, %v2234
      %v2236 = vpop.f32.mrb[0].mxu0
      %2237 = vmatprep.mubr.bf16.mxu0 0
      %2238 = vmatmul.mubr.bf16.gmra.mrb[0].mxu0 %v2089
      %v2239 = vpop.f32.mrb[0].mxu0
      %v2240 = vadd.f32 0.0, %v2239
      %v2241 = vpop.f32.mrb[0].mxu0
      %v2242 = vpop.f32.mrb[0].mxu0
      %v2243 = vadd.f32 0.0, %v2242
      %v2244 = vpop.f32.mrb[0].mxu0
      %2245 = vmatprep.mubr.bf16.mxu0 0
      %2246 = vmatmul.mubr.bf16.gmra.mrb[0].mxu0 %v2092
      %v2247 = vpop.f32.mrb[0].mxu0
      %v2248 = vadd.f32 0.0, %v2247
      %v2249 = vpop.f32.mrb[0].mxu0
      %v2250 = vpop.f32.mrb[0].mxu0
      %v2251 = vadd.f32 0.0, %v2250
      %v2252 = vpop.f32.mrb[0].mxu0
      %2253 = vmatprep.mubr.bf16.mxu0 0
      %2254 = vmatmul.mubr.bf16.gmra.mrb[0].mxu0 %v2095
      %v2255 = vpop.f32.mrb[0].mxu0
      %v2256 = vadd.f32 0.0, %v2255
      %v2257 = vpop.f32.mrb[0].mxu0
      %v2258 = vpop.f32.mrb[0].mxu0
      %v2259 = vadd.f32 0.0, %v2258
      %v2260 = vpop.f32.mrb[0].mxu0
      %2261 = vmatprep.mubr.bf16.mxu0 0
      %2262 = vmatmul.mubr.bf16.gmra.mrb[0].mxu0 %v2098
      %v2263 = vpop.f32.mrb[0].mxu0
      %v2264 = vadd.f32 0.0, %v2263
      %v2265 = vpop.f32.mrb[0].mxu0
      %v2266 = vpop.f32.mrb[0].mxu0
      %v2267 = vadd.f32 0.0, %v2266
      %v2268 = vpop.f32.mrb[0].mxu0
      %2269 = vmatprep.mubr.bf16.mxu0 0
      %2270 = vmatmul.mubr.bf16.gmra.mrb[0].mxu0 %v2101
      %v2271 = vpop.f32.mrb[0].mxu0
      %v2272 = vadd.f32 0.0, %v2271
      %v2273 = vpop.f32.mrb[0].mxu0
      %v2274 = vpop.f32.mrb[0].mxu0
      %v2275 = vadd.f32 0.0, %v2274
      %v2276 = vpop.f32.mrb[0].mxu0
      %2277 = vmatprep.mubr.bf16.mxu0 0
      %2278 = vmatmul.mubr.bf16.gmra.mrb[0].mxu0 %v2104
      %v2279 = vpop.f32.mrb[0].mxu0
      %v2280 = vadd.f32 0.0, %v2279
      %v2281 = vpop.f32.mrb[0].mxu0
      %v2282 = vpop.f32.mrb[0].mxu0
      %v2283 = vadd.f32 0.0, %v2282
      %v2284 = vpop.f32.mrb[0].mxu0
      %2285 = vdwg.mxu0
      %v2286 = vadd.f32 %v1839, %v2144
      %v2287 = vadd.f32 %v1840, %v2147
      %v2288 = vadd.f32 %v1841, %v2152
      %v2289 = vadd.f32 %v1842, %v2155
      %v2290 = vadd.f32 %v1843, %v2160
      %v2291 = vadd.f32 %v1844, %v2163
      %v2292 = vadd.f32 %v1845, %v2168
      %v2293 = vadd.f32 %v1846, %v2171
      %v2294 = vadd.f32 %v1847, %v2176
      %v2295 = vadd.f32 %v1848, %v2179
      %v2296 = vadd.f32 %v1849, %v2184
      %v2297 = vadd.f32 %v1850, %v2187
      %v2298 = vadd.f32 %v1851, %v2192
      %v2299 = vadd.f32 %v1852, %v2195
      %v2300 = vadd.f32 %v1853, %v2200
      %v2301 = vadd.f32 %v1854, %v2203
      %v2302 = vadd.f32 %v1855, %v2208
      %v2303 = vadd.f32 %v1856, %v2211
      %v2304 = vadd.f32 %v1857, %v2216
      %v2305 = vadd.f32 %v1858, %v2219
      %v2306 = vadd.f32 %v1859, %v2224
      %v2307 = vadd.f32 %v1860, %v2227
      %v2308 = vadd.f32 %v1861, %v2232
      %v2309 = vadd.f32 %v1862, %v2235
      %v2310 = vadd.f32 %v1863, %v2240
      %v2311 = vadd.f32 %v1864, %v2243
      %v2312 = vadd.f32 %v1865, %v2248
      %v2313 = vadd.f32 %v1866, %v2251
      %v2314 = vadd.f32 %v1867, %v2256
      %v2315 = vadd.f32 %v1868, %v2259
      %v2316 = vadd.f32 %v1869, %v2264
      %v2317 = vadd.f32 %v1870, %v2267
      %v2318 = vadd.f32 %v1871, %v2272
      %v2319 = vadd.f32 %v1872, %v2275
      %v2320 = vadd.f32 %v1873, %v2280
      %v2321 = vadd.f32 %v1874, %v2283
      %v2322 = vld [vmem:[%s381 + $0x8] sm:$0xc]
      %s2323 = scalar_lea.vmem %s2, 10
      %v2324 = vld [vmem:[%s2323] sm:$0x3]
      %v2326 = vunpack.c.l.b16 %v2322
      %v2327 = vpack.c.b16 %v1513, %v2326
      %vm2328 = vcmask 1045504
      %v2329 = vrot.slane %v2327, 2
      %v2330 = vrot.slane %v1550, 2
      %v2331 = vsel %vm2328, %v2329, %v2330
      %v2332 = vrot.slane %v1551, 2
      %v2333 = vsel %vm2328, %v2330, %v2332
      %v2334 = vrot.slane %v1552, 2
      %v2335 = vsel %vm2328, %v2332, %v2334
      %v2336 = vrot.slane %v1553, 2
      %v2337 = vsel %vm2328, %v2334, %v2336
      %v2338 = vrot.slane %v1554, 2
      %v2339 = vsel %vm2328, %v2336, %v2338
      %v2340 = vrot.slane %v1555, 2
      %v2341 = vsel %vm2328, %v2338, %v2340
      %v2342 = vrot.slane %v1556, 2
      %v2343 = vsel %vm2328, %v2340, %v2342
      %v2344 = vrot.slane %v1557, 2
      %v2345 = vsel %vm2328, %v2342, %v2344
      %v2346 = vrot.slane %v1558, 2
      %v2347 = vsel %vm2328, %v2344, %v2346
      %v2348 = vrot.slane %v1559, 2
      %v2349 = vsel %vm2328, %v2346, %v2348
      %v2350 = vrot.slane %v1560, 2
      %v2351 = vsel %vm2328, %v2348, %v2350
      %v2352 = vrot.slane %v1561, 2
      %v2353 = vsel %vm2328, %v2350, %v2352
      %v2354 = vrot.slane %v1562, 2
      %v2355 = vsel %vm2328, %v2352, %v2354
      %v2356 = vrot.slane %v1563, 2
      %v2357 = vsel %vm2328, %v2354, %v2356
      %v2358 = vrot.slane %v1564, 2
      %v2359 = vsel %vm2328, %v2356, %v2358
      %v2360 = vrot.slane %v1565, 2
      %v2361 = vsel %vm2328, %v2358, %v2360
      %v2362 = vrot.slane %v1566, 2
      %v2363 = vsel %vm2328, %v2360, %v2362
      %v2364 = vrot.slane %v1880, 2
      %v2365 = vsel %vm2328, %v2362, %v2364
      %v2367 = vsel %vm670, %v2331, 0
      %v2370 = vsel %vm670, %v2333, 0
      %v2373 = vsel %vm670, %v2335, 0
      %v2376 = vsel %vm670, %v2337, 0
      %v2379 = vsel %vm670, %v2339, 0
      %v2382 = vsel %vm670, %v2341, 0
      %v2385 = vsel %vm670, %v2343, 0
      %v2388 = vsel %vm670, %v2345, 0
      %v2391 = vsel %vm670, %v2347, 0
      %v2394 = vsel %vm670, %v2349, 0
      %v2397 = vsel %vm670, %v2351, 0
      %v2400 = vsel %vm670, %v2353, 0
      %v2403 = vsel %vm670, %v2355, 0
      %v2406 = vsel %vm670, %v2357, 0
      %v2409 = vsel %vm670, %v2359, 0
      %v2412 = vsel %vm670, %v2361, 0
      %v2415 = vsel %vm670, %v2363, 0
      %v2418 = vsel %vm670, %v2365, 0
      %v2421 = vsel %vm725, %v2324, 0
      %2423 = vmatprep.subr.bf16.mxu0 0
      %2424 = vmatpush1.bf16.msra.mxu0 %v2421
      %2425 = vmatprep.subr.bf16.mxu0 0
      %2426 = vmatpush1.bf16.msra.mxu0 0
      %2427 = vmatprep.subr.bf16.mxu0 0
      %2428 = vmatpush1.bf16.msra.mxu0 0
      %2429 = vmatprep.subr.bf16.mxu0 0
      %2430 = vmatpush1.bf16.msra.mxu0 0
      %2431 = vmatprep.subr.bf16.mxu0 0
      %2432 = vmatpush1.bf16.msra.mxu0 0
      %2433 = vmatprep.subr.bf16.mxu0 0
      %2434 = vmatpush1.bf16.msra.mxu0 0
      %2435 = vmatprep.subr.bf16.mxu0 0
      %2436 = vmatpush1.bf16.msra.mxu0 0
      %2437 = vmatprep.subr.bf16.mxu0 0
      %2438 = vmatpush1.bf16.msra.mxu0 0
      %2439 = vmatprep.subr.bf16.mxu0 0
      %2440 = vmatpush1.bf16.msra.mxu0 0
      %2441 = vmatprep.subr.bf16.mxu0 0
      %2442 = vmatpush1.bf16.msra.mxu0 0
      %2443 = vmatprep.subr.bf16.mxu0 0
      %2444 = vmatpush1.bf16.msra.mxu0 0
      %2445 = vmatprep.subr.bf16.mxu0 0
      %2446 = vmatpush1.bf16.msra.mxu0 0
      %2447 = vmatprep.subr.bf16.mxu0 0
      %2448 = vmatpush1.bf16.msra.mxu0 0
      %2449 = vmatprep.subr.bf16.mxu0 0
      %2450 = vmatpush1.bf16.msra.mxu0 0
      %2451 = vmatprep.subr.bf16.mxu0 0
      %2452 = vmatpush1.bf16.msra.mxu0 0
      %2453 = vmatprep.subr.bf16.mxu0 0
      %2454 = vmatpush1.bf16.msra.mxu0 0
      %2455 = vmatprep.mubr.bf16.mxu0 0
      %2456 = vmatmul.mubr.bf16.gmra.mrb[0].mxu0 %v2367
      %v2457 = vpop.f32.mrb[0].mxu0
      %v2458 = vadd.f32 0.0, %v2457
      %v2459 = vpop.f32.mrb[0].mxu0
      %v2460 = vpop.f32.mrb[0].mxu0
      %v2461 = vadd.f32 0.0, %v2460
      %v2462 = vpop.f32.mrb[0].mxu0
      %2463 = vmatprep.mubr.bf16.mxu0 0
      %2464 = vmatmul.mubr.bf16.gmra.mrb[0].mxu0 %v2370
      %v2465 = vpop.f32.mrb[0].mxu0
      %v2466 = vadd.f32 0.0, %v2465
      %v2467 = vpop.f32.mrb[0].mxu0
      %v2468 = vpop.f32.mrb[0].mxu0
      %v2469 = vadd.f32 0.0, %v2468
      %v2470 = vpop.f32.mrb[0].mxu0
      %2471 = vmatprep.mubr.bf16.mxu0 0
      %2472 = vmatmul.mubr.bf16.gmra.mrb[0].mxu0 %v2373
      %v2473 = vpop.f32.mrb[0].mxu0
      %v2474 = vadd.f32 0.0, %v2473
      %v2475 = vpop.f32.mrb[0].mxu0
      %v2476 = vpop.f32.mrb[0].mxu0
      %v2477 = vadd.f32 0.0, %v2476
      %v2478 = vpop.f32.mrb[0].mxu0
      %2479 = vmatprep.mubr.bf16.mxu0 0
      %2480 = vmatmul.mubr.bf16.gmra.mrb[0].mxu0 %v2376
      %v2481 = vpop.f32.mrb[0].mxu0
      %v2482 = vadd.f32 0.0, %v2481
      %v2483 = vpop.f32.mrb[0].mxu0
      %v2484 = vpop.f32.mrb[0].mxu0
      %v2485 = vadd.f32 0.0, %v2484
      %v2486 = vpop.f32.mrb[0].mxu0
      %2487 = vmatprep.mubr.bf16.mxu0 0
      %2488 = vmatmul.mubr.bf16.gmra.mrb[0].mxu0 %v2379
      %v2489 = vpop.f32.mrb[0].mxu0
      %v2490 = vadd.f32 0.0, %v2489
      %v2491 = vpop.f32.mrb[0].mxu0
      %v2492 = vpop.f32.mrb[0].mxu0
      %v2493 = vadd.f32 0.0, %v2492
      %v2494 = vpop.f32.mrb[0].mxu0
      %2495 = vmatprep.mubr.bf16.mxu0 0
      %2496 = vmatmul.mubr.bf16.gmra.mrb[0].mxu0 %v2382
      %v2497 = vpop.f32.mrb[0].mxu0
      %v2498 = vadd.f32 0.0, %v2497
      %v2499 = vpop.f32.mrb[0].mxu0
      %v2500 = vpop.f32.mrb[0].mxu0
      %v2501 = vadd.f32 0.0, %v2500
      %v2502 = vpop.f32.mrb[0].mxu0
      %2503 = vmatprep.mubr.bf16.mxu0 0
      %2504 = vmatmul.mubr.bf16.gmra.mrb[0].mxu0 %v2385
      %v2505 = vpop.f32.mrb[0].mxu0
      %v2506 = vadd.f32 0.0, %v2505
      %v2507 = vpop.f32.mrb[0].mxu0
      %v2508 = vpop.f32.mrb[0].mxu0
      %v2509 = vadd.f32 0.0, %v2508
      %v2510 = vpop.f32.mrb[0].mxu0
      %2511 = vmatprep.mubr.bf16.mxu0 0
      %2512 = vmatmul.mubr.bf16.gmra.mrb[0].mxu0 %v2388
      %v2513 = vpop.f32.mrb[0].mxu0
      %v2514 = vadd.f32 0.0, %v2513
      %v2515 = vpop.f32.mrb[0].mxu0
      %v2516 = vpop.f32.mrb[0].mxu0
      %v2517 = vadd.f32 0.0, %v2516
      %v2518 = vpop.f32.mrb[0].mxu0
      %2519 = vmatprep.mubr.bf16.mxu0 0
      %2520 = vmatmul.mubr.bf16.gmra.mrb[0].mxu0 %v2391
      %v2521 = vpop.f32.mrb[0].mxu0
      %v2522 = vadd.f32 0.0, %v2521
      %v2523 = vpop.f32.mrb[0].mxu0
      %v2524 = vpop.f32.mrb[0].mxu0
      %v2525 = vadd.f32 0.0, %v2524
      %v2526 = vpop.f32.mrb[0].mxu0
      %2527 = vmatprep.mubr.bf16.mxu0 0
      %2528 = vmatmul.mubr.bf16.gmra.mrb[0].mxu0 %v2394
      %v2529 = vpop.f32.mrb[0].mxu0
      %v2530 = vadd.f32 0.0, %v2529
      %v2531 = vpop.f32.mrb[0].mxu0
      %v2532 = vpop.f32.mrb[0].mxu0
      %v2533 = vadd.f32 0.0, %v2532
      %v2534 = vpop.f32.mrb[0].mxu0
      %2535 = vmatprep.mubr.bf16.mxu0 0
      %2536 = vmatmul.mubr.bf16.gmra.mrb[0].mxu0 %v2397
      %v2537 = vpop.f32.mrb[0].mxu0
      %v2538 = vadd.f32 0.0, %v2537
      %v2539 = vpop.f32.mrb[0].mxu0
      %v2540 = vpop.f32.mrb[0].mxu0
      %v2541 = vadd.f32 0.0, %v2540
      %v2542 = vpop.f32.mrb[0].mxu0
      %2543 = vmatprep.mubr.bf16.mxu0 0
      %2544 = vmatmul.mubr.bf16.gmra.mrb[0].mxu0 %v2400
      %v2545 = vpop.f32.mrb[0].mxu0
      %v2546 = vadd.f32 0.0, %v2545
      %v2547 = vpop.f32.mrb[0].mxu0
      %v2548 = vpop.f32.mrb[0].mxu0
      %v2549 = vadd.f32 0.0, %v2548
      %v2550 = vpop.f32.mrb[0].mxu0
      %2551 = vmatprep.mubr.bf16.mxu0 0
      %2552 = vmatmul.mubr.bf16.gmra.mrb[0].mxu0 %v2403
      %v2553 = vpop.f32.mrb[0].mxu0
      %v2554 = vadd.f32 0.0, %v2553
      %v2555 = vpop.f32.mrb[0].mxu0
      %v2556 = vpop.f32.mrb[0].mxu0
      %v2557 = vadd.f32 0.0, %v2556
      %v2558 = vpop.f32.mrb[0].mxu0
      %2559 = vmatprep.mubr.bf16.mxu0 0
      %2560 = vmatmul.mubr.bf16.gmra.mrb[0].mxu0 %v2406
      %v2561 = vpop.f32.mrb[0].mxu0
      %v2562 = vadd.f32 0.0, %v2561
      %v2563 = vpop.f32.mrb[0].mxu0
      %v2564 = vpop.f32.mrb[0].mxu0
      %v2565 = vadd.f32 0.0, %v2564
      %v2566 = vpop.f32.mrb[0].mxu0
      %2567 = vmatprep.mubr.bf16.mxu0 0
      %2568 = vmatmul.mubr.bf16.gmra.mrb[0].mxu0 %v2409
      %v2569 = vpop.f32.mrb[0].mxu0
      %v2570 = vadd.f32 0.0, %v2569
      %v2571 = vpop.f32.mrb[0].mxu0
      %v2572 = vpop.f32.mrb[0].mxu0
      %v2573 = vadd.f32 0.0, %v2572
      %v2574 = vpop.f32.mrb[0].mxu0
      %2575 = vmatprep.mubr.bf16.mxu0 0
      %2576 = vmatmul.mubr.bf16.gmra.mrb[0].mxu0 %v2412
      %v2577 = vpop.f32.mrb[0].mxu0
      %v2578 = vadd.f32 0.0, %v2577
      %v2579 = vpop.f32.mrb[0].mxu0
      %v2580 = vpop.f32.mrb[0].mxu0
      %v2581 = vadd.f32 0.0, %v2580
      %v2582 = vpop.f32.mrb[0].mxu0
      %2583 = vmatprep.mubr.bf16.mxu0 0
      %2584 = vmatmul.mubr.bf16.gmra.mrb[0].mxu0 %v2415
      %v2585 = vpop.f32.mrb[0].mxu0
      %v2586 = vadd.f32 0.0, %v2585
      %v2587 = vpop.f32.mrb[0].mxu0
      %v2588 = vpop.f32.mrb[0].mxu0
      %v2589 = vadd.f32 0.0, %v2588
      %v2590 = vpop.f32.mrb[0].mxu0
      %2591 = vmatprep.mubr.bf16.mxu0 0
      %2592 = vmatmul.mubr.bf16.gmra.mrb[0].mxu0 %v2418
      %v2593 = vpop.f32.mrb[0].mxu0
      %v2594 = vadd.f32 0.0, %v2593
      %v2595 = vpop.f32.mrb[0].mxu0
      %v2596 = vpop.f32.mrb[0].mxu0
      %v2597 = vadd.f32 0.0, %v2596
      %v2598 = vpop.f32.mrb[0].mxu0
      %2599 = vdwg.mxu0
      %v2600 = vadd.f32 %v2286, %v2458
      %v2601 = vadd.f32 %v2287, %v2461
      %v2602 = vadd.f32 %v2288, %v2466
      %v2603 = vadd.f32 %v2289, %v2469
      %v2604 = vadd.f32 %v2290, %v2474
      %v2605 = vadd.f32 %v2291, %v2477
      %v2606 = vadd.f32 %v2292, %v2482
      %v2607 = vadd.f32 %v2293, %v2485
      %v2608 = vadd.f32 %v2294, %v2490
      %v2609 = vadd.f32 %v2295, %v2493
      %v2610 = vadd.f32 %v2296, %v2498
      %v2611 = vadd.f32 %v2297, %v2501
      %v2612 = vadd.f32 %v2298, %v2506
      %v2613 = vadd.f32 %v2299, %v2509
      %v2614 = vadd.f32 %v2300, %v2514
      %v2615 = vadd.f32 %v2301, %v2517
      %v2616 = vadd.f32 %v2302, %v2522
      %v2617 = vadd.f32 %v2303, %v2525
      %v2618 = vadd.f32 %v2304, %v2530
      %v2619 = vadd.f32 %v2305, %v2533
      %v2620 = vadd.f32 %v2306, %v2538
      %v2621 = vadd.f32 %v2307, %v2541
      %v2622 = vadd.f32 %v2308, %v2546
      %v2623 = vadd.f32 %v2309, %v2549
      %v2624 = vadd.f32 %v2310, %v2554
      %v2625 = vadd.f32 %v2311, %v2557
      %v2626 = vadd.f32 %v2312, %v2562
      %v2627 = vadd.f32 %v2313, %v2565
      %v2628 = vadd.f32 %v2314, %v2570
      %v2629 = vadd.f32 %v2315, %v2573
      %v2630 = vadd.f32 %v2316, %v2578
      %v2631 = vadd.f32 %v2317, %v2581
      %v2632 = vadd.f32 %v2318, %v2586
      %v2633 = vadd.f32 %v2319, %v2589
      %v2634 = vadd.f32 %v2320, %v2594
      %v2635 = vadd.f32 %v2321, %v2597
      %v2636 = vld [vmem:[%s381 + $0x10] sm:$0xc]
      %v2637 = vld [vmem:[%s381 + $0x14] sm:$0xf]
      %v2638 = vld [vmem:[%s381 + $0x18] sm:$0xf]
      %v2639 = vld [vmem:[%s381 + $0x1c] sm:$0xf]
      %v2640 = vld [vmem:[%s381 + $0x20] sm:$0xf]
      %v2641 = vld [vmem:[%s381 + $0x24] sm:$0xf]
      %v2642 = vld [vmem:[%s381 + $0x28] sm:$0xf]
      %v2643 = vld [vmem:[%s381 + $0x2c] sm:$0xf]
      %v2644 = vld [vmem:[%s381 + $0x30] sm:$0xf]
      %v2645 = vld [vmem:[%s381 + $0x34] sm:$0xf]
      %v2646 = vld [vmem:[%s381 + $0x38] sm:$0xf]
      %v2647 = vld [vmem:[%s381 + $0x3c] sm:$0xf]
      %v2648 = vld [vmem:[%s381 + $0x40] sm:$0xf]
      %v2649 = vld [vmem:[%s381 + $0x44] sm:$0xf]
      %v2650 = vld [vmem:[%s381 + $0x48] sm:$0xf]
      %v2651 = vld [vmem:[%s381 + $0x4c] sm:$0xf]
      %v2652 = vld [vmem:[%s381 + $0x50] sm:$0xf]
      %v2653 = vld [vmem:[%s381 + $0x54] sm:$0xf]
      %v2654 = vld [vmem:[%s381 + $0x58] sm:$0xf]
      %v2655 = vld [vmem:[%s381 + $0x5c] sm:$0xf]
      %v2656 = vld [vmem:[%s381 + $0x60] sm:$0xf]
      %v2657 = vld [vmem:[%s381 + $0x64] sm:$0xf]
      %v2658 = vld [vmem:[%s381 + $0x68] sm:$0xf]
      %v2659 = vld [vmem:[%s381 + $0x6c] sm:$0xf]
      %v2660 = vld [vmem:[%s381 + $0x70] sm:$0xf]
      %v2661 = vld [vmem:[%s381 + $0x74] sm:$0xf]
      %v2662 = vld [vmem:[%s381 + $0x78] sm:$0xf]
      %v2663 = vld [vmem:[%s381 + $0x7c] sm:$0xf]
      %v2664 = vld [vmem:[%s381 + $0x80] sm:$0xf]
      %v2665 = vld [vmem:[%s381 + $0x84] sm:$0xf]
      %v2666 = vld [vmem:[%s381 + $0x88] sm:$0xf]
      %v2667 = vld [vmem:[%s381 + $0x8c] sm:$0xf]
      %v2668 = vld [vmem:[%s381 + $0x90] sm:$0xf]
      %v2669 = vld [vmem:[%s381 + $0x94] sm:$0xf]
      %v2670 = vld [vmem:[%s381 + $0x98] sm:$0xf]
      %v2671 = vld [vmem:[%s381 + $0x9c] sm:$0xf]
      %v2672 = vld [vmem:[%s381 + $0xa0] sm:$0x3]
      %s2673 = scalar_lea.vmem %s2, 12
      %v2674 = vld [vmem:[%s2673] sm:$0x3]
      %v2712 = vunpack.c.l.b16 %v2636
      %v2713 = vunpack.c.l.b16 %v2637
      %v2714 = vunpack.c.l.b16 %v2638
      %v2715 = vunpack.c.l.b16 %v2639
      %v2716 = vunpack.c.l.b16 %v2640
      %v2717 = vunpack.c.l.b16 %v2641
      %v2718 = vunpack.c.l.b16 %v2642
      %v2719 = vunpack.c.l.b16 %v2643
      %v2720 = vunpack.c.l.b16 %v2644
      %v2721 = vunpack.c.l.b16 %v2645
      %v2722 = vunpack.c.l.b16 %v2646
      %v2723 = vunpack.c.l.b16 %v2647
      %v2724 = vunpack.c.l.b16 %v2648
      %v2725 = vunpack.c.l.b16 %v2649
      %v2726 = vunpack.c.l.b16 %v2650
      %v2727 = vunpack.c.l.b16 %v2651
      %v2728 = vunpack.c.l.b16 %v2652
      %v2729 = vunpack.c.l.b16 %v2653
      %v2730 = vunpack.c.l.b16 %v2654
      %v2731 = vunpack.c.l.b16 %v2655
      %v2732 = vunpack.c.l.b16 %v2656
      %v2733 = vunpack.c.l.b16 %v2657
      %v2734 = vunpack.c.l.b16 %v2658
      %v2735 = vunpack.c.l.b16 %v2659
      %v2736 = vunpack.c.l.b16 %v2660
      %v2737 = vunpack.c.l.b16 %v2661
      %v2738 = vunpack.c.l.b16 %v2662
      %v2739 = vunpack.c.l.b16 %v2663
      %v2740 = vunpack.c.l.b16 %v2664
      %v2741 = vunpack.c.l.b16 %v2665
      %v2742 = vunpack.c.l.b16 %v2666
      %v2743 = vunpack.c.l.b16 %v2667
      %v2744 = vunpack.c.l.b16 %v2668
      %v2745 = vunpack.c.l.b16 %v2669
      %v2746 = vunpack.c.l.b16 %v2670
      %v2747 = vunpack.c.l.b16 %v2671
      %v2748 = vunpack.c.l.b16 %v2672
      %v2749 = vpack.c.b16 %v2713, %v2712
      %v2750 = vpack.c.b16 %v2715, %v2714
      %v2751 = vpack.c.b16 %v2717, %v2716
      %v2752 = vpack.c.b16 %v2719, %v2718
      %v2753 = vpack.c.b16 %v2721, %v2720
      %v2754 = vpack.c.b16 %v2723, %v2722
      %v2755 = vpack.c.b16 %v2725, %v2724
      %v2756 = vpack.c.b16 %v2727, %v2726
      %v2757 = vpack.c.b16 %v2729, %v2728
      %v2758 = vpack.c.b16 %v2731, %v2730
      %v2759 = vpack.c.b16 %v2733, %v2732
      %v2760 = vpack.c.b16 %v2735, %v2734
      %v2761 = vpack.c.b16 %v2737, %v2736
      %v2762 = vpack.c.b16 %v2739, %v2738
      %v2763 = vpack.c.b16 %v2741, %v2740
      %v2764 = vpack.c.b16 %v2743, %v2742
      %v2765 = vpack.c.b16 %v2745, %v2744
      %v2766 = vpack.c.b16 %v2747, %v2746
      %v2767 = vpack.c.b16 %v2748, %v2748
      %v2768 = vrot.slane %v2749, 2
      %v2769 = vrot.slane %v2750, 2
      %v2770 = vsel %vm2328, %v2768, %v2769
      %v2771 = vrot.slane %v2751, 2
      %v2772 = vsel %vm2328, %v2769, %v2771
      %v2773 = vrot.slane %v2752, 2
      %v2774 = vsel %vm2328, %v2771, %v2773
      %v2775 = vrot.slane %v2753, 2
      %v2776 = vsel %vm2328, %v2773, %v2775
      %v2777 = vrot.slane %v2754, 2
      %v2778 = vsel %vm2328, %v2775, %v2777
      %v2779 = vrot.slane %v2755, 2
      %v2780 = vsel %vm2328, %v2777, %v2779
      %v2781 = vrot.slane %v2756, 2
      %v2782 = vsel %vm2328, %v2779, %v2781
      %v2783 = vrot.slane %v2757, 2
      %v2784 = vsel %vm2328, %v2781, %v2783
      %v2785 = vrot.slane %v2758, 2
      %v2786 = vsel %vm2328, %v2783, %v2785
      %v2787 = vrot.slane %v2759, 2
      %v2788 = vsel %vm2328, %v2785, %v2787
      %v2789 = vrot.slane %v2760, 2
      %v2790 = vsel %vm2328, %v2787, %v2789
      %v2791 = vrot.slane %v2761, 2
      %v2792 = vsel %vm2328, %v2789, %v2791
      %v2793 = vrot.slane %v2762, 2
      %v2794 = vsel %vm2328, %v2791, %v2793
      %v2795 = vrot.slane %v2763, 2
      %v2796 = vsel %vm2328, %v2793, %v2795
      %v2797 = vrot.slane %v2764, 2
      %v2798 = vsel %vm2328, %v2795, %v2797
      %v2799 = vrot.slane %v2765, 2
      %v2800 = vsel %vm2328, %v2797, %v2799
      %v2801 = vrot.slane %v2766, 2
      %v2802 = vsel %vm2328, %v2799, %v2801
      %v2803 = vrot.slane %v2767, 2
      %v2804 = vsel %vm2328, %v2801, %v2803
      %v2806 = vsel %vm670, %v2770, 0
      %v2809 = vsel %vm670, %v2772, 0
      %v2812 = vsel %vm670, %v2774, 0
      %v2815 = vsel %vm670, %v2776, 0
      %v2818 = vsel %vm670, %v2778, 0
      %v2821 = vsel %vm670, %v2780, 0
      %v2824 = vsel %vm670, %v2782, 0
      %v2827 = vsel %vm670, %v2784, 0
      %v2830 = vsel %vm670, %v2786, 0
      %v2833 = vsel %vm670, %v2788, 0
      %v2836 = vsel %vm670, %v2790, 0
      %v2839 = vsel %vm670, %v2792, 0
      %v2842 = vsel %vm670, %v2794, 0
      %v2845 = vsel %vm670, %v2796, 0
      %v2848 = vsel %vm670, %v2798, 0
      %v2851 = vsel %vm670, %v2800, 0
      %v2854 = vsel %vm670, %v2802, 0
      %v2857 = vsel %vm670, %v2804, 0
      %v2860 = vsel %vm725, %v2674, 0
      %2862 = vmatprep.subr.bf16.mxu0 0
      %2863 = vmatpush1.bf16.msra.mxu0 %v2860
      %2864 = vmatprep.subr.bf16.mxu0 0
      %2865 = vmatpush1.bf16.msra.mxu0 0
      %2866 = vmatprep.subr.bf16.mxu0 0
      %2867 = vmatpush1.bf16.msra.mxu0 0
      %2868 = vmatprep.subr.bf16.mxu0 0
      %2869 = vmatpush1.bf16.msra.mxu0 0
      %2870 = vmatprep.subr.bf16.mxu0 0
      %2871 = vmatpush1.bf16.msra.mxu0 0
      %2872 = vmatprep.subr.bf16.mxu0 0
      %2873 = vmatpush1.bf16.msra.mxu0 0
      %2874 = vmatprep.subr.bf16.mxu0 0
      %2875 = vmatpush1.bf16.msra.mxu0 0
      %2876 = vmatprep.subr.bf16.mxu0 0
      %2877 = vmatpush1.bf16.msra.mxu0 0
      %2878 = vmatprep.subr.bf16.mxu0 0
      %2879 = vmatpush1.bf16.msra.mxu0 0
      %2880 = vmatprep.subr.bf16.mxu0 0
      %2881 = vmatpush1.bf16.msra.mxu0 0
      %2882 = vmatprep.subr.bf16.mxu0 0
      %2883 = vmatpush1.bf16.msra.mxu0 0
      %2884 = vmatprep.subr.bf16.mxu0 0
      %2885 = vmatpush1.bf16.msra.mxu0 0
      %2886 = vmatprep.subr.bf16.mxu0 0
      %2887 = vmatpush1.bf16.msra.mxu0 0
      %2888 = vmatprep.subr.bf16.mxu0 0
      %2889 = vmatpush1.bf16.msra.mxu0 0
      %2890 = vmatprep.subr.bf16.mxu0 0
      %2891 = vmatpush1.bf16.msra.mxu0 0
      %2892 = vmatprep.subr.bf16.mxu0 0
      %2893 = vmatpush1.bf16.msra.mxu0 0
      %2894 = vmatprep.mubr.bf16.mxu0 0
      %2895 = vmatmul.mubr.bf16.gmra.mrb[0].mxu0 %v2806
      %v2896 = vpop.f32.mrb[0].mxu0
      %v2897 = vadd.f32 0.0, %v2896
      %v2898 = vpop.f32.mrb[0].mxu0
      %v2899 = vpop.f32.mrb[0].mxu0
      %v2900 = vadd.f32 0.0, %v2899
      %v2901 = vpop.f32.mrb[0].mxu0
      %2902 = vmatprep.mubr.bf16.mxu0 0
      %2903 = vmatmul.mubr.bf16.gmra.mrb[0].mxu0 %v2809
      %v2904 = vpop.f32.mrb[0].mxu0
      %v2905 = vadd.f32 0.0, %v2904
      %v2906 = vpop.f32.mrb[0].mxu0
      %v2907 = vpop.f32.mrb[0].mxu0
      %v2908 = vadd.f32 0.0, %v2907
      %v2909 = vpop.f32.mrb[0].mxu0
      %2910 = vmatprep.mubr.bf16.mxu0 0
      %2911 = vmatmul.mubr.bf16.gmra.mrb[0].mxu0 %v2812
      %v2912 = vpop.f32.mrb[0].mxu0
      %v2913 = vadd.f32 0.0, %v2912
      %v2914 = vpop.f32.mrb[0].mxu0
      %v2915 = vpop.f32.mrb[0].mxu0
      %v2916 = vadd.f32 0.0, %v2915
      %v2917 = vpop.f32.mrb[0].mxu0
      %2918 = vmatprep.mubr.bf16.mxu0 0
      %2919 = vmatmul.mubr.bf16.gmra.mrb[0].mxu0 %v2815
      %v2920 = vpop.f32.mrb[0].mxu0
      %v2921 = vadd.f32 0.0, %v2920
      %v2922 = vpop.f32.mrb[0].mxu0
      %v2923 = vpop.f32.mrb[0].mxu0
      %v2924 = vadd.f32 0.0, %v2923
      %v2925 = vpop.f32.mrb[0].mxu0
      %2926 = vmatprep.mubr.bf16.mxu0 0
      %2927 = vmatmul.mubr.bf16.gmra.mrb[0].mxu0 %v2818
      %v2928 = vpop.f32.mrb[0].mxu0
      %v2929 = vadd.f32 0.0, %v2928
      %v2930 = vpop.f32.mrb[0].mxu0
      %v2931 = vpop.f32.mrb[0].mxu0
      %v2932 = vadd.f32 0.0, %v2931
      %v2933 = vpop.f32.mrb[0].mxu0
      %2934 = vmatprep.mubr.bf16.mxu0 0
      %2935 = vmatmul.mubr.bf16.gmra.mrb[0].mxu0 %v2821
      %v2936 = vpop.f32.mrb[0].mxu0
      %v2937 = vadd.f32 0.0, %v2936
      %v2938 = vpop.f32.mrb[0].mxu0
      %v2939 = vpop.f32.mrb[0].mxu0
      %v2940 = vadd.f32 0.0, %v2939
      %v2941 = vpop.f32.mrb[0].mxu0
      %2942 = vmatprep.mubr.bf16.mxu0 0
      %2943 = vmatmul.mubr.bf16.gmra.mrb[0].mxu0 %v2824
      %v2944 = vpop.f32.mrb[0].mxu0
      %v2945 = vadd.f32 0.0, %v2944
      %v2946 = vpop.f32.mrb[0].mxu0
      %v2947 = vpop.f32.mrb[0].mxu0
      %v2948 = vadd.f32 0.0, %v2947
      %v2949 = vpop.f32.mrb[0].mxu0
      %2950 = vmatprep.mubr.bf16.mxu0 0
      %2951 = vmatmul.mubr.bf16.gmra.mrb[0].mxu0 %v2827
      %v2952 = vpop.f32.mrb[0].mxu0
      %v2953 = vadd.f32 0.0, %v2952
      %v2954 = vpop.f32.mrb[0].mxu0
      %v2955 = vpop.f32.mrb[0].mxu0
      %v2956 = vadd.f32 0.0, %v2955
      %v2957 = vpop.f32.mrb[0].mxu0
      %2958 = vmatprep.mubr.bf16.mxu0 0
      %2959 = vmatmul.mubr.bf16.gmra.mrb[0].mxu0 %v2830
      %v2960 = vpop.f32.mrb[0].mxu0
      %v2961 = vadd.f32 0.0, %v2960
      %v2962 = vpop.f32.mrb[0].mxu0
      %v2963 = vpop.f32.mrb[0].mxu0
      %v2964 = vadd.f32 0.0, %v2963
      %v2965 = vpop.f32.mrb[0].mxu0
      %2966 = vmatprep.mubr.bf16.mxu0 0
      %2967 = vmatmul.mubr.bf16.gmra.mrb[0].mxu0 %v2833
      %v2968 = vpop.f32.mrb[0].mxu0
      %v2969 = vadd.f32 0.0, %v2968
      %v2970 = vpop.f32.mrb[0].mxu0
      %v2971 = vpop.f32.mrb[0].mxu0
      %v2972 = vadd.f32 0.0, %v2971
      %v2973 = vpop.f32.mrb[0].mxu0
      %2974 = vmatprep.mubr.bf16.mxu0 0
      %2975 = vmatmul.mubr.bf16.gmra.mrb[0].mxu0 %v2836
      %v2976 = vpop.f32.mrb[0].mxu0
      %v2977 = vadd.f32 0.0, %v2976
      %v2978 = vpop.f32.mrb[0].mxu0
      %v2979 = vpop.f32.mrb[0].mxu0
      %v2980 = vadd.f32 0.0, %v2979
      %v2981 = vpop.f32.mrb[0].mxu0
      %2982 = vmatprep.mubr.bf16.mxu0 0
      %2983 = vmatmul.mubr.bf16.gmra.mrb[0].mxu0 %v2839
      %v2984 = vpop.f32.mrb[0].mxu0
      %v2985 = vadd.f32 0.0, %v2984
      %v2986 = vpop.f32.mrb[0].mxu0
      %v2987 = vpop.f32.mrb[0].mxu0
      %v2988 = vadd.f32 0.0, %v2987
      %v2989 = vpop.f32.mrb[0].mxu0
      %2990 = vmatprep.mubr.bf16.mxu0 0
      %2991 = vmatmul.mubr.bf16.gmra.mrb[0].mxu0 %v2842
      %v2992 = vpop.f32.mrb[0].mxu0
      %v2993 = vadd.f32 0.0, %v2992
      %v2994 = vpop.f32.mrb[0].mxu0
      %v2995 = vpop.f32.mrb[0].mxu0
      %v2996 = vadd.f32 0.0, %v2995
      %v2997 = vpop.f32.mrb[0].mxu0
      %2998 = vmatprep.mubr.bf16.mxu0 0
      %2999 = vmatmul.mubr.bf16.gmra.mrb[0].mxu0 %v2845
      %v3000 = vpop.f32.mrb[0].mxu0
      %v3001 = vadd.f32 0.0, %v3000
      %v3002 = vpop.f32.mrb[0].mxu0
      %v3003 = vpop.f32.mrb[0].mxu0
      %v3004 = vadd.f32 0.0, %v3003
      %v3005 = vpop.f32.mrb[0].mxu0
      %3006 = vmatprep.mubr.bf16.mxu0 0
      %3007 = vmatmul.mubr.bf16.gmra.mrb[0].mxu0 %v2848
      %v3008 = vpop.f32.mrb[0].mxu0
      %v3009 = vadd.f32 0.0, %v3008
      %v3010 = vpop.f32.mrb[0].mxu0
      %v3011 = vpop.f32.mrb[0].mxu0
      %v3012 = vadd.f32 0.0, %v3011
      %v3013 = vpop.f32.mrb[0].mxu0
      %3014 = vmatprep.mubr.bf16.mxu0 0
      %3015 = vmatmul.mubr.bf16.gmra.mrb[0].mxu0 %v2851
      %v3016 = vpop.f32.mrb[0].mxu0
      %v3017 = vadd.f32 0.0, %v3016
      %v3018 = vpop.f32.mrb[0].mxu0
      %v3019 = vpop.f32.mrb[0].mxu0
      %v3020 = vadd.f32 0.0, %v3019
      %v3021 = vpop.f32.mrb[0].mxu0
      %3022 = vmatprep.mubr.bf16.mxu0 0
      %3023 = vmatmul.mubr.bf16.gmra.mrb[0].mxu0 %v2854
      %v3024 = vpop.f32.mrb[0].mxu0
      %v3025 = vadd.f32 0.0, %v3024
      %v3026 = vpop.f32.mrb[0].mxu0
      %v3027 = vpop.f32.mrb[0].mxu0
      %v3028 = vadd.f32 0.0, %v3027
      %v3029 = vpop.f32.mrb[0].mxu0
      %3030 = vmatprep.mubr.bf16.mxu0 0
      %3031 = vmatmul.mubr.bf16.gmra.mrb[0].mxu0 %v2857
      %v3032 = vpop.f32.mrb[0].mxu0
      %v3033 = vadd.f32 0.0, %v3032
      %v3034 = vpop.f32.mrb[0].mxu0
      %v3035 = vpop.f32.mrb[0].mxu0
      %v3036 = vadd.f32 0.0, %v3035
      %v3037 = vpop.f32.mrb[0].mxu0
      %3038 = vdwg.mxu0
      %v3039 = vadd.f32 %v2600, %v2897
      %v3040 = vadd.f32 %v2601, %v2900
      %v3041 = vadd.f32 %v2602, %v2905
      %v3042 = vadd.f32 %v2603, %v2908
      %v3043 = vadd.f32 %v2604, %v2913
      %v3044 = vadd.f32 %v2605, %v2916
      %v3045 = vadd.f32 %v2606, %v2921
      %v3046 = vadd.f32 %v2607, %v2924
      %v3047 = vadd.f32 %v2608, %v2929
      %v3048 = vadd.f32 %v2609, %v2932
      %v3049 = vadd.f32 %v2610, %v2937
      %v3050 = vadd.f32 %v2611, %v2940
      %v3051 = vadd.f32 %v2612, %v2945
      %v3052 = vadd.f32 %v2613, %v2948
      %v3053 = vadd.f32 %v2614, %v2953
      %v3054 = vadd.f32 %v2615, %v2956
      %v3055 = vadd.f32 %v2616, %v2961
      %v3056 = vadd.f32 %v2617, %v2964
      %v3057 = vadd.f32 %v2618, %v2969
      %v3058 = vadd.f32 %v2619, %v2972
      %v3059 = vadd.f32 %v2620, %v2977
      %v3060 = vadd.f32 %v2621, %v2980
      %v3061 = vadd.f32 %v2622, %v2985
      %v3062 = vadd.f32 %v2623, %v2988
      %v3063 = vadd.f32 %v2624, %v2993
      %v3064 = vadd.f32 %v2625, %v2996
      %v3065 = vadd.f32 %v2626, %v3001
      %v3066 = vadd.f32 %v2627, %v3004
      %v3067 = vadd.f32 %v2628, %v3009
      %v3068 = vadd.f32 %v2629, %v3012
      %v3069 = vadd.f32 %v2630, %v3017
      %v3070 = vadd.f32 %v2631, %v3020
      %v3071 = vadd.f32 %v2632, %v3025
      %v3072 = vadd.f32 %v2633, %v3028
      %v3073 = vadd.f32 %v2634, %v3033
      %v3074 = vadd.f32 %v2635, %v3036
      %v3075 = vld [vmem:[%s381 + $0xa0] sm:$0x7]
      %s3076 = scalar_lea.vmem %s2, 14
      %v3077 = vld [vmem:[%s3076] sm:$0x3]
      %v3079 = vunpack.c.l.b16 %v3075
      %v3080 = vpack.c.b16 %v3079, %v3079
      %vm3081 = vsmask.f32 5376
      %v3083 = vshrl.u32 %v2749, 16
      %v3085 = vrot.slane %v3083, 2
      %v3086 = vshll.u32 %v2749, 16
      %v3088 = vrot.slane %v3086, 3
      %v3089 = vor.u32 %v3085, %v3088
      %v3091 = vshrl.u32 %v2750, 16
      %v3093 = vrot.slane %v3091, 2
      %v3094 = vshll.u32 %v2750, 16
      %v3096 = vrot.slane %v3094, 3
      %v3097 = vor.u32 %v3093, %v3096
      %v3098 = vsel %vm3081, %v3089, %v3097
      %v3100 = vshrl.u32 %v2751, 16
      %v3102 = vrot.slane %v3100, 2
      %v3103 = vshll.u32 %v2751, 16
      %v3105 = vrot.slane %v3103, 3
      %v3106 = vor.u32 %v3102, %v3105
      %v3107 = vsel %vm3081, %v3097, %v3106
      %v3109 = vshrl.u32 %v2752, 16
      %v3111 = vrot.slane %v3109, 2
      %v3112 = vshll.u32 %v2752, 16
      %v3114 = vrot.slane %v3112, 3
      %v3115 = vor.u32 %v3111, %v3114
      %v3116 = vsel %vm3081, %v3106, %v3115
      %v3118 = vshrl.u32 %v2753, 16
      %v3120 = vrot.slane %v3118, 2
      %v3121 = vshll.u32 %v2753, 16
      %v3123 = vrot.slane %v3121, 3
      %v3124 = vor.u32 %v3120, %v3123
      %v3125 = vsel %vm3081, %v3115, %v3124
      %v3127 = vshrl.u32 %v2754, 16
      %v3129 = vrot.slane %v3127, 2
      %v3130 = vshll.u32 %v2754, 16
      %v3132 = vrot.slane %v3130, 3
      %v3133 = vor.u32 %v3129, %v3132
      %v3134 = vsel %vm3081, %v3124, %v3133
      %v3136 = vshrl.u32 %v2755, 16
      %v3138 = vrot.slane %v3136, 2
      %v3139 = vshll.u32 %v2755, 16
      %v3141 = vrot.slane %v3139, 3
      %v3142 = vor.u32 %v3138, %v3141
      %v3143 = vsel %vm3081, %v3133, %v3142
      %v3145 = vshrl.u32 %v2756, 16
      %v3147 = vrot.slane %v3145, 2
      %v3148 = vshll.u32 %v2756, 16
      %v3150 = vrot.slane %v3148, 3
      %v3151 = vor.u32 %v3147, %v3150
      %v3152 = vsel %vm3081, %v3142, %v3151
      %v3154 = vshrl.u32 %v2757, 16
      %v3156 = vrot.slane %v3154, 2
      %v3157 = vshll.u32 %v2757, 16
      %v3159 = vrot.slane %v3157, 3
      %v3160 = vor.u32 %v3156, %v3159
      %v3161 = vsel %vm3081, %v3151, %v3160
      %v3163 = vshrl.u32 %v2758, 16
      %v3165 = vrot.slane %v3163, 2
      %v3166 = vshll.u32 %v2758, 16
      %v3168 = vrot.slane %v3166, 3
      %v3169 = vor.u32 %v3165, %v3168
      %v3170 = vsel %vm3081, %v3160, %v3169
      %v3172 = vshrl.u32 %v2759, 16
      %v3174 = vrot.slane %v3172, 2
      %v3175 = vshll.u32 %v2759, 16
      %v3177 = vrot.slane %v3175, 3
      %v3178 = vor.u32 %v3174, %v3177
      %v3179 = vsel %vm3081, %v3169, %v3178
      %v3181 = vshrl.u32 %v2760, 16
      %v3183 = vrot.slane %v3181, 2
      %v3184 = vshll.u32 %v2760, 16
      %v3186 = vrot.slane %v3184, 3
      %v3187 = vor.u32 %v3183, %v3186
      %v3188 = vsel %vm3081, %v3178, %v3187
      %v3190 = vshrl.u32 %v2761, 16
      %v3192 = vrot.slane %v3190, 2
      %v3193 = vshll.u32 %v2761, 16
      %v3195 = vrot.slane %v3193, 3
      %v3196 = vor.u32 %v3192, %v3195
      %v3197 = vsel %vm3081, %v3187, %v3196
      %v3199 = vshrl.u32 %v2762, 16
      %v3201 = vrot.slane %v3199, 2
      %v3202 = vshll.u32 %v2762, 16
      %v3204 = vrot.slane %v3202, 3
      %v3205 = vor.u32 %v3201, %v3204
      %v3206 = vsel %vm3081, %v3196, %v3205
      %v3208 = vshrl.u32 %v2763, 16
      %v3210 = vrot.slane %v3208, 2
      %v3211 = vshll.u32 %v2763, 16
      %v3213 = vrot.slane %v3211, 3
      %v3214 = vor.u32 %v3210, %v3213
      %v3215 = vsel %vm3081, %v3205, %v3214
      %v3217 = vshrl.u32 %v2764, 16
      %v3219 = vrot.slane %v3217, 2
      %v3220 = vshll.u32 %v2764, 16
      %v3222 = vrot.slane %v3220, 3
      %v3223 = vor.u32 %v3219, %v3222
      %v3224 = vsel %vm3081, %v3214, %v3223
      %v3226 = vshrl.u32 %v2765, 16
      %v3228 = vrot.slane %v3226, 2
      %v3229 = vshll.u32 %v2765, 16
      %v3231 = vrot.slane %v3229, 3
      %v3232 = vor.u32 %v3228, %v3231
      %v3233 = vsel %vm3081, %v3223, %v3232
      %v3235 = vshrl.u32 %v2766, 16
      %v3237 = vrot.slane %v3235, 2
      %v3238 = vshll.u32 %v2766, 16
      %v3240 = vrot.slane %v3238, 3
      %v3241 = vor.u32 %v3237, %v3240
      %v3242 = vsel %vm3081, %v3232, %v3241
      %v3244 = vshrl.u32 %v3080, 16
      %v3246 = vrot.slane %v3244, 2
      %v3247 = vshll.u32 %v3080, 16
      %v3249 = vrot.slane %v3247, 3
      %v3250 = vor.u32 %v3246, %v3249
      %v3251 = vsel %vm3081, %v3241, %v3250
      %v3253 = vsel %vm670, %v3098, 0
      %v3256 = vsel %vm670, %v3107, 0
      %v3259 = vsel %vm670, %v3116, 0
      %v3262 = vsel %vm670, %v3125, 0
      %v3265 = vsel %vm670, %v3134, 0
      %v3268 = vsel %vm670, %v3143, 0
      %v3271 = vsel %vm670, %v3152, 0
      %v3274 = vsel %vm670, %v3161, 0
      %v3277 = vsel %vm670, %v3170, 0
      %v3280 = vsel %vm670, %v3179, 0
      %v3283 = vsel %vm670, %v3188, 0
      %v3286 = vsel %vm670, %v3197, 0
      %v3289 = vsel %vm670, %v3206, 0
      %v3292 = vsel %vm670, %v3215, 0
      %v3295 = vsel %vm670, %v3224, 0
      %v3298 = vsel %vm670, %v3233, 0
      %v3301 = vsel %vm670, %v3242, 0
      %v3304 = vsel %vm670, %v3251, 0
      %v3307 = vsel %vm725, %v3077, 0
      %3309 = vmatprep.subr.bf16.mxu0 0
      %3310 = vmatpush1.bf16.msra.mxu0 %v3307
      %3311 = vmatprep.subr.bf16.mxu0 0
      %3312 = vmatpush1.bf16.msra.mxu0 0
      %3313 = vmatprep.subr.bf16.mxu0 0
      %3314 = vmatpush1.bf16.msra.mxu0 0
      %3315 = vmatprep.subr.bf16.mxu0 0
      %3316 = vmatpush1.bf16.msra.mxu0 0
      %3317 = vmatprep.subr.bf16.mxu0 0
      %3318 = vmatpush1.bf16.msra.mxu0 0
      %3319 = vmatprep.subr.bf16.mxu0 0
      %3320 = vmatpush1.bf16.msra.mxu0 0
      %3321 = vmatprep.subr.bf16.mxu0 0
      %3322 = vmatpush1.bf16.msra.mxu0 0
      %3323 = vmatprep.subr.bf16.mxu0 0
      %3324 = vmatpush1.bf16.msra.mxu0 0
      %3325 = vmatprep.subr.bf16.mxu0 0
      %3326 = vmatpush1.bf16.msra.mxu0 0
      %3327 = vmatprep.subr.bf16.mxu0 0
      %3328 = vmatpush1.bf16.msra.mxu0 0
      %3329 = vmatprep.subr.bf16.mxu0 0
      %3330 = vmatpush1.bf16.msra.mxu0 0
      %3331 = vmatprep.subr.bf16.mxu0 0
      %3332 = vmatpush1.bf16.msra.mxu0 0
      %3333 = vmatprep.subr.bf16.mxu0 0
      %3334 = vmatpush1.bf16.msra.mxu0 0
      %3335 = vmatprep.subr.bf16.mxu0 0
      %3336 = vmatpush1.bf16.msra.mxu0 0
      %3337 = vmatprep.subr.bf16.mxu0 0
      %3338 = vmatpush1.bf16.msra.mxu0 0
      %3339 = vmatprep.subr.bf16.mxu0 0
      %3340 = vmatpush1.bf16.msra.mxu0 0
      %3341 = vmatprep.mubr.bf16.mxu0 0
      %3342 = vmatmul.mubr.bf16.gmra.mrb[0].mxu0 %v3253
      %v3343 = vpop.f32.mrb[0].mxu0
      %v3344 = vadd.f32 0.0, %v3343
      %v3345 = vpop.f32.mrb[0].mxu0
      %v3346 = vpop.f32.mrb[0].mxu0
      %v3347 = vadd.f32 0.0, %v3346
      %v3348 = vpop.f32.mrb[0].mxu0
      %3349 = vmatprep.mubr.bf16.mxu0 0
      %3350 = vmatmul.mubr.bf16.gmra.mrb[0].mxu0 %v3256
      %v3351 = vpop.f32.mrb[0].mxu0
      %v3352 = vadd.f32 0.0, %v3351
      %v3353 = vpop.f32.mrb[0].mxu0
      %v3354 = vpop.f32.mrb[0].mxu0
      %v3355 = vadd.f32 0.0, %v3354
      %v3356 = vpop.f32.mrb[0].mxu0
      %3357 = vmatprep.mubr.bf16.mxu0 0
      %3358 = vmatmul.mubr.bf16.gmra.mrb[0].mxu0 %v3259
      %v3359 = vpop.f32.mrb[0].mxu0
      %v3360 = vadd.f32 0.0, %v3359
      %v3361 = vpop.f32.mrb[0].mxu0
      %v3362 = vpop.f32.mrb[0].mxu0
      %v3363 = vadd.f32 0.0, %v3362
      %v3364 = vpop.f32.mrb[0].mxu0
      %3365 = vmatprep.mubr.bf16.mxu0 0
      %3366 = vmatmul.mubr.bf16.gmra.mrb[0].mxu0 %v3262
      %v3367 = vpop.f32.mrb[0].mxu0
      %v3368 = vadd.f32 0.0, %v3367
      %v3369 = vpop.f32.mrb[0].mxu0
      %v3370 = vpop.f32.mrb[0].mxu0
      %v3371 = vadd.f32 0.0, %v3370
      %v3372 = vpop.f32.mrb[0].mxu0
      %3373 = vmatprep.mubr.bf16.mxu0 0
      %3374 = vmatmul.mubr.bf16.gmra.mrb[0].mxu0 %v3265
      %v3375 = vpop.f32.mrb[0].mxu0
      %v3376 = vadd.f32 0.0, %v3375
      %v3377 = vpop.f32.mrb[0].mxu0
      %v3378 = vpop.f32.mrb[0].mxu0
      %v3379 = vadd.f32 0.0, %v3378
      %v3380 = vpop.f32.mrb[0].mxu0
      %3381 = vmatprep.mubr.bf16.mxu0 0
      %3382 = vmatmul.mubr.bf16.gmra.mrb[0].mxu0 %v3268
      %v3383 = vpop.f32.mrb[0].mxu0
      %v3384 = vadd.f32 0.0, %v3383
      %v3385 = vpop.f32.mrb[0].mxu0
      %v3386 = vpop.f32.mrb[0].mxu0
      %v3387 = vadd.f32 0.0, %v3386
      %v3388 = vpop.f32.mrb[0].mxu0
      %3389 = vmatprep.mubr.bf16.mxu0 0
      %3390 = vmatmul.mubr.bf16.gmra.mrb[0].mxu0 %v3271
      %v3391 = vpop.f32.mrb[0].mxu0
      %v3392 = vadd.f32 0.0, %v3391
      %v3393 = vpop.f32.mrb[0].mxu0
      %v3394 = vpop.f32.mrb[0].mxu0
      %v3395 = vadd.f32 0.0, %v3394
      %v3396 = vpop.f32.mrb[0].mxu0
      %3397 = vmatprep.mubr.bf16.mxu0 0
      %3398 = vmatmul.mubr.bf16.gmra.mrb[0].mxu0 %v3274
      %v3399 = vpop.f32.mrb[0].mxu0
      %v3400 = vadd.f32 0.0, %v3399
      %v3401 = vpop.f32.mrb[0].mxu0
      %v3402 = vpop.f32.mrb[0].mxu0
      %v3403 = vadd.f32 0.0, %v3402
      %v3404 = vpop.f32.mrb[0].mxu0
      %3405 = vmatprep.mubr.bf16.mxu0 0
      %3406 = vmatmul.mubr.bf16.gmra.mrb[0].mxu0 %v3277
      %v3407 = vpop.f32.mrb[0].mxu0
      %v3408 = vadd.f32 0.0, %v3407
      %v3409 = vpop.f32.mrb[0].mxu0
      %v3410 = vpop.f32.mrb[0].mxu0
      %v3411 = vadd.f32 0.0, %v3410
      %v3412 = vpop.f32.mrb[0].mxu0
      %3413 = vmatprep.mubr.bf16.mxu0 0
      %3414 = vmatmul.mubr.bf16.gmra.mrb[0].mxu0 %v3280
      %v3415 = vpop.f32.mrb[0].mxu0
      %v3416 = vadd.f32 0.0, %v3415
      %v3417 = vpop.f32.mrb[0].mxu0
      %v3418 = vpop.f32.mrb[0].mxu0
      %v3419 = vadd.f32 0.0, %v3418
      %v3420 = vpop.f32.mrb[0].mxu0
      %3421 = vmatprep.mubr.bf16.mxu0 0
      %3422 = vmatmul.mubr.bf16.gmra.mrb[0].mxu0 %v3283
      %v3423 = vpop.f32.mrb[0].mxu0
      %v3424 = vadd.f32 0.0, %v3423
      %v3425 = vpop.f32.mrb[0].mxu0
      %v3426 = vpop.f32.mrb[0].mxu0
      %v3427 = vadd.f32 0.0, %v3426
      %v3428 = vpop.f32.mrb[0].mxu0
      %3429 = vmatprep.mubr.bf16.mxu0 0
      %3430 = vmatmul.mubr.bf16.gmra.mrb[0].mxu0 %v3286
      %v3431 = vpop.f32.mrb[0].mxu0
      %v3432 = vadd.f32 0.0, %v3431
      %v3433 = vpop.f32.mrb[0].mxu0
      %v3434 = vpop.f32.mrb[0].mxu0
      %v3435 = vadd.f32 0.0, %v3434
      %v3436 = vpop.f32.mrb[0].mxu0
      %3437 = vmatprep.mubr.bf16.mxu0 0
      %3438 = vmatmul.mubr.bf16.gmra.mrb[0].mxu0 %v3289
      %v3439 = vpop.f32.mrb[0].mxu0
      %v3440 = vadd.f32 0.0, %v3439
      %v3441 = vpop.f32.mrb[0].mxu0
      %v3442 = vpop.f32.mrb[0].mxu0
      %v3443 = vadd.f32 0.0, %v3442
      %v3444 = vpop.f32.mrb[0].mxu0
      %3445 = vmatprep.mubr.bf16.mxu0 0
      %3446 = vmatmul.mubr.bf16.gmra.mrb[0].mxu0 %v3292
      %v3447 = vpop.f32.mrb[0].mxu0
      %v3448 = vadd.f32 0.0, %v3447
      %v3449 = vpop.f32.mrb[0].mxu0
      %v3450 = vpop.f32.mrb[0].mxu0
      %v3451 = vadd.f32 0.0, %v3450
      %v3452 = vpop.f32.mrb[0].mxu0
      %3453 = vmatprep.mubr.bf16.mxu0 0
      %3454 = vmatmul.mubr.bf16.gmra.mrb[0].mxu0 %v3295
      %v3455 = vpop.f32.mrb[0].mxu0
      %v3456 = vadd.f32 0.0, %v3455
      %v3457 = vpop.f32.mrb[0].mxu0
      %v3458 = vpop.f32.mrb[0].mxu0
      %v3459 = vadd.f32 0.0, %v3458
      %v3460 = vpop.f32.mrb[0].mxu0
      %3461 = vmatprep.mubr.bf16.mxu0 0
      %3462 = vmatmul.mubr.bf16.gmra.mrb[0].mxu0 %v3298
      %v3463 = vpop.f32.mrb[0].mxu0
      %v3464 = vadd.f32 0.0, %v3463
      %v3465 = vpop.f32.mrb[0].mxu0
      %v3466 = vpop.f32.mrb[0].mxu0
      %v3467 = vadd.f32 0.0, %v3466
      %v3468 = vpop.f32.mrb[0].mxu0
      %3469 = vmatprep.mubr.bf16.mxu0 0
      %3470 = vmatmul.mubr.bf16.gmra.mrb[0].mxu0 %v3301
      %v3471 = vpop.f32.mrb[0].mxu0
      %v3472 = vadd.f32 0.0, %v3471
      %v3473 = vpop.f32.mrb[0].mxu0
      %v3474 = vpop.f32.mrb[0].mxu0
      %v3475 = vadd.f32 0.0, %v3474
      %v3476 = vpop.f32.mrb[0].mxu0
      %3477 = vmatprep.mubr.bf16.mxu0 0
      %3478 = vmatmul.mubr.bf16.gmra.mrb[0].mxu0 %v3304
      %v3479 = vpop.f32.mrb[0].mxu0
      %v3480 = vadd.f32 0.0, %v3479
      %v3481 = vpop.f32.mrb[0].mxu0
      %v3482 = vpop.f32.mrb[0].mxu0
      %v3483 = vadd.f32 0.0, %v3482
      %v3484 = vpop.f32.mrb[0].mxu0
      %3485 = vdwg.mxu0
      %v3486 = vadd.f32 %v3039, %v3344
      %v3487 = vadd.f32 %v3040, %v3347
      %v3488 = vadd.f32 %v3041, %v3352
      %v3489 = vadd.f32 %v3042, %v3355
      %v3490 = vadd.f32 %v3043, %v3360
      %v3491 = vadd.f32 %v3044, %v3363
      %v3492 = vadd.f32 %v3045, %v3368
      %v3493 = vadd.f32 %v3046, %v3371
      %v3494 = vadd.f32 %v3047, %v3376
      %v3495 = vadd.f32 %v3048, %v3379
      %v3496 = vadd.f32 %v3049, %v3384
      %v3497 = vadd.f32 %v3050, %v3387
      %v3498 = vadd.f32 %v3051, %v3392
      %v3499 = vadd.f32 %v3052, %v3395
      %v3500 = vadd.f32 %v3053, %v3400
      %v3501 = vadd.f32 %v3054, %v3403
      %v3502 = vadd.f32 %v3055, %v3408
      %v3503 = vadd.f32 %v3056, %v3411
      %v3504 = vadd.f32 %v3057, %v3416
      %v3505 = vadd.f32 %v3058, %v3419
      %v3506 = vadd.f32 %v3059, %v3424
      %v3507 = vadd.f32 %v3060, %v3427
      %v3508 = vadd.f32 %v3061, %v3432
      %v3509 = vadd.f32 %v3062, %v3435
      %v3510 = vadd.f32 %v3063, %v3440
      %v3511 = vadd.f32 %v3064, %v3443
      %v3512 = vadd.f32 %v3065, %v3448
      %v3513 = vadd.f32 %v3066, %v3451
      %v3514 = vadd.f32 %v3067, %v3456
      %v3515 = vadd.f32 %v3068, %v3459
      %v3516 = vadd.f32 %v3069, %v3464
      %v3517 = vadd.f32 %v3070, %v3467
      %v3518 = vadd.f32 %v3071, %v3472
      %v3519 = vadd.f32 %v3072, %v3475
      %v3520 = vadd.f32 %v3073, %v3480
      %v3521 = vadd.f32 %v3074, %v3483
      %v3522 = vld [vmem:[%s381 + $0x10] sm:$0x8]
      %s3523 = scalar_lea.vmem %s2, 16
      %v3524 = vld [vmem:[%s3523] sm:$0x3]
      %v3526 = vunpack.c.l.b16 %v3522
      %v3527 = vpack.c.b16 %v2713, %v3526
      %vm3528 = vcmask 1044480
      %v3529 = vrot.slane %v3527, 3
      %v3530 = vrot.slane %v2750, 3
      %v3531 = vsel %vm3528, %v3529, %v3530
      %v3532 = vrot.slane %v2751, 3
      %v3533 = vsel %vm3528, %v3530, %v3532
      %v3534 = vrot.slane %v2752, 3
      %v3535 = vsel %vm3528, %v3532, %v3534
      %v3536 = vrot.slane %v2753, 3
      %v3537 = vsel %vm3528, %v3534, %v3536
      %v3538 = vrot.slane %v2754, 3
      %v3539 = vsel %vm3528, %v3536, %v3538
      %v3540 = vrot.slane %v2755, 3
      %v3541 = vsel %vm3528, %v3538, %v3540
      %v3542 = vrot.slane %v2756, 3
      %v3543 = vsel %vm3528, %v3540, %v3542
      %v3544 = vrot.slane %v2757, 3
      %v3545 = vsel %vm3528, %v3542, %v3544
      %v3546 = vrot.slane %v2758, 3
      %v3547 = vsel %vm3528, %v3544, %v3546
      %v3548 = vrot.slane %v2759, 3
      %v3549 = vsel %vm3528, %v3546, %v3548
      %v3550 = vrot.slane %v2760, 3
      %v3551 = vsel %vm3528, %v3548, %v3550
      %v3552 = vrot.slane %v2761, 3
      %v3553 = vsel %vm3528, %v3550, %v3552
      %v3554 = vrot.slane %v2762, 3
      %v3555 = vsel %vm3528, %v3552, %v3554
      %v3556 = vrot.slane %v2763, 3
      %v3557 = vsel %vm3528, %v3554, %v3556
      %v3558 = vrot.slane %v2764, 3
      %v3559 = vsel %vm3528, %v3556, %v3558
      %v3560 = vrot.slane %v2765, 3
      %v3561 = vsel %vm3528, %v3558, %v3560
      %v3562 = vrot.slane %v2766, 3
      %v3563 = vsel %vm3528, %v3560, %v3562
      %v3564 = vrot.slane %v3080, 3
      %v3565 = vsel %vm3528, %v3562, %v3564
      %v3567 = vsel %vm670, %v3531, 0
      %v3570 = vsel %vm670, %v3533, 0
      %v3573 = vsel %vm670, %v3535, 0
      %v3576 = vsel %vm670, %v3537, 0
      %v3579 = vsel %vm670, %v3539, 0
      %v3582 = vsel %vm670, %v3541, 0
      %v3585 = vsel %vm670, %v3543, 0
      %v3588 = vsel %vm670, %v3545, 0
      %v3591 = vsel %vm670, %v3547, 0
      %v3594 = vsel %vm670, %v3549, 0
      %v3597 = vsel %vm670, %v3551, 0
      %v3600 = vsel %vm670, %v3553, 0
      %v3603 = vsel %vm670, %v3555, 0
      %v3606 = vsel %vm670, %v3557, 0
      %v3609 = vsel %vm670, %v3559, 0
      %v3612 = vsel %vm670, %v3561, 0
      %v3615 = vsel %vm670, %v3563, 0
      %v3618 = vsel %vm670, %v3565, 0
      %v3621 = vsel %vm725, %v3524, 0
      %3623 = vmatprep.subr.bf16.mxu0 0
      %3624 = vmatpush1.bf16.msra.mxu0 %v3621
      %3625 = vmatprep.subr.bf16.mxu0 0
      %3626 = vmatpush1.bf16.msra.mxu0 0
      %3627 = vmatprep.subr.bf16.mxu0 0
      %3628 = vmatpush1.bf16.msra.mxu0 0
      %3629 = vmatprep.subr.bf16.mxu0 0
      %3630 = vmatpush1.bf16.msra.mxu0 0
      %3631 = vmatprep.subr.bf16.mxu0 0
      %3632 = vmatpush1.bf16.msra.mxu0 0
      %3633 = vmatprep.subr.bf16.mxu0 0
      %3634 = vmatpush1.bf16.msra.mxu0 0
      %3635 = vmatprep.subr.bf16.mxu0 0
      %3636 = vmatpush1.bf16.msra.mxu0 0
      %3637 = vmatprep.subr.bf16.mxu0 0
      %3638 = vmatpush1.bf16.msra.mxu0 0
      %3639 = vmatprep.subr.bf16.mxu0 0
      %3640 = vmatpush1.bf16.msra.mxu0 0
      %3641 = vmatprep.subr.bf16.mxu0 0
      %3642 = vmatpush1.bf16.msra.mxu0 0
      %3643 = vmatprep.subr.bf16.mxu0 0
      %3644 = vmatpush1.bf16.msra.mxu0 0
      %3645 = vmatprep.subr.bf16.mxu0 0
      %3646 = vmatpush1.bf16.msra.mxu0 0
      %3647 = vmatprep.subr.bf16.mxu0 0
      %3648 = vmatpush1.bf16.msra.mxu0 0
      %3649 = vmatprep.subr.bf16.mxu0 0
      %3650 = vmatpush1.bf16.msra.mxu0 0
      %3651 = vmatprep.subr.bf16.mxu0 0
      %3652 = vmatpush1.bf16.msra.mxu0 0
      %3653 = vmatprep.subr.bf16.mxu0 0
      %3654 = vmatpush1.bf16.msra.mxu0 0
      %3655 = vmatprep.mubr.bf16.mxu0 0
      %3656 = vmatmul.mubr.bf16.gmra.mrb[0].mxu0 %v3567
      %v3657 = vpop.f32.mrb[0].mxu0
      %v3658 = vadd.f32 0.0, %v3657
      %v3659 = vpop.f32.mrb[0].mxu0
      %v3660 = vpop.f32.mrb[0].mxu0
      %v3661 = vadd.f32 0.0, %v3660
      %v3662 = vpop.f32.mrb[0].mxu0
      %3663 = vmatprep.mubr.bf16.mxu0 0
      %3664 = vmatmul.mubr.bf16.gmra.mrb[0].mxu0 %v3570
      %v3665 = vpop.f32.mrb[0].mxu0
      %v3666 = vadd.f32 0.0, %v3665
      %v3667 = vpop.f32.mrb[0].mxu0
      %v3668 = vpop.f32.mrb[0].mxu0
      %v3669 = vadd.f32 0.0, %v3668
      %v3670 = vpop.f32.mrb[0].mxu0
      %3671 = vmatprep.mubr.bf16.mxu0 0
      %3672 = vmatmul.mubr.bf16.gmra.mrb[0].mxu0 %v3573
      %v3673 = vpop.f32.mrb[0].mxu0
      %v3674 = vadd.f32 0.0, %v3673
      %v3675 = vpop.f32.mrb[0].mxu0
      %v3676 = vpop.f32.mrb[0].mxu0
      %v3677 = vadd.f32 0.0, %v3676
      %v3678 = vpop.f32.mrb[0].mxu0
      %3679 = vmatprep.mubr.bf16.mxu0 0
      %3680 = vmatmul.mubr.bf16.gmra.mrb[0].mxu0 %v3576
      %v3681 = vpop.f32.mrb[0].mxu0
      %v3682 = vadd.f32 0.0, %v3681
      %v3683 = vpop.f32.mrb[0].mxu0
      %v3684 = vpop.f32.mrb[0].mxu0
      %v3685 = vadd.f32 0.0, %v3684
      %v3686 = vpop.f32.mrb[0].mxu0
      %3687 = vmatprep.mubr.bf16.mxu0 0
      %3688 = vmatmul.mubr.bf16.gmra.mrb[0].mxu0 %v3579
      %v3689 = vpop.f32.mrb[0].mxu0
      %v3690 = vadd.f32 0.0, %v3689
      %v3691 = vpop.f32.mrb[0].mxu0
      %v3692 = vpop.f32.mrb[0].mxu0
      %v3693 = vadd.f32 0.0, %v3692
      %v3694 = vpop.f32.mrb[0].mxu0
      %3695 = vmatprep.mubr.bf16.mxu0 0
      %3696 = vmatmul.mubr.bf16.gmra.mrb[0].mxu0 %v3582
      %v3697 = vpop.f32.mrb[0].mxu0
      %v3698 = vadd.f32 0.0, %v3697
      %v3699 = vpop.f32.mrb[0].mxu0
      %v3700 = vpop.f32.mrb[0].mxu0
      %v3701 = vadd.f32 0.0, %v3700
      %v3702 = vpop.f32.mrb[0].mxu0
      %3703 = vmatprep.mubr.bf16.mxu0 0
      %3704 = vmatmul.mubr.bf16.gmra.mrb[0].mxu0 %v3585
      %v3705 = vpop.f32.mrb[0].mxu0
      %v3706 = vadd.f32 0.0, %v3705
      %v3707 = vpop.f32.mrb[0].mxu0
      %v3708 = vpop.f32.mrb[0].mxu0
      %v3709 = vadd.f32 0.0, %v3708
      %v3710 = vpop.f32.mrb[0].mxu0
      %3711 = vmatprep.mubr.bf16.mxu0 0
      %3712 = vmatmul.mubr.bf16.gmra.mrb[0].mxu0 %v3588
      %v3713 = vpop.f32.mrb[0].mxu0
      %v3714 = vadd.f32 0.0, %v3713
      %v3715 = vpop.f32.mrb[0].mxu0
      %v3716 = vpop.f32.mrb[0].mxu0
      %v3717 = vadd.f32 0.0, %v3716
      %v3718 = vpop.f32.mrb[0].mxu0
      %3719 = vmatprep.mubr.bf16.mxu0 0
      %3720 = vmatmul.mubr.bf16.gmra.mrb[0].mxu0 %v3591
      %v3721 = vpop.f32.mrb[0].mxu0
      %v3722 = vadd.f32 0.0, %v3721
      %v3723 = vpop.f32.mrb[0].mxu0
      %v3724 = vpop.f32.mrb[0].mxu0
      %v3725 = vadd.f32 0.0, %v3724
      %v3726 = vpop.f32.mrb[0].mxu0
      %3727 = vmatprep.mubr.bf16.mxu0 0
      %3728 = vmatmul.mubr.bf16.gmra.mrb[0].mxu0 %v3594
      %v3729 = vpop.f32.mrb[0].mxu0
      %v3730 = vadd.f32 0.0, %v3729
      %v3731 = vpop.f32.mrb[0].mxu0
      %v3732 = vpop.f32.mrb[0].mxu0
      %v3733 = vadd.f32 0.0, %v3732
      %v3734 = vpop.f32.mrb[0].mxu0
      %3735 = vmatprep.mubr.bf16.mxu0 0
      %3736 = vmatmul.mubr.bf16.gmra.mrb[0].mxu0 %v3597
      %v3737 = vpop.f32.mrb[0].mxu0
      %v3738 = vadd.f32 0.0, %v3737
      %v3739 = vpop.f32.mrb[0].mxu0
      %v3740 = vpop.f32.mrb[0].mxu0
      %v3741 = vadd.f32 0.0, %v3740
      %v3742 = vpop.f32.mrb[0].mxu0
      %3743 = vmatprep.mubr.bf16.mxu0 0
      %3744 = vmatmul.mubr.bf16.gmra.mrb[0].mxu0 %v3600
      %v3745 = vpop.f32.mrb[0].mxu0
      %v3746 = vadd.f32 0.0, %v3745
      %v3747 = vpop.f32.mrb[0].mxu0
      %v3748 = vpop.f32.mrb[0].mxu0
      %v3749 = vadd.f32 0.0, %v3748
      %v3750 = vpop.f32.mrb[0].mxu0
      %3751 = vmatprep.mubr.bf16.mxu0 0
      %3752 = vmatmul.mubr.bf16.gmra.mrb[0].mxu0 %v3603
      %v3753 = vpop.f32.mrb[0].mxu0
      %v3754 = vadd.f32 0.0, %v3753
      %v3755 = vpop.f32.mrb[0].mxu0
      %v3756 = vpop.f32.mrb[0].mxu0
      %v3757 = vadd.f32 0.0, %v3756
      %v3758 = vpop.f32.mrb[0].mxu0
      %3759 = vmatprep.mubr.bf16.mxu0 0
      %3760 = vmatmul.mubr.bf16.gmra.mrb[0].mxu0 %v3606
      %v3761 = vpop.f32.mrb[0].mxu0
      %v3762 = vadd.f32 0.0, %v3761
      %v3763 = vpop.f32.mrb[0].mxu0
      %v3764 = vpop.f32.mrb[0].mxu0
      %v3765 = vadd.f32 0.0, %v3764
      %v3766 = vpop.f32.mrb[0].mxu0
      %3767 = vmatprep.mubr.bf16.mxu0 0
      %3768 = vmatmul.mubr.bf16.gmra.mrb[0].mxu0 %v3609
      %v3769 = vpop.f32.mrb[0].mxu0
      %v3770 = vadd.f32 0.0, %v3769
      %v3771 = vpop.f32.mrb[0].mxu0
      %v3772 = vpop.f32.mrb[0].mxu0
      %v3773 = vadd.f32 0.0, %v3772
      %v3774 = vpop.f32.mrb[0].mxu0
      %3775 = vmatprep.mubr.bf16.mxu0 0
      %3776 = vmatmul.mubr.bf16.gmra.mrb[0].mxu0 %v3612
      %v3777 = vpop.f32.mrb[0].mxu0
      %v3778 = vadd.f32 0.0, %v3777
      %v3779 = vpop.f32.mrb[0].mxu0
      %v3780 = vpop.f32.mrb[0].mxu0
      %v3781 = vadd.f32 0.0, %v3780
      %v3782 = vpop.f32.mrb[0].mxu0
      %3783 = vmatprep.mubr.bf16.mxu0 0
      %3784 = vmatmul.mubr.bf16.gmra.mrb[0].mxu0 %v3615
      %v3785 = vpop.f32.mrb[0].mxu0
      %v3786 = vadd.f32 0.0, %v3785
      %v3787 = vpop.f32.mrb[0].mxu0
      %v3788 = vpop.f32.mrb[0].mxu0
      %v3789 = vadd.f32 0.0, %v3788
      %v3790 = vpop.f32.mrb[0].mxu0
      %3791 = vmatprep.mubr.bf16.mxu0 0
      %3792 = vmatmul.mubr.bf16.gmra.mrb[0].mxu0 %v3618
      %v3793 = vpop.f32.mrb[0].mxu0
      %v3794 = vadd.f32 0.0, %v3793
      %v3795 = vpop.f32.mrb[0].mxu0
      %v3796 = vpop.f32.mrb[0].mxu0
      %v3797 = vadd.f32 0.0, %v3796
      %v3798 = vpop.f32.mrb[0].mxu0
      %3799 = vdwg.mxu0
      %v3800 = vadd.f32 %v3486, %v3658
      %v3801 = vadd.f32 %v3487, %v3661
      %v3802 = vadd.f32 %v3488, %v3666
      %v3803 = vadd.f32 %v3489, %v3669
      %v3804 = vadd.f32 %v3490, %v3674
      %v3805 = vadd.f32 %v3491, %v3677
      %v3806 = vadd.f32 %v3492, %v3682
      %v3807 = vadd.f32 %v3493, %v3685
      %v3808 = vadd.f32 %v3494, %v3690
      %v3809 = vadd.f32 %v3495, %v3693
      %v3810 = vadd.f32 %v3496, %v3698
      %v3811 = vadd.f32 %v3497, %v3701
      %v3812 = vadd.f32 %v3498, %v3706
      %v3813 = vadd.f32 %v3499, %v3709
      %v3814 = vadd.f32 %v3500, %v3714
      %v3815 = vadd.f32 %v3501, %v3717
      %v3816 = vadd.f32 %v3502, %v3722
      %v3817 = vadd.f32 %v3503, %v3725
      %v3818 = vadd.f32 %v3504, %v3730
      %v3819 = vadd.f32 %v3505, %v3733
      %v3820 = vadd.f32 %v3506, %v3738
      %v3821 = vadd.f32 %v3507, %v3741
      %v3822 = vadd.f32 %v3508, %v3746
      %v3823 = vadd.f32 %v3509, %v3749
      %v3824 = vadd.f32 %v3510, %v3754
      %v3825 = vadd.f32 %v3511, %v3757
      %v3826 = vadd.f32 %v3512, %v3762
      %v3827 = vadd.f32 %v3513, %v3765
      %v3828 = vadd.f32 %v3514, %v3770
      %v3829 = vadd.f32 %v3515, %v3773
      %v3830 = vadd.f32 %v3516, %v3778
      %v3831 = vadd.f32 %v3517, %v3781
      %v3832 = vadd.f32 %v3518, %v3786
      %v3833 = vadd.f32 %v3519, %v3789
      %v3834 = vadd.f32 %v3520, %v3794
      %v3835 = vadd.f32 %v3521, %v3797
      %v3836 = vld [vmem:[%s3] sm:$0x1]
      %v3838 = vlaneseq
      %v3839 = vshrl.u32 %v3838, 7
      %v3840 = vsub.s32 0, %v3839
      %v3841 = vrot.slane %v3836, %v3840
      %v3843 = vmul.f32 %v3800, %v3841
      %v3844 = vmul.f32 %v3801, %v3841
      %v3845 = vmul.f32 %v3802, %v3841
      %v3846 = vmul.f32 %v3803, %v3841
      %v3847 = vmul.f32 %v3804, %v3841
      %v3848 = vmul.f32 %v3805, %v3841
      %v3849 = vmul.f32 %v3806, %v3841
      %v3850 = vmul.f32 %v3807, %v3841
      %v3851 = vmul.f32 %v3808, %v3841
      %v3852 = vmul.f32 %v3809, %v3841
      %v3853 = vmul.f32 %v3810, %v3841
      %v3854 = vmul.f32 %v3811, %v3841
      %v3855 = vmul.f32 %v3812, %v3841
      %v3856 = vmul.f32 %v3813, %v3841
      %v3857 = vmul.f32 %v3814, %v3841
      %v3858 = vmul.f32 %v3815, %v3841
      %v3859 = vmul.f32 %v3816, %v3841
      %v3860 = vmul.f32 %v3817, %v3841
      %v3861 = vmul.f32 %v3818, %v3841
      %v3862 = vmul.f32 %v3819, %v3841
      %v3863 = vmul.f32 %v3820, %v3841
      %v3864 = vmul.f32 %v3821, %v3841
      %v3865 = vmul.f32 %v3822, %v3841
      %v3866 = vmul.f32 %v3823, %v3841
      %v3867 = vmul.f32 %v3824, %v3841
      %v3868 = vmul.f32 %v3825, %v3841
      %v3869 = vmul.f32 %v3826, %v3841
      %v3870 = vmul.f32 %v3827, %v3841
      %v3871 = vmul.f32 %v3828, %v3841
      %v3872 = vmul.f32 %v3829, %v3841
      %v3873 = vmul.f32 %v3830, %v3841
      %v3874 = vmul.f32 %v3831, %v3841
      %v3875 = vmul.f32 %v3832, %v3841
      %v3876 = vmul.f32 %v3833, %v3841
      %v3877 = vmul.f32 %v3834, %v3841
      %v3878 = vmul.f32 %v3835, %v3841
      %v3879 = vld [vmem:[%s4] sm:$0x1]
      %v3881 = vlaneseq
      %v3882 = vshrl.u32 %v3881, 7
      %v3883 = vsub.s32 0, %v3882
      %v3884 = vrot.slane %v3879, %v3883
      %v3886 = vadd.f32 %v3843, %v3884
      %v3887 = vadd.f32 %v3844, %v3884
      %v3888 = vadd.f32 %v3845, %v3884
      %v3889 = vadd.f32 %v3846, %v3884
      %v3890 = vadd.f32 %v3847, %v3884
      %v3891 = vadd.f32 %v3848, %v3884
      %v3892 = vadd.f32 %v3849, %v3884
      %v3893 = vadd.f32 %v3850, %v3884
      %v3894 = vadd.f32 %v3851, %v3884
      %v3895 = vadd.f32 %v3852, %v3884
      %v3896 = vadd.f32 %v3853, %v3884
      %v3897 = vadd.f32 %v3854, %v3884
      %v3898 = vadd.f32 %v3855, %v3884
      %v3899 = vadd.f32 %v3856, %v3884
      %v3900 = vadd.f32 %v3857, %v3884
      %v3901 = vadd.f32 %v3858, %v3884
      %v3902 = vadd.f32 %v3859, %v3884
      %v3903 = vadd.f32 %v3860, %v3884
      %v3904 = vadd.f32 %v3861, %v3884
      %v3905 = vadd.f32 %v3862, %v3884
      %v3906 = vadd.f32 %v3863, %v3884
      %v3907 = vadd.f32 %v3864, %v3884
      %v3908 = vadd.f32 %v3865, %v3884
      %v3909 = vadd.f32 %v3866, %v3884
      %v3910 = vadd.f32 %v3867, %v3884
      %v3911 = vadd.f32 %v3868, %v3884
      %v3912 = vadd.f32 %v3869, %v3884
      %v3913 = vadd.f32 %v3870, %v3884
      %v3914 = vadd.f32 %v3871, %v3884
      %v3915 = vadd.f32 %v3872, %v3884
      %v3916 = vadd.f32 %v3873, %v3884
      %v3917 = vadd.f32 %v3874, %v3884
      %v3918 = vadd.f32 %v3875, %v3884
      %v3919 = vadd.f32 %v3876, %v3884
      %v3920 = vadd.f32 %v3877, %v3884
      %v3921 = vadd.f32 %v3878, %v3884
      %v3922 = vmax.f32 %v3886, 0.0
      %v3923 = vmax.f32 %v3887, 0.0
      %v3924 = vmax.f32 %v3888, 0.0
      %v3925 = vmax.f32 %v3889, 0.0
      %v3926 = vmax.f32 %v3890, 0.0
      %v3927 = vmax.f32 %v3891, 0.0
      %v3928 = vmax.f32 %v3892, 0.0
      %v3929 = vmax.f32 %v3893, 0.0
      %v3930 = vmax.f32 %v3894, 0.0
      %v3931 = vmax.f32 %v3895, 0.0
      %v3932 = vmax.f32 %v3896, 0.0
      %v3933 = vmax.f32 %v3897, 0.0
      %v3934 = vmax.f32 %v3898, 0.0
      %v3935 = vmax.f32 %v3899, 0.0
      %v3936 = vmax.f32 %v3900, 0.0
      %v3937 = vmax.f32 %v3901, 0.0
      %v3938 = vmax.f32 %v3902, 0.0
      %v3939 = vmax.f32 %v3903, 0.0
      %v3940 = vmax.f32 %v3904, 0.0
      %v3941 = vmax.f32 %v3905, 0.0
      %v3942 = vmax.f32 %v3906, 0.0
      %v3943 = vmax.f32 %v3907, 0.0
      %v3944 = vmax.f32 %v3908, 0.0
      %v3945 = vmax.f32 %v3909, 0.0
      %v3946 = vmax.f32 %v3910, 0.0
      %v3947 = vmax.f32 %v3911, 0.0
      %v3948 = vmax.f32 %v3912, 0.0
      %v3949 = vmax.f32 %v3913, 0.0
      %v3950 = vmax.f32 %v3914, 0.0
      %v3951 = vmax.f32 %v3915, 0.0
      %v3952 = vmax.f32 %v3916, 0.0
      %v3953 = vmax.f32 %v3917, 0.0
      %v3954 = vmax.f32 %v3918, 0.0
      %v3955 = vmax.f32 %v3919, 0.0
      %v3956 = vmax.f32 %v3920, 0.0
      %v3957 = vmax.f32 %v3921, 0.0
      %v3958 = vld [vmem:[%s1] sm:$0xf]
      %v3959 = vld [vmem:[%s1 + $0x4] sm:$0xf]
      %v3960 = vld [vmem:[%s1 + $0x8] sm:$0xf]
      %v3961 = vld [vmem:[%s1 + $0xc] sm:$0xf]
      %v3962 = vld [vmem:[%s1 + $0x10] sm:$0xf]
      %v3963 = vld [vmem:[%s1 + $0x14] sm:$0xf]
      %v3964 = vld [vmem:[%s1 + $0x18] sm:$0xf]
      %v3965 = vld [vmem:[%s1 + $0x1c] sm:$0xf]
      %v3966 = vld [vmem:[%s1 + $0x20] sm:$0xf]
      %v3967 = vld [vmem:[%s1 + $0x24] sm:$0xf]
      %v3968 = vld [vmem:[%s1 + $0x28] sm:$0xf]
      %v3969 = vld [vmem:[%s1 + $0x2c] sm:$0xf]
      %v3970 = vld [vmem:[%s1 + $0x30] sm:$0xf]
      %v3971 = vld [vmem:[%s1 + $0x34] sm:$0xf]
      %v3972 = vld [vmem:[%s1 + $0x38] sm:$0xf]
      %v3973 = vld [vmem:[%s1 + $0x3c] sm:$0xf]
      %v3974 = vld [vmem:[%s1 + $0x40] sm:$0xf]
      %v3975 = vld [vmem:[%s1 + $0x44] sm:$0xf]
      %v3976 = vld [vmem:[%s1 + $0x48] sm:$0xf]
      %v3977 = vld [vmem:[%s1 + $0x4c] sm:$0xf]
      %v3978 = vld [vmem:[%s1 + $0x50] sm:$0xf]
      %v3979 = vld [vmem:[%s1 + $0x54] sm:$0xf]
      %v3980 = vld [vmem:[%s1 + $0x58] sm:$0xf]
      %v3981 = vld [vmem:[%s1 + $0x5c] sm:$0xf]
      %v3982 = vld [vmem:[%s1 + $0x60] sm:$0xf]
      %v3983 = vld [vmem:[%s1 + $0x64] sm:$0xf]
      %v3984 = vld [vmem:[%s1 + $0x68] sm:$0xf]
      %v3985 = vld [vmem:[%s1 + $0x6c] sm:$0xf]
      %v3986 = vld [vmem:[%s1 + $0x70] sm:$0xf]
      %v3987 = vld [vmem:[%s1 + $0x74] sm:$0xf]
      %v3988 = vld [vmem:[%s1 + $0x78] sm:$0xf]
      %v3989 = vld [vmem:[%s1 + $0x7c] sm:$0xf]
      %v3990 = vld [vmem:[%s1 + $0x80] sm:$0xf]
      %v3991 = vld [vmem:[%s1 + $0x84] sm:$0xf]
      %v3992 = vld [vmem:[%s1 + $0x88] sm:$0xf]
      %v3993 = vld [vmem:[%s1 + $0x8c] sm:$0xf]
      %v3994 = vunpack.c.l.bf16 %v3958
      %v3995 = vunpack.c.l.bf16 %v3959
      %v3996 = vunpack.c.l.bf16 %v3960
      %v3997 = vunpack.c.l.bf16 %v3961
      %v3998 = vunpack.c.l.bf16 %v3962
      %v3999 = vunpack.c.l.bf16 %v3963
      %v4000 = vunpack.c.l.bf16 %v3964
      %v4001 = vunpack.c.l.bf16 %v3965
      %v4002 = vunpack.c.l.bf16 %v3966
      %v4003 = vunpack.c.l.bf16 %v3967
      %v4004 = vunpack.c.l.bf16 %v3968
      %v4005 = vunpack.c.l.bf16 %v3969
      %v4006 = vunpack.c.l.bf16 %v3970
      %v4007 = vunpack.c.l.bf16 %v3971
      %v4008 = vunpack.c.l.bf16 %v3972
      %v4009 = vunpack.c.l.bf16 %v3973
      %v4010 = vunpack.c.l.bf16 %v3974
      %v4011 = vunpack.c.l.bf16 %v3975
      %v4012 = vunpack.c.l.bf16 %v3976
      %v4013 = vunpack.c.l.bf16 %v3977
      %v4014 = vunpack.c.l.bf16 %v3978
      %v4015 = vunpack.c.l.bf16 %v3979
      %v4016 = vunpack.c.l.bf16 %v3980
      %v4017 = vunpack.c.l.bf16 %v3981
      %v4018 = vunpack.c.l.bf16 %v3982
      %v4019 = vunpack.c.l.bf16 %v3983
      %v4020 = vunpack.c.l.bf16 %v3984
      %v4021 = vunpack.c.l.bf16 %v3985
      %v4022 = vunpack.c.l.bf16 %v3986
      %v4023 = vunpack.c.l.bf16 %v3987
      %v4024 = vunpack.c.l.bf16 %v3988
      %v4025 = vunpack.c.l.bf16 %v3989
      %v4026 = vunpack.c.l.bf16 %v3990
      %v4027 = vunpack.c.l.bf16 %v3991
      %v4028 = vunpack.c.l.bf16 %v3992
      %v4029 = vunpack.c.l.bf16 %v3993
      %4031 = vset.pattern.permute.xlu0 0
      %4032 = vperm.xlu0 %4031, %v3994
      %v4033 = vpop.permute.xlu0 %4032
      %4036 = vset.pattern.permute.xlu0 0
      %4037 = vperm.xlu0 %4036, %v3995
      %v4038 = vpop.permute.xlu0 %4037
      %4041 = vset.pattern.permute.xlu0 0
      %4042 = vperm.xlu0 %4041, %v3996
      %v4043 = vpop.permute.xlu0 %4042
      %4046 = vset.pattern.permute.xlu0 0
      %4047 = vperm.xlu0 %4046, %v3997
      %v4048 = vpop.permute.xlu0 %4047
      %4051 = vset.pattern.permute.xlu0 0
      %4052 = vperm.xlu0 %4051, %v3998
      %v4053 = vpop.permute.xlu0 %4052
      %4056 = vset.pattern.permute.xlu0 0
      %4057 = vperm.xlu0 %4056, %v3999
      %v4058 = vpop.permute.xlu0 %4057
      %4061 = vset.pattern.permute.xlu0 0
      %4062 = vperm.xlu0 %4061, %v4000
      %v4063 = vpop.permute.xlu0 %4062
      %4066 = vset.pattern.permute.xlu0 0
      %4067 = vperm.xlu0 %4066, %v4001
      %v4068 = vpop.permute.xlu0 %4067
      %4071 = vset.pattern.permute.xlu0 0
      %4072 = vperm.xlu0 %4071, %v4002
      %v4073 = vpop.permute.xlu0 %4072
      %4076 = vset.pattern.permute.xlu0 0
      %4077 = vperm.xlu0 %4076, %v4003
      %v4078 = vpop.permute.xlu0 %4077
      %4081 = vset.pattern.permute.xlu0 0
      %4082 = vperm.xlu0 %4081, %v4004
      %v4083 = vpop.permute.xlu0 %4082
      %4086 = vset.pattern.permute.xlu0 0
      %4087 = vperm.xlu0 %4086, %v4005
      %v4088 = vpop.permute.xlu0 %4087
      %4091 = vset.pattern.permute.xlu0 0
      %4092 = vperm.xlu0 %4091, %v4006
      %v4093 = vpop.permute.xlu0 %4092
      %4096 = vset.pattern.permute.xlu0 0
      %4097 = vperm.xlu0 %4096, %v4007
      %v4098 = vpop.permute.xlu0 %4097
      %4101 = vset.pattern.permute.xlu0 0
      %4102 = vperm.xlu0 %4101, %v4008
      %v4103 = vpop.permute.xlu0 %4102
      %4106 = vset.pattern.permute.xlu0 0
      %4107 = vperm.xlu0 %4106, %v4009
      %v4108 = vpop.permute.xlu0 %4107
      %4111 = vset.pattern.permute.xlu0 0
      %4112 = vperm.xlu0 %4111, %v4010
      %v4113 = vpop.permute.xlu0 %4112
      %4116 = vset.pattern.permute.xlu0 0
      %4117 = vperm.xlu0 %4116, %v4011
      %v4118 = vpop.permute.xlu0 %4117
      %4121 = vset.pattern.permute.xlu0 0
      %4122 = vperm.xlu0 %4121, %v4012
      %v4123 = vpop.permute.xlu0 %4122
      %4126 = vset.pattern.permute.xlu0 0
      %4127 = vperm.xlu0 %4126, %v4013
      %v4128 = vpop.permute.xlu0 %4127
      %4131 = vset.pattern.permute.xlu0 0
      %4132 = vperm.xlu0 %4131, %v4014
      %v4133 = vpop.permute.xlu0 %4132
      %4136 = vset.pattern.permute.xlu0 0
      %4137 = vperm.xlu0 %4136, %v4015
      %v4138 = vpop.permute.xlu0 %4137
      %4141 = vset.pattern.permute.xlu0 0
      %4142 = vperm.xlu0 %4141, %v4016
      %v4143 = vpop.permute.xlu0 %4142
      %4146 = vset.pattern.permute.xlu0 0
      %4147 = vperm.xlu0 %4146, %v4017
      %v4148 = vpop.permute.xlu0 %4147
      %4151 = vset.pattern.permute.xlu0 0
      %4152 = vperm.xlu0 %4151, %v4018
      %v4153 = vpop.permute.xlu0 %4152
      %4156 = vset.pattern.permute.xlu0 0
      %4157 = vperm.xlu0 %4156, %v4019
      %v4158 = vpop.permute.xlu0 %4157
      %4161 = vset.pattern.permute.xlu0 0
      %4162 = vperm.xlu0 %4161, %v4020
      %v4163 = vpop.permute.xlu0 %4162
      %4166 = vset.pattern.permute.xlu0 0
      %4167 = vperm.xlu0 %4166, %v4021
      %v4168 = vpop.permute.xlu0 %4167
      %4171 = vset.pattern.permute.xlu0 0
      %4172 = vperm.xlu0 %4171, %v4022
      %v4173 = vpop.permute.xlu0 %4172
      %4176 = vset.pattern.permute.xlu0 0
      %4177 = vperm.xlu0 %4176, %v4023
      %v4178 = vpop.permute.xlu0 %4177
      %4181 = vset.pattern.permute.xlu0 0
      %4182 = vperm.xlu0 %4181, %v4024
      %v4183 = vpop.permute.xlu0 %4182
      %4186 = vset.pattern.permute.xlu0 0
      %4187 = vperm.xlu0 %4186, %v4025
      %v4188 = vpop.permute.xlu0 %4187
      %4191 = vset.pattern.permute.xlu0 0
      %4192 = vperm.xlu0 %4191, %v4026
      %v4193 = vpop.permute.xlu0 %4192
      %4196 = vset.pattern.permute.xlu0 0
      %4197 = vperm.xlu0 %4196, %v4027
      %v4198 = vpop.permute.xlu0 %4197
      %4201 = vset.pattern.permute.xlu0 0
      %4202 = vperm.xlu0 %4201, %v4028
      %v4203 = vpop.permute.xlu0 %4202
      %4206 = vset.pattern.permute.xlu0 0
      %4207 = vperm.xlu0 %4206, %v4029
      %v4208 = vpop.permute.xlu0 %4207
      %v4210 = vmul.f32 %v3922, %v4033
      %v4211 = vmul.f32 %v3923, %v4038
      %v4212 = vmul.f32 %v3924, %v4043
      %v4213 = vmul.f32 %v3925, %v4048
      %v4214 = vmul.f32 %v3926, %v4053
      %v4215 = vmul.f32 %v3927, %v4058
      %v4216 = vmul.f32 %v3928, %v4063
      %v4217 = vmul.f32 %v3929, %v4068
      %v4218 = vmul.f32 %v3930, %v4073
      %v4219 = vmul.f32 %v3931, %v4078
      %v4220 = vmul.f32 %v3932, %v4083
      %v4221 = vmul.f32 %v3933, %v4088
      %v4222 = vmul.f32 %v3934, %v4093
      %v4223 = vmul.f32 %v3935, %v4098
      %v4224 = vmul.f32 %v3936, %v4103
      %v4225 = vmul.f32 %v3937, %v4108
      %v4226 = vmul.f32 %v3938, %v4113
      %v4227 = vmul.f32 %v3939, %v4118
      %v4228 = vmul.f32 %v3940, %v4123
      %v4229 = vmul.f32 %v3941, %v4128
      %v4230 = vmul.f32 %v3942, %v4133
      %v4231 = vmul.f32 %v3943, %v4138
      %v4232 = vmul.f32 %v3944, %v4143
      %v4233 = vmul.f32 %v3945, %v4148
      %v4234 = vmul.f32 %v3946, %v4153
      %v4235 = vmul.f32 %v3947, %v4158
      %v4236 = vmul.f32 %v3948, %v4163
      %v4237 = vmul.f32 %v3949, %v4168
      %v4238 = vmul.f32 %v3950, %v4173
      %v4239 = vmul.f32 %v3951, %v4178
      %v4240 = vmul.f32 %v3952, %v4183
      %v4241 = vmul.f32 %v3953, %v4188
      %v4242 = vmul.f32 %v3954, %v4193
      %v4243 = vmul.f32 %v3955, %v4198
      %v4244 = vmul.f32 %v3956, %v4203
      %v4245 = vmul.f32 %v3957, %v4208
      %vm4246 = vcmask 64512
      %4247 = vst.msk [vmem:[#allocation2] sm:$0xff] %vm4246, 0
      %vm4248 = vcmask 60416
      %4249 = vst.msk [vmem:[#allocation2 + $0x8] sm:$0xf] %vm4248, 0
      %vm4250 = vcmask 64516
      %4251 = vst.msk [vmem:[#allocation2 + $0x98] sm:$0xf0] %vm4250, 0
      %4252 = vst.msk [vmem:[#allocation2 + $0xa0] sm:$0xff] %vm4246, 0
      %4253 = vst.msk [vmem:[#allocation2 + $0xa8] sm:$0xff] %vm4246, 0
      %v4254 = vpack.c.bf16 %v4211, %v4210
      %v4255 = vpack.c.bf16 %v4213, %v4212
      %v4256 = vpack.c.bf16 %v4215, %v4214
      %v4257 = vpack.c.bf16 %v4217, %v4216
      %v4258 = vpack.c.bf16 %v4219, %v4218
      %v4259 = vpack.c.bf16 %v4221, %v4220
      %v4260 = vpack.c.bf16 %v4223, %v4222
      %v4261 = vpack.c.bf16 %v4225, %v4224
      %v4262 = vpack.c.bf16 %v4227, %v4226
      %v4263 = vpack.c.bf16 %v4229, %v4228
      %v4264 = vpack.c.bf16 %v4231, %v4230
      %v4265 = vpack.c.bf16 %v4233, %v4232
      %v4266 = vpack.c.bf16 %v4235, %v4234
      %v4267 = vpack.c.bf16 %v4237, %v4236
      %v4268 = vpack.c.bf16 %v4239, %v4238
      %v4269 = vpack.c.bf16 %v4241, %v4240
      %v4270 = vpack.c.bf16 %v4243, %v4242
      %v4271 = vpack.c.bf16 %v4245, %v4244
      %vm4290 = vcmask 1043456
      %v4291 = vrot.slane %v4254, 4
      %v4292 = vrot.slane %v4255, 4
      %v4293 = vsel %vm4290, %v4291, %v4292
      %v4294 = vrot.slane %v4256, 4
      %v4295 = vsel %vm4290, %v4292, %v4294
      %v4296 = vrot.slane %v4257, 4
      %v4297 = vsel %vm4290, %v4294, %v4296
      %v4298 = vrot.slane %v4258, 4
      %v4299 = vsel %vm4290, %v4296, %v4298
      %v4300 = vrot.slane %v4259, 4
      %v4301 = vsel %vm4290, %v4298, %v4300
      %v4302 = vrot.slane %v4260, 4
      %v4303 = vsel %vm4290, %v4300, %v4302
      %v4304 = vrot.slane %v4261, 4
      %v4305 = vsel %vm4290, %v4302, %v4304
      %v4306 = vrot.slane %v4262, 4
      %v4307 = vsel %vm4290, %v4304, %v4306
      %v4308 = vrot.slane %v4263, 4
      %v4309 = vsel %vm4290, %v4306, %v4308
      %v4310 = vrot.slane %v4264, 4
      %v4311 = vsel %vm4290, %v4308, %v4310
      %v4312 = vrot.slane %v4265, 4
      %v4313 = vsel %vm4290, %v4310, %v4312
      %v4314 = vrot.slane %v4266, 4
      %v4315 = vsel %vm4290, %v4312, %v4314
      %v4316 = vrot.slane %v4267, 4
      %v4317 = vsel %vm4290, %v4314, %v4316
      %v4318 = vrot.slane %v4268, 4
      %v4319 = vsel %vm4290, %v4316, %v4318
      %v4320 = vrot.slane %v4269, 4
      %v4321 = vsel %vm4290, %v4318, %v4320
      %v4322 = vrot.slane %v4270, 4
      %v4323 = vsel %vm4290, %v4320, %v4322
      %v4324 = vrot.slane %v4271, 4
      %v4325 = vsel %vm4290, %v4322, %v4324
      %4345 = vst.msk [vmem:[#allocation2 + $0x8] sm:$0xf0] %vm4250, %v4291
      %4346 = vst.msk [vmem:[#allocation2 + $0x10] sm:$0xff] %vm4246, %v4293
      %4347 = vst.msk [vmem:[#allocation2 + $0x18] sm:$0xff] %vm4246, %v4295
      %4348 = vst.msk [vmem:[#allocation2 + $0x20] sm:$0xff] %vm4246, %v4297
      %4349 = vst.msk [vmem:[#allocation2 + $0x28] sm:$0xff] %vm4246, %v4299
      %4350 = vst.msk [vmem:[#allocation2 + $0x30] sm:$0xff] %vm4246, %v4301
      %4351 = vst.msk [vmem:[#allocation2 + $0x38] sm:$0xff] %vm4246, %v4303
      %4352 = vst.msk [vmem:[#allocation2 + $0x40] sm:$0xff] %vm4246, %v4305
      %4353 = vst.msk [vmem:[#allocation2 + $0x48] sm:$0xff] %vm4246, %v4307
      %4354 = vst.msk [vmem:[#allocation2 + $0x50] sm:$0xff] %vm4246, %v4309
      %4355 = vst.msk [vmem:[#allocation2 + $0x58] sm:$0xff] %vm4246, %v4311
      %4356 = vst.msk [vmem:[#allocation2 + $0x60] sm:$0xff] %vm4246, %v4313
      %4357 = vst.msk [vmem:[#allocation2 + $0x68] sm:$0xff] %vm4246, %v4315
      %4358 = vst.msk [vmem:[#allocation2 + $0x70] sm:$0xff] %vm4246, %v4317
      %4359 = vst.msk [vmem:[#allocation2 + $0x78] sm:$0xff] %vm4246, %v4319
      %4360 = vst.msk [vmem:[#allocation2 + $0x80] sm:$0xff] %vm4246, %v4321
      %4361 = vst.msk [vmem:[#allocation2 + $0x88] sm:$0xff] %vm4246, %v4323
      %4362 = vst.msk [vmem:[#allocation2 + $0x90] sm:$0xff] %vm4246, %v4325
      %4363 = vst.msk [vmem:[#allocation2 + $0x98] sm:$0xf] %vm4248, %v4324
      %v4364 = vld [vmem:[#allocation2] sm:$0xfc]
      %v4365 = vld [vmem:[#allocation2 + $0x8] sm:$0xff]
      %v4366 = vld [vmem:[#allocation2 + $0x10] sm:$0xff]
      %v4367 = vld [vmem:[#allocation2 + $0x18] sm:$0xff]
      %v4368 = vld [vmem:[#allocation2 + $0x20] sm:$0xff]
      %v4369 = vld [vmem:[#allocation2 + $0x28] sm:$0xff]
      %v4370 = vld [vmem:[#allocation2 + $0x30] sm:$0xff]
      %v4371 = vld [vmem:[#allocation2 + $0x38] sm:$0xff]
      %v4372 = vld [vmem:[#allocation2 + $0x40] sm:$0xff]
      %v4373 = vld [vmem:[#allocation2 + $0x48] sm:$0xff]
      %v4374 = vld [vmem:[#allocation2 + $0x50] sm:$0xff]
      %v4375 = vld [vmem:[#allocation2 + $0x58] sm:$0xff]
      %v4376 = vld [vmem:[#allocation2 + $0x60] sm:$0xff]
      %v4377 = vld [vmem:[#allocation2 + $0x68] sm:$0xff]
      %v4378 = vld [vmem:[#allocation2 + $0x70] sm:$0xff]
      %v4379 = vld [vmem:[#allocation2 + $0x78] sm:$0xff]
      %v4380 = vld [vmem:[#allocation2 + $0x80] sm:$0xff]
      %v4381 = vld [vmem:[#allocation2 + $0x88] sm:$0xff]
      %v4382 = vld [vmem:[#allocation2 + $0x90] sm:$0x7]
      %v4383 = vld [vmem:[%s5] sm:$0xf]
      %v4384 = vld [vmem:[#allocation2] sm:$0xf8]
      %s4385 = scalar_lea.vmem %s5, 4
      %v4386 = vld [vmem:[%s4385] sm:$0xf]
      %v4406 = vrot.slane %v4384, 3
      %v4407 = vrot.slane %v4365, 3
      %v4408 = vsel %vm3528, %v4406, %v4407
      %v4409 = vrot.slane %v4366, 3
      %v4410 = vsel %vm3528, %v4407, %v4409
      %v4411 = vrot.slane %v4367, 3
      %v4412 = vsel %vm3528, %v4409, %v4411
      %v4413 = vrot.slane %v4368, 3
      %v4414 = vsel %vm3528, %v4411, %v4413
      %v4415 = vrot.slane %v4369, 3
      %v4416 = vsel %vm3528, %v4413, %v4415
      %v4417 = vrot.slane %v4370, 3
      %v4418 = vsel %vm3528, %v4415, %v4417
      %v4419 = vrot.slane %v4371, 3
      %v4420 = vsel %vm3528, %v4417, %v4419
      %v4421 = vrot.slane %v4372, 3
      %v4422 = vsel %vm3528, %v4419, %v4421
      %v4423 = vrot.slane %v4373, 3
      %v4424 = vsel %vm3528, %v4421, %v4423
      %v4425 = vrot.slane %v4374, 3
      %v4426 = vsel %vm3528, %v4423, %v4425
      %v4427 = vrot.slane %v4375, 3
      %v4428 = vsel %vm3528, %v4425, %v4427
      %v4429 = vrot.slane %v4376, 3
      %v4430 = vsel %vm3528, %v4427, %v4429
      %v4431 = vrot.slane %v4377, 3
      %v4432 = vsel %vm3528, %v4429, %v4431
      %v4433 = vrot.slane %v4378, 3
      %v4434 = vsel %vm3528, %v4431, %v4433
      %v4435 = vrot.slane %v4379, 3
      %v4436 = vsel %vm3528, %v4433, %v4435
      %v4437 = vrot.slane %v4380, 3
      %v4438 = vsel %vm3528, %v4435, %v4437
      %v4439 = vrot.slane %v4381, 3
      %v4440 = vsel %vm3528, %v4437, %v4439
      %v4441 = vrot.slane %v4382, 3
      %v4442 = vsel %vm3528, %v4439, %v4441
      %v4444 = vsel %vm4246, %v4408, 0
      %v4447 = vsel %vm4246, %v4410, 0
      %v4450 = vsel %vm4246, %v4412, 0
      %v4453 = vsel %vm4246, %v4414, 0
      %v4456 = vsel %vm4246, %v4416, 0
      %v4459 = vsel %vm4246, %v4418, 0
      %v4462 = vsel %vm4246, %v4420, 0
      %v4465 = vsel %vm4246, %v4422, 0
      %v4468 = vsel %vm4246, %v4424, 0
      %v4471 = vsel %vm4246, %v4426, 0
      %v4474 = vsel %vm4246, %v4428, 0
      %v4477 = vsel %vm4246, %v4430, 0
      %v4480 = vsel %vm4246, %v4432, 0
      %v4483 = vsel %vm4246, %v4434, 0
      %v4486 = vsel %vm4246, %v4436, 0
      %v4489 = vsel %vm4246, %v4438, 0
      %v4492 = vsel %vm4246, %v4440, 0
      %v4495 = vsel %vm4246, %v4442, 0
      %vm4497 = vcmask 1043456
      %v4499 = vsel %vm4497, %v4386, 0
      %4501 = vmatprep.subr.bf16.mxu0 0
      %4502 = vmatpush1.bf16.msra.mxu0 %v4499
      %4503 = vmatprep.subr.bf16.mxu0 0
      %4504 = vmatpush1.bf16.msra.mxu0 0
      %4505 = vmatprep.subr.bf16.mxu0 0
      %4506 = vmatpush1.bf16.msra.mxu0 0
      %4507 = vmatprep.subr.bf16.mxu0 0
      %4508 = vmatpush1.bf16.msra.mxu0 0
      %4509 = vmatprep.subr.bf16.mxu0 0
      %4510 = vmatpush1.bf16.msra.mxu0 0
      %4511 = vmatprep.subr.bf16.mxu0 0
      %4512 = vmatpush1.bf16.msra.mxu0 0
      %4513 = vmatprep.subr.bf16.mxu0 0
      %4514 = vmatpush1.bf16.msra.mxu0 0
      %4515 = vmatprep.subr.bf16.mxu0 0
      %4516 = vmatpush1.bf16.msra.mxu0 0
      %4517 = vmatprep.subr.bf16.mxu0 0
      %4518 = vmatpush1.bf16.msra.mxu0 0
      %4519 = vmatprep.subr.bf16.mxu0 0
      %4520 = vmatpush1.bf16.msra.mxu0 0
      %4521 = vmatprep.subr.bf16.mxu0 0
      %4522 = vmatpush1.bf16.msra.mxu0 0
      %4523 = vmatprep.subr.bf16.mxu0 0
      %4524 = vmatpush1.bf16.msra.mxu0 0
      %4525 = vmatprep.subr.bf16.mxu0 0
      %4526 = vmatpush1.bf16.msra.mxu0 0
      %4527 = vmatprep.subr.bf16.mxu0 0
      %4528 = vmatpush1.bf16.msra.mxu0 0
      %4529 = vmatprep.subr.bf16.mxu0 0
      %4530 = vmatpush1.bf16.msra.mxu0 0
      %4531 = vmatprep.subr.bf16.mxu0 0
      %4532 = vmatpush1.bf16.msra.mxu0 0
      %4533 = vmatprep.mubr.bf16.mxu0 0
      %4534 = vmatmul.mubr.bf16.gmra.mrb[0].mxu0 %v4444
      %v4535 = vpop.f32.mrb[0].mxu0
      %v4536 = vadd.f32 0.0, %v4535
      %v4537 = vpop.f32.mrb[0].mxu0
      %v4538 = vpop.f32.mrb[0].mxu0
      %v4539 = vadd.f32 0.0, %v4538
      %v4540 = vpop.f32.mrb[0].mxu0
      %4541 = vmatprep.mubr.bf16.mxu0 0
      %4542 = vmatmul.mubr.bf16.gmra.mrb[0].mxu0 %v4447
      %v4543 = vpop.f32.mrb[0].mxu0
      %v4544 = vadd.f32 0.0, %v4543
      %v4545 = vpop.f32.mrb[0].mxu0
      %v4546 = vpop.f32.mrb[0].mxu0
      %v4547 = vadd.f32 0.0, %v4546
      %v4548 = vpop.f32.mrb[0].mxu0
      %4549 = vmatprep.mubr.bf16.mxu0 0
      %4550 = vmatmul.mubr.bf16.gmra.mrb[0].mxu0 %v4450
      %v4551 = vpop.f32.mrb[0].mxu0
      %v4552 = vadd.f32 0.0, %v4551
      %v4553 = vpop.f32.mrb[0].mxu0
      %v4554 = vpop.f32.mrb[0].mxu0
      %v4555 = vadd.f32 0.0, %v4554
      %v4556 = vpop.f32.mrb[0].mxu0
      %4557 = vmatprep.mubr.bf16.mxu0 0
      %4558 = vmatmul.mubr.bf16.gmra.mrb[0].mxu0 %v4453
      %v4559 = vpop.f32.mrb[0].mxu0
      %v4560 = vadd.f32 0.0, %v4559
      %v4561 = vpop.f32.mrb[0].mxu0
      %v4562 = vpop.f32.mrb[0].mxu0
      %v4563 = vadd.f32 0.0, %v4562
      %v4564 = vpop.f32.mrb[0].mxu0
      %4565 = vmatprep.mubr.bf16.mxu0 0
      %4566 = vmatmul.mubr.bf16.gmra.mrb[0].mxu0 %v4456
      %v4567 = vpop.f32.mrb[0].mxu0
      %v4568 = vadd.f32 0.0, %v4567
      %v4569 = vpop.f32.mrb[0].mxu0
      %v4570 = vpop.f32.mrb[0].mxu0
      %v4571 = vadd.f32 0.0, %v4570
      %v4572 = vpop.f32.mrb[0].mxu0
      %4573 = vmatprep.mubr.bf16.mxu0 0
      %4574 = vmatmul.mubr.bf16.gmra.mrb[0].mxu0 %v4459
      %v4575 = vpop.f32.mrb[0].mxu0
      %v4576 = vadd.f32 0.0, %v4575
      %v4577 = vpop.f32.mrb[0].mxu0
      %v4578 = vpop.f32.mrb[0].mxu0
      %v4579 = vadd.f32 0.0, %v4578
      %v4580 = vpop.f32.mrb[0].mxu0
      %4581 = vmatprep.mubr.bf16.mxu0 0
      %4582 = vmatmul.mubr.bf16.gmra.mrb[0].mxu0 %v4462
      %v4583 = vpop.f32.mrb[0].mxu0
      %v4584 = vadd.f32 0.0, %v4583
      %v4585 = vpop.f32.mrb[0].mxu0
      %v4586 = vpop.f32.mrb[0].mxu0
      %v4587 = vadd.f32 0.0, %v4586
      %v4588 = vpop.f32.mrb[0].mxu0
      %4589 = vmatprep.mubr.bf16.mxu0 0
      %4590 = vmatmul.mubr.bf16.gmra.mrb[0].mxu0 %v4465
      %v4591 = vpop.f32.mrb[0].mxu0
      %v4592 = vadd.f32 0.0, %v4591
      %v4593 = vpop.f32.mrb[0].mxu0
      %v4594 = vpop.f32.mrb[0].mxu0
      %v4595 = vadd.f32 0.0, %v4594
      %v4596 = vpop.f32.mrb[0].mxu0
      %4597 = vmatprep.mubr.bf16.mxu0 0
      %4598 = vmatmul.mubr.bf16.gmra.mrb[0].mxu0 %v4468
      %v4599 = vpop.f32.mrb[0].mxu0
      %v4600 = vadd.f32 0.0, %v4599
      %v4601 = vpop.f32.mrb[0].mxu0
      %v4602 = vpop.f32.mrb[0].mxu0
      %v4603 = vadd.f32 0.0, %v4602
      %v4604 = vpop.f32.mrb[0].mxu0
      %4605 = vmatprep.mubr.bf16.mxu0 0
      %4606 = vmatmul.mubr.bf16.gmra.mrb[0].mxu0 %v4471
      %v4607 = vpop.f32.mrb[0].mxu0
      %v4608 = vadd.f32 0.0, %v4607
      %v4609 = vpop.f32.mrb[0].mxu0
      %v4610 = vpop.f32.mrb[0].mxu0
      %v4611 = vadd.f32 0.0, %v4610
      %v4612 = vpop.f32.mrb[0].mxu0
      %4613 = vmatprep.mubr.bf16.mxu0 0
      %4614 = vmatmul.mubr.bf16.gmra.mrb[0].mxu0 %v4474
      %v4615 = vpop.f32.mrb[0].mxu0
      %v4616 = vadd.f32 0.0, %v4615
      %v4617 = vpop.f32.mrb[0].mxu0
      %v4618 = vpop.f32.mrb[0].mxu0
      %v4619 = vadd.f32 0.0, %v4618
      %v4620 = vpop.f32.mrb[0].mxu0
      %4621 = vmatprep.mubr.bf16.mxu0 0
      %4622 = vmatmul.mubr.bf16.gmra.mrb[0].mxu0 %v4477
      %v4623 = vpop.f32.mrb[0].mxu0
      %v4624 = vadd.f32 0.0, %v4623
      %v4625 = vpop.f32.mrb[0].mxu0
      %v4626 = vpop.f32.mrb[0].mxu0
      %v4627 = vadd.f32 0.0, %v4626
      %v4628 = vpop.f32.mrb[0].mxu0
      %4629 = vmatprep.mubr.bf16.mxu0 0
      %4630 = vmatmul.mubr.bf16.gmra.mrb[0].mxu0 %v4480
      %v4631 = vpop.f32.mrb[0].mxu0
      %v4632 = vadd.f32 0.0, %v4631
      %v4633 = vpop.f32.mrb[0].mxu0
      %v4634 = vpop.f32.mrb[0].mxu0
      %v4635 = vadd.f32 0.0, %v4634
      %v4636 = vpop.f32.mrb[0].mxu0
      %4637 = vmatprep.mubr.bf16.mxu0 0
      %4638 = vmatmul.mubr.bf16.gmra.mrb[0].mxu0 %v4483
      %v4639 = vpop.f32.mrb[0].mxu0
      %v4640 = vadd.f32 0.0, %v4639
      %v4641 = vpop.f32.mrb[0].mxu0
      %v4642 = vpop.f32.mrb[0].mxu0
      %v4643 = vadd.f32 0.0, %v4642
      %v4644 = vpop.f32.mrb[0].mxu0
      %4645 = vmatprep.mubr.bf16.mxu0 0
      %4646 = vmatmul.mubr.bf16.gmra.mrb[0].mxu0 %v4486
      %v4647 = vpop.f32.mrb[0].mxu0
      %v4648 = vadd.f32 0.0, %v4647
      %v4649 = vpop.f32.mrb[0].mxu0
      %v4650 = vpop.f32.mrb[0].mxu0
      %v4651 = vadd.f32 0.0, %v4650
      %v4652 = vpop.f32.mrb[0].mxu0
      %4653 = vmatprep.mubr.bf16.mxu0 0
      %4654 = vmatmul.mubr.bf16.gmra.mrb[0].mxu0 %v4489
      %v4655 = vpop.f32.mrb[0].mxu0
      %v4656 = vadd.f32 0.0, %v4655
      %v4657 = vpop.f32.mrb[0].mxu0
      %v4658 = vpop.f32.mrb[0].mxu0
      %v4659 = vadd.f32 0.0, %v4658
      %v4660 = vpop.f32.mrb[0].mxu0
      %4661 = vmatprep.mubr.bf16.mxu0 0
      %4662 = vmatmul.mubr.bf16.gmra.mrb[0].mxu0 %v4492
      %v4663 = vpop.f32.mrb[0].mxu0
      %v4664 = vadd.f32 0.0, %v4663
      %v4665 = vpop.f32.mrb[0].mxu0
      %v4666 = vpop.f32.mrb[0].mxu0
      %v4667 = vadd.f32 0.0, %v4666
      %v4668 = vpop.f32.mrb[0].mxu0
      %4669 = vmatprep.mubr.bf16.mxu0 0
      %4670 = vmatmul.mubr.bf16.gmra.mrb[0].mxu0 %v4495
      %v4671 = vpop.f32.mrb[0].mxu0
      %v4672 = vadd.f32 0.0, %v4671
      %v4673 = vpop.f32.mrb[0].mxu0
      %v4674 = vpop.f32.mrb[0].mxu0
      %v4675 = vadd.f32 0.0, %v4674
      %v4676 = vpop.f32.mrb[0].mxu0
      %4677 = vdwg.mxu0
      %v4679 = vshrl.u32 %v4364, 16
      %v4681 = vrot.slane %v4679, 2
      %v4682 = vshll.u32 %v4364, 16
      %v4684 = vrot.slane %v4682, 3
      %v4685 = vor.u32 %v4681, %v4684
      %v4687 = vshrl.u32 %v4365, 16
      %v4689 = vrot.slane %v4687, 2
      %v4690 = vshll.u32 %v4365, 16
      %v4692 = vrot.slane %v4690, 3
      %v4693 = vor.u32 %v4689, %v4692
      %v4694 = vsel %vm3081, %v4685, %v4693
      %v4696 = vshrl.u32 %v4366, 16
      %v4698 = vrot.slane %v4696, 2
      %v4699 = vshll.u32 %v4366, 16
      %v4701 = vrot.slane %v4699, 3
      %v4702 = vor.u32 %v4698, %v4701
      %v4703 = vsel %vm3081, %v4693, %v4702
      %v4705 = vshrl.u32 %v4367, 16
      %v4707 = vrot.slane %v4705, 2
      %v4708 = vshll.u32 %v4367, 16
      %v4710 = vrot.slane %v4708, 3
      %v4711 = vor.u32 %v4707, %v4710
      %v4712 = vsel %vm3081, %v4702, %v4711
      %v4714 = vshrl.u32 %v4368, 16
      %v4716 = vrot.slane %v4714, 2
      %v4717 = vshll.u32 %v4368, 16
      %v4719 = vrot.slane %v4717, 3
      %v4720 = vor.u32 %v4716, %v4719
      %v4721 = vsel %vm3081, %v4711, %v4720
      %v4723 = vshrl.u32 %v4369, 16
      %v4725 = vrot.slane %v4723, 2
      %v4726 = vshll.u32 %v4369, 16
      %v4728 = vrot.slane %v4726, 3
      %v4729 = vor.u32 %v4725, %v4728
      %v4730 = vsel %vm3081, %v4720, %v4729
      %v4732 = vshrl.u32 %v4370, 16
      %v4734 = vrot.slane %v4732, 2
      %v4735 = vshll.u32 %v4370, 16
      %v4737 = vrot.slane %v4735, 3
      %v4738 = vor.u32 %v4734, %v4737
      %v4739 = vsel %vm3081, %v4729, %v4738
      %v4741 = vshrl.u32 %v4371, 16
      %v4743 = vrot.slane %v4741, 2
      %v4744 = vshll.u32 %v4371, 16
      %v4746 = vrot.slane %v4744, 3
      %v4747 = vor.u32 %v4743, %v4746
      %v4748 = vsel %vm3081, %v4738, %v4747
      %v4750 = vshrl.u32 %v4372, 16
      %v4752 = vrot.slane %v4750, 2
      %v4753 = vshll.u32 %v4372, 16
      %v4755 = vrot.slane %v4753, 3
      %v4756 = vor.u32 %v4752, %v4755
      %v4757 = vsel %vm3081, %v4747, %v4756
      %v4759 = vshrl.u32 %v4373, 16
      %v4761 = vrot.slane %v4759, 2
      %v4762 = vshll.u32 %v4373, 16
      %v4764 = vrot.slane %v4762, 3
      %v4765 = vor.u32 %v4761, %v4764
      %v4766 = vsel %vm3081, %v4756, %v4765
      %v4768 = vshrl.u32 %v4374, 16
      %v4770 = vrot.slane %v4768, 2
      %v4771 = vshll.u32 %v4374, 16
      %v4773 = vrot.slane %v4771, 3
      %v4774 = vor.u32 %v4770, %v4773
      %v4775 = vsel %vm3081, %v4765, %v4774
      %v4777 = vshrl.u32 %v4375, 16
      %v4779 = vrot.slane %v4777, 2
      %v4780 = vshll.u32 %v4375, 16
      %v4782 = vrot.slane %v4780, 3
      %v4783 = vor.u32 %v4779, %v4782
      %v4784 = vsel %vm3081, %v4774, %v4783
      %v4786 = vshrl.u32 %v4376, 16
      %v4788 = vrot.slane %v4786, 2
      %v4789 = vshll.u32 %v4376, 16
      %v4791 = vrot.slane %v4789, 3
      %v4792 = vor.u32 %v4788, %v4791
      %v4793 = vsel %vm3081, %v4783, %v4792
      %v4795 = vshrl.u32 %v4377, 16
      %v4797 = vrot.slane %v4795, 2
      %v4798 = vshll.u32 %v4377, 16
      %v4800 = vrot.slane %v4798, 3
      %v4801 = vor.u32 %v4797, %v4800
      %v4802 = vsel %vm3081, %v4792, %v4801
      %v4804 = vshrl.u32 %v4378, 16
      %v4806 = vrot.slane %v4804, 2
      %v4807 = vshll.u32 %v4378, 16
      %v4809 = vrot.slane %v4807, 3
      %v4810 = vor.u32 %v4806, %v4809
      %v4811 = vsel %vm3081, %v4801, %v4810
      %v4813 = vshrl.u32 %v4379, 16
      %v4815 = vrot.slane %v4813, 2
      %v4816 = vshll.u32 %v4379, 16
      %v4818 = vrot.slane %v4816, 3
      %v4819 = vor.u32 %v4815, %v4818
      %v4820 = vsel %vm3081, %v4810, %v4819
      %v4822 = vshrl.u32 %v4380, 16
      %v4824 = vrot.slane %v4822, 2
      %v4825 = vshll.u32 %v4380, 16
      %v4827 = vrot.slane %v4825, 3
      %v4828 = vor.u32 %v4824, %v4827
      %v4829 = vsel %vm3081, %v4819, %v4828
      %v4831 = vshrl.u32 %v4381, 16
      %v4833 = vrot.slane %v4831, 2
      %v4834 = vshll.u32 %v4381, 16
      %v4836 = vrot.slane %v4834, 3
      %v4837 = vor.u32 %v4833, %v4836
      %v4838 = vsel %vm3081, %v4828, %v4837
      %v4840 = vshrl.u32 %v4382, 16
      %v4842 = vrot.slane %v4840, 2
      %v4843 = vshll.u32 %v4382, 16
      %v4845 = vrot.slane %v4843, 3
      %v4846 = vor.u32 %v4842, %v4845
      %v4847 = vsel %vm3081, %v4837, %v4846
      %v4849 = vsel %vm4246, %v4694, 0
      %v4852 = vsel %vm4246, %v4703, 0
      %v4855 = vsel %vm4246, %v4712, 0
      %v4858 = vsel %vm4246, %v4721, 0
      %v4861 = vsel %vm4246, %v4730, 0
      %v4864 = vsel %vm4246, %v4739, 0
      %v4867 = vsel %vm4246, %v4748, 0
      %v4870 = vsel %vm4246, %v4757, 0
      %v4873 = vsel %vm4246, %v4766, 0
      %v4876 = vsel %vm4246, %v4775, 0
      %v4879 = vsel %vm4246, %v4784, 0
      %v4882 = vsel %vm4246, %v4793, 0
      %v4885 = vsel %vm4246, %v4802, 0
      %v4888 = vsel %vm4246, %v4811, 0
      %v4891 = vsel %vm4246, %v4820, 0
      %v4894 = vsel %vm4246, %v4829, 0
      %v4897 = vsel %vm4246, %v4838, 0
      %v4900 = vsel %vm4246, %v4847, 0
      %v4903 = vsel %vm4497, %v4383, 0
      %4905 = vmatprep.subr.bf16.mxu0 0
      %4906 = vmatpush1.bf16.msra.mxu0 %v4903
      %4907 = vmatprep.subr.bf16.mxu0 0
      %4908 = vmatpush1.bf16.msra.mxu0 0
      %4909 = vmatprep.subr.bf16.mxu0 0
      %4910 = vmatpush1.bf16.msra.mxu0 0
      %4911 = vmatprep.subr.bf16.mxu0 0
      %4912 = vmatpush1.bf16.msra.mxu0 0
      %4913 = vmatprep.subr.bf16.mxu0 0
      %4914 = vmatpush1.bf16.msra.mxu0 0
      %4915 = vmatprep.subr.bf16.mxu0 0
      %4916 = vmatpush1.bf16.msra.mxu0 0
      %4917 = vmatprep.subr.bf16.mxu0 0
      %4918 = vmatpush1.bf16.msra.mxu0 0
      %4919 = vmatprep.subr.bf16.mxu0 0
      %4920 = vmatpush1.bf16.msra.mxu0 0
      %4921 = vmatprep.subr.bf16.mxu0 0
      %4922 = vmatpush1.bf16.msra.mxu0 0
      %4923 = vmatprep.subr.bf16.mxu0 0
      %4924 = vmatpush1.bf16.msra.mxu0 0
      %4925 = vmatprep.subr.bf16.mxu0 0
      %4926 = vmatpush1.bf16.msra.mxu0 0
      %4927 = vmatprep.subr.bf16.mxu0 0
      %4928 = vmatpush1.bf16.msra.mxu0 0
      %4929 = vmatprep.subr.bf16.mxu0 0
      %4930 = vmatpush1.bf16.msra.mxu0 0
      %4931 = vmatprep.subr.bf16.mxu0 0
      %4932 = vmatpush1.bf16.msra.mxu0 0
      %4933 = vmatprep.subr.bf16.mxu0 0
      %4934 = vmatpush1.bf16.msra.mxu0 0
      %4935 = vmatprep.subr.bf16.mxu0 0
      %4936 = vmatpush1.bf16.msra.mxu0 0
      %4937 = vmatprep.mubr.bf16.mxu0 0
      %4938 = vmatmul.mubr.bf16.gmra.mrb[0].mxu0 %v4849
      %v4939 = vpop.f32.mrb[0].mxu0
      %v4940 = vadd.f32 %v4536, %v4939
      %v4941 = vpop.f32.mrb[0].mxu0
      %v4942 = vpop.f32.mrb[0].mxu0
      %v4943 = vadd.f32 %v4539, %v4942
      %v4944 = vpop.f32.mrb[0].mxu0
      %4945 = vmatprep.mubr.bf16.mxu0 0
      %4946 = vmatmul.mubr.bf16.gmra.mrb[0].mxu0 %v4852
      %v4947 = vpop.f32.mrb[0].mxu0
      %v4948 = vadd.f32 %v4544, %v4947
      %v4949 = vpop.f32.mrb[0].mxu0
      %v4950 = vpop.f32.mrb[0].mxu0
      %v4951 = vadd.f32 %v4547, %v4950
      %v4952 = vpop.f32.mrb[0].mxu0
      %4953 = vmatprep.mubr.bf16.mxu0 0
      %4954 = vmatmul.mubr.bf16.gmra.mrb[0].mxu0 %v4855
      %v4955 = vpop.f32.mrb[0].mxu0
      %v4956 = vadd.f32 %v4552, %v4955
      %v4957 = vpop.f32.mrb[0].mxu0
      %v4958 = vpop.f32.mrb[0].mxu0
      %v4959 = vadd.f32 %v4555, %v4958
      %v4960 = vpop.f32.mrb[0].mxu0
      %4961 = vmatprep.mubr.bf16.mxu0 0
      %4962 = vmatmul.mubr.bf16.gmra.mrb[0].mxu0 %v4858
      %v4963 = vpop.f32.mrb[0].mxu0
      %v4964 = vadd.f32 %v4560, %v4963
      %v4965 = vpop.f32.mrb[0].mxu0
      %v4966 = vpop.f32.mrb[0].mxu0
      %v4967 = vadd.f32 %v4563, %v4966
      %v4968 = vpop.f32.mrb[0].mxu0
      %4969 = vmatprep.mubr.bf16.mxu0 0
      %4970 = vmatmul.mubr.bf16.gmra.mrb[0].mxu0 %v4861
      %v4971 = vpop.f32.mrb[0].mxu0
      %v4972 = vadd.f32 %v4568, %v4971
      %v4973 = vpop.f32.mrb[0].mxu0
      %v4974 = vpop.f32.mrb[0].mxu0
      %v4975 = vadd.f32 %v4571, %v4974
      %v4976 = vpop.f32.mrb[0].mxu0
      %4977 = vmatprep.mubr.bf16.mxu0 0
      %4978 = vmatmul.mubr.bf16.gmra.mrb[0].mxu0 %v4864
      %v4979 = vpop.f32.mrb[0].mxu0
      %v4980 = vadd.f32 %v4576, %v4979
      %v4981 = vpop.f32.mrb[0].mxu0
      %v4982 = vpop.f32.mrb[0].mxu0
      %v4983 = vadd.f32 %v4579, %v4982
      %v4984 = vpop.f32.mrb[0].mxu0
      %4985 = vmatprep.mubr.bf16.mxu0 0
      %4986 = vmatmul.mubr.bf16.gmra.mrb[0].mxu0 %v4867
      %v4987 = vpop.f32.mrb[0].mxu0
      %v4988 = vadd.f32 %v4584, %v4987
      %v4989 = vpop.f32.mrb[0].mxu0
      %v4990 = vpop.f32.mrb[0].mxu0
      %v4991 = vadd.f32 %v4587, %v4990
      %v4992 = vpop.f32.mrb[0].mxu0
      %4993 = vmatprep.mubr.bf16.mxu0 0
      %4994 = vmatmul.mubr.bf16.gmra.mrb[0].mxu0 %v4870
      %v4995 = vpop.f32.mrb[0].mxu0
      %v4996 = vadd.f32 %v4592, %v4995
      %v4997 = vpop.f32.mrb[0].mxu0
      %v4998 = vpop.f32.mrb[0].mxu0
      %v4999 = vadd.f32 %v4595, %v4998
      %v5000 = vpop.f32.mrb[0].mxu0
      %5001 = vmatprep.mubr.bf16.mxu0 0
      %5002 = vmatmul.mubr.bf16.gmra.mrb[0].mxu0 %v4873
      %v5003 = vpop.f32.mrb[0].mxu0
      %v5004 = vadd.f32 %v4600, %v5003
      %v5005 = vpop.f32.mrb[0].mxu0
      %v5006 = vpop.f32.mrb[0].mxu0
      %v5007 = vadd.f32 %v4603, %v5006
      %v5008 = vpop.f32.mrb[0].mxu0
      %5009 = vmatprep.mubr.bf16.mxu0 0
      %5010 = vmatmul.mubr.bf16.gmra.mrb[0].mxu0 %v4876
      %v5011 = vpop.f32.mrb[0].mxu0
      %v5012 = vadd.f32 %v4608, %v5011
      %v5013 = vpop.f32.mrb[0].mxu0
      %v5014 = vpop.f32.mrb[0].mxu0
      %v5015 = vadd.f32 %v4611, %v5014
      %v5016 = vpop.f32.mrb[0].mxu0
      %5017 = vmatprep.mubr.bf16.mxu0 0
      %5018 = vmatmul.mubr.bf16.gmra.mrb[0].mxu0 %v4879
      %v5019 = vpop.f32.mrb[0].mxu0
      %v5020 = vadd.f32 %v4616, %v5019
      %v5021 = vpop.f32.mrb[0].mxu0
      %v5022 = vpop.f32.mrb[0].mxu0
      %v5023 = vadd.f32 %v4619, %v5022
      %v5024 = vpop.f32.mrb[0].mxu0
      %5025 = vmatprep.mubr.bf16.mxu0 0
      %5026 = vmatmul.mubr.bf16.gmra.mrb[0].mxu0 %v4882
      %v5027 = vpop.f32.mrb[0].mxu0
      %v5028 = vadd.f32 %v4624, %v5027
      %v5029 = vpop.f32.mrb[0].mxu0
      %v5030 = vpop.f32.mrb[0].mxu0
      %v5031 = vadd.f32 %v4627, %v5030
      %v5032 = vpop.f32.mrb[0].mxu0
      %5033 = vmatprep.mubr.bf16.mxu0 0
      %5034 = vmatmul.mubr.bf16.gmra.mrb[0].mxu0 %v4885
      %v5035 = vpop.f32.mrb[0].mxu0
      %v5036 = vadd.f32 %v4632, %v5035
      %v5037 = vpop.f32.mrb[0].mxu0
      %v5038 = vpop.f32.mrb[0].mxu0
      %v5039 = vadd.f32 %v4635, %v5038
      %v5040 = vpop.f32.mrb[0].mxu0
      %5041 = vmatprep.mubr.bf16.mxu0 0
      %5042 = vmatmul.mubr.bf16.gmra.mrb[0].mxu0 %v4888
      %v5043 = vpop.f32.mrb[0].mxu0
      %v5044 = vadd.f32 %v4640, %v5043
      %v5045 = vpop.f32.mrb[0].mxu0
      %v5046 = vpop.f32.mrb[0].mxu0
      %v5047 = vadd.f32 %v4643, %v5046
      %v5048 = vpop.f32.mrb[0].mxu0
      %5049 = vmatprep.mubr.bf16.mxu0 0
      %5050 = vmatmul.mubr.bf16.gmra.mrb[0].mxu0 %v4891
      %v5051 = vpop.f32.mrb[0].mxu0
      %v5052 = vadd.f32 %v4648, %v5051
      %v5053 = vpop.f32.mrb[0].mxu0
      %v5054 = vpop.f32.mrb[0].mxu0
      %v5055 = vadd.f32 %v4651, %v5054
      %v5056 = vpop.f32.mrb[0].mxu0
      %5057 = vmatprep.mubr.bf16.mxu0 0
      %5058 = vmatmul.mubr.bf16.gmra.mrb[0].mxu0 %v4894
      %v5059 = vpop.f32.mrb[0].mxu0
      %v5060 = vadd.f32 %v4656, %v5059
      %v5061 = vpop.f32.mrb[0].mxu0
      %v5062 = vpop.f32.mrb[0].mxu0
      %v5063 = vadd.f32 %v4659, %v5062
      %v5064 = vpop.f32.mrb[0].mxu0
      %5065 = vmatprep.mubr.bf16.mxu0 0
      %5066 = vmatmul.mubr.bf16.gmra.mrb[0].mxu0 %v4897
      %v5067 = vpop.f32.mrb[0].mxu0
      %v5068 = vadd.f32 %v4664, %v5067
      %v5069 = vpop.f32.mrb[0].mxu0
      %v5070 = vpop.f32.mrb[0].mxu0
      %v5071 = vadd.f32 %v4667, %v5070
      %v5072 = vpop.f32.mrb[0].mxu0
      %5073 = vmatprep.mubr.bf16.mxu0 0
      %5074 = vmatmul.mubr.bf16.gmra.mrb[0].mxu0 %v4900
      %v5075 = vpop.f32.mrb[0].mxu0
      %v5076 = vadd.f32 %v4672, %v5075
      %v5077 = vpop.f32.mrb[0].mxu0
      %v5078 = vpop.f32.mrb[0].mxu0
      %v5079 = vadd.f32 %v4675, %v5078
      %v5080 = vpop.f32.mrb[0].mxu0
      %5081 = vdwg.mxu0
      %v5082 = vld [vmem:[#allocation2 + $0x90] sm:$0xf]
      %s5083 = scalar_lea.vmem %s5, 8
      %v5084 = vld [vmem:[%s5083] sm:$0xf]
      %vm5085 = vsmask.f32 4352
      %v5087 = vshrl.u32 %v4384, 16
      %v5089 = vrot.slane %v5087, 3
      %v5090 = vshll.u32 %v4384, 16
      %v5092 = vrot.slane %v5090, 4
      %v5093 = vor.u32 %v5089, %v5092
      %v5094 = vrot.slane %v4687, 3
      %v5095 = vrot.slane %v4690, 4
      %v5096 = vor.u32 %v5094, %v5095
      %v5097 = vsel %vm5085, %v5093, %v5096
      %v5098 = vrot.slane %v4696, 3
      %v5099 = vrot.slane %v4699, 4
      %v5100 = vor.u32 %v5098, %v5099
      %v5101 = vsel %vm5085, %v5096, %v5100
      %v5102 = vrot.slane %v4705, 3
      %v5103 = vrot.slane %v4708, 4
      %v5104 = vor.u32 %v5102, %v5103
      %v5105 = vsel %vm5085, %v5100, %v5104
      %v5106 = vrot.slane %v4714, 3
      %v5107 = vrot.slane %v4717, 4
      %v5108 = vor.u32 %v5106, %v5107
      %v5109 = vsel %vm5085, %v5104, %v5108
      %v5110 = vrot.slane %v4723, 3
      %v5111 = vrot.slane %v4726, 4
      %v5112 = vor.u32 %v5110, %v5111
      %v5113 = vsel %vm5085, %v5108, %v5112
      %v5114 = vrot.slane %v4732, 3
      %v5115 = vrot.slane %v4735, 4
      %v5116 = vor.u32 %v5114, %v5115
      %v5117 = vsel %vm5085, %v5112, %v5116
      %v5118 = vrot.slane %v4741, 3
      %v5119 = vrot.slane %v4744, 4
      %v5120 = vor.u32 %v5118, %v5119
      %v5121 = vsel %vm5085, %v5116, %v5120
      %v5122 = vrot.slane %v4750, 3
      %v5123 = vrot.slane %v4753, 4
      %v5124 = vor.u32 %v5122, %v5123
      %v5125 = vsel %vm5085, %v5120, %v5124
      %v5126 = vrot.slane %v4759, 3
      %v5127 = vrot.slane %v4762, 4
      %v5128 = vor.u32 %v5126, %v5127
      %v5129 = vsel %vm5085, %v5124, %v5128
      %v5130 = vrot.slane %v4768, 3
      %v5131 = vrot.slane %v4771, 4
      %v5132 = vor.u32 %v5130, %v5131
      %v5133 = vsel %vm5085, %v5128, %v5132
      %v5134 = vrot.slane %v4777, 3
      %v5135 = vrot.slane %v4780, 4
      %v5136 = vor.u32 %v5134, %v5135
      %v5137 = vsel %vm5085, %v5132, %v5136
      %v5138 = vrot.slane %v4786, 3
      %v5139 = vrot.slane %v4789, 4
      %v5140 = vor.u32 %v5138, %v5139
      %v5141 = vsel %vm5085, %v5136, %v5140
      %v5142 = vrot.slane %v4795, 3
      %v5143 = vrot.slane %v4798, 4
      %v5144 = vor.u32 %v5142, %v5143
      %v5145 = vsel %vm5085, %v5140, %v5144
      %v5146 = vrot.slane %v4804, 3
      %v5147 = vrot.slane %v4807, 4
      %v5148 = vor.u32 %v5146, %v5147
      %v5149 = vsel %vm5085, %v5144, %v5148
      %v5150 = vrot.slane %v4813, 3
      %v5151 = vrot.slane %v4816, 4
      %v5152 = vor.u32 %v5150, %v5151
      %v5153 = vsel %vm5085, %v5148, %v5152
      %v5154 = vrot.slane %v4822, 3
      %v5155 = vrot.slane %v4825, 4
      %v5156 = vor.u32 %v5154, %v5155
      %v5157 = vsel %vm5085, %v5152, %v5156
      %v5158 = vrot.slane %v4831, 3
      %v5159 = vrot.slane %v4834, 4
      %v5160 = vor.u32 %v5158, %v5159
      %v5161 = vsel %vm5085, %v5156, %v5160
      %v5163 = vshrl.u32 %v5082, 16
      %v5165 = vrot.slane %v5163, 3
      %v5166 = vshll.u32 %v5082, 16
      %v5168 = vrot.slane %v5166, 4
      %v5169 = vor.u32 %v5165, %v5168
      %v5170 = vsel %vm5085, %v5160, %v5169
      %v5172 = vsel %vm4246, %v5097, 0
      %v5175 = vsel %vm4246, %v5101, 0
      %v5178 = vsel %vm4246, %v5105, 0
      %v5181 = vsel %vm4246, %v5109, 0
      %v5184 = vsel %vm4246, %v5113, 0
      %v5187 = vsel %vm4246, %v5117, 0
      %v5190 = vsel %vm4246, %v5121, 0
      %v5193 = vsel %vm4246, %v5125, 0
      %v5196 = vsel %vm4246, %v5129, 0
      %v5199 = vsel %vm4246, %v5133, 0
      %v5202 = vsel %vm4246, %v5137, 0
      %v5205 = vsel %vm4246, %v5141, 0
      %v5208 = vsel %vm4246, %v5145, 0
      %v5211 = vsel %vm4246, %v5149, 0
      %v5214 = vsel %vm4246, %v5153, 0
      %v5217 = vsel %vm4246, %v5157, 0
      %v5220 = vsel %vm4246, %v5161, 0
      %v5223 = vsel %vm4246, %v5170, 0
      %v5226 = vsel %vm4497, %v5084, 0
      %5228 = vmatprep.subr.bf16.mxu0 0
      %5229 = vmatpush1.bf16.msra.mxu0 %v5226
      %5230 = vmatprep.subr.bf16.mxu0 0
      %5231 = vmatpush1.bf16.msra.mxu0 0
      %5232 = vmatprep.subr.bf16.mxu0 0
      %5233 = vmatpush1.bf16.msra.mxu0 0
      %5234 = vmatprep.subr.bf16.mxu0 0
      %5235 = vmatpush1.bf16.msra.mxu0 0
      %5236 = vmatprep.subr.bf16.mxu0 0
      %5237 = vmatpush1.bf16.msra.mxu0 0
      %5238 = vmatprep.subr.bf16.mxu0 0
      %5239 = vmatpush1.bf16.msra.mxu0 0
      %5240 = vmatprep.subr.bf16.mxu0 0
      %5241 = vmatpush1.bf16.msra.mxu0 0
      %5242 = vmatprep.subr.bf16.mxu0 0
      %5243 = vmatpush1.bf16.msra.mxu0 0
      %5244 = vmatprep.subr.bf16.mxu0 0
      %5245 = vmatpush1.bf16.msra.mxu0 0
      %5246 = vmatprep.subr.bf16.mxu0 0
      %5247 = vmatpush1.bf16.msra.mxu0 0
      %5248 = vmatprep.subr.bf16.mxu0 0
      %5249 = vmatpush1.bf16.msra.mxu0 0
      %5250 = vmatprep.subr.bf16.mxu0 0
      %5251 = vmatpush1.bf16.msra.mxu0 0
      %5252 = vmatprep.subr.bf16.mxu0 0
      %5253 = vmatpush1.bf16.msra.mxu0 0
      %5254 = vmatprep.subr.bf16.mxu0 0
      %5255 = vmatpush1.bf16.msra.mxu0 0
      %5256 = vmatprep.subr.bf16.mxu0 0
      %5257 = vmatpush1.bf16.msra.mxu0 0
      %5258 = vmatprep.subr.bf16.mxu0 0
      %5259 = vmatpush1.bf16.msra.mxu0 0
      %5260 = vmatprep.mubr.bf16.mxu0 0
      %5261 = vmatmul.mubr.bf16.gmra.mrb[0].mxu0 %v5172
      %v5262 = vpop.f32.mrb[0].mxu0
      %v5263 = vadd.f32 0.0, %v5262
      %v5264 = vpop.f32.mrb[0].mxu0
      %v5265 = vpop.f32.mrb[0].mxu0
      %v5266 = vadd.f32 0.0, %v5265
      %v5267 = vpop.f32.mrb[0].mxu0
      %5268 = vmatprep.mubr.bf16.mxu0 0
      %5269 = vmatmul.mubr.bf16.gmra.mrb[0].mxu0 %v5175
      %v5270 = vpop.f32.mrb[0].mxu0
      %v5271 = vadd.f32 0.0, %v5270
      %v5272 = vpop.f32.mrb[0].mxu0
      %v5273 = vpop.f32.mrb[0].mxu0
      %v5274 = vadd.f32 0.0, %v5273
      %v5275 = vpop.f32.mrb[0].mxu0
      %5276 = vmatprep.mubr.bf16.mxu0 0
      %5277 = vmatmul.mubr.bf16.gmra.mrb[0].mxu0 %v5178
      %v5278 = vpop.f32.mrb[0].mxu0
      %v5279 = vadd.f32 0.0, %v5278
      %v5280 = vpop.f32.mrb[0].mxu0
      %v5281 = vpop.f32.mrb[0].mxu0
      %v5282 = vadd.f32 0.0, %v5281
      %v5283 = vpop.f32.mrb[0].mxu0
      %5284 = vmatprep.mubr.bf16.mxu0 0
      %5285 = vmatmul.mubr.bf16.gmra.mrb[0].mxu0 %v5181
      %v5286 = vpop.f32.mrb[0].mxu0
      %v5287 = vadd.f32 0.0, %v5286
      %v5288 = vpop.f32.mrb[0].mxu0
      %v5289 = vpop.f32.mrb[0].mxu0
      %v5290 = vadd.f32 0.0, %v5289
      %v5291 = vpop.f32.mrb[0].mxu0
      %5292 = vmatprep.mubr.bf16.mxu0 0
      %5293 = vmatmul.mubr.bf16.gmra.mrb[0].mxu0 %v5184
      %v5294 = vpop.f32.mrb[0].mxu0
      %v5295 = vadd.f32 0.0, %v5294
      %v5296 = vpop.f32.mrb[0].mxu0
      %v5297 = vpop.f32.mrb[0].mxu0
      %v5298 = vadd.f32 0.0, %v5297
      %v5299 = vpop.f32.mrb[0].mxu0
      %5300 = vmatprep.mubr.bf16.mxu0 0
      %5301 = vmatmul.mubr.bf16.gmra.mrb[0].mxu0 %v5187
      %v5302 = vpop.f32.mrb[0].mxu0
      %v5303 = vadd.f32 0.0, %v5302
      %v5304 = vpop.f32.mrb[0].mxu0
      %v5305 = vpop.f32.mrb[0].mxu0
      %v5306 = vadd.f32 0.0, %v5305
      %v5307 = vpop.f32.mrb[0].mxu0
      %5308 = vmatprep.mubr.bf16.mxu0 0
      %5309 = vmatmul.mubr.bf16.gmra.mrb[0].mxu0 %v5190
      %v5310 = vpop.f32.mrb[0].mxu0
      %v5311 = vadd.f32 0.0, %v5310
      %v5312 = vpop.f32.mrb[0].mxu0
      %v5313 = vpop.f32.mrb[0].mxu0
      %v5314 = vadd.f32 0.0, %v5313
      %v5315 = vpop.f32.mrb[0].mxu0
      %5316 = vmatprep.mubr.bf16.mxu0 0
      %5317 = vmatmul.mubr.bf16.gmra.mrb[0].mxu0 %v5193
      %v5318 = vpop.f32.mrb[0].mxu0
      %v5319 = vadd.f32 0.0, %v5318
      %v5320 = vpop.f32.mrb[0].mxu0
      %v5321 = vpop.f32.mrb[0].mxu0
      %v5322 = vadd.f32 0.0, %v5321
      %v5323 = vpop.f32.mrb[0].mxu0
      %5324 = vmatprep.mubr.bf16.mxu0 0
      %5325 = vmatmul.mubr.bf16.gmra.mrb[0].mxu0 %v5196
      %v5326 = vpop.f32.mrb[0].mxu0
      %v5327 = vadd.f32 0.0, %v5326
      %v5328 = vpop.f32.mrb[0].mxu0
      %v5329 = vpop.f32.mrb[0].mxu0
      %v5330 = vadd.f32 0.0, %v5329
      %v5331 = vpop.f32.mrb[0].mxu0
      %5332 = vmatprep.mubr.bf16.mxu0 0
      %5333 = vmatmul.mubr.bf16.gmra.mrb[0].mxu0 %v5199
      %v5334 = vpop.f32.mrb[0].mxu0
      %v5335 = vadd.f32 0.0, %v5334
      %v5336 = vpop.f32.mrb[0].mxu0
      %v5337 = vpop.f32.mrb[0].mxu0
      %v5338 = vadd.f32 0.0, %v5337
      %v5339 = vpop.f32.mrb[0].mxu0
      %5340 = vmatprep.mubr.bf16.mxu0 0
      %5341 = vmatmul.mubr.bf16.gmra.mrb[0].mxu0 %v5202
      %v5342 = vpop.f32.mrb[0].mxu0
      %v5343 = vadd.f32 0.0, %v5342
      %v5344 = vpop.f32.mrb[0].mxu0
      %v5345 = vpop.f32.mrb[0].mxu0
      %v5346 = vadd.f32 0.0, %v5345
      %v5347 = vpop.f32.mrb[0].mxu0
      %5348 = vmatprep.mubr.bf16.mxu0 0
      %5349 = vmatmul.mubr.bf16.gmra.mrb[0].mxu0 %v5205
      %v5350 = vpop.f32.mrb[0].mxu0
      %v5351 = vadd.f32 0.0, %v5350
      %v5352 = vpop.f32.mrb[0].mxu0
      %v5353 = vpop.f32.mrb[0].mxu0
      %v5354 = vadd.f32 0.0, %v5353
      %v5355 = vpop.f32.mrb[0].mxu0
      %5356 = vmatprep.mubr.bf16.mxu0 0
      %5357 = vmatmul.mubr.bf16.gmra.mrb[0].mxu0 %v5208
      %v5358 = vpop.f32.mrb[0].mxu0
      %v5359 = vadd.f32 0.0, %v5358
      %v5360 = vpop.f32.mrb[0].mxu0
      %v5361 = vpop.f32.mrb[0].mxu0
      %v5362 = vadd.f32 0.0, %v5361
      %v5363 = vpop.f32.mrb[0].mxu0
      %5364 = vmatprep.mubr.bf16.mxu0 0
      %5365 = vmatmul.mubr.bf16.gmra.mrb[0].mxu0 %v5211
      %v5366 = vpop.f32.mrb[0].mxu0
      %v5367 = vadd.f32 0.0, %v5366
      %v5368 = vpop.f32.mrb[0].mxu0
      %v5369 = vpop.f32.mrb[0].mxu0
      %v5370 = vadd.f32 0.0, %v5369
      %v5371 = vpop.f32.mrb[0].mxu0
      %5372 = vmatprep.mubr.bf16.mxu0 0
      %5373 = vmatmul.mubr.bf16.gmra.mrb[0].mxu0 %v5214
      %v5374 = vpop.f32.mrb[0].mxu0
      %v5375 = vadd.f32 0.0, %v5374
      %v5376 = vpop.f32.mrb[0].mxu0
      %v5377 = vpop.f32.mrb[0].mxu0
      %v5378 = vadd.f32 0.0, %v5377
      %v5379 = vpop.f32.mrb[0].mxu0
      %5380 = vmatprep.mubr.bf16.mxu0 0
      %5381 = vmatmul.mubr.bf16.gmra.mrb[0].mxu0 %v5217
      %v5382 = vpop.f32.mrb[0].mxu0
      %v5383 = vadd.f32 0.0, %v5382
      %v5384 = vpop.f32.mrb[0].mxu0
      %v5385 = vpop.f32.mrb[0].mxu0
      %v5386 = vadd.f32 0.0, %v5385
      %v5387 = vpop.f32.mrb[0].mxu0
      %5388 = vmatprep.mubr.bf16.mxu0 0
      %5389 = vmatmul.mubr.bf16.gmra.mrb[0].mxu0 %v5220
      %v5390 = vpop.f32.mrb[0].mxu0
      %v5391 = vadd.f32 0.0, %v5390
      %v5392 = vpop.f32.mrb[0].mxu0
      %v5393 = vpop.f32.mrb[0].mxu0
      %v5394 = vadd.f32 0.0, %v5393
      %v5395 = vpop.f32.mrb[0].mxu0
      %5396 = vmatprep.mubr.bf16.mxu0 0
      %5397 = vmatmul.mubr.bf16.gmra.mrb[0].mxu0 %v5223
      %v5398 = vpop.f32.mrb[0].mxu0
      %v5399 = vadd.f32 0.0, %v5398
      %v5400 = vpop.f32.mrb[0].mxu0
      %v5401 = vpop.f32.mrb[0].mxu0
      %v5402 = vadd.f32 0.0, %v5401
      %v5403 = vpop.f32.mrb[0].mxu0
      %5404 = vdwg.mxu0
      %v5405 = vadd.f32 %v4940, %v5263
      %v5406 = vadd.f32 %v4943, %v5266
      %v5407 = vadd.f32 %v4948, %v5271
      %v5408 = vadd.f32 %v4951, %v5274
      %v5409 = vadd.f32 %v4956, %v5279
      %v5410 = vadd.f32 %v4959, %v5282
      %v5411 = vadd.f32 %v4964, %v5287
      %v5412 = vadd.f32 %v4967, %v5290
      %v5413 = vadd.f32 %v4972, %v5295
      %v5414 = vadd.f32 %v4975, %v5298
      %v5415 = vadd.f32 %v4980, %v5303
      %v5416 = vadd.f32 %v4983, %v5306
      %v5417 = vadd.f32 %v4988, %v5311
      %v5418 = vadd.f32 %v4991, %v5314
      %v5419 = vadd.f32 %v4996, %v5319
      %v5420 = vadd.f32 %v4999, %v5322
      %v5421 = vadd.f32 %v5004, %v5327
      %v5422 = vadd.f32 %v5007, %v5330
      %v5423 = vadd.f32 %v5012, %v5335
      %v5424 = vadd.f32 %v5015, %v5338
      %v5425 = vadd.f32 %v5020, %v5343
      %v5426 = vadd.f32 %v5023, %v5346
      %v5427 = vadd.f32 %v5028, %v5351
      %v5428 = vadd.f32 %v5031, %v5354
      %v5429 = vadd.f32 %v5036, %v5359
      %v5430 = vadd.f32 %v5039, %v5362
      %v5431 = vadd.f32 %v5044, %v5367
      %v5432 = vadd.f32 %v5047, %v5370
      %v5433 = vadd.f32 %v5052, %v5375
      %v5434 = vadd.f32 %v5055, %v5378
      %v5435 = vadd.f32 %v5060, %v5383
      %v5436 = vadd.f32 %v5063, %v5386
      %v5437 = vadd.f32 %v5068, %v5391
      %v5438 = vadd.f32 %v5071, %v5394
      %v5439 = vadd.f32 %v5076, %v5399
      %v5440 = vadd.f32 %v5079, %v5402
      %v5441 = vld [vmem:[#allocation2 + $0x8] sm:$0xf8]
      %v5442 = vld [vmem:[#allocation2 + $0x10] sm:$0xff]
      %v5443 = vld [vmem:[#allocation2 + $0x18] sm:$0xff]
      %v5444 = vld [vmem:[#allocation2 + $0x20] sm:$0xff]
      %v5445 = vld [vmem:[#allocation2 + $0x28] sm:$0xff]
      %v5446 = vld [vmem:[#allocation2 + $0x30] sm:$0xff]
      %v5447 = vld [vmem:[#allocation2 + $0x38] sm:$0xff]
      %v5448 = vld [vmem:[#allocation2 + $0x40] sm:$0xff]
      %v5449 = vld [vmem:[#allocation2 + $0x48] sm:$0xff]
      %v5450 = vld [vmem:[#allocation2 + $0x50] sm:$0xff]
      %v5451 = vld [vmem:[#allocation2 + $0x58] sm:$0xff]
      %v5452 = vld [vmem:[#allocation2 + $0x60] sm:$0xff]
      %v5453 = vld [vmem:[#allocation2 + $0x68] sm:$0xff]
      %v5454 = vld [vmem:[#allocation2 + $0x70] sm:$0xff]
      %v5455 = vld [vmem:[#allocation2 + $0x78] sm:$0xff]
      %v5456 = vld [vmem:[#allocation2 + $0x80] sm:$0xff]
      %v5457 = vld [vmem:[#allocation2 + $0x88] sm:$0xff]
      %v5458 = vld [vmem:[#allocation2 + $0x90] sm:$0xff]
      %v5459 = vld [vmem:[#allocation2 + $0x98] sm:$0xf]
      %s5460 = scalar_lea.vmem %s5, 12
      %v5461 = vld [vmem:[%s5460] sm:$0xf]
      %v5463 = vshrl.u32 %v5441, 16
      %v5465 = vrot.slane %v5463, 3
      %v5466 = vshll.u32 %v5441, 16
      %v5468 = vrot.slane %v5466, 4
      %v5469 = vor.u32 %v5465, %v5468
      %v5471 = vshrl.u32 %v5442, 16
      %v5473 = vrot.slane %v5471, 3
      %v5474 = vshll.u32 %v5442, 16
      %v5476 = vrot.slane %v5474, 4
      %v5477 = vor.u32 %v5473, %v5476
      %v5478 = vsel %vm5085, %v5469, %v5477
      %v5480 = vshrl.u32 %v5443, 16
      %v5482 = vrot.slane %v5480, 3
      %v5483 = vshll.u32 %v5443, 16
      %v5485 = vrot.slane %v5483, 4
      %v5486 = vor.u32 %v5482, %v5485
      %v5487 = vsel %vm5085, %v5477, %v5486
      %v5489 = vshrl.u32 %v5444, 16
      %v5491 = vrot.slane %v5489, 3
      %v5492 = vshll.u32 %v5444, 16
      %v5494 = vrot.slane %v5492, 4
      %v5495 = vor.u32 %v5491, %v5494
      %v5496 = vsel %vm5085, %v5486, %v5495
      %v5498 = vshrl.u32 %v5445, 16
      %v5500 = vrot.slane %v5498, 3
      %v5501 = vshll.u32 %v5445, 16
      %v5503 = vrot.slane %v5501, 4
      %v5504 = vor.u32 %v5500, %v5503
      %v5505 = vsel %vm5085, %v5495, %v5504
      %v5507 = vshrl.u32 %v5446, 16
      %v5509 = vrot.slane %v5507, 3
      %v5510 = vshll.u32 %v5446, 16
      %v5512 = vrot.slane %v5510, 4
      %v5513 = vor.u32 %v5509, %v5512
      %v5514 = vsel %vm5085, %v5504, %v5513
      %v5516 = vshrl.u32 %v5447, 16
      %v5518 = vrot.slane %v5516, 3
      %v5519 = vshll.u32 %v5447, 16
      %v5521 = vrot.slane %v5519, 4
      %v5522 = vor.u32 %v5518, %v5521
      %v5523 = vsel %vm5085, %v5513, %v5522
      %v5525 = vshrl.u32 %v5448, 16
      %v5527 = vrot.slane %v5525, 3
      %v5528 = vshll.u32 %v5448, 16
      %v5530 = vrot.slane %v5528, 4
      %v5531 = vor.u32 %v5527, %v5530
      %v5532 = vsel %vm5085, %v5522, %v5531
      %v5534 = vshrl.u32 %v5449, 16
      %v5536 = vrot.slane %v5534, 3
      %v5537 = vshll.u32 %v5449, 16
      %v5539 = vrot.slane %v5537, 4
      %v5540 = vor.u32 %v5536, %v5539
      %v5541 = vsel %vm5085, %v5531, %v5540
      %v5543 = vshrl.u32 %v5450, 16
      %v5545 = vrot.slane %v5543, 3
      %v5546 = vshll.u32 %v5450, 16
      %v5548 = vrot.slane %v5546, 4
      %v5549 = vor.u32 %v5545, %v5548
      %v5550 = vsel %vm5085, %v5540, %v5549
      %v5552 = vshrl.u32 %v5451, 16
      %v5554 = vrot.slane %v5552, 3
      %v5555 = vshll.u32 %v5451, 16
      %v5557 = vrot.slane %v5555, 4
      %v5558 = vor.u32 %v5554, %v5557
      %v5559 = vsel %vm5085, %v5549, %v5558
      %v5561 = vshrl.u32 %v5452, 16
      %v5563 = vrot.slane %v5561, 3
      %v5564 = vshll.u32 %v5452, 16
      %v5566 = vrot.slane %v5564, 4
      %v5567 = vor.u32 %v5563, %v5566
      %v5568 = vsel %vm5085, %v5558, %v5567
      %v5570 = vshrl.u32 %v5453, 16
      %v5572 = vrot.slane %v5570, 3
      %v5573 = vshll.u32 %v5453, 16
      %v5575 = vrot.slane %v5573, 4
      %v5576 = vor.u32 %v5572, %v5575
      %v5577 = vsel %vm5085, %v5567, %v5576
      %v5579 = vshrl.u32 %v5454, 16
      %v5581 = vrot.slane %v5579, 3
      %v5582 = vshll.u32 %v5454, 16
      %v5584 = vrot.slane %v5582, 4
      %v5585 = vor.u32 %v5581, %v5584
      %v5586 = vsel %vm5085, %v5576, %v5585
      %v5588 = vshrl.u32 %v5455, 16
      %v5590 = vrot.slane %v5588, 3
      %v5591 = vshll.u32 %v5455, 16
      %v5593 = vrot.slane %v5591, 4
      %v5594 = vor.u32 %v5590, %v5593
      %v5595 = vsel %vm5085, %v5585, %v5594
      %v5597 = vshrl.u32 %v5456, 16
      %v5599 = vrot.slane %v5597, 3
      %v5600 = vshll.u32 %v5456, 16
      %v5602 = vrot.slane %v5600, 4
      %v5603 = vor.u32 %v5599, %v5602
      %v5604 = vsel %vm5085, %v5594, %v5603
      %v5606 = vshrl.u32 %v5457, 16
      %v5608 = vrot.slane %v5606, 3
      %v5609 = vshll.u32 %v5457, 16
      %v5611 = vrot.slane %v5609, 4
      %v5612 = vor.u32 %v5608, %v5611
      %v5613 = vsel %vm5085, %v5603, %v5612
      %v5615 = vshrl.u32 %v5458, 16
      %v5617 = vrot.slane %v5615, 3
      %v5618 = vshll.u32 %v5458, 16
      %v5620 = vrot.slane %v5618, 4
      %v5621 = vor.u32 %v5617, %v5620
      %v5622 = vsel %vm5085, %v5612, %v5621
      %v5624 = vshrl.u32 %v5459, 16
      %v5626 = vrot.slane %v5624, 3
      %v5627 = vshll.u32 %v5459, 16
      %v5629 = vrot.slane %v5627, 4
      %v5630 = vor.u32 %v5626, %v5629
      %v5631 = vsel %vm5085, %v5621, %v5630
      %v5633 = vsel %vm4246, %v5478, 0
      %v5636 = vsel %vm4246, %v5487, 0
      %v5639 = vsel %vm4246, %v5496, 0
      %v5642 = vsel %vm4246, %v5505, 0
      %v5645 = vsel %vm4246, %v5514, 0
      %v5648 = vsel %vm4246, %v5523, 0
      %v5651 = vsel %vm4246, %v5532, 0
      %v5654 = vsel %vm4246, %v5541, 0
      %v5657 = vsel %vm4246, %v5550, 0
      %v5660 = vsel %vm4246, %v5559, 0
      %v5663 = vsel %vm4246, %v5568, 0
      %v5666 = vsel %vm4246, %v5577, 0
      %v5669 = vsel %vm4246, %v5586, 0
      %v5672 = vsel %vm4246, %v5595, 0
      %v5675 = vsel %vm4246, %v5604, 0
      %v5678 = vsel %vm4246, %v5613, 0
      %v5681 = vsel %vm4246, %v5622, 0
      %v5684 = vsel %vm4246, %v5631, 0
      %v5687 = vsel %vm4497, %v5461, 0
      %5689 = vmatprep.subr.bf16.mxu0 0
      %5690 = vmatpush1.bf16.msra.mxu0 %v5687
      %5691 = vmatprep.subr.bf16.mxu0 0
      %5692 = vmatpush1.bf16.msra.mxu0 0
      %5693 = vmatprep.subr.bf16.mxu0 0
      %5694 = vmatpush1.bf16.msra.mxu0 0
      %5695 = vmatprep.subr.bf16.mxu0 0
      %5696 = vmatpush1.bf16.msra.mxu0 0
      %5697 = vmatprep.subr.bf16.mxu0 0
      %5698 = vmatpush1.bf16.msra.mxu0 0
      %5699 = vmatprep.subr.bf16.mxu0 0
      %5700 = vmatpush1.bf16.msra.mxu0 0
      %5701 = vmatprep.subr.bf16.mxu0 0
      %5702 = vmatpush1.bf16.msra.mxu0 0
      %5703 = vmatprep.subr.bf16.mxu0 0
      %5704 = vmatpush1.bf16.msra.mxu0 0
      %5705 = vmatprep.subr.bf16.mxu0 0
      %5706 = vmatpush1.bf16.msra.mxu0 0
      %5707 = vmatprep.subr.bf16.mxu0 0
      %5708 = vmatpush1.bf16.msra.mxu0 0
      %5709 = vmatprep.subr.bf16.mxu0 0
      %5710 = vmatpush1.bf16.msra.mxu0 0
      %5711 = vmatprep.subr.bf16.mxu0 0
      %5712 = vmatpush1.bf16.msra.mxu0 0
      %5713 = vmatprep.subr.bf16.mxu0 0
      %5714 = vmatpush1.bf16.msra.mxu0 0
      %5715 = vmatprep.subr.bf16.mxu0 0
      %5716 = vmatpush1.bf16.msra.mxu0 0
      %5717 = vmatprep.subr.bf16.mxu0 0
      %5718 = vmatpush1.bf16.msra.mxu0 0
      %5719 = vmatprep.subr.bf16.mxu0 0
      %5720 = vmatpush1.bf16.msra.mxu0 0
      %5721 = vmatprep.mubr.bf16.mxu0 0
      %5722 = vmatmul.mubr.bf16.gmra.mrb[0].mxu0 %v5633
      %v5723 = vpop.f32.mrb[0].mxu0
      %v5724 = vadd.f32 0.0, %v5723
      %v5725 = vpop.f32.mrb[0].mxu0
      %v5726 = vpop.f32.mrb[0].mxu0
      %v5727 = vadd.f32 0.0, %v5726
      %v5728 = vpop.f32.mrb[0].mxu0
      %5729 = vmatprep.mubr.bf16.mxu0 0
      %5730 = vmatmul.mubr.bf16.gmra.mrb[0].mxu0 %v5636
      %v5731 = vpop.f32.mrb[0].mxu0
      %v5732 = vadd.f32 0.0, %v5731
      %v5733 = vpop.f32.mrb[0].mxu0
      %v5734 = vpop.f32.mrb[0].mxu0
      %v5735 = vadd.f32 0.0, %v5734
      %v5736 = vpop.f32.mrb[0].mxu0
      %5737 = vmatprep.mubr.bf16.mxu0 0
      %5738 = vmatmul.mubr.bf16.gmra.mrb[0].mxu0 %v5639
      %v5739 = vpop.f32.mrb[0].mxu0
      %v5740 = vadd.f32 0.0, %v5739
      %v5741 = vpop.f32.mrb[0].mxu0
      %v5742 = vpop.f32.mrb[0].mxu0
      %v5743 = vadd.f32 0.0, %v5742
      %v5744 = vpop.f32.mrb[0].mxu0
      %5745 = vmatprep.mubr.bf16.mxu0 0
      %5746 = vmatmul.mubr.bf16.gmra.mrb[0].mxu0 %v5642
      %v5747 = vpop.f32.mrb[0].mxu0
      %v5748 = vadd.f32 0.0, %v5747
      %v5749 = vpop.f32.mrb[0].mxu0
      %v5750 = vpop.f32.mrb[0].mxu0
      %v5751 = vadd.f32 0.0, %v5750
      %v5752 = vpop.f32.mrb[0].mxu0
      %5753 = vmatprep.mubr.bf16.mxu0 0
      %5754 = vmatmul.mubr.bf16.gmra.mrb[0].mxu0 %v5645
      %v5755 = vpop.f32.mrb[0].mxu0
      %v5756 = vadd.f32 0.0, %v5755
      %v5757 = vpop.f32.mrb[0].mxu0
      %v5758 = vpop.f32.mrb[0].mxu0
      %v5759 = vadd.f32 0.0, %v5758
      %v5760 = vpop.f32.mrb[0].mxu0
      %5761 = vmatprep.mubr.bf16.mxu0 0
      %5762 = vmatmul.mubr.bf16.gmra.mrb[0].mxu0 %v5648
      %v5763 = vpop.f32.mrb[0].mxu0
      %v5764 = vadd.f32 0.0, %v5763
      %v5765 = vpop.f32.mrb[0].mxu0
      %v5766 = vpop.f32.mrb[0].mxu0
      %v5767 = vadd.f32 0.0, %v5766
      %v5768 = vpop.f32.mrb[0].mxu0
      %5769 = vmatprep.mubr.bf16.mxu0 0
      %5770 = vmatmul.mubr.bf16.gmra.mrb[0].mxu0 %v5651
      %v5771 = vpop.f32.mrb[0].mxu0
      %v5772 = vadd.f32 0.0, %v5771
      %v5773 = vpop.f32.mrb[0].mxu0
      %v5774 = vpop.f32.mrb[0].mxu0
      %v5775 = vadd.f32 0.0, %v5774
      %v5776 = vpop.f32.mrb[0].mxu0
      %5777 = vmatprep.mubr.bf16.mxu0 0
      %5778 = vmatmul.mubr.bf16.gmra.mrb[0].mxu0 %v5654
      %v5779 = vpop.f32.mrb[0].mxu0
      %v5780 = vadd.f32 0.0, %v5779
      %v5781 = vpop.f32.mrb[0].mxu0
      %v5782 = vpop.f32.mrb[0].mxu0
      %v5783 = vadd.f32 0.0, %v5782
      %v5784 = vpop.f32.mrb[0].mxu0
      %5785 = vmatprep.mubr.bf16.mxu0 0
      %5786 = vmatmul.mubr.bf16.gmra.mrb[0].mxu0 %v5657
      %v5787 = vpop.f32.mrb[0].mxu0
      %v5788 = vadd.f32 0.0, %v5787
      %v5789 = vpop.f32.mrb[0].mxu0
      %v5790 = vpop.f32.mrb[0].mxu0
      %v5791 = vadd.f32 0.0, %v5790
      %v5792 = vpop.f32.mrb[0].mxu0
      %5793 = vmatprep.mubr.bf16.mxu0 0
      %5794 = vmatmul.mubr.bf16.gmra.mrb[0].mxu0 %v5660
      %v5795 = vpop.f32.mrb[0].mxu0
      %v5796 = vadd.f32 0.0, %v5795
      %v5797 = vpop.f32.mrb[0].mxu0
      %v5798 = vpop.f32.mrb[0].mxu0
      %v5799 = vadd.f32 0.0, %v5798
      %v5800 = vpop.f32.mrb[0].mxu0
      %5801 = vmatprep.mubr.bf16.mxu0 0
      %5802 = vmatmul.mubr.bf16.gmra.mrb[0].mxu0 %v5663
      %v5803 = vpop.f32.mrb[0].mxu0
      %v5804 = vadd.f32 0.0, %v5803
      %v5805 = vpop.f32.mrb[0].mxu0
      %v5806 = vpop.f32.mrb[0].mxu0
      %v5807 = vadd.f32 0.0, %v5806
      %v5808 = vpop.f32.mrb[0].mxu0
      %5809 = vmatprep.mubr.bf16.mxu0 0
      %5810 = vmatmul.mubr.bf16.gmra.mrb[0].mxu0 %v5666
      %v5811 = vpop.f32.mrb[0].mxu0
      %v5812 = vadd.f32 0.0, %v5811
      %v5813 = vpop.f32.mrb[0].mxu0
      %v5814 = vpop.f32.mrb[0].mxu0
      %v5815 = vadd.f32 0.0, %v5814
      %v5816 = vpop.f32.mrb[0].mxu0
      %5817 = vmatprep.mubr.bf16.mxu0 0
      %5818 = vmatmul.mubr.bf16.gmra.mrb[0].mxu0 %v5669
      %v5819 = vpop.f32.mrb[0].mxu0
      %v5820 = vadd.f32 0.0, %v5819
      %v5821 = vpop.f32.mrb[0].mxu0
      %v5822 = vpop.f32.mrb[0].mxu0
      %v5823 = vadd.f32 0.0, %v5822
      %v5824 = vpop.f32.mrb[0].mxu0
      %5825 = vmatprep.mubr.bf16.mxu0 0
      %5826 = vmatmul.mubr.bf16.gmra.mrb[0].mxu0 %v5672
      %v5827 = vpop.f32.mrb[0].mxu0
      %v5828 = vadd.f32 0.0, %v5827
      %v5829 = vpop.f32.mrb[0].mxu0
      %v5830 = vpop.f32.mrb[0].mxu0
      %v5831 = vadd.f32 0.0, %v5830
      %v5832 = vpop.f32.mrb[0].mxu0
      %5833 = vmatprep.mubr.bf16.mxu0 0
      %5834 = vmatmul.mubr.bf16.gmra.mrb[0].mxu0 %v5675
      %v5835 = vpop.f32.mrb[0].mxu0
      %v5836 = vadd.f32 0.0, %v5835
      %v5837 = vpop.f32.mrb[0].mxu0
      %v5838 = vpop.f32.mrb[0].mxu0
      %v5839 = vadd.f32 0.0, %v5838
      %v5840 = vpop.f32.mrb[0].mxu0
      %5841 = vmatprep.mubr.bf16.mxu0 0
      %5842 = vmatmul.mubr.bf16.gmra.mrb[0].mxu0 %v5678
      %v5843 = vpop.f32.mrb[0].mxu0
      %v5844 = vadd.f32 0.0, %v5843
      %v5845 = vpop.f32.mrb[0].mxu0
      %v5846 = vpop.f32.mrb[0].mxu0
      %v5847 = vadd.f32 0.0, %v5846
      %v5848 = vpop.f32.mrb[0].mxu0
      %5849 = vmatprep.mubr.bf16.mxu0 0
      %5850 = vmatmul.mubr.bf16.gmra.mrb[0].mxu0 %v5681
      %v5851 = vpop.f32.mrb[0].mxu0
      %v5852 = vadd.f32 0.0, %v5851
      %v5853 = vpop.f32.mrb[0].mxu0
      %v5854 = vpop.f32.mrb[0].mxu0
      %v5855 = vadd.f32 0.0, %v5854
      %v5856 = vpop.f32.mrb[0].mxu0
      %5857 = vmatprep.mubr.bf16.mxu0 0
      %5858 = vmatmul.mubr.bf16.gmra.mrb[0].mxu0 %v5684
      %v5859 = vpop.f32.mrb[0].mxu0
      %v5860 = vadd.f32 0.0, %v5859
      %v5861 = vpop.f32.mrb[0].mxu0
      %v5862 = vpop.f32.mrb[0].mxu0
      %v5863 = vadd.f32 0.0, %v5862
      %v5864 = vpop.f32.mrb[0].mxu0
      %5865 = vdwg.mxu0
      %v5866 = vadd.f32 %v5405, %v5724
      %v5867 = vadd.f32 %v5406, %v5727
      %v5868 = vadd.f32 %v5407, %v5732
      %v5869 = vadd.f32 %v5408, %v5735
      %v5870 = vadd.f32 %v5409, %v5740
      %v5871 = vadd.f32 %v5410, %v5743
      %v5872 = vadd.f32 %v5411, %v5748
      %v5873 = vadd.f32 %v5412, %v5751
      %v5874 = vadd.f32 %v5413, %v5756
      %v5875 = vadd.f32 %v5414, %v5759
      %v5876 = vadd.f32 %v5415, %v5764
      %v5877 = vadd.f32 %v5416, %v5767
      %v5878 = vadd.f32 %v5417, %v5772
      %v5879 = vadd.f32 %v5418, %v5775
      %v5880 = vadd.f32 %v5419, %v5780
      %v5881 = vadd.f32 %v5420, %v5783
      %v5882 = vadd.f32 %v5421, %v5788
      %v5883 = vadd.f32 %v5422, %v5791
      %v5884 = vadd.f32 %v5423, %v5796
      %v5885 = vadd.f32 %v5424, %v5799
      %v5886 = vadd.f32 %v5425, %v5804
      %v5887 = vadd.f32 %v5426, %v5807
      %v5888 = vadd.f32 %v5427, %v5812
      %v5889 = vadd.f32 %v5428, %v5815
      %v5890 = vadd.f32 %v5429, %v5820
      %v5891 = vadd.f32 %v5430, %v5823
      %v5892 = vadd.f32 %v5431, %v5828
      %v5893 = vadd.f32 %v5432, %v5831
      %v5894 = vadd.f32 %v5433, %v5836
      %v5895 = vadd.f32 %v5434, %v5839
      %v5896 = vadd.f32 %v5435, %v5844
      %v5897 = vadd.f32 %v5436, %v5847
      %v5898 = vadd.f32 %v5437, %v5852
      %v5899 = vadd.f32 %v5438, %v5855
      %v5900 = vadd.f32 %v5439, %v5860
      %v5901 = vadd.f32 %v5440, %v5863
      %v5902 = vld [vmem:[#allocation2 + $0x8] sm:$0xf0]
      %s5903 = scalar_lea.vmem %s5, 16
      %v5904 = vld [vmem:[%s5903] sm:$0xf]
      %v5924 = vrot.slane %v5902, 4
      %v5925 = vrot.slane %v5442, 4
      %v5926 = vsel %vm4290, %v5924, %v5925
      %v5927 = vrot.slane %v5443, 4
      %v5928 = vsel %vm4290, %v5925, %v5927
      %v5929 = vrot.slane %v5444, 4
      %v5930 = vsel %vm4290, %v5927, %v5929
      %v5931 = vrot.slane %v5445, 4
      %v5932 = vsel %vm4290, %v5929, %v5931
      %v5933 = vrot.slane %v5446, 4
      %v5934 = vsel %vm4290, %v5931, %v5933
      %v5935 = vrot.slane %v5447, 4
      %v5936 = vsel %vm4290, %v5933, %v5935
      %v5937 = vrot.slane %v5448, 4
      %v5938 = vsel %vm4290, %v5935, %v5937
      %v5939 = vrot.slane %v5449, 4
      %v5940 = vsel %vm4290, %v5937, %v5939
      %v5941 = vrot.slane %v5450, 4
      %v5942 = vsel %vm4290, %v5939, %v5941
      %v5943 = vrot.slane %v5451, 4
      %v5944 = vsel %vm4290, %v5941, %v5943
      %v5945 = vrot.slane %v5452, 4
      %v5946 = vsel %vm4290, %v5943, %v5945
      %v5947 = vrot.slane %v5453, 4
      %v5948 = vsel %vm4290, %v5945, %v5947
      %v5949 = vrot.slane %v5454, 4
      %v5950 = vsel %vm4290, %v5947, %v5949
      %v5951 = vrot.slane %v5455, 4
      %v5952 = vsel %vm4290, %v5949, %v5951
      %v5953 = vrot.slane %v5456, 4
      %v5954 = vsel %vm4290, %v5951, %v5953
      %v5955 = vrot.slane %v5457, 4
      %v5956 = vsel %vm4290, %v5953, %v5955
      %v5957 = vrot.slane %v5458, 4
      %v5958 = vsel %vm4290, %v5955, %v5957
      %v5959 = vrot.slane %v5459, 4
      %v5960 = vsel %vm4290, %v5957, %v5959
      %v5962 = vsel %vm4246, %v5926, 0
      %v5965 = vsel %vm4246, %v5928, 0
      %v5968 = vsel %vm4246, %v5930, 0
      %v5971 = vsel %vm4246, %v5932, 0
      %v5974 = vsel %vm4246, %v5934, 0
      %v5977 = vsel %vm4246, %v5936, 0
      %v5980 = vsel %vm4246, %v5938, 0
      %v5983 = vsel %vm4246, %v5940, 0
      %v5986 = vsel %vm4246, %v5942, 0
      %v5989 = vsel %vm4246, %v5944, 0
      %v5992 = vsel %vm4246, %v5946, 0
      %v5995 = vsel %vm4246, %v5948, 0
      %v5998 = vsel %vm4246, %v5950, 0
      %v6001 = vsel %vm4246, %v5952, 0
      %v6004 = vsel %vm4246, %v5954, 0
      %v6007 = vsel %vm4246, %v5956, 0
      %v6010 = vsel %vm4246, %v5958, 0
      %v6013 = vsel %vm4246, %v5960, 0
      %v6016 = vsel %vm4497, %v5904, 0
      %6018 = vmatprep.subr.bf16.mxu0 0
      %6019 = vmatpush1.bf16.msra.mxu0 %v6016
      %6020 = vmatprep.subr.bf16.mxu0 0
      %6021 = vmatpush1.bf16.msra.mxu0 0
      %6022 = vmatprep.subr.bf16.mxu0 0
      %6023 = vmatpush1.bf16.msra.mxu0 0
      %6024 = vmatprep.subr.bf16.mxu0 0
      %6025 = vmatpush1.bf16.msra.mxu0 0
      %6026 = vmatprep.subr.bf16.mxu0 0
      %6027 = vmatpush1.bf16.msra.mxu0 0
      %6028 = vmatprep.subr.bf16.mxu0 0
      %6029 = vmatpush1.bf16.msra.mxu0 0
      %6030 = vmatprep.subr.bf16.mxu0 0
      %6031 = vmatpush1.bf16.msra.mxu0 0
      %6032 = vmatprep.subr.bf16.mxu0 0
      %6033 = vmatpush1.bf16.msra.mxu0 0
      %6034 = vmatprep.subr.bf16.mxu0 0
      %6035 = vmatpush1.bf16.msra.mxu0 0
      %6036 = vmatprep.subr.bf16.mxu0 0
      %6037 = vmatpush1.bf16.msra.mxu0 0
      %6038 = vmatprep.subr.bf16.mxu0 0
      %6039 = vmatpush1.bf16.msra.mxu0 0
      %6040 = vmatprep.subr.bf16.mxu0 0
      %6041 = vmatpush1.bf16.msra.mxu0 0
      %6042 = vmatprep.subr.bf16.mxu0 0
      %6043 = vmatpush1.bf16.msra.mxu0 0
      %6044 = vmatprep.subr.bf16.mxu0 0
      %6045 = vmatpush1.bf16.msra.mxu0 0
      %6046 = vmatprep.subr.bf16.mxu0 0
      %6047 = vmatpush1.bf16.msra.mxu0 0
      %6048 = vmatprep.subr.bf16.mxu0 0
      %6049 = vmatpush1.bf16.msra.mxu0 0
      %6050 = vmatprep.mubr.bf16.mxu0 0
      %6051 = vmatmul.mubr.bf16.gmra.mrb[0].mxu0 %v5962
      %v6052 = vpop.f32.mrb[0].mxu0
      %v6053 = vadd.f32 0.0, %v6052
      %v6054 = vpop.f32.mrb[0].mxu0
      %v6055 = vpop.f32.mrb[0].mxu0
      %v6056 = vadd.f32 0.0, %v6055
      %v6057 = vpop.f32.mrb[0].mxu0
      %6058 = vmatprep.mubr.bf16.mxu0 0
      %6059 = vmatmul.mubr.bf16.gmra.mrb[0].mxu0 %v5965
      %v6060 = vpop.f32.mrb[0].mxu0
      %v6061 = vadd.f32 0.0, %v6060
      %v6062 = vpop.f32.mrb[0].mxu0
      %v6063 = vpop.f32.mrb[0].mxu0
      %v6064 = vadd.f32 0.0, %v6063
      %v6065 = vpop.f32.mrb[0].mxu0
      %6066 = vmatprep.mubr.bf16.mxu0 0
      %6067 = vmatmul.mubr.bf16.gmra.mrb[0].mxu0 %v5968
      %v6068 = vpop.f32.mrb[0].mxu0
      %v6069 = vadd.f32 0.0, %v6068
      %v6070 = vpop.f32.mrb[0].mxu0
      %v6071 = vpop.f32.mrb[0].mxu0
      %v6072 = vadd.f32 0.0, %v6071
      %v6073 = vpop.f32.mrb[0].mxu0
      %6074 = vmatprep.mubr.bf16.mxu0 0
      %6075 = vmatmul.mubr.bf16.gmra.mrb[0].mxu0 %v5971
      %v6076 = vpop.f32.mrb[0].mxu0
      %v6077 = vadd.f32 0.0, %v6076
      %v6078 = vpop.f32.mrb[0].mxu0
      %v6079 = vpop.f32.mrb[0].mxu0
      %v6080 = vadd.f32 0.0, %v6079
      %v6081 = vpop.f32.mrb[0].mxu0
      %6082 = vmatprep.mubr.bf16.mxu0 0
      %6083 = vmatmul.mubr.bf16.gmra.mrb[0].mxu0 %v5974
      %v6084 = vpop.f32.mrb[0].mxu0
      %v6085 = vadd.f32 0.0, %v6084
      %v6086 = vpop.f32.mrb[0].mxu0
      %v6087 = vpop.f32.mrb[0].mxu0
      %v6088 = vadd.f32 0.0, %v6087
      %v6089 = vpop.f32.mrb[0].mxu0
      %6090 = vmatprep.mubr.bf16.mxu0 0
      %6091 = vmatmul.mubr.bf16.gmra.mrb[0].mxu0 %v5977
      %v6092 = vpop.f32.mrb[0].mxu0
      %v6093 = vadd.f32 0.0, %v6092
      %v6094 = vpop.f32.mrb[0].mxu0
      %v6095 = vpop.f32.mrb[0].mxu0
      %v6096 = vadd.f32 0.0, %v6095
      %v6097 = vpop.f32.mrb[0].mxu0
      %6098 = vmatprep.mubr.bf16.mxu0 0
      %6099 = vmatmul.mubr.bf16.gmra.mrb[0].mxu0 %v5980
      %v6100 = vpop.f32.mrb[0].mxu0
      %v6101 = vadd.f32 0.0, %v6100
      %v6102 = vpop.f32.mrb[0].mxu0
      %v6103 = vpop.f32.mrb[0].mxu0
      %v6104 = vadd.f32 0.0, %v6103
      %v6105 = vpop.f32.mrb[0].mxu0
      %6106 = vmatprep.mubr.bf16.mxu0 0
      %6107 = vmatmul.mubr.bf16.gmra.mrb[0].mxu0 %v5983
      %v6108 = vpop.f32.mrb[0].mxu0
      %v6109 = vadd.f32 0.0, %v6108
      %v6110 = vpop.f32.mrb[0].mxu0
      %v6111 = vpop.f32.mrb[0].mxu0
      %v6112 = vadd.f32 0.0, %v6111
      %v6113 = vpop.f32.mrb[0].mxu0
      %6114 = vmatprep.mubr.bf16.mxu0 0
      %6115 = vmatmul.mubr.bf16.gmra.mrb[0].mxu0 %v5986
      %v6116 = vpop.f32.mrb[0].mxu0
      %v6117 = vadd.f32 0.0, %v6116
      %v6118 = vpop.f32.mrb[0].mxu0
      %v6119 = vpop.f32.mrb[0].mxu0
      %v6120 = vadd.f32 0.0, %v6119
      %v6121 = vpop.f32.mrb[0].mxu0
      %6122 = vmatprep.mubr.bf16.mxu0 0
      %6123 = vmatmul.mubr.bf16.gmra.mrb[0].mxu0 %v5989
      %v6124 = vpop.f32.mrb[0].mxu0
      %v6125 = vadd.f32 0.0, %v6124
      %v6126 = vpop.f32.mrb[0].mxu0
      %v6127 = vpop.f32.mrb[0].mxu0
      %v6128 = vadd.f32 0.0, %v6127
      %v6129 = vpop.f32.mrb[0].mxu0
      %6130 = vmatprep.mubr.bf16.mxu0 0
      %6131 = vmatmul.mubr.bf16.gmra.mrb[0].mxu0 %v5992
      %v6132 = vpop.f32.mrb[0].mxu0
      %v6133 = vadd.f32 0.0, %v6132
      %v6134 = vpop.f32.mrb[0].mxu0
      %v6135 = vpop.f32.mrb[0].mxu0
      %v6136 = vadd.f32 0.0, %v6135
      %v6137 = vpop.f32.mrb[0].mxu0
      %6138 = vmatprep.mubr.bf16.mxu0 0
      %6139 = vmatmul.mubr.bf16.gmra.mrb[0].mxu0 %v5995
      %v6140 = vpop.f32.mrb[0].mxu0
      %v6141 = vadd.f32 0.0, %v6140
      %v6142 = vpop.f32.mrb[0].mxu0
      %v6143 = vpop.f32.mrb[0].mxu0
      %v6144 = vadd.f32 0.0, %v6143
      %v6145 = vpop.f32.mrb[0].mxu0
      %6146 = vmatprep.mubr.bf16.mxu0 0
      %6147 = vmatmul.mubr.bf16.gmra.mrb[0].mxu0 %v5998
      %v6148 = vpop.f32.mrb[0].mxu0
      %v6149 = vadd.f32 0.0, %v6148
      %v6150 = vpop.f32.mrb[0].mxu0
      %v6151 = vpop.f32.mrb[0].mxu0
      %v6152 = vadd.f32 0.0, %v6151
      %v6153 = vpop.f32.mrb[0].mxu0
      %6154 = vmatprep.mubr.bf16.mxu0 0
      %6155 = vmatmul.mubr.bf16.gmra.mrb[0].mxu0 %v6001
      %v6156 = vpop.f32.mrb[0].mxu0
      %v6157 = vadd.f32 0.0, %v6156
      %v6158 = vpop.f32.mrb[0].mxu0
      %v6159 = vpop.f32.mrb[0].mxu0
      %v6160 = vadd.f32 0.0, %v6159
      %v6161 = vpop.f32.mrb[0].mxu0
      %6162 = vmatprep.mubr.bf16.mxu0 0
      %6163 = vmatmul.mubr.bf16.gmra.mrb[0].mxu0 %v6004
      %v6164 = vpop.f32.mrb[0].mxu0
      %v6165 = vadd.f32 0.0, %v6164
      %v6166 = vpop.f32.mrb[0].mxu0
      %v6167 = vpop.f32.mrb[0].mxu0
      %v6168 = vadd.f32 0.0, %v6167
      %v6169 = vpop.f32.mrb[0].mxu0
      %6170 = vmatprep.mubr.bf16.mxu0 0
      %6171 = vmatmul.mubr.bf16.gmra.mrb[0].mxu0 %v6007
      %v6172 = vpop.f32.mrb[0].mxu0
      %v6173 = vadd.f32 0.0, %v6172
      %v6174 = vpop.f32.mrb[0].mxu0
      %v6175 = vpop.f32.mrb[0].mxu0
      %v6176 = vadd.f32 0.0, %v6175
      %v6177 = vpop.f32.mrb[0].mxu0
      %6178 = vmatprep.mubr.bf16.mxu0 0
      %6179 = vmatmul.mubr.bf16.gmra.mrb[0].mxu0 %v6010
      %v6180 = vpop.f32.mrb[0].mxu0
      %v6181 = vadd.f32 0.0, %v6180
      %v6182 = vpop.f32.mrb[0].mxu0
      %v6183 = vpop.f32.mrb[0].mxu0
      %v6184 = vadd.f32 0.0, %v6183
      %v6185 = vpop.f32.mrb[0].mxu0
      %6186 = vmatprep.mubr.bf16.mxu0 0
      %6187 = vmatmul.mubr.bf16.gmra.mrb[0].mxu0 %v6013
      %v6188 = vpop.f32.mrb[0].mxu0
      %v6189 = vadd.f32 0.0, %v6188
      %v6190 = vpop.f32.mrb[0].mxu0
      %v6191 = vpop.f32.mrb[0].mxu0
      %v6192 = vadd.f32 0.0, %v6191
      %v6193 = vpop.f32.mrb[0].mxu0
      %6194 = vdwg.mxu0
      %v6195 = vadd.f32 %v5866, %v6053
      %v6196 = vadd.f32 %v5867, %v6056
      %v6197 = vadd.f32 %v5868, %v6061
      %v6198 = vadd.f32 %v5869, %v6064
      %v6199 = vadd.f32 %v5870, %v6069
      %v6200 = vadd.f32 %v5871, %v6072
      %v6201 = vadd.f32 %v5872, %v6077
      %v6202 = vadd.f32 %v5873, %v6080
      %v6203 = vadd.f32 %v5874, %v6085
      %v6204 = vadd.f32 %v5875, %v6088
      %v6205 = vadd.f32 %v5876, %v6093
      %v6206 = vadd.f32 %v5877, %v6096
      %v6207 = vadd.f32 %v5878, %v6101
      %v6208 = vadd.f32 %v5879, %v6104
      %v6209 = vadd.f32 %v5880, %v6109
      %v6210 = vadd.f32 %v5881, %v6112
      %v6211 = vadd.f32 %v5882, %v6117
      %v6212 = vadd.f32 %v5883, %v6120
      %v6213 = vadd.f32 %v5884, %v6125
      %v6214 = vadd.f32 %v5885, %v6128
      %v6215 = vadd.f32 %v5886, %v6133
      %v6216 = vadd.f32 %v5887, %v6136
      %v6217 = vadd.f32 %v5888, %v6141
      %v6218 = vadd.f32 %v5889, %v6144
      %v6219 = vadd.f32 %v5890, %v6149
      %v6220 = vadd.f32 %v5891, %v6152
      %v6221 = vadd.f32 %v5892, %v6157
      %v6222 = vadd.f32 %v5893, %v6160
      %v6223 = vadd.f32 %v5894, %v6165
      %v6224 = vadd.f32 %v5895, %v6168
      %v6225 = vadd.f32 %v5896, %v6173
      %v6226 = vadd.f32 %v5897, %v6176
      %v6227 = vadd.f32 %v5898, %v6181
      %v6228 = vadd.f32 %v5899, %v6184
      %v6229 = vadd.f32 %v5900, %v6189
      %v6230 = vadd.f32 %v5901, %v6192
      %v6231 = vld [vmem:[#allocation2 + $0x98] sm:$0x1f]
      %s6232 = scalar_lea.vmem %s5, 20
      %v6233 = vld [vmem:[%s6232] sm:$0xf]
      %vm6234 = vsmask.f32 3328
      %v6236 = vshrl.u32 %v5902, 16
      %v6238 = vrot.slane %v6236, 4
      %v6239 = vshll.u32 %v5902, 16
      %v6241 = vrot.slane %v6239, 5
      %v6242 = vor.u32 %v6238, %v6241
      %v6243 = vrot.slane %v5471, 4
      %v6244 = vrot.slane %v5474, 5
      %v6245 = vor.u32 %v6243, %v6244
      %v6246 = vsel %vm6234, %v6242, %v6245
      %v6247 = vrot.slane %v5480, 4
      %v6248 = vrot.slane %v5483, 5
      %v6249 = vor.u32 %v6247, %v6248
      %v6250 = vsel %vm6234, %v6245, %v6249
      %v6251 = vrot.slane %v5489, 4
      %v6252 = vrot.slane %v5492, 5
      %v6253 = vor.u32 %v6251, %v6252
      %v6254 = vsel %vm6234, %v6249, %v6253
      %v6255 = vrot.slane %v5498, 4
      %v6256 = vrot.slane %v5501, 5
      %v6257 = vor.u32 %v6255, %v6256
      %v6258 = vsel %vm6234, %v6253, %v6257
      %v6259 = vrot.slane %v5507, 4
      %v6260 = vrot.slane %v5510, 5
      %v6261 = vor.u32 %v6259, %v6260
      %v6262 = vsel %vm6234, %v6257, %v6261
      %v6263 = vrot.slane %v5516, 4
      %v6264 = vrot.slane %v5519, 5
      %v6265 = vor.u32 %v6263, %v6264
      %v6266 = vsel %vm6234, %v6261, %v6265
      %v6267 = vrot.slane %v5525, 4
      %v6268 = vrot.slane %v5528, 5
      %v6269 = vor.u32 %v6267, %v6268
      %v6270 = vsel %vm6234, %v6265, %v6269
      %v6271 = vrot.slane %v5534, 4
      %v6272 = vrot.slane %v5537, 5
      %v6273 = vor.u32 %v6271, %v6272
      %v6274 = vsel %vm6234, %v6269, %v6273
      %v6275 = vrot.slane %v5543, 4
      %v6276 = vrot.slane %v5546, 5
      %v6277 = vor.u32 %v6275, %v6276
      %v6278 = vsel %vm6234, %v6273, %v6277
      %v6279 = vrot.slane %v5552, 4
      %v6280 = vrot.slane %v5555, 5
      %v6281 = vor.u32 %v6279, %v6280
      %v6282 = vsel %vm6234, %v6277, %v6281
      %v6283 = vrot.slane %v5561, 4
      %v6284 = vrot.slane %v5564, 5
      %v6285 = vor.u32 %v6283, %v6284
      %v6286 = vsel %vm6234, %v6281, %v6285
      %v6287 = vrot.slane %v5570, 4
      %v6288 = vrot.slane %v5573, 5
      %v6289 = vor.u32 %v6287, %v6288
      %v6290 = vsel %vm6234, %v6285, %v6289
      %v6291 = vrot.slane %v5579, 4
      %v6292 = vrot.slane %v5582, 5
      %v6293 = vor.u32 %v6291, %v6292
      %v6294 = vsel %vm6234, %v6289, %v6293
      %v6295 = vrot.slane %v5588, 4
      %v6296 = vrot.slane %v5591, 5
      %v6297 = vor.u32 %v6295, %v6296
      %v6298 = vsel %vm6234, %v6293, %v6297
      %v6299 = vrot.slane %v5597, 4
      %v6300 = vrot.slane %v5600, 5
      %v6301 = vor.u32 %v6299, %v6300
      %v6302 = vsel %vm6234, %v6297, %v6301
      %v6303 = vrot.slane %v5606, 4
      %v6304 = vrot.slane %v5609, 5
      %v6305 = vor.u32 %v6303, %v6304
      %v6306 = vsel %vm6234, %v6301, %v6305
      %v6307 = vrot.slane %v5615, 4
      %v6308 = vrot.slane %v5618, 5
      %v6309 = vor.u32 %v6307, %v6308
      %v6310 = vsel %vm6234, %v6305, %v6309
      %v6312 = vshrl.u32 %v6231, 16
      %v6314 = vrot.slane %v6312, 4
      %v6315 = vshll.u32 %v6231, 16
      %v6317 = vrot.slane %v6315, 5
      %v6318 = vor.u32 %v6314, %v6317
      %v6319 = vsel %vm6234, %v6309, %v6318
      %v6321 = vsel %vm4246, %v6246, 0
      %v6324 = vsel %vm4246, %v6250, 0
      %v6327 = vsel %vm4246, %v6254, 0
      %v6330 = vsel %vm4246, %v6258, 0
      %v6333 = vsel %vm4246, %v6262, 0
      %v6336 = vsel %vm4246, %v6266, 0
      %v6339 = vsel %vm4246, %v6270, 0
      %v6342 = vsel %vm4246, %v6274, 0
      %v6345 = vsel %vm4246, %v6278, 0
      %v6348 = vsel %vm4246, %v6282, 0
      %v6351 = vsel %vm4246, %v6286, 0
      %v6354 = vsel %vm4246, %v6290, 0
      %v6357 = vsel %vm4246, %v6294, 0
      %v6360 = vsel %vm4246, %v6298, 0
      %v6363 = vsel %vm4246, %v6302, 0
      %v6366 = vsel %vm4246, %v6306, 0
      %v6369 = vsel %vm4246, %v6310, 0
      %v6372 = vsel %vm4246, %v6319, 0
      %v6375 = vsel %vm4497, %v6233, 0
      %6377 = vmatprep.subr.bf16.mxu0 0
      %6378 = vmatpush1.bf16.msra.mxu0 %v6375
      %6379 = vmatprep.subr.bf16.mxu0 0
      %6380 = vmatpush1.bf16.msra.mxu0 0
      %6381 = vmatprep.subr.bf16.mxu0 0
      %6382 = vmatpush1.bf16.msra.mxu0 0
      %6383 = vmatprep.subr.bf16.mxu0 0
      %6384 = vmatpush1.bf16.msra.mxu0 0
      %6385 = vmatprep.subr.bf16.mxu0 0
      %6386 = vmatpush1.bf16.msra.mxu0 0
      %6387 = vmatprep.subr.bf16.mxu0 0
      %6388 = vmatpush1.bf16.msra.mxu0 0
      %6389 = vmatprep.subr.bf16.mxu0 0
      %6390 = vmatpush1.bf16.msra.mxu0 0
      %6391 = vmatprep.subr.bf16.mxu0 0
      %6392 = vmatpush1.bf16.msra.mxu0 0
      %6393 = vmatprep.subr.bf16.mxu0 0
      %6394 = vmatpush1.bf16.msra.mxu0 0
      %6395 = vmatprep.subr.bf16.mxu0 0
      %6396 = vmatpush1.bf16.msra.mxu0 0
      %6397 = vmatprep.subr.bf16.mxu0 0
      %6398 = vmatpush1.bf16.msra.mxu0 0
      %6399 = vmatprep.subr.bf16.mxu0 0
      %6400 = vmatpush1.bf16.msra.mxu0 0
      %6401 = vmatprep.subr.bf16.mxu0 0
      %6402 = vmatpush1.bf16.msra.mxu0 0
      %6403 = vmatprep.subr.bf16.mxu0 0
      %6404 = vmatpush1.bf16.msra.mxu0 0
      %6405 = vmatprep.subr.bf16.mxu0 0
      %6406 = vmatpush1.bf16.msra.mxu0 0
      %6407 = vmatprep.subr.bf16.mxu0 0
      %6408 = vmatpush1.bf16.msra.mxu0 0
      %6409 = vmatprep.mubr.bf16.mxu0 0
      %6410 = vmatmul.mubr.bf16.gmra.mrb[0].mxu0 %v6321
      %v6411 = vpop.f32.mrb[0].mxu0
      %v6412 = vadd.f32 0.0, %v6411
      %v6413 = vpop.f32.mrb[0].mxu0
      %v6414 = vpop.f32.mrb[0].mxu0
      %v6415 = vadd.f32 0.0, %v6414
      %v6416 = vpop.f32.mrb[0].mxu0
      %6417 = vmatprep.mubr.bf16.mxu0 0
      %6418 = vmatmul.mubr.bf16.gmra.mrb[0].mxu0 %v6324
      %v6419 = vpop.f32.mrb[0].mxu0
      %v6420 = vadd.f32 0.0, %v6419
      %v6421 = vpop.f32.mrb[0].mxu0
      %v6422 = vpop.f32.mrb[0].mxu0
      %v6423 = vadd.f32 0.0, %v6422
      %v6424 = vpop.f32.mrb[0].mxu0
      %6425 = vmatprep.mubr.bf16.mxu0 0
      %6426 = vmatmul.mubr.bf16.gmra.mrb[0].mxu0 %v6327
      %v6427 = vpop.f32.mrb[0].mxu0
      %v6428 = vadd.f32 0.0, %v6427
      %v6429 = vpop.f32.mrb[0].mxu0
      %v6430 = vpop.f32.mrb[0].mxu0
      %v6431 = vadd.f32 0.0, %v6430
      %v6432 = vpop.f32.mrb[0].mxu0
      %6433 = vmatprep.mubr.bf16.mxu0 0
      %6434 = vmatmul.mubr.bf16.gmra.mrb[0].mxu0 %v6330
      %v6435 = vpop.f32.mrb[0].mxu0
      %v6436 = vadd.f32 0.0, %v6435
      %v6437 = vpop.f32.mrb[0].mxu0
      %v6438 = vpop.f32.mrb[0].mxu0
      %v6439 = vadd.f32 0.0, %v6438
      %v6440 = vpop.f32.mrb[0].mxu0
      %6441 = vmatprep.mubr.bf16.mxu0 0
      %6442 = vmatmul.mubr.bf16.gmra.mrb[0].mxu0 %v6333
      %v6443 = vpop.f32.mrb[0].mxu0
      %v6444 = vadd.f32 0.0, %v6443
      %v6445 = vpop.f32.mrb[0].mxu0
      %v6446 = vpop.f32.mrb[0].mxu0
      %v6447 = vadd.f32 0.0, %v6446
      %v6448 = vpop.f32.mrb[0].mxu0
      %6449 = vmatprep.mubr.bf16.mxu0 0
      %6450 = vmatmul.mubr.bf16.gmra.mrb[0].mxu0 %v6336
      %v6451 = vpop.f32.mrb[0].mxu0
      %v6452 = vadd.f32 0.0, %v6451
      %v6453 = vpop.f32.mrb[0].mxu0
      %v6454 = vpop.f32.mrb[0].mxu0
      %v6455 = vadd.f32 0.0, %v6454
      %v6456 = vpop.f32.mrb[0].mxu0
      %6457 = vmatprep.mubr.bf16.mxu0 0
      %6458 = vmatmul.mubr.bf16.gmra.mrb[0].mxu0 %v6339
      %v6459 = vpop.f32.mrb[0].mxu0
      %v6460 = vadd.f32 0.0, %v6459
      %v6461 = vpop.f32.mrb[0].mxu0
      %v6462 = vpop.f32.mrb[0].mxu0
      %v6463 = vadd.f32 0.0, %v6462
      %v6464 = vpop.f32.mrb[0].mxu0
      %6465 = vmatprep.mubr.bf16.mxu0 0
      %6466 = vmatmul.mubr.bf16.gmra.mrb[0].mxu0 %v6342
      %v6467 = vpop.f32.mrb[0].mxu0
      %v6468 = vadd.f32 0.0, %v6467
      %v6469 = vpop.f32.mrb[0].mxu0
      %v6470 = vpop.f32.mrb[0].mxu0
      %v6471 = vadd.f32 0.0, %v6470
      %v6472 = vpop.f32.mrb[0].mxu0
      %6473 = vmatprep.mubr.bf16.mxu0 0
      %6474 = vmatmul.mubr.bf16.gmra.mrb[0].mxu0 %v6345
      %v6475 = vpop.f32.mrb[0].mxu0
      %v6476 = vadd.f32 0.0, %v6475
      %v6477 = vpop.f32.mrb[0].mxu0
      %v6478 = vpop.f32.mrb[0].mxu0
      %v6479 = vadd.f32 0.0, %v6478
      %v6480 = vpop.f32.mrb[0].mxu0
      %6481 = vmatprep.mubr.bf16.mxu0 0
      %6482 = vmatmul.mubr.bf16.gmra.mrb[0].mxu0 %v6348
      %v6483 = vpop.f32.mrb[0].mxu0
      %v6484 = vadd.f32 0.0, %v6483
      %v6485 = vpop.f32.mrb[0].mxu0
      %v6486 = vpop.f32.mrb[0].mxu0
      %v6487 = vadd.f32 0.0, %v6486
      %v6488 = vpop.f32.mrb[0].mxu0
      %6489 = vmatprep.mubr.bf16.mxu0 0
      %6490 = vmatmul.mubr.bf16.gmra.mrb[0].mxu0 %v6351
      %v6491 = vpop.f32.mrb[0].mxu0
      %v6492 = vadd.f32 0.0, %v6491
      %v6493 = vpop.f32.mrb[0].mxu0
      %v6494 = vpop.f32.mrb[0].mxu0
      %v6495 = vadd.f32 0.0, %v6494
      %v6496 = vpop.f32.mrb[0].mxu0
      %6497 = vmatprep.mubr.bf16.mxu0 0
      %6498 = vmatmul.mubr.bf16.gmra.mrb[0].mxu0 %v6354
      %v6499 = vpop.f32.mrb[0].mxu0
      %v6500 = vadd.f32 0.0, %v6499
      %v6501 = vpop.f32.mrb[0].mxu0
      %v6502 = vpop.f32.mrb[0].mxu0
      %v6503 = vadd.f32 0.0, %v6502
      %v6504 = vpop.f32.mrb[0].mxu0
      %6505 = vmatprep.mubr.bf16.mxu0 0
      %6506 = vmatmul.mubr.bf16.gmra.mrb[0].mxu0 %v6357
      %v6507 = vpop.f32.mrb[0].mxu0
      %v6508 = vadd.f32 0.0, %v6507
      %v6509 = vpop.f32.mrb[0].mxu0
      %v6510 = vpop.f32.mrb[0].mxu0
      %v6511 = vadd.f32 0.0, %v6510
      %v6512 = vpop.f32.mrb[0].mxu0
      %6513 = vmatprep.mubr.bf16.mxu0 0
      %6514 = vmatmul.mubr.bf16.gmra.mrb[0].mxu0 %v6360
      %v6515 = vpop.f32.mrb[0].mxu0
      %v6516 = vadd.f32 0.0, %v6515
      %v6517 = vpop.f32.mrb[0].mxu0
      %v6518 = vpop.f32.mrb[0].mxu0
      %v6519 = vadd.f32 0.0, %v6518
      %v6520 = vpop.f32.mrb[0].mxu0
      %6521 = vmatprep.mubr.bf16.mxu0 0
      %6522 = vmatmul.mubr.bf16.gmra.mrb[0].mxu0 %v6363
      %v6523 = vpop.f32.mrb[0].mxu0
      %v6524 = vadd.f32 0.0, %v6523
      %v6525 = vpop.f32.mrb[0].mxu0
      %v6526 = vpop.f32.mrb[0].mxu0
      %v6527 = vadd.f32 0.0, %v6526
      %v6528 = vpop.f32.mrb[0].mxu0
      %6529 = vmatprep.mubr.bf16.mxu0 0
      %6530 = vmatmul.mubr.bf16.gmra.mrb[0].mxu0 %v6366
      %v6531 = vpop.f32.mrb[0].mxu0
      %v6532 = vadd.f32 0.0, %v6531
      %v6533 = vpop.f32.mrb[0].mxu0
      %v6534 = vpop.f32.mrb[0].mxu0
      %v6535 = vadd.f32 0.0, %v6534
      %v6536 = vpop.f32.mrb[0].mxu0
      %6537 = vmatprep.mubr.bf16.mxu0 0
      %6538 = vmatmul.mubr.bf16.gmra.mrb[0].mxu0 %v6369
      %v6539 = vpop.f32.mrb[0].mxu0
      %v6540 = vadd.f32 0.0, %v6539
      %v6541 = vpop.f32.mrb[0].mxu0
      %v6542 = vpop.f32.mrb[0].mxu0
      %v6543 = vadd.f32 0.0, %v6542
      %v6544 = vpop.f32.mrb[0].mxu0
      %6545 = vmatprep.mubr.bf16.mxu0 0
      %6546 = vmatmul.mubr.bf16.gmra.mrb[0].mxu0 %v6372
      %v6547 = vpop.f32.mrb[0].mxu0
      %v6548 = vadd.f32 0.0, %v6547
      %v6549 = vpop.f32.mrb[0].mxu0
      %v6550 = vpop.f32.mrb[0].mxu0
      %v6551 = vadd.f32 0.0, %v6550
      %v6552 = vpop.f32.mrb[0].mxu0
      %6553 = vdwg.mxu0
      %v6554 = vadd.f32 %v6195, %v6412
      %v6555 = vadd.f32 %v6196, %v6415
      %v6556 = vadd.f32 %v6197, %v6420
      %v6557 = vadd.f32 %v6198, %v6423
      %v6558 = vadd.f32 %v6199, %v6428
      %v6559 = vadd.f32 %v6200, %v6431
      %v6560 = vadd.f32 %v6201, %v6436
      %v6561 = vadd.f32 %v6202, %v6439
      %v6562 = vadd.f32 %v6203, %v6444
      %v6563 = vadd.f32 %v6204, %v6447
      %v6564 = vadd.f32 %v6205, %v6452
      %v6565 = vadd.f32 %v6206, %v6455
      %v6566 = vadd.f32 %v6207, %v6460
      %v6567 = vadd.f32 %v6208, %v6463
      %v6568 = vadd.f32 %v6209, %v6468
      %v6569 = vadd.f32 %v6210, %v6471
      %v6570 = vadd.f32 %v6211, %v6476
      %v6571 = vadd.f32 %v6212, %v6479
      %v6572 = vadd.f32 %v6213, %v6484
      %v6573 = vadd.f32 %v6214, %v6487
      %v6574 = vadd.f32 %v6215, %v6492
      %v6575 = vadd.f32 %v6216, %v6495
      %v6576 = vadd.f32 %v6217, %v6500
      %v6577 = vadd.f32 %v6218, %v6503
      %v6578 = vadd.f32 %v6219, %v6508
      %v6579 = vadd.f32 %v6220, %v6511
      %v6580 = vadd.f32 %v6221, %v6516
      %v6581 = vadd.f32 %v6222, %v6519
      %v6582 = vadd.f32 %v6223, %v6524
      %v6583 = vadd.f32 %v6224, %v6527
      %v6584 = vadd.f32 %v6225, %v6532
      %v6585 = vadd.f32 %v6226, %v6535
      %v6586 = vadd.f32 %v6227, %v6540
      %v6587 = vadd.f32 %v6228, %v6543
      %v6588 = vadd.f32 %v6229, %v6548
      %v6589 = vadd.f32 %v6230, %v6551
      %v6590 = vld [vmem:[#allocation2 + $0x10] sm:$0xf0]
      %v6591 = vld [vmem:[#allocation2 + $0x18] sm:$0xff]
      %v6592 = vld [vmem:[#allocation2 + $0x20] sm:$0xff]
      %v6593 = vld [vmem:[#allocation2 + $0x28] sm:$0xff]
      %v6594 = vld [vmem:[#allocation2 + $0x30] sm:$0xff]
      %v6595 = vld [vmem:[#allocation2 + $0x38] sm:$0xff]
      %v6596 = vld [vmem:[#allocation2 + $0x40] sm:$0xff]
      %v6597 = vld [vmem:[#allocation2 + $0x48] sm:$0xff]
      %v6598 = vld [vmem:[#allocation2 + $0x50] sm:$0xff]
      %v6599 = vld [vmem:[#allocation2 + $0x58] sm:$0xff]
      %v6600 = vld [vmem:[#allocation2 + $0x60] sm:$0xff]
      %v6601 = vld [vmem:[#allocation2 + $0x68] sm:$0xff]
      %v6602 = vld [vmem:[#allocation2 + $0x70] sm:$0xff]
      %v6603 = vld [vmem:[#allocation2 + $0x78] sm:$0xff]
      %v6604 = vld [vmem:[#allocation2 + $0x80] sm:$0xff]
      %v6605 = vld [vmem:[#allocation2 + $0x88] sm:$0xff]
      %v6606 = vld [vmem:[#allocation2 + $0x90] sm:$0xff]
      %v6607 = vld [vmem:[#allocation2 + $0x98] sm:$0xff]
      %v6608 = vld [vmem:[#allocation2 + $0xa0] sm:$0x1f]
      %s6609 = scalar_lea.vmem %s5, 24
      %v6610 = vld [vmem:[%s6609] sm:$0xf]
      %v6612 = vshrl.u32 %v6590, 16
      %v6614 = vrot.slane %v6612, 4
      %v6615 = vshll.u32 %v6590, 16
      %v6617 = vrot.slane %v6615, 5
      %v6618 = vor.u32 %v6614, %v6617
      %v6620 = vshrl.u32 %v6591, 16
      %v6622 = vrot.slane %v6620, 4
      %v6623 = vshll.u32 %v6591, 16
      %v6625 = vrot.slane %v6623, 5
      %v6626 = vor.u32 %v6622, %v6625
      %v6627 = vsel %vm6234, %v6618, %v6626
      %v6629 = vshrl.u32 %v6592, 16
      %v6631 = vrot.slane %v6629, 4
      %v6632 = vshll.u32 %v6592, 16
      %v6634 = vrot.slane %v6632, 5
      %v6635 = vor.u32 %v6631, %v6634
      %v6636 = vsel %vm6234, %v6626, %v6635
      %v6638 = vshrl.u32 %v6593, 16
      %v6640 = vrot.slane %v6638, 4
      %v6641 = vshll.u32 %v6593, 16
      %v6643 = vrot.slane %v6641, 5
      %v6644 = vor.u32 %v6640, %v6643
      %v6645 = vsel %vm6234, %v6635, %v6644
      %v6647 = vshrl.u32 %v6594, 16
      %v6649 = vrot.slane %v6647, 4
      %v6650 = vshll.u32 %v6594, 16
      %v6652 = vrot.slane %v6650, 5
      %v6653 = vor.u32 %v6649, %v6652
      %v6654 = vsel %vm6234, %v6644, %v6653
      %v6656 = vshrl.u32 %v6595, 16
      %v6658 = vrot.slane %v6656, 4
      %v6659 = vshll.u32 %v6595, 16
      %v6661 = vrot.slane %v6659, 5
      %v6662 = vor.u32 %v6658, %v6661
      %v6663 = vsel %vm6234, %v6653, %v6662
      %v6665 = vshrl.u32 %v6596, 16
      %v6667 = vrot.slane %v6665, 4
      %v6668 = vshll.u32 %v6596, 16
      %v6670 = vrot.slane %v6668, 5
      %v6671 = vor.u32 %v6667, %v6670
      %v6672 = vsel %vm6234, %v6662, %v6671
      %v6674 = vshrl.u32 %v6597, 16
      %v6676 = vrot.slane %v6674, 4
      %v6677 = vshll.u32 %v6597, 16
      %v6679 = vrot.slane %v6677, 5
      %v6680 = vor.u32 %v6676, %v6679
      %v6681 = vsel %vm6234, %v6671, %v6680
      %v6683 = vshrl.u32 %v6598, 16
      %v6685 = vrot.slane %v6683, 4
      %v6686 = vshll.u32 %v6598, 16
      %v6688 = vrot.slane %v6686, 5
      %v6689 = vor.u32 %v6685, %v6688
      %v6690 = vsel %vm6234, %v6680, %v6689
      %v6692 = vshrl.u32 %v6599, 16
      %v6694 = vrot.slane %v6692, 4
      %v6695 = vshll.u32 %v6599, 16
      %v6697 = vrot.slane %v6695, 5
      %v6698 = vor.u32 %v6694, %v6697
      %v6699 = vsel %vm6234, %v6689, %v6698
      %v6701 = vshrl.u32 %v6600, 16
      %v6703 = vrot.slane %v6701, 4
      %v6704 = vshll.u32 %v6600, 16
      %v6706 = vrot.slane %v6704, 5
      %v6707 = vor.u32 %v6703, %v6706
      %v6708 = vsel %vm6234, %v6698, %v6707
      %v6710 = vshrl.u32 %v6601, 16
      %v6712 = vrot.slane %v6710, 4
      %v6713 = vshll.u32 %v6601, 16
      %v6715 = vrot.slane %v6713, 5
      %v6716 = vor.u32 %v6712, %v6715
      %v6717 = vsel %vm6234, %v6707, %v6716
      %v6719 = vshrl.u32 %v6602, 16
      %v6721 = vrot.slane %v6719, 4
      %v6722 = vshll.u32 %v6602, 16
      %v6724 = vrot.slane %v6722, 5
      %v6725 = vor.u32 %v6721, %v6724
      %v6726 = vsel %vm6234, %v6716, %v6725
      %v6728 = vshrl.u32 %v6603, 16
      %v6730 = vrot.slane %v6728, 4
      %v6731 = vshll.u32 %v6603, 16
      %v6733 = vrot.slane %v6731, 5
      %v6734 = vor.u32 %v6730, %v6733
      %v6735 = vsel %vm6234, %v6725, %v6734
      %v6737 = vshrl.u32 %v6604, 16
      %v6739 = vrot.slane %v6737, 4
      %v6740 = vshll.u32 %v6604, 16
      %v6742 = vrot.slane %v6740, 5
      %v6743 = vor.u32 %v6739, %v6742
      %v6744 = vsel %vm6234, %v6734, %v6743
      %v6746 = vshrl.u32 %v6605, 16
      %v6748 = vrot.slane %v6746, 4
      %v6749 = vshll.u32 %v6605, 16
      %v6751 = vrot.slane %v6749, 5
      %v6752 = vor.u32 %v6748, %v6751
      %v6753 = vsel %vm6234, %v6743, %v6752
      %v6755 = vshrl.u32 %v6606, 16
      %v6757 = vrot.slane %v6755, 4
      %v6758 = vshll.u32 %v6606, 16
      %v6760 = vrot.slane %v6758, 5
      %v6761 = vor.u32 %v6757, %v6760
      %v6762 = vsel %vm6234, %v6752, %v6761
      %v6764 = vshrl.u32 %v6607, 16
      %v6766 = vrot.slane %v6764, 4
      %v6767 = vshll.u32 %v6607, 16
      %v6769 = vrot.slane %v6767, 5
      %v6770 = vor.u32 %v6766, %v6769
      %v6771 = vsel %vm6234, %v6761, %v6770
      %v6773 = vshrl.u32 %v6608, 16
      %v6775 = vrot.slane %v6773, 4
      %v6776 = vshll.u32 %v6608, 16
      %v6778 = vrot.slane %v6776, 5
      %v6779 = vor.u32 %v6775, %v6778
      %v6780 = vsel %vm6234, %v6770, %v6779
      %v6782 = vsel %vm4246, %v6627, 0
      %v6785 = vsel %vm4246, %v6636, 0
      %v6788 = vsel %vm4246, %v6645, 0
      %v6791 = vsel %vm4246, %v6654, 0
      %v6794 = vsel %vm4246, %v6663, 0
      %v6797 = vsel %vm4246, %v6672, 0
      %v6800 = vsel %vm4246, %v6681, 0
      %v6803 = vsel %vm4246, %v6690, 0
      %v6806 = vsel %vm4246, %v6699, 0
      %v6809 = vsel %vm4246, %v6708, 0
      %v6812 = vsel %vm4246, %v6717, 0
      %v6815 = vsel %vm4246, %v6726, 0
      %v6818 = vsel %vm4246, %v6735, 0
      %v6821 = vsel %vm4246, %v6744, 0
      %v6824 = vsel %vm4246, %v6753, 0
      %v6827 = vsel %vm4246, %v6762, 0
      %v6830 = vsel %vm4246, %v6771, 0
      %v6833 = vsel %vm4246, %v6780, 0
      %v6836 = vsel %vm4497, %v6610, 0
      %6838 = vmatprep.subr.bf16.mxu0 0
      %6839 = vmatpush1.bf16.msra.mxu0 %v6836
      %6840 = vmatprep.subr.bf16.mxu0 0
      %6841 = vmatpush1.bf16.msra.mxu0 0
      %6842 = vmatprep.subr.bf16.mxu0 0
      %6843 = vmatpush1.bf16.msra.mxu0 0
      %6844 = vmatprep.subr.bf16.mxu0 0
      %6845 = vmatpush1.bf16.msra.mxu0 0
      %6846 = vmatprep.subr.bf16.mxu0 0
      %6847 = vmatpush1.bf16.msra.mxu0 0
      %6848 = vmatprep.subr.bf16.mxu0 0
      %6849 = vmatpush1.bf16.msra.mxu0 0
      %6850 = vmatprep.subr.bf16.mxu0 0
      %6851 = vmatpush1.bf16.msra.mxu0 0
      %6852 = vmatprep.subr.bf16.mxu0 0
      %6853 = vmatpush1.bf16.msra.mxu0 0
      %6854 = vmatprep.subr.bf16.mxu0 0
      %6855 = vmatpush1.bf16.msra.mxu0 0
      %6856 = vmatprep.subr.bf16.mxu0 0
      %6857 = vmatpush1.bf16.msra.mxu0 0
      %6858 = vmatprep.subr.bf16.mxu0 0
      %6859 = vmatpush1.bf16.msra.mxu0 0
      %6860 = vmatprep.subr.bf16.mxu0 0
      %6861 = vmatpush1.bf16.msra.mxu0 0
      %6862 = vmatprep.subr.bf16.mxu0 0
      %6863 = vmatpush1.bf16.msra.mxu0 0
      %6864 = vmatprep.subr.bf16.mxu0 0
      %6865 = vmatpush1.bf16.msra.mxu0 0
      %6866 = vmatprep.subr.bf16.mxu0 0
      %6867 = vmatpush1.bf16.msra.mxu0 0
      %6868 = vmatprep.subr.bf16.mxu0 0
      %6869 = vmatpush1.bf16.msra.mxu0 0
      %6870 = vmatprep.mubr.bf16.mxu0 0
      %6871 = vmatmul.mubr.bf16.gmra.mrb[0].mxu0 %v6782
      %v6872 = vpop.f32.mrb[0].mxu0
      %v6873 = vadd.f32 0.0, %v6872
      %v6874 = vpop.f32.mrb[0].mxu0
      %v6875 = vpop.f32.mrb[0].mxu0
      %v6876 = vadd.f32 0.0, %v6875
      %v6877 = vpop.f32.mrb[0].mxu0
      %6878 = vmatprep.mubr.bf16.mxu0 0
      %6879 = vmatmul.mubr.bf16.gmra.mrb[0].mxu0 %v6785
      %v6880 = vpop.f32.mrb[0].mxu0
      %v6881 = vadd.f32 0.0, %v6880
      %v6882 = vpop.f32.mrb[0].mxu0
      %v6883 = vpop.f32.mrb[0].mxu0
      %v6884 = vadd.f32 0.0, %v6883
      %v6885 = vpop.f32.mrb[0].mxu0
      %6886 = vmatprep.mubr.bf16.mxu0 0
      %6887 = vmatmul.mubr.bf16.gmra.mrb[0].mxu0 %v6788
      %v6888 = vpop.f32.mrb[0].mxu0
      %v6889 = vadd.f32 0.0, %v6888
      %v6890 = vpop.f32.mrb[0].mxu0
      %v6891 = vpop.f32.mrb[0].mxu0
      %v6892 = vadd.f32 0.0, %v6891
      %v6893 = vpop.f32.mrb[0].mxu0
      %6894 = vmatprep.mubr.bf16.mxu0 0
      %6895 = vmatmul.mubr.bf16.gmra.mrb[0].mxu0 %v6791
      %v6896 = vpop.f32.mrb[0].mxu0
      %v6897 = vadd.f32 0.0, %v6896
      %v6898 = vpop.f32.mrb[0].mxu0
      %v6899 = vpop.f32.mrb[0].mxu0
      %v6900 = vadd.f32 0.0, %v6899
      %v6901 = vpop.f32.mrb[0].mxu0
      %6902 = vmatprep.mubr.bf16.mxu0 0
      %6903 = vmatmul.mubr.bf16.gmra.mrb[0].mxu0 %v6794
      %v6904 = vpop.f32.mrb[0].mxu0
      %v6905 = vadd.f32 0.0, %v6904
      %v6906 = vpop.f32.mrb[0].mxu0
      %v6907 = vpop.f32.mrb[0].mxu0
      %v6908 = vadd.f32 0.0, %v6907
      %v6909 = vpop.f32.mrb[0].mxu0
      %6910 = vmatprep.mubr.bf16.mxu0 0
      %6911 = vmatmul.mubr.bf16.gmra.mrb[0].mxu0 %v6797
      %v6912 = vpop.f32.mrb[0].mxu0
      %v6913 = vadd.f32 0.0, %v6912
      %v6914 = vpop.f32.mrb[0].mxu0
      %v6915 = vpop.f32.mrb[0].mxu0
      %v6916 = vadd.f32 0.0, %v6915
      %v6917 = vpop.f32.mrb[0].mxu0
      %6918 = vmatprep.mubr.bf16.mxu0 0
      %6919 = vmatmul.mubr.bf16.gmra.mrb[0].mxu0 %v6800
      %v6920 = vpop.f32.mrb[0].mxu0
      %v6921 = vadd.f32 0.0, %v6920
      %v6922 = vpop.f32.mrb[0].mxu0
      %v6923 = vpop.f32.mrb[0].mxu0
      %v6924 = vadd.f32 0.0, %v6923
      %v6925 = vpop.f32.mrb[0].mxu0
      %6926 = vmatprep.mubr.bf16.mxu0 0
      %6927 = vmatmul.mubr.bf16.gmra.mrb[0].mxu0 %v6803
      %v6928 = vpop.f32.mrb[0].mxu0
      %v6929 = vadd.f32 0.0, %v6928
      %v6930 = vpop.f32.mrb[0].mxu0
      %v6931 = vpop.f32.mrb[0].mxu0
      %v6932 = vadd.f32 0.0, %v6931
      %v6933 = vpop.f32.mrb[0].mxu0
      %6934 = vmatprep.mubr.bf16.mxu0 0
      %6935 = vmatmul.mubr.bf16.gmra.mrb[0].mxu0 %v6806
      %v6936 = vpop.f32.mrb[0].mxu0
      %v6937 = vadd.f32 0.0, %v6936
      %v6938 = vpop.f32.mrb[0].mxu0
      %v6939 = vpop.f32.mrb[0].mxu0
      %v6940 = vadd.f32 0.0, %v6939
      %v6941 = vpop.f32.mrb[0].mxu0
      %6942 = vmatprep.mubr.bf16.mxu0 0
      %6943 = vmatmul.mubr.bf16.gmra.mrb[0].mxu0 %v6809
      %v6944 = vpop.f32.mrb[0].mxu0
      %v6945 = vadd.f32 0.0, %v6944
      %v6946 = vpop.f32.mrb[0].mxu0
      %v6947 = vpop.f32.mrb[0].mxu0
      %v6948 = vadd.f32 0.0, %v6947
      %v6949 = vpop.f32.mrb[0].mxu0
      %6950 = vmatprep.mubr.bf16.mxu0 0
      %6951 = vmatmul.mubr.bf16.gmra.mrb[0].mxu0 %v6812
      %v6952 = vpop.f32.mrb[0].mxu0
      %v6953 = vadd.f32 0.0, %v6952
      %v6954 = vpop.f32.mrb[0].mxu0
      %v6955 = vpop.f32.mrb[0].mxu0
      %v6956 = vadd.f32 0.0, %v6955
      %v6957 = vpop.f32.mrb[0].mxu0
      %6958 = vmatprep.mubr.bf16.mxu0 0
      %6959 = vmatmul.mubr.bf16.gmra.mrb[0].mxu0 %v6815
      %v6960 = vpop.f32.mrb[0].mxu0
      %v6961 = vadd.f32 0.0, %v6960
      %v6962 = vpop.f32.mrb[0].mxu0
      %v6963 = vpop.f32.mrb[0].mxu0
      %v6964 = vadd.f32 0.0, %v6963
      %v6965 = vpop.f32.mrb[0].mxu0
      %6966 = vmatprep.mubr.bf16.mxu0 0
      %6967 = vmatmul.mubr.bf16.gmra.mrb[0].mxu0 %v6818
      %v6968 = vpop.f32.mrb[0].mxu0
      %v6969 = vadd.f32 0.0, %v6968
      %v6970 = vpop.f32.mrb[0].mxu0
      %v6971 = vpop.f32.mrb[0].mxu0
      %v6972 = vadd.f32 0.0, %v6971
      %v6973 = vpop.f32.mrb[0].mxu0
      %6974 = vmatprep.mubr.bf16.mxu0 0
      %6975 = vmatmul.mubr.bf16.gmra.mrb[0].mxu0 %v6821
      %v6976 = vpop.f32.mrb[0].mxu0
      %v6977 = vadd.f32 0.0, %v6976
      %v6978 = vpop.f32.mrb[0].mxu0
      %v6979 = vpop.f32.mrb[0].mxu0
      %v6980 = vadd.f32 0.0, %v6979
      %v6981 = vpop.f32.mrb[0].mxu0
      %6982 = vmatprep.mubr.bf16.mxu0 0
      %6983 = vmatmul.mubr.bf16.gmra.mrb[0].mxu0 %v6824
      %v6984 = vpop.f32.mrb[0].mxu0
      %v6985 = vadd.f32 0.0, %v6984
      %v6986 = vpop.f32.mrb[0].mxu0
      %v6987 = vpop.f32.mrb[0].mxu0
      %v6988 = vadd.f32 0.0, %v6987
      %v6989 = vpop.f32.mrb[0].mxu0
      %6990 = vmatprep.mubr.bf16.mxu0 0
      %6991 = vmatmul.mubr.bf16.gmra.mrb[0].mxu0 %v6827
      %v6992 = vpop.f32.mrb[0].mxu0
      %v6993 = vadd.f32 0.0, %v6992
      %v6994 = vpop.f32.mrb[0].mxu0
      %v6995 = vpop.f32.mrb[0].mxu0
      %v6996 = vadd.f32 0.0, %v6995
      %v6997 = vpop.f32.mrb[0].mxu0
      %6998 = vmatprep.mubr.bf16.mxu0 0
      %6999 = vmatmul.mubr.bf16.gmra.mrb[0].mxu0 %v6830
      %v7000 = vpop.f32.mrb[0].mxu0
      %v7001 = vadd.f32 0.0, %v7000
      %v7002 = vpop.f32.mrb[0].mxu0
      %v7003 = vpop.f32.mrb[0].mxu0
      %v7004 = vadd.f32 0.0, %v7003
      %v7005 = vpop.f32.mrb[0].mxu0
      %7006 = vmatprep.mubr.bf16.mxu0 0
      %7007 = vmatmul.mubr.bf16.gmra.mrb[0].mxu0 %v6833
      %v7008 = vpop.f32.mrb[0].mxu0
      %v7009 = vadd.f32 0.0, %v7008
      %v7010 = vpop.f32.mrb[0].mxu0
      %v7011 = vpop.f32.mrb[0].mxu0
      %v7012 = vadd.f32 0.0, %v7011
      %v7013 = vpop.f32.mrb[0].mxu0
      %7014 = vdwg.mxu0
      %v7015 = vadd.f32 %v6554, %v6873
      %v7016 = vadd.f32 %v6555, %v6876
      %v7017 = vadd.f32 %v6556, %v6881
      %v7018 = vadd.f32 %v6557, %v6884
      %v7019 = vadd.f32 %v6558, %v6889
      %v7020 = vadd.f32 %v6559, %v6892
      %v7021 = vadd.f32 %v6560, %v6897
      %v7022 = vadd.f32 %v6561, %v6900
      %v7023 = vadd.f32 %v6562, %v6905
      %v7024 = vadd.f32 %v6563, %v6908
      %v7025 = vadd.f32 %v6564, %v6913
      %v7026 = vadd.f32 %v6565, %v6916
      %v7027 = vadd.f32 %v6566, %v6921
      %v7028 = vadd.f32 %v6567, %v6924
      %v7029 = vadd.f32 %v6568, %v6929
      %v7030 = vadd.f32 %v6569, %v6932
      %v7031 = vadd.f32 %v6570, %v6937
      %v7032 = vadd.f32 %v6571, %v6940
      %v7033 = vadd.f32 %v6572, %v6945
      %v7034 = vadd.f32 %v6573, %v6948
      %v7035 = vadd.f32 %v6574, %v6953
      %v7036 = vadd.f32 %v6575, %v6956
      %v7037 = vadd.f32 %v6576, %v6961
      %v7038 = vadd.f32 %v6577, %v6964
      %v7039 = vadd.f32 %v6578, %v6969
      %v7040 = vadd.f32 %v6579, %v6972
      %v7041 = vadd.f32 %v6580, %v6977
      %v7042 = vadd.f32 %v6581, %v6980
      %v7043 = vadd.f32 %v6582, %v6985
      %v7044 = vadd.f32 %v6583, %v6988
      %v7045 = vadd.f32 %v6584, %v6993
      %v7046 = vadd.f32 %v6585, %v6996
      %v7047 = vadd.f32 %v6586, %v7001
      %v7048 = vadd.f32 %v6587, %v7004
      %v7049 = vadd.f32 %v6588, %v7009
      %v7050 = vadd.f32 %v6589, %v7012
      %v7051 = vld [vmem:[#allocation2 + $0x10] sm:$0xe0]
      %s7052 = scalar_lea.vmem %s5, 28
      %v7053 = vld [vmem:[%s7052] sm:$0xf]
      %vm7073 = vcmask 1042432
      %v7074 = vrot.slane %v7051, 5
      %v7075 = vrot.slane %v6591, 5
      %v7076 = vsel %vm7073, %v7074, %v7075
      %v7077 = vrot.slane %v6592, 5
      %v7078 = vsel %vm7073, %v7075, %v7077
      %v7079 = vrot.slane %v6593, 5
      %v7080 = vsel %vm7073, %v7077, %v7079
      %v7081 = vrot.slane %v6594, 5
      %v7082 = vsel %vm7073, %v7079, %v7081
      %v7083 = vrot.slane %v6595, 5
      %v7084 = vsel %vm7073, %v7081, %v7083
      %v7085 = vrot.slane %v6596, 5
      %v7086 = vsel %vm7073, %v7083, %v7085
      %v7087 = vrot.slane %v6597, 5
      %v7088 = vsel %vm7073, %v7085, %v7087
      %v7089 = vrot.slane %v6598, 5
      %v7090 = vsel %vm7073, %v7087, %v7089
      %v7091 = vrot.slane %v6599, 5
      %v7092 = vsel %vm7073, %v7089, %v7091
      %v7093 = vrot.slane %v6600, 5
      %v7094 = vsel %vm7073, %v7091, %v7093
      %v7095 = vrot.slane %v6601, 5
      %v7096 = vsel %vm7073, %v7093, %v7095
      %v7097 = vrot.slane %v6602, 5
      %v7098 = vsel %vm7073, %v7095, %v7097
      %v7099 = vrot.slane %v6603, 5
      %v7100 = vsel %vm7073, %v7097, %v7099
      %v7101 = vrot.slane %v6604, 5
      %v7102 = vsel %vm7073, %v7099, %v7101
      %v7103 = vrot.slane %v6605, 5
      %v7104 = vsel %vm7073, %v7101, %v7103
      %v7105 = vrot.slane %v6606, 5
      %v7106 = vsel %vm7073, %v7103, %v7105
      %v7107 = vrot.slane %v6607, 5
      %v7108 = vsel %vm7073, %v7105, %v7107
      %v7109 = vrot.slane %v6608, 5
      %v7110 = vsel %vm7073, %v7107, %v7109
      %v7112 = vsel %vm4246, %v7076, 0
      %v7115 = vsel %vm4246, %v7078, 0
      %v7118 = vsel %vm4246, %v7080, 0
      %v7121 = vsel %vm4246, %v7082, 0
      %v7124 = vsel %vm4246, %v7084, 0
      %v7127 = vsel %vm4246, %v7086, 0
      %v7130 = vsel %vm4246, %v7088, 0
      %v7133 = vsel %vm4246, %v7090, 0
      %v7136 = vsel %vm4246, %v7092, 0
      %v7139 = vsel %vm4246, %v7094, 0
      %v7142 = vsel %vm4246, %v7096, 0
      %v7145 = vsel %vm4246, %v7098, 0
      %v7148 = vsel %vm4246, %v7100, 0
      %v7151 = vsel %vm4246, %v7102, 0
      %v7154 = vsel %vm4246, %v7104, 0
      %v7157 = vsel %vm4246, %v7106, 0
      %v7160 = vsel %vm4246, %v7108, 0
      %v7163 = vsel %vm4246, %v7110, 0
      %v7166 = vsel %vm4497, %v7053, 0
      %7168 = vmatprep.subr.bf16.mxu0 0
      %7169 = vmatpush1.bf16.msra.mxu0 %v7166
      %7170 = vmatprep.subr.bf16.mxu0 0
      %7171 = vmatpush1.bf16.msra.mxu0 0
      %7172 = vmatprep.subr.bf16.mxu0 0
      %7173 = vmatpush1.bf16.msra.mxu0 0
      %7174 = vmatprep.subr.bf16.mxu0 0
      %7175 = vmatpush1.bf16.msra.mxu0 0
      %7176 = vmatprep.subr.bf16.mxu0 0
      %7177 = vmatpush1.bf16.msra.mxu0 0
      %7178 = vmatprep.subr.bf16.mxu0 0
      %7179 = vmatpush1.bf16.msra.mxu0 0
      %7180 = vmatprep.subr.bf16.mxu0 0
      %7181 = vmatpush1.bf16.msra.mxu0 0
      %7182 = vmatprep.subr.bf16.mxu0 0
      %7183 = vmatpush1.bf16.msra.mxu0 0
      %7184 = vmatprep.subr.bf16.mxu0 0
      %7185 = vmatpush1.bf16.msra.mxu0 0
      %7186 = vmatprep.subr.bf16.mxu0 0
      %7187 = vmatpush1.bf16.msra.mxu0 0
      %7188 = vmatprep.subr.bf16.mxu0 0
      %7189 = vmatpush1.bf16.msra.mxu0 0
      %7190 = vmatprep.subr.bf16.mxu0 0
      %7191 = vmatpush1.bf16.msra.mxu0 0
      %7192 = vmatprep.subr.bf16.mxu0 0
      %7193 = vmatpush1.bf16.msra.mxu0 0
      %7194 = vmatprep.subr.bf16.mxu0 0
      %7195 = vmatpush1.bf16.msra.mxu0 0
      %7196 = vmatprep.subr.bf16.mxu0 0
      %7197 = vmatpush1.bf16.msra.mxu0 0
      %7198 = vmatprep.subr.bf16.mxu0 0
      %7199 = vmatpush1.bf16.msra.mxu0 0
      %7200 = vmatprep.mubr.bf16.mxu0 0
      %7201 = vmatmul.mubr.bf16.gmra.mrb[0].mxu0 %v7112
      %v7202 = vpop.f32.mrb[0].mxu0
      %v7203 = vadd.f32 0.0, %v7202
      %v7204 = vpop.f32.mrb[0].mxu0
      %v7205 = vpop.f32.mrb[0].mxu0
      %v7206 = vadd.f32 0.0, %v7205
      %v7207 = vpop.f32.mrb[0].mxu0
      %7208 = vmatprep.mubr.bf16.mxu0 0
      %7209 = vmatmul.mubr.bf16.gmra.mrb[0].mxu0 %v7115
      %v7210 = vpop.f32.mrb[0].mxu0
      %v7211 = vadd.f32 0.0, %v7210
      %v7212 = vpop.f32.mrb[0].mxu0
      %v7213 = vpop.f32.mrb[0].mxu0
      %v7214 = vadd.f32 0.0, %v7213
      %v7215 = vpop.f32.mrb[0].mxu0
      %7216 = vmatprep.mubr.bf16.mxu0 0
      %7217 = vmatmul.mubr.bf16.gmra.mrb[0].mxu0 %v7118
      %v7218 = vpop.f32.mrb[0].mxu0
      %v7219 = vadd.f32 0.0, %v7218
      %v7220 = vpop.f32.mrb[0].mxu0
      %v7221 = vpop.f32.mrb[0].mxu0
      %v7222 = vadd.f32 0.0, %v7221
      %v7223 = vpop.f32.mrb[0].mxu0
      %7224 = vmatprep.mubr.bf16.mxu0 0
      %7225 = vmatmul.mubr.bf16.gmra.mrb[0].mxu0 %v7121
      %v7226 = vpop.f32.mrb[0].mxu0
      %v7227 = vadd.f32 0.0, %v7226
      %v7228 = vpop.f32.mrb[0].mxu0
      %v7229 = vpop.f32.mrb[0].mxu0
      %v7230 = vadd.f32 0.0, %v7229
      %v7231 = vpop.f32.mrb[0].mxu0
      %7232 = vmatprep.mubr.bf16.mxu0 0
      %7233 = vmatmul.mubr.bf16.gmra.mrb[0].mxu0 %v7124
      %v7234 = vpop.f32.mrb[0].mxu0
      %v7235 = vadd.f32 0.0, %v7234
      %v7236 = vpop.f32.mrb[0].mxu0
      %v7237 = vpop.f32.mrb[0].mxu0
      %v7238 = vadd.f32 0.0, %v7237
      %v7239 = vpop.f32.mrb[0].mxu0
      %7240 = vmatprep.mubr.bf16.mxu0 0
      %7241 = vmatmul.mubr.bf16.gmra.mrb[0].mxu0 %v7127
      %v7242 = vpop.f32.mrb[0].mxu0
      %v7243 = vadd.f32 0.0, %v7242
      %v7244 = vpop.f32.mrb[0].mxu0
      %v7245 = vpop.f32.mrb[0].mxu0
      %v7246 = vadd.f32 0.0, %v7245
      %v7247 = vpop.f32.mrb[0].mxu0
      %7248 = vmatprep.mubr.bf16.mxu0 0
      %7249 = vmatmul.mubr.bf16.gmra.mrb[0].mxu0 %v7130
      %v7250 = vpop.f32.mrb[0].mxu0
      %v7251 = vadd.f32 0.0, %v7250
      %v7252 = vpop.f32.mrb[0].mxu0
      %v7253 = vpop.f32.mrb[0].mxu0
      %v7254 = vadd.f32 0.0, %v7253
      %v7255 = vpop.f32.mrb[0].mxu0
      %7256 = vmatprep.mubr.bf16.mxu0 0
      %7257 = vmatmul.mubr.bf16.gmra.mrb[0].mxu0 %v7133
      %v7258 = vpop.f32.mrb[0].mxu0
      %v7259 = vadd.f32 0.0, %v7258
      %v7260 = vpop.f32.mrb[0].mxu0
      %v7261 = vpop.f32.mrb[0].mxu0
      %v7262 = vadd.f32 0.0, %v7261
      %v7263 = vpop.f32.mrb[0].mxu0
      %7264 = vmatprep.mubr.bf16.mxu0 0
      %7265 = vmatmul.mubr.bf16.gmra.mrb[0].mxu0 %v7136
      %v7266 = vpop.f32.mrb[0].mxu0
      %v7267 = vadd.f32 0.0, %v7266
      %v7268 = vpop.f32.mrb[0].mxu0
      %v7269 = vpop.f32.mrb[0].mxu0
      %v7270 = vadd.f32 0.0, %v7269
      %v7271 = vpop.f32.mrb[0].mxu0
      %7272 = vmatprep.mubr.bf16.mxu0 0
      %7273 = vmatmul.mubr.bf16.gmra.mrb[0].mxu0 %v7139
      %v7274 = vpop.f32.mrb[0].mxu0
      %v7275 = vadd.f32 0.0, %v7274
      %v7276 = vpop.f32.mrb[0].mxu0
      %v7277 = vpop.f32.mrb[0].mxu0
      %v7278 = vadd.f32 0.0, %v7277
      %v7279 = vpop.f32.mrb[0].mxu0
      %7280 = vmatprep.mubr.bf16.mxu0 0
      %7281 = vmatmul.mubr.bf16.gmra.mrb[0].mxu0 %v7142
      %v7282 = vpop.f32.mrb[0].mxu0
      %v7283 = vadd.f32 0.0, %v7282
      %v7284 = vpop.f32.mrb[0].mxu0
      %v7285 = vpop.f32.mrb[0].mxu0
      %v7286 = vadd.f32 0.0, %v7285
      %v7287 = vpop.f32.mrb[0].mxu0
      %7288 = vmatprep.mubr.bf16.mxu0 0
      %7289 = vmatmul.mubr.bf16.gmra.mrb[0].mxu0 %v7145
      %v7290 = vpop.f32.mrb[0].mxu0
      %v7291 = vadd.f32 0.0, %v7290
      %v7292 = vpop.f32.mrb[0].mxu0
      %v7293 = vpop.f32.mrb[0].mxu0
      %v7294 = vadd.f32 0.0, %v7293
      %v7295 = vpop.f32.mrb[0].mxu0
      %7296 = vmatprep.mubr.bf16.mxu0 0
      %7297 = vmatmul.mubr.bf16.gmra.mrb[0].mxu0 %v7148
      %v7298 = vpop.f32.mrb[0].mxu0
      %v7299 = vadd.f32 0.0, %v7298
      %v7300 = vpop.f32.mrb[0].mxu0
      %v7301 = vpop.f32.mrb[0].mxu0
      %v7302 = vadd.f32 0.0, %v7301
      %v7303 = vpop.f32.mrb[0].mxu0
      %7304 = vmatprep.mubr.bf16.mxu0 0
      %7305 = vmatmul.mubr.bf16.gmra.mrb[0].mxu0 %v7151
      %v7306 = vpop.f32.mrb[0].mxu0
      %v7307 = vadd.f32 0.0, %v7306
      %v7308 = vpop.f32.mrb[0].mxu0
      %v7309 = vpop.f32.mrb[0].mxu0
      %v7310 = vadd.f32 0.0, %v7309
      %v7311 = vpop.f32.mrb[0].mxu0
      %7312 = vmatprep.mubr.bf16.mxu0 0
      %7313 = vmatmul.mubr.bf16.gmra.mrb[0].mxu0 %v7154
      %v7314 = vpop.f32.mrb[0].mxu0
      %v7315 = vadd.f32 0.0, %v7314
      %v7316 = vpop.f32.mrb[0].mxu0
      %v7317 = vpop.f32.mrb[0].mxu0
      %v7318 = vadd.f32 0.0, %v7317
      %v7319 = vpop.f32.mrb[0].mxu0
      %7320 = vmatprep.mubr.bf16.mxu0 0
      %7321 = vmatmul.mubr.bf16.gmra.mrb[0].mxu0 %v7157
      %v7322 = vpop.f32.mrb[0].mxu0
      %v7323 = vadd.f32 0.0, %v7322
      %v7324 = vpop.f32.mrb[0].mxu0
      %v7325 = vpop.f32.mrb[0].mxu0
      %v7326 = vadd.f32 0.0, %v7325
      %v7327 = vpop.f32.mrb[0].mxu0
      %7328 = vmatprep.mubr.bf16.mxu0 0
      %7329 = vmatmul.mubr.bf16.gmra.mrb[0].mxu0 %v7160
      %v7330 = vpop.f32.mrb[0].mxu0
      %v7331 = vadd.f32 0.0, %v7330
      %v7332 = vpop.f32.mrb[0].mxu0
      %v7333 = vpop.f32.mrb[0].mxu0
      %v7334 = vadd.f32 0.0, %v7333
      %v7335 = vpop.f32.mrb[0].mxu0
      %7336 = vmatprep.mubr.bf16.mxu0 0
      %7337 = vmatmul.mubr.bf16.gmra.mrb[0].mxu0 %v7163
      %v7338 = vpop.f32.mrb[0].mxu0
      %v7339 = vadd.f32 0.0, %v7338
      %v7340 = vpop.f32.mrb[0].mxu0
      %v7341 = vpop.f32.mrb[0].mxu0
      %v7342 = vadd.f32 0.0, %v7341
      %v7343 = vpop.f32.mrb[0].mxu0
      %7344 = vdwg.mxu0
      %v7345 = vadd.f32 %v7015, %v7203
      %v7346 = vadd.f32 %v7016, %v7206
      %v7347 = vadd.f32 %v7017, %v7211
      %v7348 = vadd.f32 %v7018, %v7214
      %v7349 = vadd.f32 %v7019, %v7219
      %v7350 = vadd.f32 %v7020, %v7222
      %v7351 = vadd.f32 %v7021, %v7227
      %v7352 = vadd.f32 %v7022, %v7230
      %v7353 = vadd.f32 %v7023, %v7235
      %v7354 = vadd.f32 %v7024, %v7238
      %v7355 = vadd.f32 %v7025, %v7243
      %v7356 = vadd.f32 %v7026, %v7246
      %v7357 = vadd.f32 %v7027, %v7251
      %v7358 = vadd.f32 %v7028, %v7254
      %v7359 = vadd.f32 %v7029, %v7259
      %v7360 = vadd.f32 %v7030, %v7262
      %v7361 = vadd.f32 %v7031, %v7267
      %v7362 = vadd.f32 %v7032, %v7270
      %v7363 = vadd.f32 %v7033, %v7275
      %v7364 = vadd.f32 %v7034, %v7278
      %v7365 = vadd.f32 %v7035, %v7283
      %v7366 = vadd.f32 %v7036, %v7286
      %v7367 = vadd.f32 %v7037, %v7291
      %v7368 = vadd.f32 %v7038, %v7294
      %v7369 = vadd.f32 %v7039, %v7299
      %v7370 = vadd.f32 %v7040, %v7302
      %v7371 = vadd.f32 %v7041, %v7307
      %v7372 = vadd.f32 %v7042, %v7310
      %v7373 = vadd.f32 %v7043, %v7315
      %v7374 = vadd.f32 %v7044, %v7318
      %v7375 = vadd.f32 %v7045, %v7323
      %v7376 = vadd.f32 %v7046, %v7326
      %v7377 = vadd.f32 %v7047, %v7331
      %v7378 = vadd.f32 %v7048, %v7334
      %v7379 = vadd.f32 %v7049, %v7339
      %v7380 = vadd.f32 %v7050, %v7342
      %v7381 = vld [vmem:[#allocation2 + $0xa0] sm:$0x3f]
      %s7382 = scalar_lea.vmem %s5, 32
      %v7383 = vld [vmem:[%s7382] sm:$0xf]
      %vm7384 = vsmask.f32 2304
      %v7386 = vshrl.u32 %v7051, 16
      %v7388 = vrot.slane %v7386, 5
      %v7389 = vshll.u32 %v7051, 16
      %v7391 = vrot.slane %v7389, 6
      %v7392 = vor.u32 %v7388, %v7391
      %v7393 = vrot.slane %v6620, 5
      %v7394 = vrot.slane %v6623, 6
      %v7395 = vor.u32 %v7393, %v7394
      %v7396 = vsel %vm7384, %v7392, %v7395
      %v7397 = vrot.slane %v6629, 5
      %v7398 = vrot.slane %v6632, 6
      %v7399 = vor.u32 %v7397, %v7398
      %v7400 = vsel %vm7384, %v7395, %v7399
      %v7401 = vrot.slane %v6638, 5
      %v7402 = vrot.slane %v6641, 6
      %v7403 = vor.u32 %v7401, %v7402
      %v7404 = vsel %vm7384, %v7399, %v7403
      %v7405 = vrot.slane %v6647, 5
      %v7406 = vrot.slane %v6650, 6
      %v7407 = vor.u32 %v7405, %v7406
      %v7408 = vsel %vm7384, %v7403, %v7407
      %v7409 = vrot.slane %v6656, 5
      %v7410 = vrot.slane %v6659, 6
      %v7411 = vor.u32 %v7409, %v7410
      %v7412 = vsel %vm7384, %v7407, %v7411
      %v7413 = vrot.slane %v6665, 5
      %v7414 = vrot.slane %v6668, 6
      %v7415 = vor.u32 %v7413, %v7414
      %v7416 = vsel %vm7384, %v7411, %v7415
      %v7417 = vrot.slane %v6674, 5
      %v7418 = vrot.slane %v6677, 6
      %v7419 = vor.u32 %v7417, %v7418
      %v7420 = vsel %vm7384, %v7415, %v7419
      %v7421 = vrot.slane %v6683, 5
      %v7422 = vrot.slane %v6686, 6
      %v7423 = vor.u32 %v7421, %v7422
      %v7424 = vsel %vm7384, %v7419, %v7423
      %v7425 = vrot.slane %v6692, 5
      %v7426 = vrot.slane %v6695, 6
      %v7427 = vor.u32 %v7425, %v7426
      %v7428 = vsel %vm7384, %v7423, %v7427
      %v7429 = vrot.slane %v6701, 5
      %v7430 = vrot.slane %v6704, 6
      %v7431 = vor.u32 %v7429, %v7430
      %v7432 = vsel %vm7384, %v7427, %v7431
      %v7433 = vrot.slane %v6710, 5
      %v7434 = vrot.slane %v6713, 6
      %v7435 = vor.u32 %v7433, %v7434
      %v7436 = vsel %vm7384, %v7431, %v7435
      %v7437 = vrot.slane %v6719, 5
      %v7438 = vrot.slane %v6722, 6
      %v7439 = vor.u32 %v7437, %v7438
      %v7440 = vsel %vm7384, %v7435, %v7439
      %v7441 = vrot.slane %v6728, 5
      %v7442 = vrot.slane %v6731, 6
      %v7443 = vor.u32 %v7441, %v7442
      %v7444 = vsel %vm7384, %v7439, %v7443
      %v7445 = vrot.slane %v6737, 5
      %v7446 = vrot.slane %v6740, 6
      %v7447 = vor.u32 %v7445, %v7446
      %v7448 = vsel %vm7384, %v7443, %v7447
      %v7449 = vrot.slane %v6746, 5
      %v7450 = vrot.slane %v6749, 6
      %v7451 = vor.u32 %v7449, %v7450
      %v7452 = vsel %vm7384, %v7447, %v7451
      %v7453 = vrot.slane %v6755, 5
      %v7454 = vrot.slane %v6758, 6
      %v7455 = vor.u32 %v7453, %v7454
      %v7456 = vsel %vm7384, %v7451, %v7455
      %v7457 = vrot.slane %v6764, 5
      %v7458 = vrot.slane %v6767, 6
      %v7459 = vor.u32 %v7457, %v7458
      %v7460 = vsel %vm7384, %v7455, %v7459
      %v7462 = vshrl.u32 %v7381, 16
      %v7464 = vrot.slane %v7462, 5
      %v7465 = vshll.u32 %v7381, 16
      %v7467 = vrot.slane %v7465, 6
      %v7468 = vor.u32 %v7464, %v7467
      %v7469 = vsel %vm7384, %v7459, %v7468
      %v7471 = vsel %vm4246, %v7396, 0
      %v7474 = vsel %vm4246, %v7400, 0
      %v7477 = vsel %vm4246, %v7404, 0
      %v7480 = vsel %vm4246, %v7408, 0
      %v7483 = vsel %vm4246, %v7412, 0
      %v7486 = vsel %vm4246, %v7416, 0
      %v7489 = vsel %vm4246, %v7420, 0
      %v7492 = vsel %vm4246, %v7424, 0
      %v7495 = vsel %vm4246, %v7428, 0
      %v7498 = vsel %vm4246, %v7432, 0
      %v7501 = vsel %vm4246, %v7436, 0
      %v7504 = vsel %vm4246, %v7440, 0
      %v7507 = vsel %vm4246, %v7444, 0
      %v7510 = vsel %vm4246, %v7448, 0
      %v7513 = vsel %vm4246, %v7452, 0
      %v7516 = vsel %vm4246, %v7456, 0
      %v7519 = vsel %vm4246, %v7460, 0
      %v7522 = vsel %vm4246, %v7469, 0
      %v7525 = vsel %vm4497, %v7383, 0
      %7527 = vmatprep.subr.bf16.mxu0 0
      %7528 = vmatpush1.bf16.msra.mxu0 %v7525
      %7529 = vmatprep.subr.bf16.mxu0 0
      %7530 = vmatpush1.bf16.msra.mxu0 0
      %7531 = vmatprep.subr.bf16.mxu0 0
      %7532 = vmatpush1.bf16.msra.mxu0 0
      %7533 = vmatprep.subr.bf16.mxu0 0
      %7534 = vmatpush1.bf16.msra.mxu0 0
      %7535 = vmatprep.subr.bf16.mxu0 0
      %7536 = vmatpush1.bf16.msra.mxu0 0
      %7537 = vmatprep.subr.bf16.mxu0 0
      %7538 = vmatpush1.bf16.msra.mxu0 0
      %7539 = vmatprep.subr.bf16.mxu0 0
      %7540 = vmatpush1.bf16.msra.mxu0 0
      %7541 = vmatprep.subr.bf16.mxu0 0
      %7542 = vmatpush1.bf16.msra.mxu0 0
      %7543 = vmatprep.subr.bf16.mxu0 0
      %7544 = vmatpush1.bf16.msra.mxu0 0
      %7545 = vmatprep.subr.bf16.mxu0 0
      %7546 = vmatpush1.bf16.msra.mxu0 0
      %7547 = vmatprep.subr.bf16.mxu0 0
      %7548 = vmatpush1.bf16.msra.mxu0 0
      %7549 = vmatprep.subr.bf16.mxu0 0
      %7550 = vmatpush1.bf16.msra.mxu0 0
      %7551 = vmatprep.subr.bf16.mxu0 0
      %7552 = vmatpush1.bf16.msra.mxu0 0
      %7553 = vmatprep.subr.bf16.mxu0 0
      %7554 = vmatpush1.bf16.msra.mxu0 0
      %7555 = vmatprep.subr.bf16.mxu0 0
      %7556 = vmatpush1.bf16.msra.mxu0 0
      %7557 = vmatprep.subr.bf16.mxu0 0
      %7558 = vmatpush1.bf16.msra.mxu0 0
      %7559 = vmatprep.mubr.bf16.mxu0 0
      %7560 = vmatmul.mubr.bf16.gmra.mrb[0].mxu0 %v7471
      %v7561 = vpop.f32.mrb[0].mxu0
      %v7562 = vadd.f32 0.0, %v7561
      %v7563 = vpop.f32.mrb[0].mxu0
      %v7564 = vpop.f32.mrb[0].mxu0
      %v7565 = vadd.f32 0.0, %v7564
      %v7566 = vpop.f32.mrb[0].mxu0
      %7567 = vmatprep.mubr.bf16.mxu0 0
      %7568 = vmatmul.mubr.bf16.gmra.mrb[0].mxu0 %v7474
      %v7569 = vpop.f32.mrb[0].mxu0
      %v7570 = vadd.f32 0.0, %v7569
      %v7571 = vpop.f32.mrb[0].mxu0
      %v7572 = vpop.f32.mrb[0].mxu0
      %v7573 = vadd.f32 0.0, %v7572
      %v7574 = vpop.f32.mrb[0].mxu0
      %7575 = vmatprep.mubr.bf16.mxu0 0
      %7576 = vmatmul.mubr.bf16.gmra.mrb[0].mxu0 %v7477
      %v7577 = vpop.f32.mrb[0].mxu0
      %v7578 = vadd.f32 0.0, %v7577
      %v7579 = vpop.f32.mrb[0].mxu0
      %v7580 = vpop.f32.mrb[0].mxu0
      %v7581 = vadd.f32 0.0, %v7580
      %v7582 = vpop.f32.mrb[0].mxu0
      %7583 = vmatprep.mubr.bf16.mxu0 0
      %7584 = vmatmul.mubr.bf16.gmra.mrb[0].mxu0 %v7480
      %v7585 = vpop.f32.mrb[0].mxu0
      %v7586 = vadd.f32 0.0, %v7585
      %v7587 = vpop.f32.mrb[0].mxu0
      %v7588 = vpop.f32.mrb[0].mxu0
      %v7589 = vadd.f32 0.0, %v7588
      %v7590 = vpop.f32.mrb[0].mxu0
      %7591 = vmatprep.mubr.bf16.mxu0 0
      %7592 = vmatmul.mubr.bf16.gmra.mrb[0].mxu0 %v7483
      %v7593 = vpop.f32.mrb[0].mxu0
      %v7594 = vadd.f32 0.0, %v7593
      %v7595 = vpop.f32.mrb[0].mxu0
      %v7596 = vpop.f32.mrb[0].mxu0
      %v7597 = vadd.f32 0.0, %v7596
      %v7598 = vpop.f32.mrb[0].mxu0
      %7599 = vmatprep.mubr.bf16.mxu0 0
      %7600 = vmatmul.mubr.bf16.gmra.mrb[0].mxu0 %v7486
      %v7601 = vpop.f32.mrb[0].mxu0
      %v7602 = vadd.f32 0.0, %v7601
      %v7603 = vpop.f32.mrb[0].mxu0
      %v7604 = vpop.f32.mrb[0].mxu0
      %v7605 = vadd.f32 0.0, %v7604
      %v7606 = vpop.f32.mrb[0].mxu0
      %7607 = vmatprep.mubr.bf16.mxu0 0
      %7608 = vmatmul.mubr.bf16.gmra.mrb[0].mxu0 %v7489
      %v7609 = vpop.f32.mrb[0].mxu0
      %v7610 = vadd.f32 0.0, %v7609
      %v7611 = vpop.f32.mrb[0].mxu0
      %v7612 = vpop.f32.mrb[0].mxu0
      %v7613 = vadd.f32 0.0, %v7612
      %v7614 = vpop.f32.mrb[0].mxu0
      %7615 = vmatprep.mubr.bf16.mxu0 0
      %7616 = vmatmul.mubr.bf16.gmra.mrb[0].mxu0 %v7492
      %v7617 = vpop.f32.mrb[0].mxu0
      %v7618 = vadd.f32 0.0, %v7617
      %v7619 = vpop.f32.mrb[0].mxu0
      %v7620 = vpop.f32.mrb[0].mxu0
      %v7621 = vadd.f32 0.0, %v7620
      %v7622 = vpop.f32.mrb[0].mxu0
      %7623 = vmatprep.mubr.bf16.mxu0 0
      %7624 = vmatmul.mubr.bf16.gmra.mrb[0].mxu0 %v7495
      %v7625 = vpop.f32.mrb[0].mxu0
      %v7626 = vadd.f32 0.0, %v7625
      %v7627 = vpop.f32.mrb[0].mxu0
      %v7628 = vpop.f32.mrb[0].mxu0
      %v7629 = vadd.f32 0.0, %v7628
      %v7630 = vpop.f32.mrb[0].mxu0
      %7631 = vmatprep.mubr.bf16.mxu0 0
      %7632 = vmatmul.mubr.bf16.gmra.mrb[0].mxu0 %v7498
      %v7633 = vpop.f32.mrb[0].mxu0
      %v7634 = vadd.f32 0.0, %v7633
      %v7635 = vpop.f32.mrb[0].mxu0
      %v7636 = vpop.f32.mrb[0].mxu0
      %v7637 = vadd.f32 0.0, %v7636
      %v7638 = vpop.f32.mrb[0].mxu0
      %7639 = vmatprep.mubr.bf16.mxu0 0
      %7640 = vmatmul.mubr.bf16.gmra.mrb[0].mxu0 %v7501
      %v7641 = vpop.f32.mrb[0].mxu0
      %v7642 = vadd.f32 0.0, %v7641
      %v7643 = vpop.f32.mrb[0].mxu0
      %v7644 = vpop.f32.mrb[0].mxu0
      %v7645 = vadd.f32 0.0, %v7644
      %v7646 = vpop.f32.mrb[0].mxu0
      %7647 = vmatprep.mubr.bf16.mxu0 0
      %7648 = vmatmul.mubr.bf16.gmra.mrb[0].mxu0 %v7504
      %v7649 = vpop.f32.mrb[0].mxu0
      %v7650 = vadd.f32 0.0, %v7649
      %v7651 = vpop.f32.mrb[0].mxu0
      %v7652 = vpop.f32.mrb[0].mxu0
      %v7653 = vadd.f32 0.0, %v7652
      %v7654 = vpop.f32.mrb[0].mxu0
      %7655 = vmatprep.mubr.bf16.mxu0 0
      %7656 = vmatmul.mubr.bf16.gmra.mrb[0].mxu0 %v7507
      %v7657 = vpop.f32.mrb[0].mxu0
      %v7658 = vadd.f32 0.0, %v7657
      %v7659 = vpop.f32.mrb[0].mxu0
      %v7660 = vpop.f32.mrb[0].mxu0
      %v7661 = vadd.f32 0.0, %v7660
      %v7662 = vpop.f32.mrb[0].mxu0
      %7663 = vmatprep.mubr.bf16.mxu0 0
      %7664 = vmatmul.mubr.bf16.gmra.mrb[0].mxu0 %v7510
      %v7665 = vpop.f32.mrb[0].mxu0
      %v7666 = vadd.f32 0.0, %v7665
      %v7667 = vpop.f32.mrb[0].mxu0
      %v7668 = vpop.f32.mrb[0].mxu0
      %v7669 = vadd.f32 0.0, %v7668
      %v7670 = vpop.f32.mrb[0].mxu0
      %7671 = vmatprep.mubr.bf16.mxu0 0
      %7672 = vmatmul.mubr.bf16.gmra.mrb[0].mxu0 %v7513
      %v7673 = vpop.f32.mrb[0].mxu0
      %v7674 = vadd.f32 0.0, %v7673
      %v7675 = vpop.f32.mrb[0].mxu0
      %v7676 = vpop.f32.mrb[0].mxu0
      %v7677 = vadd.f32 0.0, %v7676
      %v7678 = vpop.f32.mrb[0].mxu0
      %7679 = vmatprep.mubr.bf16.mxu0 0
      %7680 = vmatmul.mubr.bf16.gmra.mrb[0].mxu0 %v7516
      %v7681 = vpop.f32.mrb[0].mxu0
      %v7682 = vadd.f32 0.0, %v7681
      %v7683 = vpop.f32.mrb[0].mxu0
      %v7684 = vpop.f32.mrb[0].mxu0
      %v7685 = vadd.f32 0.0, %v7684
      %v7686 = vpop.f32.mrb[0].mxu0
      %7687 = vmatprep.mubr.bf16.mxu0 0
      %7688 = vmatmul.mubr.bf16.gmra.mrb[0].mxu0 %v7519
      %v7689 = vpop.f32.mrb[0].mxu0
      %v7690 = vadd.f32 0.0, %v7689
      %v7691 = vpop.f32.mrb[0].mxu0
      %v7692 = vpop.f32.mrb[0].mxu0
      %v7693 = vadd.f32 0.0, %v7692
      %v7694 = vpop.f32.mrb[0].mxu0
      %7695 = vmatprep.mubr.bf16.mxu0 0
      %7696 = vmatmul.mubr.bf16.gmra.mrb[0].mxu0 %v7522
      %v7697 = vpop.f32.mrb[0].mxu0
      %v7698 = vadd.f32 0.0, %v7697
      %v7699 = vpop.f32.mrb[0].mxu0
      %v7700 = vpop.f32.mrb[0].mxu0
      %v7701 = vadd.f32 0.0, %v7700
      %v7702 = vpop.f32.mrb[0].mxu0
      %7703 = vdwg.mxu0
      %v7704 = vadd.f32 %v7345, %v7562
      %v7705 = vadd.f32 %v7346, %v7565
      %v7706 = vadd.f32 %v7347, %v7570
      %v7707 = vadd.f32 %v7348, %v7573
      %v7708 = vadd.f32 %v7349, %v7578
      %v7709 = vadd.f32 %v7350, %v7581
      %v7710 = vadd.f32 %v7351, %v7586
      %v7711 = vadd.f32 %v7352, %v7589
      %v7712 = vadd.f32 %v7353, %v7594
      %v7713 = vadd.f32 %v7354, %v7597
      %v7714 = vadd.f32 %v7355, %v7602
      %v7715 = vadd.f32 %v7356, %v7605
      %v7716 = vadd.f32 %v7357, %v7610
      %v7717 = vadd.f32 %v7358, %v7613
      %v7718 = vadd.f32 %v7359, %v7618
      %v7719 = vadd.f32 %v7360, %v7621
      %v7720 = vadd.f32 %v7361, %v7626
      %v7721 = vadd.f32 %v7362, %v7629
      %v7722 = vadd.f32 %v7363, %v7634
      %v7723 = vadd.f32 %v7364, %v7637
      %v7724 = vadd.f32 %v7365, %v7642
      %v7725 = vadd.f32 %v7366, %v7645
      %v7726 = vadd.f32 %v7367, %v7650
      %v7727 = vadd.f32 %v7368, %v7653
      %v7728 = vadd.f32 %v7369, %v7658
      %v7729 = vadd.f32 %v7370, %v7661
      %v7730 = vadd.f32 %v7371, %v7666
      %v7731 = vadd.f32 %v7372, %v7669
      %v7732 = vadd.f32 %v7373, %v7674
      %v7733 = vadd.f32 %v7374, %v7677
      %v7734 = vadd.f32 %v7375, %v7682
      %v7735 = vadd.f32 %v7376, %v7685
      %v7736 = vadd.f32 %v7377, %v7690
      %v7737 = vadd.f32 %v7378, %v7693
      %v7738 = vadd.f32 %v7379, %v7698
      %v7739 = vadd.f32 %v7380, %v7701
      %v7740 = vld [vmem:[%s6] sm:$0x1]
      %v7742 = vlaneseq
      %v7743 = vshrl.u32 %v7742, 7
      %v7744 = vsub.s32 0, %v7743
      %v7745 = vrot.slane %v7740, %v7744
      %v7747 = vmul.f32 %v7704, %v7745
      %v7748 = vmul.f32 %v7705, %v7745
      %v7749 = vmul.f32 %v7706, %v7745
      %v7750 = vmul.f32 %v7707, %v7745
      %v7751 = vmul.f32 %v7708, %v7745
      %v7752 = vmul.f32 %v7709, %v7745
      %v7753 = vmul.f32 %v7710, %v7745
      %v7754 = vmul.f32 %v7711, %v7745
      %v7755 = vmul.f32 %v7712, %v7745
      %v7756 = vmul.f32 %v7713, %v7745
      %v7757 = vmul.f32 %v7714, %v7745
      %v7758 = vmul.f32 %v7715, %v7745
      %v7759 = vmul.f32 %v7716, %v7745
      %v7760 = vmul.f32 %v7717, %v7745
      %v7761 = vmul.f32 %v7718, %v7745
      %v7762 = vmul.f32 %v7719, %v7745
      %v7763 = vmul.f32 %v7720, %v7745
      %v7764 = vmul.f32 %v7721, %v7745
      %v7765 = vmul.f32 %v7722, %v7745
      %v7766 = vmul.f32 %v7723, %v7745
      %v7767 = vmul.f32 %v7724, %v7745
      %v7768 = vmul.f32 %v7725, %v7745
      %v7769 = vmul.f32 %v7726, %v7745
      %v7770 = vmul.f32 %v7727, %v7745
      %v7771 = vmul.f32 %v7728, %v7745
      %v7772 = vmul.f32 %v7729, %v7745
      %v7773 = vmul.f32 %v7730, %v7745
      %v7774 = vmul.f32 %v7731, %v7745
      %v7775 = vmul.f32 %v7732, %v7745
      %v7776 = vmul.f32 %v7733, %v7745
      %v7777 = vmul.f32 %v7734, %v7745
      %v7778 = vmul.f32 %v7735, %v7745
      %v7779 = vmul.f32 %v7736, %v7745
      %v7780 = vmul.f32 %v7737, %v7745
      %v7781 = vmul.f32 %v7738, %v7745
      %v7782 = vmul.f32 %v7739, %v7745
      %v7783 = vld [vmem:[%s7] sm:$0x1]
      %v7785 = vlaneseq
      %v7786 = vshrl.u32 %v7785, 7
      %v7787 = vsub.s32 0, %v7786
      %v7788 = vrot.slane %v7783, %v7787
      %v7790 = vadd.f32 %v7747, %v7788
      %v7791 = vadd.f32 %v7748, %v7788
      %v7792 = vadd.f32 %v7749, %v7788
      %v7793 = vadd.f32 %v7750, %v7788
      %v7794 = vadd.f32 %v7751, %v7788
      %v7795 = vadd.f32 %v7752, %v7788
      %v7796 = vadd.f32 %v7753, %v7788
      %v7797 = vadd.f32 %v7754, %v7788
      %v7798 = vadd.f32 %v7755, %v7788
      %v7799 = vadd.f32 %v7756, %v7788
      %v7800 = vadd.f32 %v7757, %v7788
      %v7801 = vadd.f32 %v7758, %v7788
      %v7802 = vadd.f32 %v7759, %v7788
      %v7803 = vadd.f32 %v7760, %v7788
      %v7804 = vadd.f32 %v7761, %v7788
      %v7805 = vadd.f32 %v7762, %v7788
      %v7806 = vadd.f32 %v7763, %v7788
      %v7807 = vadd.f32 %v7764, %v7788
      %v7808 = vadd.f32 %v7765, %v7788
      %v7809 = vadd.f32 %v7766, %v7788
      %v7810 = vadd.f32 %v7767, %v7788
      %v7811 = vadd.f32 %v7768, %v7788
      %v7812 = vadd.f32 %v7769, %v7788
      %v7813 = vadd.f32 %v7770, %v7788
      %v7814 = vadd.f32 %v7771, %v7788
      %v7815 = vadd.f32 %v7772, %v7788
      %v7816 = vadd.f32 %v7773, %v7788
      %v7817 = vadd.f32 %v7774, %v7788
      %v7818 = vadd.f32 %v7775, %v7788
      %v7819 = vadd.f32 %v7776, %v7788
      %v7820 = vadd.f32 %v7777, %v7788
      %v7821 = vadd.f32 %v7778, %v7788
      %v7822 = vadd.f32 %v7779, %v7788
      %v7823 = vadd.f32 %v7780, %v7788
      %v7824 = vadd.f32 %v7781, %v7788
      %v7825 = vadd.f32 %v7782, %v7788
      %v7826 = vld [vmem:[%s381 + $0x8] sm:$0xe]
      %v7827 = vld [vmem:[%s381 + $0xc] sm:$0xf]
      %v7828 = vld [vmem:[%s381 + $0x10] sm:$0xf]
      %v7829 = vld [vmem:[%s381 + $0x14] sm:$0xf]
      %v7830 = vld [vmem:[%s381 + $0x18] sm:$0xf]
      %v7831 = vld [vmem:[%s381 + $0x1c] sm:$0xf]
      %v7832 = vld [vmem:[%s381 + $0x20] sm:$0xf]
      %v7833 = vld [vmem:[%s381 + $0x24] sm:$0xf]
      %v7834 = vld [vmem:[%s381 + $0x28] sm:$0xf]
      %v7835 = vld [vmem:[%s381 + $0x2c] sm:$0xf]
      %v7836 = vld [vmem:[%s381 + $0x30] sm:$0xf]
      %v7837 = vld [vmem:[%s381 + $0x34] sm:$0xf]
      %v7838 = vld [vmem:[%s381 + $0x38] sm:$0xf]
      %v7839 = vld [vmem:[%s381 + $0x3c] sm:$0xf]
      %v7840 = vld [vmem:[%s381 + $0x40] sm:$0xf]
      %v7841 = vld [vmem:[%s381 + $0x44] sm:$0xf]
      %v7842 = vld [vmem:[%s381 + $0x48] sm:$0xf]
      %v7843 = vld [vmem:[%s381 + $0x4c] sm:$0xf]
      %v7844 = vld [vmem:[%s381 + $0x50] sm:$0xf]
      %v7845 = vld [vmem:[%s381 + $0x54] sm:$0xf]
      %v7846 = vld [vmem:[%s381 + $0x58] sm:$0xf]
      %v7847 = vld [vmem:[%s381 + $0x5c] sm:$0xf]
      %v7848 = vld [vmem:[%s381 + $0x60] sm:$0xf]
      %v7849 = vld [vmem:[%s381 + $0x64] sm:$0xf]
      %v7850 = vld [vmem:[%s381 + $0x68] sm:$0xf]
      %v7851 = vld [vmem:[%s381 + $0x6c] sm:$0xf]
      %v7852 = vld [vmem:[%s381 + $0x70] sm:$0xf]
      %v7853 = vld [vmem:[%s381 + $0x74] sm:$0xf]
      %v7854 = vld [vmem:[%s381 + $0x78] sm:$0xf]
      %v7855 = vld [vmem:[%s381 + $0x7c] sm:$0xf]
      %v7856 = vld [vmem:[%s381 + $0x80] sm:$0xf]
      %v7857 = vld [vmem:[%s381 + $0x84] sm:$0xf]
      %v7858 = vld [vmem:[%s381 + $0x88] sm:$0xf]
      %v7859 = vld [vmem:[%s381 + $0x8c] sm:$0xf]
      %v7860 = vld [vmem:[%s381 + $0x90] sm:$0xf]
      %v7861 = vld [vmem:[%s381 + $0x94] sm:$0xf]
      %v7862 = vld [vmem:[%s381 + $0x98] sm:$0x3]
      %v7863 = vld [vmem:[%s8] sm:$0x3]
      %v7901 = vunpack.c.l.b16 %v7826
      %v7902 = vunpack.c.l.b16 %v7827
      %v7903 = vunpack.c.l.b16 %v7828
      %v7904 = vunpack.c.l.b16 %v7829
      %v7905 = vunpack.c.l.b16 %v7830
      %v7906 = vunpack.c.l.b16 %v7831
      %v7907 = vunpack.c.l.b16 %v7832
      %v7908 = vunpack.c.l.b16 %v7833
      %v7909 = vunpack.c.l.b16 %v7834
      %v7910 = vunpack.c.l.b16 %v7835
      %v7911 = vunpack.c.l.b16 %v7836
      %v7912 = vunpack.c.l.b16 %v7837
      %v7913 = vunpack.c.l.b16 %v7838
      %v7914 = vunpack.c.l.b16 %v7839
      %v7915 = vunpack.c.l.b16 %v7840
      %v7916 = vunpack.c.l.b16 %v7841
      %v7917 = vunpack.c.l.b16 %v7842
      %v7918 = vunpack.c.l.b16 %v7843
      %v7919 = vunpack.c.l.b16 %v7844
      %v7920 = vunpack.c.l.b16 %v7845
      %v7921 = vunpack.c.l.b16 %v7846
      %v7922 = vunpack.c.l.b16 %v7847
      %v7923 = vunpack.c.l.b16 %v7848
      %v7924 = vunpack.c.l.b16 %v7849
      %v7925 = vunpack.c.l.b16 %v7850
      %v7926 = vunpack.c.l.b16 %v7851
      %v7927 = vunpack.c.l.b16 %v7852
      %v7928 = vunpack.c.l.b16 %v7853
      %v7929 = vunpack.c.l.b16 %v7854
      %v7930 = vunpack.c.l.b16 %v7855
      %v7931 = vunpack.c.l.b16 %v7856
      %v7932 = vunpack.c.l.b16 %v7857
      %v7933 = vunpack.c.l.b16 %v7858
      %v7934 = vunpack.c.l.b16 %v7859
      %v7935 = vunpack.c.l.b16 %v7860
      %v7936 = vunpack.c.l.b16 %v7861
      %v7937 = vunpack.c.l.b16 %v7862
      %v7938 = vpack.c.b16 %v7902, %v7901
      %v7939 = vpack.c.b16 %v7904, %v7903
      %v7940 = vpack.c.b16 %v7906, %v7905
      %v7941 = vpack.c.b16 %v7908, %v7907
      %v7942 = vpack.c.b16 %v7910, %v7909
      %v7943 = vpack.c.b16 %v7912, %v7911
      %v7944 = vpack.c.b16 %v7914, %v7913
      %v7945 = vpack.c.b16 %v7916, %v7915
      %v7946 = vpack.c.b16 %v7918, %v7917
      %v7947 = vpack.c.b16 %v7920, %v7919
      %v7948 = vpack.c.b16 %v7922, %v7921
      %v7949 = vpack.c.b16 %v7924, %v7923
      %v7950 = vpack.c.b16 %v7926, %v7925
      %v7951 = vpack.c.b16 %v7928, %v7927
      %v7952 = vpack.c.b16 %v7930, %v7929
      %v7953 = vpack.c.b16 %v7932, %v7931
      %v7954 = vpack.c.b16 %v7934, %v7933
      %v7955 = vpack.c.b16 %v7936, %v7935
      %v7956 = vpack.c.b16 %v7937, %v7937
      %v7958 = vshrl.u32 %v7938, 16
      %v7960 = vrot.slane %v7958, 1
      %v7961 = vshll.u32 %v7938, 16
      %v7963 = vrot.slane %v7961, 2
      %v7964 = vor.u32 %v7960, %v7963
      %v7966 = vshrl.u32 %v7939, 16
      %v7968 = vrot.slane %v7966, 1
      %v7969 = vshll.u32 %v7939, 16
      %v7971 = vrot.slane %v7969, 2
      %v7972 = vor.u32 %v7968, %v7971
      %v7973 = vsel %vm1881, %v7964, %v7972
      %v7975 = vshrl.u32 %v7940, 16
      %v7977 = vrot.slane %v7975, 1
      %v7978 = vshll.u32 %v7940, 16
      %v7980 = vrot.slane %v7978, 2
      %v7981 = vor.u32 %v7977, %v7980
      %v7982 = vsel %vm1881, %v7972, %v7981
      %v7984 = vshrl.u32 %v7941, 16
      %v7986 = vrot.slane %v7984, 1
      %v7987 = vshll.u32 %v7941, 16
      %v7989 = vrot.slane %v7987, 2
      %v7990 = vor.u32 %v7986, %v7989
      %v7991 = vsel %vm1881, %v7981, %v7990
      %v7993 = vshrl.u32 %v7942, 16
      %v7995 = vrot.slane %v7993, 1
      %v7996 = vshll.u32 %v7942, 16
      %v7998 = vrot.slane %v7996, 2
      %v7999 = vor.u32 %v7995, %v7998
      %v8000 = vsel %vm1881, %v7990, %v7999
      %v8002 = vshrl.u32 %v7943, 16
      %v8004 = vrot.slane %v8002, 1
      %v8005 = vshll.u32 %v7943, 16
      %v8007 = vrot.slane %v8005, 2
      %v8008 = vor.u32 %v8004, %v8007
      %v8009 = vsel %vm1881, %v7999, %v8008
      %v8011 = vshrl.u32 %v7944, 16
      %v8013 = vrot.slane %v8011, 1
      %v8014 = vshll.u32 %v7944, 16
      %v8016 = vrot.slane %v8014, 2
      %v8017 = vor.u32 %v8013, %v8016
      %v8018 = vsel %vm1881, %v8008, %v8017
      %v8020 = vshrl.u32 %v7945, 16
      %v8022 = vrot.slane %v8020, 1
      %v8023 = vshll.u32 %v7945, 16
      %v8025 = vrot.slane %v8023, 2
      %v8026 = vor.u32 %v8022, %v8025
      %v8027 = vsel %vm1881, %v8017, %v8026
      %v8029 = vshrl.u32 %v7946, 16
      %v8031 = vrot.slane %v8029, 1
      %v8032 = vshll.u32 %v7946, 16
      %v8034 = vrot.slane %v8032, 2
      %v8035 = vor.u32 %v8031, %v8034
      %v8036 = vsel %vm1881, %v8026, %v8035
      %v8038 = vshrl.u32 %v7947, 16
      %v8040 = vrot.slane %v8038, 1
      %v8041 = vshll.u32 %v7947, 16
      %v8043 = vrot.slane %v8041, 2
      %v8044 = vor.u32 %v8040, %v8043
      %v8045 = vsel %vm1881, %v8035, %v8044
      %v8047 = vshrl.u32 %v7948, 16
      %v8049 = vrot.slane %v8047, 1
      %v8050 = vshll.u32 %v7948, 16
      %v8052 = vrot.slane %v8050, 2
      %v8053 = vor.u32 %v8049, %v8052
      %v8054 = vsel %vm1881, %v8044, %v8053
      %v8056 = vshrl.u32 %v7949, 16
      %v8058 = vrot.slane %v8056, 1
      %v8059 = vshll.u32 %v7949, 16
      %v8061 = vrot.slane %v8059, 2
      %v8062 = vor.u32 %v8058, %v8061
      %v8063 = vsel %vm1881, %v8053, %v8062
      %v8065 = vshrl.u32 %v7950, 16
      %v8067 = vrot.slane %v8065, 1
      %v8068 = vshll.u32 %v7950, 16
      %v8070 = vrot.slane %v8068, 2
      %v8071 = vor.u32 %v8067, %v8070
      %v8072 = vsel %vm1881, %v8062, %v8071
      %v8074 = vshrl.u32 %v7951, 16
      %v8076 = vrot.slane %v8074, 1
      %v8077 = vshll.u32 %v7951, 16
      %v8079 = vrot.slane %v8077, 2
      %v8080 = vor.u32 %v8076, %v8079
      %v8081 = vsel %vm1881, %v8071, %v8080
      %v8083 = vshrl.u32 %v7952, 16
      %v8085 = vrot.slane %v8083, 1
      %v8086 = vshll.u32 %v7952, 16
      %v8088 = vrot.slane %v8086, 2
      %v8089 = vor.u32 %v8085, %v8088
      %v8090 = vsel %vm1881, %v8080, %v8089
      %v8092 = vshrl.u32 %v7953, 16
      %v8094 = vrot.slane %v8092, 1
      %v8095 = vshll.u32 %v7953, 16
      %v8097 = vrot.slane %v8095, 2
      %v8098 = vor.u32 %v8094, %v8097
      %v8099 = vsel %vm1881, %v8089, %v8098
      %v8101 = vshrl.u32 %v7954, 16
      %v8103 = vrot.slane %v8101, 1
      %v8104 = vshll.u32 %v7954, 16
      %v8106 = vrot.slane %v8104, 2
      %v8107 = vor.u32 %v8103, %v8106
      %v8108 = vsel %vm1881, %v8098, %v8107
      %v8110 = vshrl.u32 %v7955, 16
      %v8112 = vrot.slane %v8110, 1
      %v8113 = vshll.u32 %v7955, 16
      %v8115 = vrot.slane %v8113, 2
      %v8116 = vor.u32 %v8112, %v8115
      %v8117 = vsel %vm1881, %v8107, %v8116
      %v8119 = vshrl.u32 %v7956, 16
      %v8121 = vrot.slane %v8119, 1
      %v8122 = vshll.u32 %v7956, 16
      %v8124 = vrot.slane %v8122, 2
      %v8125 = vor.u32 %v8121, %v8124
      %v8126 = vsel %vm1881, %v8116, %v8125
      %v8128 = vsel %vm670, %v7973, 0
      %v8131 = vsel %vm670, %v7982, 0
      %v8134 = vsel %vm670, %v7991, 0
      %v8137 = vsel %vm670, %v8000, 0
      %v8140 = vsel %vm670, %v8009, 0
      %v8143 = vsel %vm670, %v8018, 0
      %v8146 = vsel %vm670, %v8027, 0
      %v8149 = vsel %vm670, %v8036, 0
      %v8152 = vsel %vm670, %v8045, 0
      %v8155 = vsel %vm670, %v8054, 0
      %v8158 = vsel %vm670, %v8063, 0
      %v8161 = vsel %vm670, %v8072, 0
      %v8164 = vsel %vm670, %v8081, 0
      %v8167 = vsel %vm670, %v8090, 0
      %v8170 = vsel %vm670, %v8099, 0
      %v8173 = vsel %vm670, %v8108, 0
      %v8176 = vsel %vm670, %v8117, 0
      %v8179 = vsel %vm670, %v8126, 0
      %v8182 = vsel %vm725, %v7863, 0
      %8184 = vmatprep.subr.bf16.mxu0 0
      %8185 = vmatpush1.bf16.msra.mxu0 %v8182
      %8186 = vmatprep.subr.bf16.mxu0 0
      %8187 = vmatpush1.bf16.msra.mxu0 0
      %8188 = vmatprep.subr.bf16.mxu0 0
      %8189 = vmatpush1.bf16.msra.mxu0 0
      %8190 = vmatprep.subr.bf16.mxu0 0
      %8191 = vmatpush1.bf16.msra.mxu0 0
      %8192 = vmatprep.subr.bf16.mxu0 0
      %8193 = vmatpush1.bf16.msra.mxu0 0
      %8194 = vmatprep.subr.bf16.mxu0 0
      %8195 = vmatpush1.bf16.msra.mxu0 0
      %8196 = vmatprep.subr.bf16.mxu0 0
      %8197 = vmatpush1.bf16.msra.mxu0 0
      %8198 = vmatprep.subr.bf16.mxu0 0
      %8199 = vmatpush1.bf16.msra.mxu0 0
      %8200 = vmatprep.subr.bf16.mxu0 0
      %8201 = vmatpush1.bf16.msra.mxu0 0
      %8202 = vmatprep.subr.bf16.mxu0 0
      %8203 = vmatpush1.bf16.msra.mxu0 0
      %8204 = vmatprep.subr.bf16.mxu0 0
      %8205 = vmatpush1.bf16.msra.mxu0 0
      %8206 = vmatprep.subr.bf16.mxu0 0
      %8207 = vmatpush1.bf16.msra.mxu0 0
      %8208 = vmatprep.subr.bf16.mxu0 0
      %8209 = vmatpush1.bf16.msra.mxu0 0
      %8210 = vmatprep.subr.bf16.mxu0 0
      %8211 = vmatpush1.bf16.msra.mxu0 0
      %8212 = vmatprep.subr.bf16.mxu0 0
      %8213 = vmatpush1.bf16.msra.mxu0 0
      %8214 = vmatprep.subr.bf16.mxu0 0
      %8215 = vmatpush1.bf16.msra.mxu0 0
      %8216 = vmatprep.mubr.bf16.mxu0 0
      %8217 = vmatmul.mubr.bf16.gmra.mrb[0].mxu0 %v8128
      %v8218 = vpop.f32.mrb[0].mxu0
      %v8219 = vadd.f32 0.0, %v8218
      %v8220 = vpop.f32.mrb[0].mxu0
      %v8221 = vpop.f32.mrb[0].mxu0
      %v8222 = vadd.f32 0.0, %v8221
      %v8223 = vpop.f32.mrb[0].mxu0
      %8224 = vmatprep.mubr.bf16.mxu0 0
      %8225 = vmatmul.mubr.bf16.gmra.mrb[0].mxu0 %v8131
      %v8226 = vpop.f32.mrb[0].mxu0
      %v8227 = vadd.f32 0.0, %v8226
      %v8228 = vpop.f32.mrb[0].mxu0
      %v8229 = vpop.f32.mrb[0].mxu0
      %v8230 = vadd.f32 0.0, %v8229
      %v8231 = vpop.f32.mrb[0].mxu0
      %8232 = vmatprep.mubr.bf16.mxu0 0
      %8233 = vmatmul.mubr.bf16.gmra.mrb[0].mxu0 %v8134
      %v8234 = vpop.f32.mrb[0].mxu0
      %v8235 = vadd.f32 0.0, %v8234
      %v8236 = vpop.f32.mrb[0].mxu0
      %v8237 = vpop.f32.mrb[0].mxu0
      %v8238 = vadd.f32 0.0, %v8237
      %v8239 = vpop.f32.mrb[0].mxu0
      %8240 = vmatprep.mubr.bf16.mxu0 0
      %8241 = vmatmul.mubr.bf16.gmra.mrb[0].mxu0 %v8137
      %v8242 = vpop.f32.mrb[0].mxu0
      %v8243 = vadd.f32 0.0, %v8242
      %v8244 = vpop.f32.mrb[0].mxu0
      %v8245 = vpop.f32.mrb[0].mxu0
      %v8246 = vadd.f32 0.0, %v8245
      %v8247 = vpop.f32.mrb[0].mxu0
      %8248 = vmatprep.mubr.bf16.mxu0 0
      %8249 = vmatmul.mubr.bf16.gmra.mrb[0].mxu0 %v8140
      %v8250 = vpop.f32.mrb[0].mxu0
      %v8251 = vadd.f32 0.0, %v8250
      %v8252 = vpop.f32.mrb[0].mxu0
      %v8253 = vpop.f32.mrb[0].mxu0
      %v8254 = vadd.f32 0.0, %v8253
      %v8255 = vpop.f32.mrb[0].mxu0
      %8256 = vmatprep.mubr.bf16.mxu0 0
      %8257 = vmatmul.mubr.bf16.gmra.mrb[0].mxu0 %v8143
      %v8258 = vpop.f32.mrb[0].mxu0
      %v8259 = vadd.f32 0.0, %v8258
      %v8260 = vpop.f32.mrb[0].mxu0
      %v8261 = vpop.f32.mrb[0].mxu0
      %v8262 = vadd.f32 0.0, %v8261
      %v8263 = vpop.f32.mrb[0].mxu0
      %8264 = vmatprep.mubr.bf16.mxu0 0
      %8265 = vmatmul.mubr.bf16.gmra.mrb[0].mxu0 %v8146
      %v8266 = vpop.f32.mrb[0].mxu0
      %v8267 = vadd.f32 0.0, %v8266
      %v8268 = vpop.f32.mrb[0].mxu0
      %v8269 = vpop.f32.mrb[0].mxu0
      %v8270 = vadd.f32 0.0, %v8269
      %v8271 = vpop.f32.mrb[0].mxu0
      %8272 = vmatprep.mubr.bf16.mxu0 0
      %8273 = vmatmul.mubr.bf16.gmra.mrb[0].mxu0 %v8149
      %v8274 = vpop.f32.mrb[0].mxu0
      %v8275 = vadd.f32 0.0, %v8274
      %v8276 = vpop.f32.mrb[0].mxu0
      %v8277 = vpop.f32.mrb[0].mxu0
      %v8278 = vadd.f32 0.0, %v8277
      %v8279 = vpop.f32.mrb[0].mxu0
      %8280 = vmatprep.mubr.bf16.mxu0 0
      %8281 = vmatmul.mubr.bf16.gmra.mrb[0].mxu0 %v8152
      %v8282 = vpop.f32.mrb[0].mxu0
      %v8283 = vadd.f32 0.0, %v8282
      %v8284 = vpop.f32.mrb[0].mxu0
      %v8285 = vpop.f32.mrb[0].mxu0
      %v8286 = vadd.f32 0.0, %v8285
      %v8287 = vpop.f32.mrb[0].mxu0
      %8288 = vmatprep.mubr.bf16.mxu0 0
      %8289 = vmatmul.mubr.bf16.gmra.mrb[0].mxu0 %v8155
      %v8290 = vpop.f32.mrb[0].mxu0
      %v8291 = vadd.f32 0.0, %v8290
      %v8292 = vpop.f32.mrb[0].mxu0
      %v8293 = vpop.f32.mrb[0].mxu0
      %v8294 = vadd.f32 0.0, %v8293
      %v8295 = vpop.f32.mrb[0].mxu0
      %8296 = vmatprep.mubr.bf16.mxu0 0
      %8297 = vmatmul.mubr.bf16.gmra.mrb[0].mxu0 %v8158
      %v8298 = vpop.f32.mrb[0].mxu0
      %v8299 = vadd.f32 0.0, %v8298
      %v8300 = vpop.f32.mrb[0].mxu0
      %v8301 = vpop.f32.mrb[0].mxu0
      %v8302 = vadd.f32 0.0, %v8301
      %v8303 = vpop.f32.mrb[0].mxu0
      %8304 = vmatprep.mubr.bf16.mxu0 0
      %8305 = vmatmul.mubr.bf16.gmra.mrb[0].mxu0 %v8161
      %v8306 = vpop.f32.mrb[0].mxu0
      %v8307 = vadd.f32 0.0, %v8306
      %v8308 = vpop.f32.mrb[0].mxu0
      %v8309 = vpop.f32.mrb[0].mxu0
      %v8310 = vadd.f32 0.0, %v8309
      %v8311 = vpop.f32.mrb[0].mxu0
      %8312 = vmatprep.mubr.bf16.mxu0 0
      %8313 = vmatmul.mubr.bf16.gmra.mrb[0].mxu0 %v8164
      %v8314 = vpop.f32.mrb[0].mxu0
      %v8315 = vadd.f32 0.0, %v8314
      %v8316 = vpop.f32.mrb[0].mxu0
      %v8317 = vpop.f32.mrb[0].mxu0
      %v8318 = vadd.f32 0.0, %v8317
      %v8319 = vpop.f32.mrb[0].mxu0
      %8320 = vmatprep.mubr.bf16.mxu0 0
      %8321 = vmatmul.mubr.bf16.gmra.mrb[0].mxu0 %v8167
      %v8322 = vpop.f32.mrb[0].mxu0
      %v8323 = vadd.f32 0.0, %v8322
      %v8324 = vpop.f32.mrb[0].mxu0
      %v8325 = vpop.f32.mrb[0].mxu0
      %v8326 = vadd.f32 0.0, %v8325
      %v8327 = vpop.f32.mrb[0].mxu0
      %8328 = vmatprep.mubr.bf16.mxu0 0
      %8329 = vmatmul.mubr.bf16.gmra.mrb[0].mxu0 %v8170
      %v8330 = vpop.f32.mrb[0].mxu0
      %v8331 = vadd.f32 0.0, %v8330
      %v8332 = vpop.f32.mrb[0].mxu0
      %v8333 = vpop.f32.mrb[0].mxu0
      %v8334 = vadd.f32 0.0, %v8333
      %v8335 = vpop.f32.mrb[0].mxu0
      %8336 = vmatprep.mubr.bf16.mxu0 0
      %8337 = vmatmul.mubr.bf16.gmra.mrb[0].mxu0 %v8173
      %v8338 = vpop.f32.mrb[0].mxu0
      %v8339 = vadd.f32 0.0, %v8338
      %v8340 = vpop.f32.mrb[0].mxu0
      %v8341 = vpop.f32.mrb[0].mxu0
      %v8342 = vadd.f32 0.0, %v8341
      %v8343 = vpop.f32.mrb[0].mxu0
      %8344 = vmatprep.mubr.bf16.mxu0 0
      %8345 = vmatmul.mubr.bf16.gmra.mrb[0].mxu0 %v8176
      %v8346 = vpop.f32.mrb[0].mxu0
      %v8347 = vadd.f32 0.0, %v8346
      %v8348 = vpop.f32.mrb[0].mxu0
      %v8349 = vpop.f32.mrb[0].mxu0
      %v8350 = vadd.f32 0.0, %v8349
      %v8351 = vpop.f32.mrb[0].mxu0
      %8352 = vmatprep.mubr.bf16.mxu0 0
      %8353 = vmatmul.mubr.bf16.gmra.mrb[0].mxu0 %v8179
      %v8354 = vpop.f32.mrb[0].mxu0
      %v8355 = vadd.f32 0.0, %v8354
      %v8356 = vpop.f32.mrb[0].mxu0
      %v8357 = vpop.f32.mrb[0].mxu0
      %v8358 = vadd.f32 0.0, %v8357
      %v8359 = vpop.f32.mrb[0].mxu0
      %8360 = vdwg.mxu0
      %v8361 = vld [vmem:[%s9] sm:$0x1]
      %v8363 = vlaneseq
      %v8364 = vshrl.u32 %v8363, 7
      %v8365 = vsub.s32 0, %v8364
      %v8366 = vrot.slane %v8361, %v8365
      %v8368 = vmul.f32 %v8219, %v8366
      %v8369 = vmul.f32 %v8222, %v8366
      %v8370 = vmul.f32 %v8227, %v8366
      %v8371 = vmul.f32 %v8230, %v8366
      %v8372 = vmul.f32 %v8235, %v8366
      %v8373 = vmul.f32 %v8238, %v8366
      %v8374 = vmul.f32 %v8243, %v8366
      %v8375 = vmul.f32 %v8246, %v8366
      %v8376 = vmul.f32 %v8251, %v8366
      %v8377 = vmul.f32 %v8254, %v8366
      %v8378 = vmul.f32 %v8259, %v8366
      %v8379 = vmul.f32 %v8262, %v8366
      %v8380 = vmul.f32 %v8267, %v8366
      %v8381 = vmul.f32 %v8270, %v8366
      %v8382 = vmul.f32 %v8275, %v8366
      %v8383 = vmul.f32 %v8278, %v8366
      %v8384 = vmul.f32 %v8283, %v8366
      %v8385 = vmul.f32 %v8286, %v8366
      %v8386 = vmul.f32 %v8291, %v8366
      %v8387 = vmul.f32 %v8294, %v8366
      %v8388 = vmul.f32 %v8299, %v8366
      %v8389 = vmul.f32 %v8302, %v8366
      %v8390 = vmul.f32 %v8307, %v8366
      %v8391 = vmul.f32 %v8310, %v8366
      %v8392 = vmul.f32 %v8315, %v8366
      %v8393 = vmul.f32 %v8318, %v8366
      %v8394 = vmul.f32 %v8323, %v8366
      %v8395 = vmul.f32 %v8326, %v8366
      %v8396 = vmul.f32 %v8331, %v8366
      %v8397 = vmul.f32 %v8334, %v8366
      %v8398 = vmul.f32 %v8339, %v8366
      %v8399 = vmul.f32 %v8342, %v8366
      %v8400 = vmul.f32 %v8347, %v8366
      %v8401 = vmul.f32 %v8350, %v8366
      %v8402 = vmul.f32 %v8355, %v8366
      %v8403 = vmul.f32 %v8358, %v8366
      %v8404 = vld [vmem:[%s10] sm:$0x1]
      %v8406 = vlaneseq
      %v8407 = vshrl.u32 %v8406, 7
      %v8408 = vsub.s32 0, %v8407
      %v8409 = vrot.slane %v8404, %v8408
      %v8411 = vadd.f32 %v8368, %v8409
      %v8412 = vadd.f32 %v8369, %v8409
      %v8413 = vadd.f32 %v8370, %v8409
      %v8414 = vadd.f32 %v8371, %v8409
      %v8415 = vadd.f32 %v8372, %v8409
      %v8416 = vadd.f32 %v8373, %v8409
      %v8417 = vadd.f32 %v8374, %v8409
      %v8418 = vadd.f32 %v8375, %v8409
      %v8419 = vadd.f32 %v8376, %v8409
      %v8420 = vadd.f32 %v8377, %v8409
      %v8421 = vadd.f32 %v8378, %v8409
      %v8422 = vadd.f32 %v8379, %v8409
      %v8423 = vadd.f32 %v8380, %v8409
      %v8424 = vadd.f32 %v8381, %v8409
      %v8425 = vadd.f32 %v8382, %v8409
      %v8426 = vadd.f32 %v8383, %v8409
      %v8427 = vadd.f32 %v8384, %v8409
      %v8428 = vadd.f32 %v8385, %v8409
      %v8429 = vadd.f32 %v8386, %v8409
      %v8430 = vadd.f32 %v8387, %v8409
      %v8431 = vadd.f32 %v8388, %v8409
      %v8432 = vadd.f32 %v8389, %v8409
      %v8433 = vadd.f32 %v8390, %v8409
      %v8434 = vadd.f32 %v8391, %v8409
      %v8435 = vadd.f32 %v8392, %v8409
      %v8436 = vadd.f32 %v8393, %v8409
      %v8437 = vadd.f32 %v8394, %v8409
      %v8438 = vadd.f32 %v8395, %v8409
      %v8439 = vadd.f32 %v8396, %v8409
      %v8440 = vadd.f32 %v8397, %v8409
      %v8441 = vadd.f32 %v8398, %v8409
      %v8442 = vadd.f32 %v8399, %v8409
      %v8443 = vadd.f32 %v8400, %v8409
      %v8444 = vadd.f32 %v8401, %v8409
      %v8445 = vadd.f32 %v8402, %v8409
      %v8446 = vadd.f32 %v8403, %v8409
      %v8447 = vadd.f32 %v7790, %v8411
      %v8448 = vadd.f32 %v7791, %v8412
      %v8449 = vadd.f32 %v7792, %v8413
      %v8450 = vadd.f32 %v7793, %v8414
      %v8451 = vadd.f32 %v7794, %v8415
      %v8452 = vadd.f32 %v7795, %v8416
      %v8453 = vadd.f32 %v7796, %v8417
      %v8454 = vadd.f32 %v7797, %v8418
      %v8455 = vadd.f32 %v7798, %v8419
      %v8456 = vadd.f32 %v7799, %v8420
      %v8457 = vadd.f32 %v7800, %v8421
      %v8458 = vadd.f32 %v7801, %v8422
      %v8459 = vadd.f32 %v7802, %v8423
      %v8460 = vadd.f32 %v7803, %v8424
      %v8461 = vadd.f32 %v7804, %v8425
      %v8462 = vadd.f32 %v7805, %v8426
      %v8463 = vadd.f32 %v7806, %v8427
      %v8464 = vadd.f32 %v7807, %v8428
      %v8465 = vadd.f32 %v7808, %v8429
      %v8466 = vadd.f32 %v7809, %v8430
      %v8467 = vadd.f32 %v7810, %v8431
      %v8468 = vadd.f32 %v7811, %v8432
      %v8469 = vadd.f32 %v7812, %v8433
      %v8470 = vadd.f32 %v7813, %v8434
      %v8471 = vadd.f32 %v7814, %v8435
      %v8472 = vadd.f32 %v7815, %v8436
      %v8473 = vadd.f32 %v7816, %v8437
      %v8474 = vadd.f32 %v7817, %v8438
      %v8475 = vadd.f32 %v7818, %v8439
      %v8476 = vadd.f32 %v7819, %v8440
      %v8477 = vadd.f32 %v7820, %v8441
      %v8478 = vadd.f32 %v7821, %v8442
      %v8479 = vadd.f32 %v7822, %v8443
      %v8480 = vadd.f32 %v7823, %v8444
      %v8481 = vadd.f32 %v7824, %v8445
      %v8482 = vadd.f32 %v7825, %v8446
      %v8483 = vmax.f32 %v8447, 0.0
      %v8484 = vmax.f32 %v8448, 0.0
      %v8485 = vmax.f32 %v8449, 0.0
      %v8486 = vmax.f32 %v8450, 0.0
      %v8487 = vmax.f32 %v8451, 0.0
      %v8488 = vmax.f32 %v8452, 0.0
      %v8489 = vmax.f32 %v8453, 0.0
      %v8490 = vmax.f32 %v8454, 0.0
      %v8491 = vmax.f32 %v8455, 0.0
      %v8492 = vmax.f32 %v8456, 0.0
      %v8493 = vmax.f32 %v8457, 0.0
      %v8494 = vmax.f32 %v8458, 0.0
      %v8495 = vmax.f32 %v8459, 0.0
      %v8496 = vmax.f32 %v8460, 0.0
      %v8497 = vmax.f32 %v8461, 0.0
      %v8498 = vmax.f32 %v8462, 0.0
      %v8499 = vmax.f32 %v8463, 0.0
      %v8500 = vmax.f32 %v8464, 0.0
      %v8501 = vmax.f32 %v8465, 0.0
      %v8502 = vmax.f32 %v8466, 0.0
      %v8503 = vmax.f32 %v8467, 0.0
      %v8504 = vmax.f32 %v8468, 0.0
      %v8505 = vmax.f32 %v8469, 0.0
      %v8506 = vmax.f32 %v8470, 0.0
      %v8507 = vmax.f32 %v8471, 0.0
      %v8508 = vmax.f32 %v8472, 0.0
      %v8509 = vmax.f32 %v8473, 0.0
      %v8510 = vmax.f32 %v8474, 0.0
      %v8511 = vmax.f32 %v8475, 0.0
      %v8512 = vmax.f32 %v8476, 0.0
      %v8513 = vmax.f32 %v8477, 0.0
      %v8514 = vmax.f32 %v8478, 0.0
      %v8515 = vmax.f32 %v8479, 0.0
      %v8516 = vmax.f32 %v8480, 0.0
      %v8517 = vmax.f32 %v8481, 0.0
      %v8518 = vmax.f32 %v8482, 0.0
      %v8519 = vpack.c.bf16 %v8484, %v8483
      %v8520 = vpack.c.bf16 %v8486, %v8485
      %v8521 = vpack.c.bf16 %v8488, %v8487
      %v8522 = vpack.c.bf16 %v8490, %v8489
      %v8523 = vpack.c.bf16 %v8492, %v8491
      %v8524 = vpack.c.bf16 %v8494, %v8493
      %v8525 = vpack.c.bf16 %v8496, %v8495
      %v8526 = vpack.c.bf16 %v8498, %v8497
      %v8527 = vpack.c.bf16 %v8500, %v8499
      %v8528 = vpack.c.bf16 %v8502, %v8501
      %v8529 = vpack.c.bf16 %v8504, %v8503
      %v8530 = vpack.c.bf16 %v8506, %v8505
      %v8531 = vpack.c.bf16 %v8508, %v8507
      %v8532 = vpack.c.bf16 %v8510, %v8509
      %v8533 = vpack.c.bf16 %v8512, %v8511
      %v8534 = vpack.c.bf16 %v8514, %v8513
      %v8535 = vpack.c.bf16 %v8516, %v8515
      %v8536 = vpack.c.bf16 %v8518, %v8517
      %v8555 = vunpack.c.l.b16 %v8519
      %v8556 = vunpack.c.h.b16 %v8519
      %v8557 = vunpack.c.l.b16 %v8520
      %v8558 = vunpack.c.h.b16 %v8520
      %v8559 = vunpack.c.l.b16 %v8521
      %v8560 = vunpack.c.h.b16 %v8521
      %v8561 = vunpack.c.l.b16 %v8522
      %v8562 = vunpack.c.h.b16 %v8522
      %v8563 = vunpack.c.l.b16 %v8523
      %v8564 = vunpack.c.h.b16 %v8523
      %v8565 = vunpack.c.l.b16 %v8524
      %v8566 = vunpack.c.h.b16 %v8524
      %v8567 = vunpack.c.l.b16 %v8525
      %v8568 = vunpack.c.h.b16 %v8525
      %v8569 = vunpack.c.l.b16 %v8526
      %v8570 = vunpack.c.h.b16 %v8526
      %v8571 = vunpack.c.l.b16 %v8527
      %v8572 = vunpack.c.h.b16 %v8527
      %v8573 = vunpack.c.l.b16 %v8528
      %v8574 = vunpack.c.h.b16 %v8528
      %v8575 = vunpack.c.l.b16 %v8529
      %v8576 = vunpack.c.h.b16 %v8529
      %v8577 = vunpack.c.l.b16 %v8530
      %v8578 = vunpack.c.h.b16 %v8530
      %v8579 = vunpack.c.l.b16 %v8531
      %v8580 = vunpack.c.h.b16 %v8531
      %v8581 = vunpack.c.l.b16 %v8532
      %v8582 = vunpack.c.h.b16 %v8532
      %v8583 = vunpack.c.l.b16 %v8533
      %v8584 = vunpack.c.h.b16 %v8533
      %v8585 = vunpack.c.l.b16 %v8534
      %v8586 = vunpack.c.h.b16 %v8534
      %v8587 = vunpack.c.l.b16 %v8535
      %v8588 = vunpack.c.h.b16 %v8535
      %v8589 = vunpack.c.l.b16 %v8536
      %v8590 = vunpack.c.h.b16 %v8536
      %v8591 = vpack.c.b16 %v8555, %v8555
      %v8592 = vpack.c.b16 %v8556, %v8556
      %v8593 = vpack.c.b16 %v8557, %v8557
      %v8594 = vpack.c.b16 %v8558, %v8558
      %v8595 = vpack.c.b16 %v8559, %v8559
      %v8596 = vpack.c.b16 %v8560, %v8560
      %v8597 = vpack.c.b16 %v8561, %v8561
      %v8598 = vpack.c.b16 %v8562, %v8562
      %v8599 = vpack.c.b16 %v8563, %v8563
      %v8600 = vpack.c.b16 %v8564, %v8564
      %v8601 = vpack.c.b16 %v8565, %v8565
      %v8602 = vpack.c.b16 %v8566, %v8566
      %v8603 = vpack.c.b16 %v8567, %v8567
      %v8604 = vpack.c.b16 %v8568, %v8568
      %v8605 = vpack.c.b16 %v8569, %v8569
      %v8606 = vpack.c.b16 %v8570, %v8570
      %v8607 = vpack.c.b16 %v8571, %v8571
      %v8608 = vpack.c.b16 %v8572, %v8572
      %v8609 = vpack.c.b16 %v8573, %v8573
      %v8610 = vpack.c.b16 %v8574, %v8574
      %v8611 = vpack.c.b16 %v8575, %v8575
      %v8612 = vpack.c.b16 %v8576, %v8576
      %v8613 = vpack.c.b16 %v8577, %v8577
      %v8614 = vpack.c.b16 %v8578, %v8578
      %v8615 = vpack.c.b16 %v8579, %v8579
      %v8616 = vpack.c.b16 %v8580, %v8580
      %v8617 = vpack.c.b16 %v8581, %v8581
      %v8618 = vpack.c.b16 %v8582, %v8582
      %v8619 = vpack.c.b16 %v8583, %v8583
      %v8620 = vpack.c.b16 %v8584, %v8584
      %v8621 = vpack.c.b16 %v8585, %v8585
      %v8622 = vpack.c.b16 %v8586, %v8586
      %v8623 = vpack.c.b16 %v8587, %v8587
      %v8624 = vpack.c.b16 %v8588, %v8588
      %v8625 = vpack.c.b16 %v8589, %v8589
      %v8626 = vpack.c.b16 %v8590, %v8590
      %8663 = vst.msk [vmem:[%s386] sm:$0xf] %vm4248, %v8591
      %8664 = vst.msk [vmem:[%s386 + $0x4] sm:$0xf] %vm4248, %v8592
      %8665 = vst.msk [vmem:[%s386 + $0x8] sm:$0xf] %vm4248, %v8593
      %8666 = vst.msk [vmem:[%s386 + $0xc] sm:$0xf] %vm4248, %v8594
      %8667 = vst.msk [vmem:[%s386 + $0x10] sm:$0xf] %vm4248, %v8595
      %8668 = vst.msk [vmem:[%s386 + $0x14] sm:$0xf] %vm4248, %v8596
      %8669 = vst.msk [vmem:[%s386 + $0x18] sm:$0xf] %vm4248, %v8597
      %8670 = vst.msk [vmem:[%s386 + $0x1c] sm:$0xf] %vm4248, %v8598
      %8671 = vst.msk [vmem:[%s386 + $0x20] sm:$0xf] %vm4248, %v8599
      %8672 = vst.msk [vmem:[%s386 + $0x24] sm:$0xf] %vm4248, %v8600
      %8673 = vst.msk [vmem:[%s386 + $0x28] sm:$0xf] %vm4248, %v8601
      %8674 = vst.msk [vmem:[%s386 + $0x2c] sm:$0xf] %vm4248, %v8602
      %8675 = vst.msk [vmem:[%s386 + $0x30] sm:$0xf] %vm4248, %v8603
      %8676 = vst.msk [vmem:[%s386 + $0x34] sm:$0xf] %vm4248, %v8604
      %8677 = vst.msk [vmem:[%s386 + $0x38] sm:$0xf] %vm4248, %v8605
      %8678 = vst.msk [vmem:[%s386 + $0x3c] sm:$0xf] %vm4248, %v8606
      %8679 = vst.msk [vmem:[%s386 + $0x40] sm:$0xf] %vm4248, %v8607
      %8680 = vst.msk [vmem:[%s386 + $0x44] sm:$0xf] %vm4248, %v8608
      %8681 = vst.msk [vmem:[%s386 + $0x48] sm:$0xf] %vm4248, %v8609
      %8682 = vst.msk [vmem:[%s386 + $0x4c] sm:$0xf] %vm4248, %v8610
      %8683 = vst.msk [vmem:[%s386 + $0x50] sm:$0xf] %vm4248, %v8611
      %8684 = vst.msk [vmem:[%s386 + $0x54] sm:$0xf] %vm4248, %v8612
      %8685 = vst.msk [vmem:[%s386 + $0x58] sm:$0xf] %vm4248, %v8613
      %8686 = vst.msk [vmem:[%s386 + $0x5c] sm:$0xf] %vm4248, %v8614
      %8687 = vst.msk [vmem:[%s386 + $0x60] sm:$0xf] %vm4248, %v8615
      %8688 = vst.msk [vmem:[%s386 + $0x64] sm:$0xf] %vm4248, %v8616
      %8689 = vst.msk [vmem:[%s386 + $0x68] sm:$0xf] %vm4248, %v8617
      %8690 = vst.msk [vmem:[%s386 + $0x6c] sm:$0xf] %vm4248, %v8618
      %8691 = vst.msk [vmem:[%s386 + $0x70] sm:$0xf] %vm4248, %v8619
      %8692 = vst.msk [vmem:[%s386 + $0x74] sm:$0xf] %vm4248, %v8620
      %8693 = vst.msk [vmem:[%s386 + $0x78] sm:$0xf] %vm4248, %v8621
      %8694 = vst.msk [vmem:[%s386 + $0x7c] sm:$0xf] %vm4248, %v8622
      %8695 = vst.msk [vmem:[%s386 + $0x80] sm:$0xf] %vm4248, %v8623
      %8696 = vst.msk [vmem:[%s386 + $0x84] sm:$0xf] %vm4248, %v8624
      %8697 = vst.msk [vmem:[%s386 + $0x88] sm:$0xf] %vm4248, %v8625
      %8698 = vst.msk [vmem:[%s386 + $0x8c] sm:$0xf] %vm4248, %v8626
      %p8699 = scmp.lt.s32.totalorder %s22, 1
      %s8700 = scalar_select %p8699, %s22, 1
      %s8701 = smul.addr %s8700, 36
      %s8702 = smul.addr %s8701, 4
      %s8703 = scalar_lea.vmem %s11, %s8702
      // Predicated region
      $region65: #{basic_block_forward.1} parent=63 // pred_check
        %p8704 = pneg %p276
      $region66: #{basic_block_forward.1} parent=63 // pred_check_branch
        %8706 = sbr.rel (%p8704) target = $region68
      $region67: #{basic_block_forward.1} parent=63 // pred_region
        _
      $region68: #{basic_block_forward.1} parent=63 // pred_fallthru
        _
    $region64: #{basic_block_forward.1} parent=5 // pred_fallthru
      _
    %p8707 = scmp.le.s32.totalorder 2, %s17
    // Predicated region
    $region69: #{basic_block_forward.1} parent=5 // pred_check
      %p8708 = pneg %p8707
    $region70: #{basic_block_forward.1} parent=5 // pred_check_branch
      %8710 = sbr.rel (%p8708) target = $region72
    $region71: #{basic_block_forward.1} parent=5 // pred_region
      %s8711 = ssub.s32 %s17, 2
      // Predicated region
      $region73: #{basic_block_forward.1} parent=71 // pred_check
        %p8712 = pneg %p282
      $region74: #{basic_block_forward.1} parent=71 // pred_check_branch
        %8714 = sbr.rel (%p8712) target = $region76
      $region75: #{basic_block_forward.1} parent=71 // pred_region
        %p8715 = scmp.lt.s32.totalorder %s23, 1
        %s8716 = scalar_select %p8715, %s23, 1
        %s8717 = smul.addr %s8716, 36
        %s8718 = smul.addr %s8717, 4
        %s8719 = scalar_lea.vmem %s11, %s8718
      $region76: #{basic_block_forward.1} parent=71 // pred_fallthru
        _
    $region72: #{basic_block_forward.1} parent=5 // pred_fallthru
      _
  $region6: #{basic_block_forward.1} parent=0 // loop_footer
    %s21 = sadd.s32 1, %s17
  $region7: #{basic_block_forward.1} parent=0 // loop_footer_branch
    %16 = sbr.rel target = $region3
  $region8: #{basic_block_forward.1} parent=0 // loop_exit
    _

</llo_original>
